<compile_context>
chip_gen: v7x
topology: tpu7x:2x2x1
jax: 0.10.0
libtpu: 0.0.40
codegen_flags: <defaults>
</compile_context>

<pallas_src>
import numpy as np
import jax
import jax.numpy as jnp
from jax import lax
from jax.experimental import pallas as pl
from jax.experimental.pallas import tpu as pltpu


# ----------------------------------------------------------------------------
# In-kernel helper: 3x3, stride-1, pad-1 conv on a (Cin, H*W) activation.
# ----------------------------------------------------------------------------
def _conv3x3(x, w_ref, bias, xcol, *, width, cout):
    """x: (Cin, H*W) f32 (row-major spatial on lanes); w_ref: (9, Cout, Cin) bf16
    with tap index t = (dy+1)*3 + (dx+1); bias: (Cout, 1) f32; xcol: (1, H*W)
    int32 column coordinate per lane.  Returns (Cout, H*W) f32 pre-activation."""
    cin, hw = x.shape
    xb = x.astype(jnp.bfloat16)
    # Zero-pad W+1 lanes each side: vertically out-of-range taps read zeros.
    zpad = jnp.zeros((cin, width + 1), jnp.bfloat16)
    xp = jnp.concatenate([zpad, xb, zpad], axis=1)          # (Cin, H*W + 2W + 2)
    xc = jnp.broadcast_to(xcol, (cin, hw))                   # column coord, full shape
    acc = jnp.zeros((cout, hw), jnp.float32)
    for dy in (-1, 0, 1):
        for dx in (-1, 0, 1):
            t = (dy + 1) * 3 + (dx + 1)
            start = (width + 1) + dy * width + dx
            xs = xp[:, start:start + hw]                     # shifted input view
            if dx != 0:
                # mask lanes whose source column wrapped across an image row
                valid = jnp.logical_and(xc + dx >= 0, xc + dx < width)
                xs = jnp.where(valid, xs, jnp.zeros_like(xs))
            acc = acc + jnp.dot(w_ref[t], xs, preferred_element_type=jnp.float32)
    return acc + bias


# ----------------------------------------------------------------------------
# The fused kernel: one grid step == one sample, everything VMEM-resident.
# ----------------------------------------------------------------------------
def _gnet_kernel(zt_ref, w1r_ref, b1r_ref, u1_ref, u2_ref,
                 w1c_ref, b1c_ref, w2c_ref, b2c_ref, w3c_ref, b3c_ref,
                 xcol14_ref, xcol28_ref, out_ref):
    f32 = jnp.float32
    bf16 = jnp.bfloat16

    # ---- fc1 as a block-diagonal GEMM: lands directly in (32, 49) layout ----
    zt = zt_ref[...]                                  # (1, 32*zdim): z tiled 32x
    z32 = zt.shape[-1]
    zdim = z32 // 32
    cols = lax.broadcasted_iota(jnp.int32, (32, z32), 1)
    rows = lax.broadcasted_iota(jnp.int32, (32, z32), 0)
    lo = rows * zdim
    zb = jnp.where((cols >= lo) & (cols < lo + zdim),
                   jnp.broadcast_to(zt, (32, z32)), 0.0)      # block-diagonal z
    h = jnp.dot(zb.astype(bf16), w1r_ref[...],
                preferred_element_type=f32) + b1r_ref[...]     # (32, 49)
    h = jnp.maximum(h, 0.2 * h)                                # LeakyReLU(0.2)

    # ---- upsample 7->14 (0/1 matmul), conv1 + LeakyReLU ----
    x1 = jnp.dot(h.astype(bf16), u1_ref[...], preferred_element_type=f32)   # (32,196)
    c1 = _conv3x3(x1, w1c_ref, b1c_ref[...], xcol14_ref[...], width=14, cout=16)
    c1 = jnp.maximum(c1, 0.2 * c1)

    # ---- upsample 14->28, conv2 + LeakyReLU ----
    x2 = jnp.dot(c1.astype(bf16), u2_ref[...], preferred_element_type=f32)  # (16,784)
    c2 = _conv3x3(x2, w2c_ref, b2c_ref[...], xcol28_ref[...], width=28, cout=8)
    c2 = jnp.maximum(c2, 0.2 * c2)

    # ---- conv3 + sigmoid; lane-dense (1, 784) store ----
    c3 = _conv3x3(c2, w3c_ref, b3c_ref[...], xcol28_ref[...], width=28, cout=1)
    out_ref[...] = (1.0 / (1.0 + jnp.exp(-c3))).astype(out_ref.dtype)


# ----------------------------------------------------------------------------
# Wrapper
# ----------------------------------------------------------------------------
@jax.jit
def gnet_forward(z, kp):
    """z: (B, zdim) -> generated images (B, 1, 28, 28) (NCHW, sigmoid range)."""
    B, zdim = z.shape
    z32 = 32 * zdim
    # tile z 32x along features so the kernel can build the block-diagonal GEMM
    zt = jnp.tile(z.astype(jnp.float32), (1, 32)).reshape(B, 1, z32)
    out = pl.pallas_call(
        _gnet_kernel,
        out_shape=jax.ShapeDtypeStruct((B, 1, 784), jnp.float32),
        grid=(B,),
        in_specs=[
            pl.BlockSpec((None, 1, z32), lambda b: (b, 0, 0)),   # z (tiled)
            pl.BlockSpec((z32, 49), lambda b: (0, 0)),           # fc1 weight (permuted)
            pl.BlockSpec((32, 49), lambda b: (0, 0)),            # fc1 bias
            pl.BlockSpec((49, 196), lambda b: (0, 0)),           # upsample 7->14
            pl.BlockSpec((196, 784), lambda b: (0, 0)),          # upsample 14->28
            pl.BlockSpec((9, 16, 32), lambda b: (0, 0, 0)),      # conv1 w (per tap)
            pl.BlockSpec((16, 1), lambda b: (0, 0)),             # conv1 b
            pl.BlockSpec((9, 8, 16), lambda b: (0, 0, 0)),       # conv2 w
            pl.BlockSpec((8, 1), lambda b: (0, 0)),              # conv2 b
            pl.BlockSpec((9, 1, 8), lambda b: (0, 0, 0)),        # conv3 w
            pl.BlockSpec((1, 1), lambda b: (0, 0)),              # conv3 b
            pl.BlockSpec((1, 196), lambda b: (0, 0)),            # column coords 14x14
            pl.BlockSpec((1, 784), lambda b: (0, 0)),            # column coords 28x28
        ],
        out_specs=pl.BlockSpec((None, 1, 784), lambda b: (b, 0, 0)),
        compiler_params=pltpu.CompilerParams(
            dimension_semantics=("parallel",),
            vmem_limit_bytes=32 * 1024 * 1024),
    )(zt, kp["w1r"], kp["b1r"], kp["u1"], kp["u2"],
      kp["w1c"], kp["b1c"], kp["w2c"], kp["b2c"], kp["w3c"], kp["b3c"],
      kp["xcol14"], kp["xcol28"])
    return out.reshape(B, 1, 28, 28)


# ----------------------------------------------------------------------------
# Parameters: PyTorch layouts + conversion to the kernel's layouts
# ----------------------------------------------------------------------------
def init_params(zdim, key):
    """Synthetic params in native PyTorch layouts (Linear: (out,in); Conv: OIHW)."""
    def uni(k, shape, fan_in):
        bound = 1.0 / np.sqrt(float(fan_in))
        return jax.random.uniform(k, shape, jnp.float32, -bound, bound)
    ks = jax.random.split(key, 8)
    return {
        "fc1_w": uni(ks[0], (1568, zdim), zdim),
        "fc1_b": uni(ks[1], (1568,), zdim),
        "conv1_w": uni(ks[2], (16, 32, 3, 3), 32 * 9),
        "conv1_b": uni(ks[3], (16,), 32 * 9),
        "conv2_w": uni(ks[4], (8, 16, 3, 3), 16 * 9),
        "conv2_b": uni(ks[5], (8,), 16 * 9),
        "conv3_w": uni(ks[6], (1, 8, 3, 3), 8 * 9),
        "conv3_b": uni(ks[7], (1,), 8 * 9),
    }


def _upsample_matrix(h, w):
    """0/1 matrix U (h*w, 4*h*w): X(C, h*w) @ U == nearest-neighbour 2x upsample."""
    m = np.zeros((h * w, 2 * h * 2 * w), np.float32)
    for yu in range(2 * h):
        for xu in range(2 * w):
            m[(yu // 2) * w + (xu // 2), yu * 2 * w + xu] = 1.0
    return m


def prepare_params(p, zdim, mxu_dtype=jnp.bfloat16):
    """Convert PyTorch-layout params into the fused kernel's layouts (bf16 MXU)."""
    # fc1: h = z @ W.T + b then view(-1, 32, 7, 7).  Row c*zdim+j of w1r is
    # W[c*49+p, j], so (block-diag z) @ w1r lands directly as the (32, 49) map.
    w1r = p["fc1_w"].reshape(32, 49, zdim).transpose(0, 2, 1).reshape(32 * zdim, 49)
    # Conv weights: PyTorch OIHW -> (9, Cout, Cin) with tap t = ky*3 + kx.
    conv_taps = lambda w: w.transpose(2, 3, 0, 1).reshape(9, w.shape[0], w.shape[1])
    return {
        "w1r": w1r.astype(mxu_dtype),
        "b1r": p["fc1_b"].reshape(32, 49).astype(jnp.float32),
        "u1": jnp.asarray(_upsample_matrix(7, 7), mxu_dtype),
        "u2": jnp.asarray(_upsample_matrix(14, 14), mxu_dtype),
        "w1c": conv_taps(p["conv1_w"]).astype(mxu_dtype),
        "b1c": p["conv1_b"].reshape(16, 1).astype(jnp.float32),
        "w2c": conv_taps(p["conv2_w"]).astype(mxu_dtype),
        "b2c": p["conv2_b"].reshape(8, 1).astype(jnp.float32),
        "w3c": conv_taps(p["conv3_w"]).astype(mxu_dtype),
        "b3c": p["conv3_b"].reshape(1, 1).astype(jnp.float32),
        "xcol14": jnp.asarray(np.tile(np.arange(14, dtype=np.int32), 14)[None, :]),
        "xcol28": jnp.asarray(np.tile(np.arange(28, dtype=np.int32), 28)[None, :]),
    }


# ----------------------------------------------------------------------------
# Pure-JAX f32 reference (PyTorch semantics) for correctness checking
# ----------------------------------------------------------------------------
def gnet_reference(z, p):
    B = z.shape[0]
    leaky = lambda x: jnp.where(x > 0, x, 0.2 * x)
    up = lambda x: jnp.repeat(jnp.repeat(x, 2, axis=2), 2, axis=3)

    def conv(x, w, b):
        y = lax.conv_general_dilated(x, w, (1, 1), ((1, 1), (1, 1)),
                                     dimension_numbers=("NCHW", "OIHW", "NCHW"))
        return y + b.reshape(1, -1, 1, 1)

    h = leaky(z @ p["fc1_w"].T + p["fc1_b"])
    x = h.reshape(B, 32, 7, 7)
    x = leaky(conv(up(x), p["conv1_w"], p["conv1_b"]))
    x = leaky(conv(up(x), p["conv2_w"], p["conv2_b"]))
    return jax.nn.sigmoid(conv(x, p["conv3_w"], p["conv3_b"]))


if __name__ == "__main__":
    key = jax.random.PRNGKey(0)
    k_param, k_z = jax.random.split(key)

    zdim = 32
    batch = 2
    torch_params = init_params(zdim, k_param)
    kernel_params = prepare_params(torch_params, zdim)
    z = jax.random.normal(k_z, (batch, zdim), jnp.float32)

    out = jax.block_until_ready(gnet_forward(z, kernel_params))

    assert out.shape == (batch, 1, 28, 28), out.shape
    assert bool(jnp.all(jnp.isfinite(out)))
    assert bool(jnp.all((out >= 0.0) & (out <= 1.0)))

    # correctness vs. pure-JAX f32 reference (kernel uses bf16 MXU operands)
    ref = jax.block_until_ready(gnet_reference(z, torch_params))
    max_err = float(jnp.max(jnp.abs(out - ref)))
    assert max_err < 5e-2, f"max abs err vs reference: {max_err}"

    print("KERNEL_OK")
</pallas_src>

<mosaic_0001>
module attributes {stable_mosaic.version = 11 : i64} {
  func.func @_gnet_kernel(%arg0: i32, %arg1: memref<1x1x1024xf32, #tpu.memory_space<vmem>>, %arg2: memref<1024x49xbf16, #tpu.memory_space<vmem>>, %arg3: memref<32x49xf32, #tpu.memory_space<vmem>>, %arg4: memref<49x196xbf16, #tpu.memory_space<vmem>>, %arg5: memref<196x784xbf16, #tpu.memory_space<vmem>>, %arg6: memref<9x16x32xbf16, #tpu.memory_space<vmem>>, %arg7: memref<16x1xf32, #tpu.memory_space<vmem>>, %arg8: memref<9x8x16xbf16, #tpu.memory_space<vmem>>, %arg9: memref<8x1xf32, #tpu.memory_space<vmem>>, %arg10: memref<9x1x8xbf16, #tpu.memory_space<vmem>>, %arg11: memref<1x1xf32, #tpu.memory_space<vmem>>, %arg12: memref<1x196xi32, #tpu.memory_space<vmem>>, %arg13: memref<1x784xi32, #tpu.memory_space<vmem>>, %arg14: memref<1x1x784xf32, #tpu.memory_space<vmem>>) attributes {dimension_semantics = [#tpu.dimension_semantics<parallel>], iteration_bounds = array<i64: 2>, scalar_prefetch = 0 : i64, scratch_operands = 0 : i64, tpu.core_type = #tpu.core_type<tc>, window_params = [{transform_indices = @transform_0, window_bounds = array<i64: 1, 1, 1024>}, {pipeline_mode = #tpu.pipeline_mode<synchronous>, transform_indices = @transform_1, window_bounds = array<i64: 1024, 49>}, {pipeline_mode = #tpu.pipeline_mode<synchronous>, transform_indices = @transform_2, window_bounds = array<i64: 32, 49>}, {pipeline_mode = #tpu.pipeline_mode<synchronous>, transform_indices = @transform_3, window_bounds = array<i64: 49, 196>}, {pipeline_mode = #tpu.pipeline_mode<synchronous>, transform_indices = @transform_4, window_bounds = array<i64: 196, 784>}, {pipeline_mode = #tpu.pipeline_mode<synchronous>, transform_indices = @transform_5, window_bounds = array<i64: 9, 16, 32>}, {pipeline_mode = #tpu.pipeline_mode<synchronous>, transform_indices = @transform_6, window_bounds = array<i64: 16, 1>}, {pipeline_mode = #tpu.pipeline_mode<synchronous>, transform_indices = @transform_7, window_bounds = array<i64: 9, 8, 16>}, {pipeline_mode = #tpu.pipeline_mode<synchronous>, transform_indices = @transform_8, window_bounds = array<i64: 8, 1>}, {pipeline_mode = #tpu.pipeline_mode<synchronous>, transform_indices = @transform_9, window_bounds = array<i64: 9, 1, 8>}, {pipeline_mode = #tpu.pipeline_mode<synchronous>, transform_indices = @transform_10, window_bounds = array<i64: 1, 1>}, {pipeline_mode = #tpu.pipeline_mode<synchronous>, transform_indices = @transform_11, window_bounds = array<i64: 1, 196>}, {pipeline_mode = #tpu.pipeline_mode<synchronous>, transform_indices = @transform_12, window_bounds = array<i64: 1, 784>}, {transform_indices = @transform_13, window_bounds = array<i64: 1, 1, 784>}]} {
    %c0 = arith.constant 0 : index
    %c0_0 = arith.constant 0 : index
    %c0_1 = arith.constant 0 : index
    %0 = vector.load %arg1[%c0, %c0_0, %c0_1] : memref<1x1x1024xf32, #tpu.memory_space<vmem>>, vector<1x1x1024xf32>
    %1 = vector.shape_cast %0 : vector<1x1x1024xf32> to vector<1x1024xf32>
    %2 = tpu.iota {dimensions = array<i32: 1>} : vector<32x1024xi32>
    %3 = tpu.iota {dimensions = array<i32: 0>} : vector<32x1024xi32>
    %c32_i32 = arith.constant 32 : i32
    %4 = vector.broadcast %c32_i32 : i32 to vector<32x1024xi32>
    %5 = arith.muli %3, %4 : vector<32x1024xi32>
    %6 = arith.cmpi sge, %2, %5 : vector<32x1024xi32>
    %c32_i32_2 = arith.constant 32 : i32
    %7 = vector.broadcast %c32_i32_2 : i32 to vector<32x1024xi32>
    %8 = arith.addi %5, %7 : vector<32x1024xi32>
    %9 = arith.cmpi slt, %2, %8 : vector<32x1024xi32>
    %10 = arith.andi %6, %9 : vector<32x1024xi1>
    %11 = vector.shape_cast %1 : vector<1x1024xf32> to vector<1x1024xf32>
    %12 = vector.broadcast %11 : vector<1x1024xf32> to vector<32x1024xf32>
    %cst = arith.constant 0.000000e+00 : f32
    %13 = vector.broadcast %cst : f32 to vector<32x1024xf32>
    %14 = arith.select %10, %12, %13 : vector<32x1024xi1>, vector<32x1024xf32>
    %15 = arith.truncf %14 : vector<32x1024xf32> to vector<32x1024xbf16>
    %c0_3 = arith.constant 0 : index
    %c0_4 = arith.constant 0 : index
    %16 = vector.load %arg2[%c0_3, %c0_4] : memref<1024x49xbf16, #tpu.memory_space<vmem>>, vector<1024x49xbf16>
    %cst_5 = arith.constant dense<0.000000e+00> : vector<32x49xf32>
    %17 = tpu.matmul %15, %16, %cst_5 {dimension_numbers = #tpu.dot_dimension_numbers<[1], [0], [0], [1], [0, 0, 1, 1], [], []>} : vector<32x1024xbf16>, vector<1024x49xbf16>, vector<32x49xf32> -> vector<32x49xf32>
    %c0_6 = arith.constant 0 : index
    %c0_7 = arith.constant 0 : index
    %18 = vector.load %arg3[%c0_6, %c0_7] : memref<32x49xf32, #tpu.memory_space<vmem>>, vector<32x49xf32>
    %19 = arith.addf %17, %18 : vector<32x49xf32>
    %cst_8 = arith.constant 2.000000e-01 : f32
    %20 = vector.broadcast %cst_8 : f32 to vector<32x49xf32>
    %21 = arith.mulf %20, %19 : vector<32x49xf32>
    %22 = arith.maximumf %19, %21 : vector<32x49xf32>
    %23 = arith.truncf %22 : vector<32x49xf32> to vector<32x49xbf16>
    %c0_9 = arith.constant 0 : index
    %c0_10 = arith.constant 0 : index
    %24 = vector.load %arg4[%c0_9, %c0_10] : memref<49x196xbf16, #tpu.memory_space<vmem>>, vector<49x196xbf16>
    %cst_11 = arith.constant dense<0.000000e+00> : vector<32x196xf32>
    %25 = tpu.matmul %23, %24, %cst_11 {dimension_numbers = #tpu.dot_dimension_numbers<[1], [0], [0], [1], [0, 0, 1, 1], [], []>} : vector<32x49xbf16>, vector<49x196xbf16>, vector<32x196xf32> -> vector<32x196xf32>
    %c0_12 = arith.constant 0 : index
    %c0_13 = arith.constant 0 : index
    %26 = vector.load %arg7[%c0_12, %c0_13] : memref<16x1xf32, #tpu.memory_space<vmem>>, vector<16x1xf32>
    %c0_14 = arith.constant 0 : index
    %c0_15 = arith.constant 0 : index
    %27 = vector.load %arg12[%c0_14, %c0_15] : memref<1x196xi32, #tpu.memory_space<vmem>>, vector<1x196xi32>
    %28 = arith.truncf %25 : vector<32x196xf32> to vector<32x196xbf16>
    %cst_16 = arith.constant 0.000000e+00 : bf16
    %29 = vector.broadcast %cst_16 : bf16 to vector<32x15xbf16>
    %30 = tpu.concatenate %29, %28, %29 in 1 : vector<32x15xbf16>, vector<32x196xbf16>, vector<32x15xbf16> -> vector<32x226xbf16>
    %31 = vector.shape_cast %27 : vector<1x196xi32> to vector<1x196xi32>
    %32 = vector.broadcast %31 : vector<1x196xi32> to vector<32x196xi32>
    %cst_17 = arith.constant 0.000000e+00 : f32
    %33 = vector.broadcast %cst_17 : f32 to vector<16x196xf32>
    %34 = vector.extract_strided_slice %30 {offsets = [0, 0], sizes = [32, 196], strides = [1, 1]} : vector<32x226xbf16> to vector<32x196xbf16>
    %c-1_i32 = arith.constant -1 : i32
    %35 = vector.broadcast %c-1_i32 : i32 to vector<32x196xi32>
    %36 = arith.addi %32, %35 : vector<32x196xi32>
    %c0_i32 = arith.constant 0 : i32
    %37 = vector.broadcast %c0_i32 : i32 to vector<32x196xi32>
    %38 = arith.cmpi sge, %36, %37 : vector<32x196xi32>
    %c-1_i32_18 = arith.constant -1 : i32
    %39 = vector.broadcast %c-1_i32_18 : i32 to vector<32x196xi32>
    %40 = arith.addi %32, %39 : vector<32x196xi32>
    %c14_i32 = arith.constant 14 : i32
    %41 = vector.broadcast %c14_i32 : i32 to vector<32x196xi32>
    %42 = arith.cmpi slt, %40, %41 : vector<32x196xi32>
    %43 = arith.andi %38, %42 : vector<32x196xi1>
    %cst_19 = arith.constant 0.000000e+00 : bf16
    %44 = vector.broadcast %cst_19 : bf16 to vector<32x196xbf16>
    %45 = arith.select %43, %34, %44 : vector<32x196xi1>, vector<32x196xbf16>
    %c0_20 = arith.constant 0 : index
    %c0_21 = arith.constant 0 : index
    %c0_22 = arith.constant 0 : index
    %46 = vector.load %arg6[%c0_20, %c0_21, %c0_22] : memref<9x16x32xbf16, #tpu.memory_space<vmem>>, vector<1x16x32xbf16>
    %47 = vector.shape_cast %46 : vector<1x16x32xbf16> to vector<16x32xbf16>
    %cst_23 = arith.constant dense<0.000000e+00> : vector<16x196xf32>
    %48 = tpu.matmul %47, %45, %cst_23 {dimension_numbers = #tpu.dot_dimension_numbers<[1], [0], [0], [1], [0, 0, 1, 1], [], []>} : vector<16x32xbf16>, vector<32x196xbf16>, vector<16x196xf32> -> vector<16x196xf32>
    %49 = arith.addf %33, %48 : vector<16x196xf32>
    %50 = vector.extract_strided_slice %30 {offsets = [0, 1], sizes = [32, 196], strides = [1, 1]} : vector<32x226xbf16> to vector<32x196xbf16>
    %c1 = arith.constant 1 : index
    %c0_24 = arith.constant 0 : index
    %c0_25 = arith.constant 0 : index
    %51 = vector.load %arg6[%c1, %c0_24, %c0_25] : memref<9x16x32xbf16, #tpu.memory_space<vmem>>, vector<1x16x32xbf16>
    %52 = vector.shape_cast %51 : vector<1x16x32xbf16> to vector<16x32xbf16>
    %cst_26 = arith.constant dense<0.000000e+00> : vector<16x196xf32>
    %53 = tpu.matmul %52, %50, %cst_26 {dimension_numbers = #tpu.dot_dimension_numbers<[1], [0], [0], [1], [0, 0, 1, 1], [], []>} : vector<16x32xbf16>, vector<32x196xbf16>, vector<16x196xf32> -> vector<16x196xf32>
    %54 = arith.addf %49, %53 : vector<16x196xf32>
    %55 = vector.extract_strided_slice %30 {offsets = [0, 2], sizes = [32, 196], strides = [1, 1]} : vector<32x226xbf16> to vector<32x196xbf16>
    %c1_i32 = arith.constant 1 : i32
    %56 = vector.broadcast %c1_i32 : i32 to vector<32x196xi32>
    %57 = arith.addi %32, %56 : vector<32x196xi32>
    %c0_i32_27 = arith.constant 0 : i32
    %58 = vector.broadcast %c0_i32_27 : i32 to vector<32x196xi32>
    %59 = arith.cmpi sge, %57, %58 : vector<32x196xi32>
    %c1_i32_28 = arith.constant 1 : i32
    %60 = vector.broadcast %c1_i32_28 : i32 to vector<32x196xi32>
    %61 = arith.addi %32, %60 : vector<32x196xi32>
    %c14_i32_29 = arith.constant 14 : i32
    %62 = vector.broadcast %c14_i32_29 : i32 to vector<32x196xi32>
    %63 = arith.cmpi slt, %61, %62 : vector<32x196xi32>
    %64 = arith.andi %59, %63 : vector<32x196xi1>
    %cst_30 = arith.constant 0.000000e+00 : bf16
    %65 = vector.broadcast %cst_30 : bf16 to vector<32x196xbf16>
    %66 = arith.select %64, %55, %65 : vector<32x196xi1>, vector<32x196xbf16>
    %c2 = arith.constant 2 : index
    %c0_31 = arith.constant 0 : index
    %c0_32 = arith.constant 0 : index
    %67 = vector.load %arg6[%c2, %c0_31, %c0_32] : memref<9x16x32xbf16, #tpu.memory_space<vmem>>, vector<1x16x32xbf16>
    %68 = vector.shape_cast %67 : vector<1x16x32xbf16> to vector<16x32xbf16>
    %cst_33 = arith.constant dense<0.000000e+00> : vector<16x196xf32>
    %69 = tpu.matmul %68, %66, %cst_33 {dimension_numbers = #tpu.dot_dimension_numbers<[1], [0], [0], [1], [0, 0, 1, 1], [], []>} : vector<16x32xbf16>, vector<32x196xbf16>, vector<16x196xf32> -> vector<16x196xf32>
    %70 = arith.addf %54, %69 : vector<16x196xf32>
    %71 = vector.extract_strided_slice %30 {offsets = [0, 14], sizes = [32, 196], strides = [1, 1]} : vector<32x226xbf16> to vector<32x196xbf16>
    %c-1_i32_34 = arith.constant -1 : i32
    %72 = vector.broadcast %c-1_i32_34 : i32 to vector<32x196xi32>
    %73 = arith.addi %32, %72 : vector<32x196xi32>
    %c0_i32_35 = arith.constant 0 : i32
    %74 = vector.broadcast %c0_i32_35 : i32 to vector<32x196xi32>
    %75 = arith.cmpi sge, %73, %74 : vector<32x196xi32>
    %c-1_i32_36 = arith.constant -1 : i32
    %76 = vector.broadcast %c-1_i32_36 : i32 to vector<32x196xi32>
    %77 = arith.addi %32, %76 : vector<32x196xi32>
    %c14_i32_37 = arith.constant 14 : i32
    %78 = vector.broadcast %c14_i32_37 : i32 to vector<32x196xi32>
    %79 = arith.cmpi slt, %77, %78 : vector<32x196xi32>
    %80 = arith.andi %75, %79 : vector<32x196xi1>
    %cst_38 = arith.constant 0.000000e+00 : bf16
    %81 = vector.broadcast %cst_38 : bf16 to vector<32x196xbf16>
    %82 = arith.select %80, %71, %81 : vector<32x196xi1>, vector<32x196xbf16>
    %c3 = arith.constant 3 : index
    %c0_39 = arith.constant 0 : index
    %c0_40 = arith.constant 0 : index
    %83 = vector.load %arg6[%c3, %c0_39, %c0_40] : memref<9x16x32xbf16, #tpu.memory_space<vmem>>, vector<1x16x32xbf16>
    %84 = vector.shape_cast %83 : vector<1x16x32xbf16> to vector<16x32xbf16>
    %cst_41 = arith.constant dense<0.000000e+00> : vector<16x196xf32>
    %85 = tpu.matmul %84, %82, %cst_41 {dimension_numbers = #tpu.dot_dimension_numbers<[1], [0], [0], [1], [0, 0, 1, 1], [], []>} : vector<16x32xbf16>, vector<32x196xbf16>, vector<16x196xf32> -> vector<16x196xf32>
    %86 = arith.addf %70, %85 : vector<16x196xf32>
    %87 = vector.extract_strided_slice %30 {offsets = [0, 15], sizes = [32, 196], strides = [1, 1]} : vector<32x226xbf16> to vector<32x196xbf16>
    %c4 = arith.constant 4 : index
    %c0_42 = arith.constant 0 : index
    %c0_43 = arith.constant 0 : index
    %88 = vector.load %arg6[%c4, %c0_42, %c0_43] : memref<9x16x32xbf16, #tpu.memory_space<vmem>>, vector<1x16x32xbf16>
    %89 = vector.shape_cast %88 : vector<1x16x32xbf16> to vector<16x32xbf16>
    %cst_44 = arith.constant dense<0.000000e+00> : vector<16x196xf32>
    %90 = tpu.matmul %89, %87, %cst_44 {dimension_numbers = #tpu.dot_dimension_numbers<[1], [0], [0], [1], [0, 0, 1, 1], [], []>} : vector<16x32xbf16>, vector<32x196xbf16>, vector<16x196xf32> -> vector<16x196xf32>
    %91 = arith.addf %86, %90 : vector<16x196xf32>
    %92 = vector.extract_strided_slice %30 {offsets = [0, 16], sizes = [32, 196], strides = [1, 1]} : vector<32x226xbf16> to vector<32x196xbf16>
    %c1_i32_45 = arith.constant 1 : i32
    %93 = vector.broadcast %c1_i32_45 : i32 to vector<32x196xi32>
    %94 = arith.addi %32, %93 : vector<32x196xi32>
    %c0_i32_46 = arith.constant 0 : i32
    %95 = vector.broadcast %c0_i32_46 : i32 to vector<32x196xi32>
    %96 = arith.cmpi sge, %94, %95 : vector<32x196xi32>
    %c1_i32_47 = arith.constant 1 : i32
    %97 = vector.broadcast %c1_i32_47 : i32 to vector<32x196xi32>
    %98 = arith.addi %32, %97 : vector<32x196xi32>
    %c14_i32_48 = arith.constant 14 : i32
    %99 = vector.broadcast %c14_i32_48 : i32 to vector<32x196xi32>
    %100 = arith.cmpi slt, %98, %99 : vector<32x196xi32>
    %101 = arith.andi %96, %100 : vector<32x196xi1>
    %cst_49 = arith.constant 0.000000e+00 : bf16
    %102 = vector.broadcast %cst_49 : bf16 to vector<32x196xbf16>
    %103 = arith.select %101, %92, %102 : vector<32x196xi1>, vector<32x196xbf16>
    %c5 = arith.constant 5 : index
    %c0_50 = arith.constant 0 : index
    %c0_51 = arith.constant 0 : index
    %104 = vector.load %arg6[%c5, %c0_50, %c0_51] : memref<9x16x32xbf16, #tpu.memory_space<vmem>>, vector<1x16x32xbf16>
    %105 = vector.shape_cast %104 : vector<1x16x32xbf16> to vector<16x32xbf16>
    %cst_52 = arith.constant dense<0.000000e+00> : vector<16x196xf32>
    %106 = tpu.matmul %105, %103, %cst_52 {dimension_numbers = #tpu.dot_dimension_numbers<[1], [0], [0], [1], [0, 0, 1, 1], [], []>} : vector<16x32xbf16>, vector<32x196xbf16>, vector<16x196xf32> -> vector<16x196xf32>
    %107 = arith.addf %91, %106 : vector<16x196xf32>
    %108 = vector.extract_strided_slice %30 {offsets = [0, 28], sizes = [32, 196], strides = [1, 1]} : vector<32x226xbf16> to vector<32x196xbf16>
    %c-1_i32_53 = arith.constant -1 : i32
    %109 = vector.broadcast %c-1_i32_53 : i32 to vector<32x196xi32>
    %110 = arith.addi %32, %109 : vector<32x196xi32>
    %c0_i32_54 = arith.constant 0 : i32
    %111 = vector.broadcast %c0_i32_54 : i32 to vector<32x196xi32>
    %112 = arith.cmpi sge, %110, %111 : vector<32x196xi32>
    %c-1_i32_55 = arith.constant -1 : i32
    %113 = vector.broadcast %c-1_i32_55 : i32 to vector<32x196xi32>
    %114 = arith.addi %32, %113 : vector<32x196xi32>
    %c14_i32_56 = arith.constant 14 : i32
    %115 = vector.broadcast %c14_i32_56 : i32 to vector<32x196xi32>
    %116 = arith.cmpi slt, %114, %115 : vector<32x196xi32>
    %117 = arith.andi %112, %116 : vector<32x196xi1>
    %cst_57 = arith.constant 0.000000e+00 : bf16
    %118 = vector.broadcast %cst_57 : bf16 to vector<32x196xbf16>
    %119 = arith.select %117, %108, %118 : vector<32x196xi1>, vector<32x196xbf16>
    %c6 = arith.constant 6 : index
    %c0_58 = arith.constant 0 : index
    %c0_59 = arith.constant 0 : index
    %120 = vector.load %arg6[%c6, %c0_58, %c0_59] : memref<9x16x32xbf16, #tpu.memory_space<vmem>>, vector<1x16x32xbf16>
    %121 = vector.shape_cast %120 : vector<1x16x32xbf16> to vector<16x32xbf16>
    %cst_60 = arith.constant dense<0.000000e+00> : vector<16x196xf32>
    %122 = tpu.matmul %121, %119, %cst_60 {dimension_numbers = #tpu.dot_dimension_numbers<[1], [0], [0], [1], [0, 0, 1, 1], [], []>} : vector<16x32xbf16>, vector<32x196xbf16>, vector<16x196xf32> -> vector<16x196xf32>
    %123 = arith.addf %107, %122 : vector<16x196xf32>
    %124 = vector.extract_strided_slice %30 {offsets = [0, 29], sizes = [32, 196], strides = [1, 1]} : vector<32x226xbf16> to vector<32x196xbf16>
    %c7 = arith.constant 7 : index
    %c0_61 = arith.constant 0 : index
    %c0_62 = arith.constant 0 : index
    %125 = vector.load %arg6[%c7, %c0_61, %c0_62] : memref<9x16x32xbf16, #tpu.memory_space<vmem>>, vector<1x16x32xbf16>
    %126 = vector.shape_cast %125 : vector<1x16x32xbf16> to vector<16x32xbf16>
    %cst_63 = arith.constant dense<0.000000e+00> : vector<16x196xf32>
    %127 = tpu.matmul %126, %124, %cst_63 {dimension_numbers = #tpu.dot_dimension_numbers<[1], [0], [0], [1], [0, 0, 1, 1], [], []>} : vector<16x32xbf16>, vector<32x196xbf16>, vector<16x196xf32> -> vector<16x196xf32>
    %128 = arith.addf %123, %127 : vector<16x196xf32>
    %129 = vector.extract_strided_slice %30 {offsets = [0, 30], sizes = [32, 196], strides = [1, 1]} : vector<32x226xbf16> to vector<32x196xbf16>
    %c1_i32_64 = arith.constant 1 : i32
    %130 = vector.broadcast %c1_i32_64 : i32 to vector<32x196xi32>
    %131 = arith.addi %32, %130 : vector<32x196xi32>
    %c0_i32_65 = arith.constant 0 : i32
    %132 = vector.broadcast %c0_i32_65 : i32 to vector<32x196xi32>
    %133 = arith.cmpi sge, %131, %132 : vector<32x196xi32>
    %c1_i32_66 = arith.constant 1 : i32
    %134 = vector.broadcast %c1_i32_66 : i32 to vector<32x196xi32>
    %135 = arith.addi %32, %134 : vector<32x196xi32>
    %c14_i32_67 = arith.constant 14 : i32
    %136 = vector.broadcast %c14_i32_67 : i32 to vector<32x196xi32>
    %137 = arith.cmpi slt, %135, %136 : vector<32x196xi32>
    %138 = arith.andi %133, %137 : vector<32x196xi1>
    %cst_68 = arith.constant 0.000000e+00 : bf16
    %139 = vector.broadcast %cst_68 : bf16 to vector<32x196xbf16>
    %140 = arith.select %138, %129, %139 : vector<32x196xi1>, vector<32x196xbf16>
    %c8 = arith.constant 8 : index
    %c0_69 = arith.constant 0 : index
    %c0_70 = arith.constant 0 : index
    %141 = vector.load %arg6[%c8, %c0_69, %c0_70] : memref<9x16x32xbf16, #tpu.memory_space<vmem>>, vector<1x16x32xbf16>
    %142 = vector.shape_cast %141 : vector<1x16x32xbf16> to vector<16x32xbf16>
    %cst_71 = arith.constant dense<0.000000e+00> : vector<16x196xf32>
    %143 = tpu.matmul %142, %140, %cst_71 {dimension_numbers = #tpu.dot_dimension_numbers<[1], [0], [0], [1], [0, 0, 1, 1], [], []>} : vector<16x32xbf16>, vector<32x196xbf16>, vector<16x196xf32> -> vector<16x196xf32>
    %144 = arith.addf %128, %143 : vector<16x196xf32>
    %145 = vector.broadcast %26 : vector<16x1xf32> to vector<16x196xf32>
    %146 = arith.addf %144, %145 : vector<16x196xf32>
    %cst_72 = arith.constant 2.000000e-01 : f32
    %147 = vector.broadcast %cst_72 : f32 to vector<16x196xf32>
    %148 = arith.mulf %147, %146 : vector<16x196xf32>
    %149 = arith.maximumf %146, %148 : vector<16x196xf32>
    %150 = arith.truncf %149 : vector<16x196xf32> to vector<16x196xbf16>
    %c0_73 = arith.constant 0 : index
    %c0_74 = arith.constant 0 : index
    %151 = vector.load %arg5[%c0_73, %c0_74] : memref<196x784xbf16, #tpu.memory_space<vmem>>, vector<196x784xbf16>
    %cst_75 = arith.constant dense<0.000000e+00> : vector<16x784xf32>
    %152 = tpu.matmul %150, %151, %cst_75 {dimension_numbers = #tpu.dot_dimension_numbers<[1], [0], [0], [1], [0, 0, 1, 1], [], []>} : vector<16x196xbf16>, vector<196x784xbf16>, vector<16x784xf32> -> vector<16x784xf32>
    %c0_76 = arith.constant 0 : index
    %c0_77 = arith.constant 0 : index
    %153 = vector.load %arg9[%c0_76, %c0_77] : memref<8x1xf32, #tpu.memory_space<vmem>>, vector<8x1xf32>
    %c0_78 = arith.constant 0 : index
    %c0_79 = arith.constant 0 : index
    %154 = vector.load %arg13[%c0_78, %c0_79] : memref<1x784xi32, #tpu.memory_space<vmem>>, vector<1x784xi32>
    %155 = arith.truncf %152 : vector<16x784xf32> to vector<16x784xbf16>
    %cst_80 = arith.constant 0.000000e+00 : bf16
    %156 = vector.broadcast %cst_80 : bf16 to vector<16x29xbf16>
    %157 = tpu.concatenate %156, %155, %156 in 1 : vector<16x29xbf16>, vector<16x784xbf16>, vector<16x29xbf16> -> vector<16x842xbf16>
    %158 = vector.shape_cast %154 : vector<1x784xi32> to vector<1x784xi32>
    %159 = vector.broadcast %158 : vector<1x784xi32> to vector<16x784xi32>
    %cst_81 = arith.constant 0.000000e+00 : f32
    %160 = vector.broadcast %cst_81 : f32 to vector<8x784xf32>
    %161 = vector.extract_strided_slice %157 {offsets = [0, 0], sizes = [16, 784], strides = [1, 1]} : vector<16x842xbf16> to vector<16x784xbf16>
    %c-1_i32_82 = arith.constant -1 : i32
    %162 = vector.broadcast %c-1_i32_82 : i32 to vector<16x784xi32>
    %163 = arith.addi %159, %162 : vector<16x784xi32>
    %c0_i32_83 = arith.constant 0 : i32
    %164 = vector.broadcast %c0_i32_83 : i32 to vector<16x784xi32>
    %165 = arith.cmpi sge, %163, %164 : vector<16x784xi32>
    %c-1_i32_84 = arith.constant -1 : i32
    %166 = vector.broadcast %c-1_i32_84 : i32 to vector<16x784xi32>
    %167 = arith.addi %159, %166 : vector<16x784xi32>
    %c28_i32 = arith.constant 28 : i32
    %168 = vector.broadcast %c28_i32 : i32 to vector<16x784xi32>
    %169 = arith.cmpi slt, %167, %168 : vector<16x784xi32>
    %170 = arith.andi %165, %169 : vector<16x784xi1>
    %cst_85 = arith.constant 0.000000e+00 : bf16
    %171 = vector.broadcast %cst_85 : bf16 to vector<16x784xbf16>
    %172 = arith.select %170, %161, %171 : vector<16x784xi1>, vector<16x784xbf16>
    %c0_86 = arith.constant 0 : index
    %c0_87 = arith.constant 0 : index
    %c0_88 = arith.constant 0 : index
    %173 = vector.load %arg8[%c0_86, %c0_87, %c0_88] : memref<9x8x16xbf16, #tpu.memory_space<vmem>>, vector<1x8x16xbf16>
    %174 = vector.shape_cast %173 : vector<1x8x16xbf16> to vector<8x16xbf16>
    %cst_89 = arith.constant dense<0.000000e+00> : vector<8x784xf32>
    %175 = tpu.matmul %174, %172, %cst_89 {dimension_numbers = #tpu.dot_dimension_numbers<[1], [0], [0], [1], [0, 0, 1, 1], [], []>} : vector<8x16xbf16>, vector<16x784xbf16>, vector<8x784xf32> -> vector<8x784xf32>
    %176 = arith.addf %160, %175 : vector<8x784xf32>
    %177 = vector.extract_strided_slice %157 {offsets = [0, 1], sizes = [16, 784], strides = [1, 1]} : vector<16x842xbf16> to vector<16x784xbf16>
    %c1_90 = arith.constant 1 : index
    %c0_91 = arith.constant 0 : index
    %c0_92 = arith.constant 0 : index
    %178 = vector.load %arg8[%c1_90, %c0_91, %c0_92] : memref<9x8x16xbf16, #tpu.memory_space<vmem>>, vector<1x8x16xbf16>
    %179 = vector.shape_cast %178 : vector<1x8x16xbf16> to vector<8x16xbf16>
    %cst_93 = arith.constant dense<0.000000e+00> : vector<8x784xf32>
    %180 = tpu.matmul %179, %177, %cst_93 {dimension_numbers = #tpu.dot_dimension_numbers<[1], [0], [0], [1], [0, 0, 1, 1], [], []>} : vector<8x16xbf16>, vector<16x784xbf16>, vector<8x784xf32> -> vector<8x784xf32>
    %181 = arith.addf %176, %180 : vector<8x784xf32>
    %182 = vector.extract_strided_slice %157 {offsets = [0, 2], sizes = [16, 784], strides = [1, 1]} : vector<16x842xbf16> to vector<16x784xbf16>
    %c1_i32_94 = arith.constant 1 : i32
    %183 = vector.broadcast %c1_i32_94 : i32 to vector<16x784xi32>
    %184 = arith.addi %159, %183 : vector<16x784xi32>
    %c0_i32_95 = arith.constant 0 : i32
    %185 = vector.broadcast %c0_i32_95 : i32 to vector<16x784xi32>
    %186 = arith.cmpi sge, %184, %185 : vector<16x784xi32>
    %c1_i32_96 = arith.constant 1 : i32
    %187 = vector.broadcast %c1_i32_96 : i32 to vector<16x784xi32>
    %188 = arith.addi %159, %187 : vector<16x784xi32>
    %c28_i32_97 = arith.constant 28 : i32
    %189 = vector.broadcast %c28_i32_97 : i32 to vector<16x784xi32>
    %190 = arith.cmpi slt, %188, %189 : vector<16x784xi32>
    %191 = arith.andi %186, %190 : vector<16x784xi1>
    %cst_98 = arith.constant 0.000000e+00 : bf16
    %192 = vector.broadcast %cst_98 : bf16 to vector<16x784xbf16>
    %193 = arith.select %191, %182, %192 : vector<16x784xi1>, vector<16x784xbf16>
    %c2_99 = arith.constant 2 : index
    %c0_100 = arith.constant 0 : index
    %c0_101 = arith.constant 0 : index
    %194 = vector.load %arg8[%c2_99, %c0_100, %c0_101] : memref<9x8x16xbf16, #tpu.memory_space<vmem>>, vector<1x8x16xbf16>
    %195 = vector.shape_cast %194 : vector<1x8x16xbf16> to vector<8x16xbf16>
    %cst_102 = arith.constant dense<0.000000e+00> : vector<8x784xf32>
    %196 = tpu.matmul %195, %193, %cst_102 {dimension_numbers = #tpu.dot_dimension_numbers<[1], [0], [0], [1], [0, 0, 1, 1], [], []>} : vector<8x16xbf16>, vector<16x784xbf16>, vector<8x784xf32> -> vector<8x784xf32>
    %197 = arith.addf %181, %196 : vector<8x784xf32>
    %198 = vector.extract_strided_slice %157 {offsets = [0, 28], sizes = [16, 784], strides = [1, 1]} : vector<16x842xbf16> to vector<16x784xbf16>
    %c-1_i32_103 = arith.constant -1 : i32
    %199 = vector.broadcast %c-1_i32_103 : i32 to vector<16x784xi32>
    %200 = arith.addi %159, %199 : vector<16x784xi32>
    %c0_i32_104 = arith.constant 0 : i32
    %201 = vector.broadcast %c0_i32_104 : i32 to vector<16x784xi32>
    %202 = arith.cmpi sge, %200, %201 : vector<16x784xi32>
    %c-1_i32_105 = arith.constant -1 : i32
    %203 = vector.broadcast %c-1_i32_105 : i32 to vector<16x784xi32>
    %204 = arith.addi %159, %203 : vector<16x784xi32>
    %c28_i32_106 = arith.constant 28 : i32
    %205 = vector.broadcast %c28_i32_106 : i32 to vector<16x784xi32>
    %206 = arith.cmpi slt, %204, %205 : vector<16x784xi32>
    %207 = arith.andi %202, %206 : vector<16x784xi1>
    %cst_107 = arith.constant 0.000000e+00 : bf16
    %208 = vector.broadcast %cst_107 : bf16 to vector<16x784xbf16>
    %209 = arith.select %207, %198, %208 : vector<16x784xi1>, vector<16x784xbf16>
    %c3_108 = arith.constant 3 : index
    %c0_109 = arith.constant 0 : index
    %c0_110 = arith.constant 0 : index
    %210 = vector.load %arg8[%c3_108, %c0_109, %c0_110] : memref<9x8x16xbf16, #tpu.memory_space<vmem>>, vector<1x8x16xbf16>
    %211 = vector.shape_cast %210 : vector<1x8x16xbf16> to vector<8x16xbf16>
    %cst_111 = arith.constant dense<0.000000e+00> : vector<8x784xf32>
    %212 = tpu.matmul %211, %209, %cst_111 {dimension_numbers = #tpu.dot_dimension_numbers<[1], [0], [0], [1], [0, 0, 1, 1], [], []>} : vector<8x16xbf16>, vector<16x784xbf16>, vector<8x784xf32> -> vector<8x784xf32>
    %213 = arith.addf %197, %212 : vector<8x784xf32>
    %214 = vector.extract_strided_slice %157 {offsets = [0, 29], sizes = [16, 784], strides = [1, 1]} : vector<16x842xbf16> to vector<16x784xbf16>
    %c4_112 = arith.constant 4 : index
    %c0_113 = arith.constant 0 : index
    %c0_114 = arith.constant 0 : index
    %215 = vector.load %arg8[%c4_112, %c0_113, %c0_114] : memref<9x8x16xbf16, #tpu.memory_space<vmem>>, vector<1x8x16xbf16>
    %216 = vector.shape_cast %215 : vector<1x8x16xbf16> to vector<8x16xbf16>
    %cst_115 = arith.constant dense<0.000000e+00> : vector<8x784xf32>
    %217 = tpu.matmul %216, %214, %cst_115 {dimension_numbers = #tpu.dot_dimension_numbers<[1], [0], [0], [1], [0, 0, 1, 1], [], []>} : vector<8x16xbf16>, vector<16x784xbf16>, vector<8x784xf32> -> vector<8x784xf32>
    %218 = arith.addf %213, %217 : vector<8x784xf32>
    %219 = vector.extract_strided_slice %157 {offsets = [0, 30], sizes = [16, 784], strides = [1, 1]} : vector<16x842xbf16> to vector<16x784xbf16>
    %c1_i32_116 = arith.constant 1 : i32
    %220 = vector.broadcast %c1_i32_116 : i32 to vector<16x784xi32>
    %221 = arith.addi %159, %220 : vector<16x784xi32>
    %c0_i32_117 = arith.constant 0 : i32
    %222 = vector.broadcast %c0_i32_117 : i32 to vector<16x784xi32>
    %223 = arith.cmpi sge, %221, %222 : vector<16x784xi32>
    %c1_i32_118 = arith.constant 1 : i32
    %224 = vector.broadcast %c1_i32_118 : i32 to vector<16x784xi32>
    %225 = arith.addi %159, %224 : vector<16x784xi32>
    %c28_i32_119 = arith.constant 28 : i32
    %226 = vector.broadcast %c28_i32_119 : i32 to vector<16x784xi32>
    %227 = arith.cmpi slt, %225, %226 : vector<16x784xi32>
    %228 = arith.andi %223, %227 : vector<16x784xi1>
    %cst_120 = arith.constant 0.000000e+00 : bf16
    %229 = vector.broadcast %cst_120 : bf16 to vector<16x784xbf16>
    %230 = arith.select %228, %219, %229 : vector<16x784xi1>, vector<16x784xbf16>
    %c5_121 = arith.constant 5 : index
    %c0_122 = arith.constant 0 : index
    %c0_123 = arith.constant 0 : index
    %231 = vector.load %arg8[%c5_121, %c0_122, %c0_123] : memref<9x8x16xbf16, #tpu.memory_space<vmem>>, vector<1x8x16xbf16>
    %232 = vector.shape_cast %231 : vector<1x8x16xbf16> to vector<8x16xbf16>
    %cst_124 = arith.constant dense<0.000000e+00> : vector<8x784xf32>
    %233 = tpu.matmul %232, %230, %cst_124 {dimension_numbers = #tpu.dot_dimension_numbers<[1], [0], [0], [1], [0, 0, 1, 1], [], []>} : vector<8x16xbf16>, vector<16x784xbf16>, vector<8x784xf32> -> vector<8x784xf32>
    %234 = arith.addf %218, %233 : vector<8x784xf32>
    %235 = vector.extract_strided_slice %157 {offsets = [0, 56], sizes = [16, 784], strides = [1, 1]} : vector<16x842xbf16> to vector<16x784xbf16>
    %c-1_i32_125 = arith.constant -1 : i32
    %236 = vector.broadcast %c-1_i32_125 : i32 to vector<16x784xi32>
    %237 = arith.addi %159, %236 : vector<16x784xi32>
    %c0_i32_126 = arith.constant 0 : i32
    %238 = vector.broadcast %c0_i32_126 : i32 to vector<16x784xi32>
    %239 = arith.cmpi sge, %237, %238 : vector<16x784xi32>
    %c-1_i32_127 = arith.constant -1 : i32
    %240 = vector.broadcast %c-1_i32_127 : i32 to vector<16x784xi32>
    %241 = arith.addi %159, %240 : vector<16x784xi32>
    %c28_i32_128 = arith.constant 28 : i32
    %242 = vector.broadcast %c28_i32_128 : i32 to vector<16x784xi32>
    %243 = arith.cmpi slt, %241, %242 : vector<16x784xi32>
    %244 = arith.andi %239, %243 : vector<16x784xi1>
    %cst_129 = arith.constant 0.000000e+00 : bf16
    %245 = vector.broadcast %cst_129 : bf16 to vector<16x784xbf16>
    %246 = arith.select %244, %235, %245 : vector<16x784xi1>, vector<16x784xbf16>
    %c6_130 = arith.constant 6 : index
    %c0_131 = arith.constant 0 : index
    %c0_132 = arith.constant 0 : index
    %247 = vector.load %arg8[%c6_130, %c0_131, %c0_132] : memref<9x8x16xbf16, #tpu.memory_space<vmem>>, vector<1x8x16xbf16>
    %248 = vector.shape_cast %247 : vector<1x8x16xbf16> to vector<8x16xbf16>
    %cst_133 = arith.constant dense<0.000000e+00> : vector<8x784xf32>
    %249 = tpu.matmul %248, %246, %cst_133 {dimension_numbers = #tpu.dot_dimension_numbers<[1], [0], [0], [1], [0, 0, 1, 1], [], []>} : vector<8x16xbf16>, vector<16x784xbf16>, vector<8x784xf32> -> vector<8x784xf32>
    %250 = arith.addf %234, %249 : vector<8x784xf32>
    %251 = vector.extract_strided_slice %157 {offsets = [0, 57], sizes = [16, 784], strides = [1, 1]} : vector<16x842xbf16> to vector<16x784xbf16>
    %c7_134 = arith.constant 7 : index
    %c0_135 = arith.constant 0 : index
    %c0_136 = arith.constant 0 : index
    %252 = vector.load %arg8[%c7_134, %c0_135, %c0_136] : memref<9x8x16xbf16, #tpu.memory_space<vmem>>, vector<1x8x16xbf16>
    %253 = vector.shape_cast %252 : vector<1x8x16xbf16> to vector<8x16xbf16>
    %cst_137 = arith.constant dense<0.000000e+00> : vector<8x784xf32>
    %254 = tpu.matmul %253, %251, %cst_137 {dimension_numbers = #tpu.dot_dimension_numbers<[1], [0], [0], [1], [0, 0, 1, 1], [], []>} : vector<8x16xbf16>, vector<16x784xbf16>, vector<8x784xf32> -> vector<8x784xf32>
    %255 = arith.addf %250, %254 : vector<8x784xf32>
    %256 = vector.extract_strided_slice %157 {offsets = [0, 58], sizes = [16, 784], strides = [1, 1]} : vector<16x842xbf16> to vector<16x784xbf16>
    %c1_i32_138 = arith.constant 1 : i32
    %257 = vector.broadcast %c1_i32_138 : i32 to vector<16x784xi32>
    %258 = arith.addi %159, %257 : vector<16x784xi32>
    %c0_i32_139 = arith.constant 0 : i32
    %259 = vector.broadcast %c0_i32_139 : i32 to vector<16x784xi32>
    %260 = arith.cmpi sge, %258, %259 : vector<16x784xi32>
    %c1_i32_140 = arith.constant 1 : i32
    %261 = vector.broadcast %c1_i32_140 : i32 to vector<16x784xi32>
    %262 = arith.addi %159, %261 : vector<16x784xi32>
    %c28_i32_141 = arith.constant 28 : i32
    %263 = vector.broadcast %c28_i32_141 : i32 to vector<16x784xi32>
    %264 = arith.cmpi slt, %262, %263 : vector<16x784xi32>
    %265 = arith.andi %260, %264 : vector<16x784xi1>
    %cst_142 = arith.constant 0.000000e+00 : bf16
    %266 = vector.broadcast %cst_142 : bf16 to vector<16x784xbf16>
    %267 = arith.select %265, %256, %266 : vector<16x784xi1>, vector<16x784xbf16>
    %c8_143 = arith.constant 8 : index
    %c0_144 = arith.constant 0 : index
    %c0_145 = arith.constant 0 : index
    %268 = vector.load %arg8[%c8_143, %c0_144, %c0_145] : memref<9x8x16xbf16, #tpu.memory_space<vmem>>, vector<1x8x16xbf16>
    %269 = vector.shape_cast %268 : vector<1x8x16xbf16> to vector<8x16xbf16>
    %cst_146 = arith.constant dense<0.000000e+00> : vector<8x784xf32>
    %270 = tpu.matmul %269, %267, %cst_146 {dimension_numbers = #tpu.dot_dimension_numbers<[1], [0], [0], [1], [0, 0, 1, 1], [], []>} : vector<8x16xbf16>, vector<16x784xbf16>, vector<8x784xf32> -> vector<8x784xf32>
    %271 = arith.addf %255, %270 : vector<8x784xf32>
    %272 = vector.broadcast %153 : vector<8x1xf32> to vector<8x784xf32>
    %273 = arith.addf %271, %272 : vector<8x784xf32>
    %cst_147 = arith.constant 2.000000e-01 : f32
    %274 = vector.broadcast %cst_147 : f32 to vector<8x784xf32>
    %275 = arith.mulf %274, %273 : vector<8x784xf32>
    %276 = arith.maximumf %273, %275 : vector<8x784xf32>
    %c0_148 = arith.constant 0 : index
    %c0_149 = arith.constant 0 : index
    %277 = vector.load %arg11[%c0_148, %c0_149] : memref<1x1xf32, #tpu.memory_space<vmem>>, vector<1x1xf32>
    %c0_150 = arith.constant 0 : index
    %c0_151 = arith.constant 0 : index
    %278 = vector.load %arg13[%c0_150, %c0_151] : memref<1x784xi32, #tpu.memory_space<vmem>>, vector<1x784xi32>
    %279 = arith.truncf %276 : vector<8x784xf32> to vector<8x784xbf16>
    %cst_152 = arith.constant 0.000000e+00 : bf16
    %280 = vector.broadcast %cst_152 : bf16 to vector<8x29xbf16>
    %281 = tpu.concatenate %280, %279, %280 in 1 : vector<8x29xbf16>, vector<8x784xbf16>, vector<8x29xbf16> -> vector<8x842xbf16>
    %282 = vector.shape_cast %278 : vector<1x784xi32> to vector<1x784xi32>
    %283 = vector.broadcast %282 : vector<1x784xi32> to vector<8x784xi32>
    %cst_153 = arith.constant 0.000000e+00 : f32
    %284 = vector.broadcast %cst_153 : f32 to vector<1x784xf32>
    %285 = vector.extract_strided_slice %281 {offsets = [0, 0], sizes = [8, 784], strides = [1, 1]} : vector<8x842xbf16> to vector<8x784xbf16>
    %c-1_i32_154 = arith.constant -1 : i32
    %286 = vector.broadcast %c-1_i32_154 : i32 to vector<8x784xi32>
    %287 = arith.addi %283, %286 : vector<8x784xi32>
    %c0_i32_155 = arith.constant 0 : i32
    %288 = vector.broadcast %c0_i32_155 : i32 to vector<8x784xi32>
    %289 = arith.cmpi sge, %287, %288 : vector<8x784xi32>
    %c-1_i32_156 = arith.constant -1 : i32
    %290 = vector.broadcast %c-1_i32_156 : i32 to vector<8x784xi32>
    %291 = arith.addi %283, %290 : vector<8x784xi32>
    %c28_i32_157 = arith.constant 28 : i32
    %292 = vector.broadcast %c28_i32_157 : i32 to vector<8x784xi32>
    %293 = arith.cmpi slt, %291, %292 : vector<8x784xi32>
    %294 = arith.andi %289, %293 : vector<8x784xi1>
    %cst_158 = arith.constant 0.000000e+00 : bf16
    %295 = vector.broadcast %cst_158 : bf16 to vector<8x784xbf16>
    %296 = arith.select %294, %285, %295 : vector<8x784xi1>, vector<8x784xbf16>
    %c0_159 = arith.constant 0 : index
    %c0_160 = arith.constant 0 : index
    %c0_161 = arith.constant 0 : index
    %297 = vector.load %arg10[%c0_159, %c0_160, %c0_161] : memref<9x1x8xbf16, #tpu.memory_space<vmem>>, vector<1x1x8xbf16>
    %298 = vector.shape_cast %297 : vector<1x1x8xbf16> to vector<1x8xbf16>
    %cst_162 = arith.constant dense<0.000000e+00> : vector<1x784xf32>
    %299 = tpu.matmul %298, %296, %cst_162 {dimension_numbers = #tpu.dot_dimension_numbers<[1], [0], [0], [1], [0, 0, 1, 1], [], []>} : vector<1x8xbf16>, vector<8x784xbf16>, vector<1x784xf32> -> vector<1x784xf32>
    %300 = arith.addf %284, %299 : vector<1x784xf32>
    %301 = vector.extract_strided_slice %281 {offsets = [0, 1], sizes = [8, 784], strides = [1, 1]} : vector<8x842xbf16> to vector<8x784xbf16>
    %c1_163 = arith.constant 1 : index
    %c0_164 = arith.constant 0 : index
    %c0_165 = arith.constant 0 : index
    %302 = vector.load %arg10[%c1_163, %c0_164, %c0_165] : memref<9x1x8xbf16, #tpu.memory_space<vmem>>, vector<1x1x8xbf16>
    %303 = vector.shape_cast %302 : vector<1x1x8xbf16> to vector<1x8xbf16>
    %cst_166 = arith.constant dense<0.000000e+00> : vector<1x784xf32>
    %304 = tpu.matmul %303, %301, %cst_166 {dimension_numbers = #tpu.dot_dimension_numbers<[1], [0], [0], [1], [0, 0, 1, 1], [], []>} : vector<1x8xbf16>, vector<8x784xbf16>, vector<1x784xf32> -> vector<1x784xf32>
    %305 = arith.addf %300, %304 : vector<1x784xf32>
    %306 = vector.extract_strided_slice %281 {offsets = [0, 2], sizes = [8, 784], strides = [1, 1]} : vector<8x842xbf16> to vector<8x784xbf16>
    %c1_i32_167 = arith.constant 1 : i32
    %307 = vector.broadcast %c1_i32_167 : i32 to vector<8x784xi32>
    %308 = arith.addi %283, %307 : vector<8x784xi32>
    %c0_i32_168 = arith.constant 0 : i32
    %309 = vector.broadcast %c0_i32_168 : i32 to vector<8x784xi32>
    %310 = arith.cmpi sge, %308, %309 : vector<8x784xi32>
    %c1_i32_169 = arith.constant 1 : i32
    %311 = vector.broadcast %c1_i32_169 : i32 to vector<8x784xi32>
    %312 = arith.addi %283, %311 : vector<8x784xi32>
    %c28_i32_170 = arith.constant 28 : i32
    %313 = vector.broadcast %c28_i32_170 : i32 to vector<8x784xi32>
    %314 = arith.cmpi slt, %312, %313 : vector<8x784xi32>
    %315 = arith.andi %310, %314 : vector<8x784xi1>
    %cst_171 = arith.constant 0.000000e+00 : bf16
    %316 = vector.broadcast %cst_171 : bf16 to vector<8x784xbf16>
    %317 = arith.select %315, %306, %316 : vector<8x784xi1>, vector<8x784xbf16>
    %c2_172 = arith.constant 2 : index
    %c0_173 = arith.constant 0 : index
    %c0_174 = arith.constant 0 : index
    %318 = vector.load %arg10[%c2_172, %c0_173, %c0_174] : memref<9x1x8xbf16, #tpu.memory_space<vmem>>, vector<1x1x8xbf16>
    %319 = vector.shape_cast %318 : vector<1x1x8xbf16> to vector<1x8xbf16>
    %cst_175 = arith.constant dense<0.000000e+00> : vector<1x784xf32>
    %320 = tpu.matmul %319, %317, %cst_175 {dimension_numbers = #tpu.dot_dimension_numbers<[1], [0], [0], [1], [0, 0, 1, 1], [], []>} : vector<1x8xbf16>, vector<8x784xbf16>, vector<1x784xf32> -> vector<1x784xf32>
    %321 = arith.addf %305, %320 : vector<1x784xf32>
    %322 = vector.extract_strided_slice %281 {offsets = [0, 28], sizes = [8, 784], strides = [1, 1]} : vector<8x842xbf16> to vector<8x784xbf16>
    %c-1_i32_176 = arith.constant -1 : i32
    %323 = vector.broadcast %c-1_i32_176 : i32 to vector<8x784xi32>
    %324 = arith.addi %283, %323 : vector<8x784xi32>
    %c0_i32_177 = arith.constant 0 : i32
    %325 = vector.broadcast %c0_i32_177 : i32 to vector<8x784xi32>
    %326 = arith.cmpi sge, %324, %325 : vector<8x784xi32>
    %c-1_i32_178 = arith.constant -1 : i32
    %327 = vector.broadcast %c-1_i32_178 : i32 to vector<8x784xi32>
    %328 = arith.addi %283, %327 : vector<8x784xi32>
    %c28_i32_179 = arith.constant 28 : i32
    %329 = vector.broadcast %c28_i32_179 : i32 to vector<8x784xi32>
    %330 = arith.cmpi slt, %328, %329 : vector<8x784xi32>
    %331 = arith.andi %326, %330 : vector<8x784xi1>
    %cst_180 = arith.constant 0.000000e+00 : bf16
    %332 = vector.broadcast %cst_180 : bf16 to vector<8x784xbf16>
    %333 = arith.select %331, %322, %332 : vector<8x784xi1>, vector<8x784xbf16>
    %c3_181 = arith.constant 3 : index
    %c0_182 = arith.constant 0 : index
    %c0_183 = arith.constant 0 : index
    %334 = vector.load %arg10[%c3_181, %c0_182, %c0_183] : memref<9x1x8xbf16, #tpu.memory_space<vmem>>, vector<1x1x8xbf16>
    %335 = vector.shape_cast %334 : vector<1x1x8xbf16> to vector<1x8xbf16>
    %cst_184 = arith.constant dense<0.000000e+00> : vector<1x784xf32>
    %336 = tpu.matmul %335, %333, %cst_184 {dimension_numbers = #tpu.dot_dimension_numbers<[1], [0], [0], [1], [0, 0, 1, 1], [], []>} : vector<1x8xbf16>, vector<8x784xbf16>, vector<1x784xf32> -> vector<1x784xf32>
    %337 = arith.addf %321, %336 : vector<1x784xf32>
    %338 = vector.extract_strided_slice %281 {offsets = [0, 29], sizes = [8, 784], strides = [1, 1]} : vector<8x842xbf16> to vector<8x784xbf16>
    %c4_185 = arith.constant 4 : index
    %c0_186 = arith.constant 0 : index
    %c0_187 = arith.constant 0 : index
    %339 = vector.load %arg10[%c4_185, %c0_186, %c0_187] : memref<9x1x8xbf16, #tpu.memory_space<vmem>>, vector<1x1x8xbf16>
    %340 = vector.shape_cast %339 : vector<1x1x8xbf16> to vector<1x8xbf16>
    %cst_188 = arith.constant dense<0.000000e+00> : vector<1x784xf32>
    %341 = tpu.matmul %340, %338, %cst_188 {dimension_numbers = #tpu.dot_dimension_numbers<[1], [0], [0], [1], [0, 0, 1, 1], [], []>} : vector<1x8xbf16>, vector<8x784xbf16>, vector<1x784xf32> -> vector<1x784xf32>
    %342 = arith.addf %337, %341 : vector<1x784xf32>
    %343 = vector.extract_strided_slice %281 {offsets = [0, 30], sizes = [8, 784], strides = [1, 1]} : vector<8x842xbf16> to vector<8x784xbf16>
    %c1_i32_189 = arith.constant 1 : i32
    %344 = vector.broadcast %c1_i32_189 : i32 to vector<8x784xi32>
    %345 = arith.addi %283, %344 : vector<8x784xi32>
    %c0_i32_190 = arith.constant 0 : i32
    %346 = vector.broadcast %c0_i32_190 : i32 to vector<8x784xi32>
    %347 = arith.cmpi sge, %345, %346 : vector<8x784xi32>
    %c1_i32_191 = arith.constant 1 : i32
    %348 = vector.broadcast %c1_i32_191 : i32 to vector<8x784xi32>
    %349 = arith.addi %283, %348 : vector<8x784xi32>
    %c28_i32_192 = arith.constant 28 : i32
    %350 = vector.broadcast %c28_i32_192 : i32 to vector<8x784xi32>
    %351 = arith.cmpi slt, %349, %350 : vector<8x784xi32>
    %352 = arith.andi %347, %351 : vector<8x784xi1>
    %cst_193 = arith.constant 0.000000e+00 : bf16
    %353 = vector.broadcast %cst_193 : bf16 to vector<8x784xbf16>
    %354 = arith.select %352, %343, %353 : vector<8x784xi1>, vector<8x784xbf16>
    %c5_194 = arith.constant 5 : index
    %c0_195 = arith.constant 0 : index
    %c0_196 = arith.constant 0 : index
    %355 = vector.load %arg10[%c5_194, %c0_195, %c0_196] : memref<9x1x8xbf16, #tpu.memory_space<vmem>>, vector<1x1x8xbf16>
    %356 = vector.shape_cast %355 : vector<1x1x8xbf16> to vector<1x8xbf16>
    %cst_197 = arith.constant dense<0.000000e+00> : vector<1x784xf32>
    %357 = tpu.matmul %356, %354, %cst_197 {dimension_numbers = #tpu.dot_dimension_numbers<[1], [0], [0], [1], [0, 0, 1, 1], [], []>} : vector<1x8xbf16>, vector<8x784xbf16>, vector<1x784xf32> -> vector<1x784xf32>
    %358 = arith.addf %342, %357 : vector<1x784xf32>
    %359 = vector.extract_strided_slice %281 {offsets = [0, 56], sizes = [8, 784], strides = [1, 1]} : vector<8x842xbf16> to vector<8x784xbf16>
    %c-1_i32_198 = arith.constant -1 : i32
    %360 = vector.broadcast %c-1_i32_198 : i32 to vector<8x784xi32>
    %361 = arith.addi %283, %360 : vector<8x784xi32>
    %c0_i32_199 = arith.constant 0 : i32
    %362 = vector.broadcast %c0_i32_199 : i32 to vector<8x784xi32>
    %363 = arith.cmpi sge, %361, %362 : vector<8x784xi32>
    %c-1_i32_200 = arith.constant -1 : i32
    %364 = vector.broadcast %c-1_i32_200 : i32 to vector<8x784xi32>
    %365 = arith.addi %283, %364 : vector<8x784xi32>
    %c28_i32_201 = arith.constant 28 : i32
    %366 = vector.broadcast %c28_i32_201 : i32 to vector<8x784xi32>
    %367 = arith.cmpi slt, %365, %366 : vector<8x784xi32>
    %368 = arith.andi %363, %367 : vector<8x784xi1>
    %cst_202 = arith.constant 0.000000e+00 : bf16
    %369 = vector.broadcast %cst_202 : bf16 to vector<8x784xbf16>
    %370 = arith.select %368, %359, %369 : vector<8x784xi1>, vector<8x784xbf16>
    %c6_203 = arith.constant 6 : index
    %c0_204 = arith.constant 0 : index
    %c0_205 = arith.constant 0 : index
    %371 = vector.load %arg10[%c6_203, %c0_204, %c0_205] : memref<9x1x8xbf16, #tpu.memory_space<vmem>>, vector<1x1x8xbf16>
    %372 = vector.shape_cast %371 : vector<1x1x8xbf16> to vector<1x8xbf16>
    %cst_206 = arith.constant dense<0.000000e+00> : vector<1x784xf32>
    %373 = tpu.matmul %372, %370, %cst_206 {dimension_numbers = #tpu.dot_dimension_numbers<[1], [0], [0], [1], [0, 0, 1, 1], [], []>} : vector<1x8xbf16>, vector<8x784xbf16>, vector<1x784xf32> -> vector<1x784xf32>
    %374 = arith.addf %358, %373 : vector<1x784xf32>
    %375 = vector.extract_strided_slice %281 {offsets = [0, 57], sizes = [8, 784], strides = [1, 1]} : vector<8x842xbf16> to vector<8x784xbf16>
    %c7_207 = arith.constant 7 : index
    %c0_208 = arith.constant 0 : index
    %c0_209 = arith.constant 0 : index
    %376 = vector.load %arg10[%c7_207, %c0_208, %c0_209] : memref<9x1x8xbf16, #tpu.memory_space<vmem>>, vector<1x1x8xbf16>
    %377 = vector.shape_cast %376 : vector<1x1x8xbf16> to vector<1x8xbf16>
    %cst_210 = arith.constant dense<0.000000e+00> : vector<1x784xf32>
    %378 = tpu.matmul %377, %375, %cst_210 {dimension_numbers = #tpu.dot_dimension_numbers<[1], [0], [0], [1], [0, 0, 1, 1], [], []>} : vector<1x8xbf16>, vector<8x784xbf16>, vector<1x784xf32> -> vector<1x784xf32>
    %379 = arith.addf %374, %378 : vector<1x784xf32>
    %380 = vector.extract_strided_slice %281 {offsets = [0, 58], sizes = [8, 784], strides = [1, 1]} : vector<8x842xbf16> to vector<8x784xbf16>
    %c1_i32_211 = arith.constant 1 : i32
    %381 = vector.broadcast %c1_i32_211 : i32 to vector<8x784xi32>
    %382 = arith.addi %283, %381 : vector<8x784xi32>
    %c0_i32_212 = arith.constant 0 : i32
    %383 = vector.broadcast %c0_i32_212 : i32 to vector<8x784xi32>
    %384 = arith.cmpi sge, %382, %383 : vector<8x784xi32>
    %c1_i32_213 = arith.constant 1 : i32
    %385 = vector.broadcast %c1_i32_213 : i32 to vector<8x784xi32>
    %386 = arith.addi %283, %385 : vector<8x784xi32>
    %c28_i32_214 = arith.constant 28 : i32
    %387 = vector.broadcast %c28_i32_214 : i32 to vector<8x784xi32>
    %388 = arith.cmpi slt, %386, %387 : vector<8x784xi32>
    %389 = arith.andi %384, %388 : vector<8x784xi1>
    %cst_215 = arith.constant 0.000000e+00 : bf16
    %390 = vector.broadcast %cst_215 : bf16 to vector<8x784xbf16>
    %391 = arith.select %389, %380, %390 : vector<8x784xi1>, vector<8x784xbf16>
    %c8_216 = arith.constant 8 : index
    %c0_217 = arith.constant 0 : index
    %c0_218 = arith.constant 0 : index
    %392 = vector.load %arg10[%c8_216, %c0_217, %c0_218] : memref<9x1x8xbf16, #tpu.memory_space<vmem>>, vector<1x1x8xbf16>
    %393 = vector.shape_cast %392 : vector<1x1x8xbf16> to vector<1x8xbf16>
    %cst_219 = arith.constant dense<0.000000e+00> : vector<1x784xf32>
    %394 = tpu.matmul %393, %391, %cst_219 {dimension_numbers = #tpu.dot_dimension_numbers<[1], [0], [0], [1], [0, 0, 1, 1], [], []>} : vector<1x8xbf16>, vector<8x784xbf16>, vector<1x784xf32> -> vector<1x784xf32>
    %395 = arith.addf %379, %394 : vector<1x784xf32>
    %396 = vector.broadcast %277 : vector<1x1xf32> to vector<1x784xf32>
    %397 = arith.addf %395, %396 : vector<1x784xf32>
    %cst_220 = arith.constant 0.000000e+00 : f32
    %398 = vector.broadcast %cst_220 : f32 to vector<1x784xf32>
    %399 = arith.subf %398, %397 : vector<1x784xf32>
    %400 = math.exp %399 : vector<1x784xf32>
    %cst_221 = arith.constant 1.000000e+00 : f32
    %401 = vector.broadcast %cst_221 : f32 to vector<1x784xf32>
    %402 = arith.addf %401, %400 : vector<1x784xf32>
    %cst_222 = arith.constant 1.000000e+00 : f32
    %403 = vector.broadcast %cst_222 : f32 to vector<1x784xf32>
    %404 = arith.divf %403, %402 : vector<1x784xf32>
    %c0_223 = arith.constant 0 : index
    %c0_224 = arith.constant 0 : index
    %c0_225 = arith.constant 0 : index
    %405 = vector.load %arg14[%c0_223, %c0_224, %c0_225] : memref<1x1x784xf32, #tpu.memory_space<vmem>>, vector<1x1x784xf32>
    %406 = vector.shape_cast %405 : vector<1x1x784xf32> to vector<1x784xf32>
    %407 = vector.shape_cast %404 : vector<1x784xf32> to vector<1x1x784xf32>
    tpu.vector_store %arg14[%c0_223, %c0_224, %c0_225], %407 {strides = array<i32>} : memref<1x1x784xf32, #tpu.memory_space<vmem>>, vector<1x1x784xf32>,
    return
  }
  func.func @transform_0(%arg0: i32) -> (i32, i32, i32) {
    %c0_i32 = arith.constant 0 : i32
    %c0_i32_0 = arith.constant 0 : i32
    %c0_i32_1 = arith.constant 0 : i32
    return %arg0, %c0_i32, %c0_i32_0 : i32, i32, i32
  }
  func.func @transform_1(%arg0: i32) -> (i32, i32) {
    %c0_i32 = arith.constant 0 : i32
    %c0_i32_0 = arith.constant 0 : i32
    %c0_i32_1 = arith.constant 0 : i32
    return %c0_i32, %c0_i32_0 : i32, i32
  }
  func.func @transform_2(%arg0: i32) -> (i32, i32) {
    %c0_i32 = arith.constant 0 : i32
    %c0_i32_0 = arith.constant 0 : i32
    %c0_i32_1 = arith.constant 0 : i32
    return %c0_i32, %c0_i32_0 : i32, i32
  }
  func.func @transform_3(%arg0: i32) -> (i32, i32) {
    %c0_i32 = arith.constant 0 : i32
    %c0_i32_0 = arith.constant 0 : i32
    %c0_i32_1 = arith.constant 0 : i32
    return %c0_i32, %c0_i32_0 : i32, i32
  }
  func.func @transform_4(%arg0: i32) -> (i32, i32) {
    %c0_i32 = arith.constant 0 : i32
    %c0_i32_0 = arith.constant 0 : i32
    %c0_i32_1 = arith.constant 0 : i32
    return %c0_i32, %c0_i32_0 : i32, i32
  }
  func.func @transform_5(%arg0: i32) -> (i32, i32, i32) {
    %c0_i32 = arith.constant 0 : i32
    %c0_i32_0 = arith.constant 0 : i32
    %c0_i32_1 = arith.constant 0 : i32
    %c0_i32_2 = arith.constant 0 : i32
    return %c0_i32, %c0_i32_0, %c0_i32_1 : i32, i32, i32
  }
  func.func @transform_6(%arg0: i32) -> (i32, i32) {
    %c0_i32 = arith.constant 0 : i32
    %c0_i32_0 = arith.constant 0 : i32
    %c0_i32_1 = arith.constant 0 : i32
    return %c0_i32, %c0_i32_0 : i32, i32
  }
  func.func @transform_7(%arg0: i32) -> (i32, i32, i32) {
    %c0_i32 = arith.constant 0 : i32
    %c0_i32_0 = arith.constant 0 : i32
    %c0_i32_1 = arith.constant 0 : i32
    %c0_i32_2 = arith.constant 0 : i32
    return %c0_i32, %c0_i32_0, %c0_i32_1 : i32, i32, i32
  }
  func.func @transform_8(%arg0: i32) -> (i32, i32) {
    %c0_i32 = arith.constant 0 : i32
    %c0_i32_0 = arith.constant 0 : i32
    %c0_i32_1 = arith.constant 0 : i32
    return %c0_i32, %c0_i32_0 : i32, i32
  }
  func.func @transform_9(%arg0: i32) -> (i32, i32, i32) {
    %c0_i32 = arith.constant 0 : i32
    %c0_i32_0 = arith.constant 0 : i32
    %c0_i32_1 = arith.constant 0 : i32
    %c0_i32_2 = arith.constant 0 : i32
    return %c0_i32, %c0_i32_0, %c0_i32_1 : i32, i32, i32
  }
  func.func @transform_10(%arg0: i32) -> (i32, i32) {
    %c0_i32 = arith.constant 0 : i32
    %c0_i32_0 = arith.constant 0 : i32
    %c0_i32_1 = arith.constant 0 : i32
    return %c0_i32, %c0_i32_0 : i32, i32
  }
  func.func @transform_11(%arg0: i32) -> (i32, i32) {
    %c0_i32 = arith.constant 0 : i32
    %c0_i32_0 = arith.constant 0 : i32
    %c0_i32_1 = arith.constant 0 : i32
    return %c0_i32, %c0_i32_0 : i32, i32
  }
  func.func @transform_12(%arg0: i32) -> (i32, i32) {
    %c0_i32 = arith.constant 0 : i32
    %c0_i32_0 = arith.constant 0 : i32
    %c0_i32_1 = arith.constant 0 : i32
    return %c0_i32, %c0_i32_0 : i32, i32
  }
  func.func @transform_13(%arg0: i32) -> (i32, i32, i32) {
    %c0_i32 = arith.constant 0 : i32
    %c0_i32_0 = arith.constant 0 : i32
    %c0_i32_1 = arith.constant 0 : i32
    return %arg0, %c0_i32, %c0_i32_0 : i32, i32, i32
  }
}

</mosaic_0001>

<llo_original>
// kernel: gnet_forward.1
$region0: #{gnet_forward.1}
  #allocation0 [shape = 'u32[]', space=smem, size = 0x4, offset = 0x4, fixed_abs, tag = 'smem constant byte address 0x4 - core index']
  #allocation1 [shape = 'u32[144,128]{1,0:T(1,128)}', space=vmem, size = 0x12000, scoped, tag = 'internal scratch']
  #allocation2 [shape = 'f32[1,1]{1,0:T(1,128)S(1)}', space=vmem, size = 0x200, scoped, tag = 'scoped memory for gnet_forward.1']
  %s0 = inlined_call_operand.vmem [shape: f32[2,1,1024], index: 0, kind: input, shape index: {}]
  %s1 = inlined_call_operand.vmem [shape: bf16[1024,49], index: 1, kind: input, shape index: {}]
  %s2 = inlined_call_operand.vmem [shape: f32[32,49], index: 2, kind: input, shape index: {}]
  %s3 = inlined_call_operand.vmem [shape: bf16[49,196], index: 3, kind: input, shape index: {}]
  %s4 = inlined_call_operand.vmem [shape: bf16[196,784], index: 4, kind: input, shape index: {}]
  %s5 = inlined_call_operand.vmem [shape: bf16[9,16,32], index: 5, kind: input, shape index: {}]
  %s6 = inlined_call_operand.vmem [shape: f32[16,1], index: 6, kind: input, shape index: {}]
  %s7 = inlined_call_operand.vmem [shape: bf16[9,8,16], index: 7, kind: input, shape index: {}]
  %s8 = inlined_call_operand.vmem [shape: f32[8,1], index: 8, kind: input, shape index: {}]
  %s9 = inlined_call_operand.vmem [shape: bf16[9,1,8], index: 9, kind: input, shape index: {}]
  %s10 = inlined_call_operand.<no memory space> [shape: f32[1,1], index: 10, kind: input, shape index: {}]
  %s11 = inlined_call_operand.vmem [shape: s32[1,196], index: 11, kind: input, shape index: {}]
  %s12 = inlined_call_operand.vmem [shape: s32[1,784], index: 12, kind: input, shape index: {}]
  %s13 = inlined_call_operand.vmem [shape: f32[2,1,784], index: 13, kind: output, shape index: {}]
  %s14 = sld [smem:[#allocation0]]
  $region85: #{gnet_forward.1} parent=0
    _
  %s16 = ssub.s32 1, %s14
  %s17 = scalar_select 0, %s16, %s14
  %v18 = vstv %s10
  %19 = vst [vmem:[#allocation2] sm:$0x1] %v18
  loop: start=0, step=1, limit=4
  $region2: #{gnet_forward.1} parent=0 // loop_pre_header
    _
  $region3: #{gnet_forward.1} parent=0 // loop_header
    %s21 = sphi 0, %s25
    %p22 = scmp.ge.s32.totalorder %s21, 4
    %s31 = sphi 0, %s33
    %s34 = sphi 0, %s31
    %s35 = sphi 0, %s34
    %s51 = sphi 0, %s35
    %s55 = sphi 0, %s55
    %s57 = sphi 0, %s55
    %s58 = sphi 0, %s57
    %s72 = sphi 0, %s58
    %s76 = sphi 0, %s76
    %s78 = sphi 0, %s76
    %s79 = sphi 0, %s78
    %s93 = sphi 0, %s79
    %s97 = sphi 0, %s97
    %s99 = sphi 0, %s97
    %s100 = sphi 0, %s99
    %s114 = sphi 0, %s100
    %s118 = sphi 0, %s118
    %s120 = sphi 0, %s118
    %s121 = sphi 0, %s120
    %s135 = sphi 0, %s121
    %s139 = sphi 0, %s139
    %s141 = sphi 0, %s139
    %s142 = sphi 0, %s141
    %s156 = sphi 0, %s142
    %s160 = sphi 0, %s160
    %s162 = sphi 0, %s160
    %s163 = sphi 0, %s162
    %s177 = sphi 0, %s163
    %s181 = sphi 0, %s181
    %s183 = sphi 0, %s181
    %s184 = sphi 0, %s183
    %s198 = sphi 0, %s184
    %s202 = sphi 0, %s202
    %s204 = sphi 0, %s202
    %s205 = sphi 0, %s204
    %s219 = sphi 0, %s205
    %s223 = sphi 0, %s223
    %s225 = sphi 0, %s223
    %s226 = sphi 0, %s225
    %s240 = sphi 0, %s226
    %s244 = sphi 0, %s244
    %s246 = sphi 0, %s244
    %s247 = sphi 0, %s246
    %s261 = sphi 0, %s247
    %s265 = sphi 0, %s265
    %s267 = sphi 0, %s265
    %s268 = sphi 0, %s267
    %s282 = sphi 0, %s268
    %s286 = sphi 0, %s286
    %s288 = sphi 0, %s286
    %s289 = sphi 0, %s288
    %s303 = sphi 0, %s289
    %s309 = sphi 0, %s311
    %s312 = sphi 0, %s309
    %s313 = sphi 0, %s312
    %s329 = sphi 0, %s313
  $region4: #{gnet_forward.1} parent=0 // loop_header_branch
    %24 = sbr.rel (%p22) target = $region8
  $region5: #{gnet_forward.1} parent=0 // loop_body
    %s26 = ssub.s32 %s21, 1
    %s27 = ssub.s32 %s21, 2
    %s28 = sadd.s32 %s21, 1
    %s29 = ssub.s32 %s21, %s28
    %p30 = scmp.eq.s32.totalorder %s29, 0
    %s32 = sadd.s32 %s31, 1
    %s33 = scalar_select %p30, %s31, %s32
    %p36 = pneg %p30
    %p37 = scmp.eq.s32.totalorder %s21, 1
    %p38 = por %p36, %p37
    %p39 = scmp.ne.s32.totalorder %s31, %s34
    %p40 = scmp.eq.s32.totalorder %s21, 0
    %p41 = por %p39, %p40
    %p42 = scmp.ne.s32.totalorder %s31, %s34
    %p43 = scmp.eq.s32.totalorder %s26, 1
    %p44 = por %p42, %p43
    %p45 = scmp.ne.s32.totalorder %s34, %s35
    %p46 = scmp.eq.s32.totalorder %s26, 0
    %p47 = por %p45, %p46
    %p48 = scmp.ne.s32.totalorder %s34, %s35
    %p49 = scmp.eq.s32.totalorder %s27, 1
    %p50 = por %p48, %p49
    %p52 = scmp.ne.s32.totalorder %s35, %s51
    %p53 = scmp.eq.s32.totalorder %s27, 0
    %p54 = por %p52, %p53
    %s56 = sadd.s32 %s55, 1
    %p59 = scmp.eq.s32.totalorder %s21, 1
    %p60 = scmp.ne.s32.totalorder %s55, %s57
    %p61 = scmp.eq.s32.totalorder %s21, 0
    %p62 = por %p60, %p61
    %p63 = scmp.ne.s32.totalorder %s55, %s57
    %p64 = scmp.eq.s32.totalorder %s26, 1
    %p65 = por %p63, %p64
    %p66 = scmp.ne.s32.totalorder %s57, %s58
    %p67 = scmp.eq.s32.totalorder %s26, 0
    %p68 = por %p66, %p67
    %p69 = scmp.ne.s32.totalorder %s57, %s58
    %p70 = scmp.eq.s32.totalorder %s27, 1
    %p71 = por %p69, %p70
    %p73 = scmp.ne.s32.totalorder %s58, %s72
    %p74 = scmp.eq.s32.totalorder %s27, 0
    %p75 = por %p73, %p74
    %s77 = sadd.s32 %s76, 1
    %p80 = scmp.eq.s32.totalorder %s21, 1
    %p81 = scmp.ne.s32.totalorder %s76, %s78
    %p82 = scmp.eq.s32.totalorder %s21, 0
    %p83 = por %p81, %p82
    %p84 = scmp.ne.s32.totalorder %s76, %s78
    %p85 = scmp.eq.s32.totalorder %s26, 1
    %p86 = por %p84, %p85
    %p87 = scmp.ne.s32.totalorder %s78, %s79
    %p88 = scmp.eq.s32.totalorder %s26, 0
    %p89 = por %p87, %p88
    %p90 = scmp.ne.s32.totalorder %s78, %s79
    %p91 = scmp.eq.s32.totalorder %s27, 1
    %p92 = por %p90, %p91
    %p94 = scmp.ne.s32.totalorder %s79, %s93
    %p95 = scmp.eq.s32.totalorder %s27, 0
    %p96 = por %p94, %p95
    %s98 = sadd.s32 %s97, 1
    %p101 = scmp.eq.s32.totalorder %s21, 1
    %p102 = scmp.ne.s32.totalorder %s97, %s99
    %p103 = scmp.eq.s32.totalorder %s21, 0
    %p104 = por %p102, %p103
    %p105 = scmp.ne.s32.totalorder %s97, %s99
    %p106 = scmp.eq.s32.totalorder %s26, 1
    %p107 = por %p105, %p106
    %p108 = scmp.ne.s32.totalorder %s99, %s100
    %p109 = scmp.eq.s32.totalorder %s26, 0
    %p110 = por %p108, %p109
    %p111 = scmp.ne.s32.totalorder %s99, %s100
    %p112 = scmp.eq.s32.totalorder %s27, 1
    %p113 = por %p111, %p112
    %p115 = scmp.ne.s32.totalorder %s100, %s114
    %p116 = scmp.eq.s32.totalorder %s27, 0
    %p117 = por %p115, %p116
    %s119 = sadd.s32 %s118, 1
    %p122 = scmp.eq.s32.totalorder %s21, 1
    %p123 = scmp.ne.s32.totalorder %s118, %s120
    %p124 = scmp.eq.s32.totalorder %s21, 0
    %p125 = por %p123, %p124
    %p126 = scmp.ne.s32.totalorder %s118, %s120
    %p127 = scmp.eq.s32.totalorder %s26, 1
    %p128 = por %p126, %p127
    %p129 = scmp.ne.s32.totalorder %s120, %s121
    %p130 = scmp.eq.s32.totalorder %s26, 0
    %p131 = por %p129, %p130
    %p132 = scmp.ne.s32.totalorder %s120, %s121
    %p133 = scmp.eq.s32.totalorder %s27, 1
    %p134 = por %p132, %p133
    %p136 = scmp.ne.s32.totalorder %s121, %s135
    %p137 = scmp.eq.s32.totalorder %s27, 0
    %p138 = por %p136, %p137
    %s140 = sadd.s32 %s139, 1
    %p143 = scmp.eq.s32.totalorder %s21, 1
    %p144 = scmp.ne.s32.totalorder %s139, %s141
    %p145 = scmp.eq.s32.totalorder %s21, 0
    %p146 = por %p144, %p145
    %p147 = scmp.ne.s32.totalorder %s139, %s141
    %p148 = scmp.eq.s32.totalorder %s26, 1
    %p149 = por %p147, %p148
    %p150 = scmp.ne.s32.totalorder %s141, %s142
    %p151 = scmp.eq.s32.totalorder %s26, 0
    %p152 = por %p150, %p151
    %p153 = scmp.ne.s32.totalorder %s141, %s142
    %p154 = scmp.eq.s32.totalorder %s27, 1
    %p155 = por %p153, %p154
    %p157 = scmp.ne.s32.totalorder %s142, %s156
    %p158 = scmp.eq.s32.totalorder %s27, 0
    %p159 = por %p157, %p158
    %s161 = sadd.s32 %s160, 1
    %p164 = scmp.eq.s32.totalorder %s21, 1
    %p165 = scmp.ne.s32.totalorder %s160, %s162
    %p166 = scmp.eq.s32.totalorder %s21, 0
    %p167 = por %p165, %p166
    %p168 = scmp.ne.s32.totalorder %s160, %s162
    %p169 = scmp.eq.s32.totalorder %s26, 1
    %p170 = por %p168, %p169
    %p171 = scmp.ne.s32.totalorder %s162, %s163
    %p172 = scmp.eq.s32.totalorder %s26, 0
    %p173 = por %p171, %p172
    %p174 = scmp.ne.s32.totalorder %s162, %s163
    %p175 = scmp.eq.s32.totalorder %s27, 1
    %p176 = por %p174, %p175
    %p178 = scmp.ne.s32.totalorder %s163, %s177
    %p179 = scmp.eq.s32.totalorder %s27, 0
    %p180 = por %p178, %p179
    %s182 = sadd.s32 %s181, 1
    %p185 = scmp.eq.s32.totalorder %s21, 1
    %p186 = scmp.ne.s32.totalorder %s181, %s183
    %p187 = scmp.eq.s32.totalorder %s21, 0
    %p188 = por %p186, %p187
    %p189 = scmp.ne.s32.totalorder %s181, %s183
    %p190 = scmp.eq.s32.totalorder %s26, 1
    %p191 = por %p189, %p190
    %p192 = scmp.ne.s32.totalorder %s183, %s184
    %p193 = scmp.eq.s32.totalorder %s26, 0
    %p194 = por %p192, %p193
    %p195 = scmp.ne.s32.totalorder %s183, %s184
    %p196 = scmp.eq.s32.totalorder %s27, 1
    %p197 = por %p195, %p196
    %p199 = scmp.ne.s32.totalorder %s184, %s198
    %p200 = scmp.eq.s32.totalorder %s27, 0
    %p201 = por %p199, %p200
    %s203 = sadd.s32 %s202, 1
    %p206 = scmp.eq.s32.totalorder %s21, 1
    %p207 = scmp.ne.s32.totalorder %s202, %s204
    %p208 = scmp.eq.s32.totalorder %s21, 0
    %p209 = por %p207, %p208
    %p210 = scmp.ne.s32.totalorder %s202, %s204
    %p211 = scmp.eq.s32.totalorder %s26, 1
    %p212 = por %p210, %p211
    %p213 = scmp.ne.s32.totalorder %s204, %s205
    %p214 = scmp.eq.s32.totalorder %s26, 0
    %p215 = por %p213, %p214
    %p216 = scmp.ne.s32.totalorder %s204, %s205
    %p217 = scmp.eq.s32.totalorder %s27, 1
    %p218 = por %p216, %p217
    %p220 = scmp.ne.s32.totalorder %s205, %s219
    %p221 = scmp.eq.s32.totalorder %s27, 0
    %p222 = por %p220, %p221
    %s224 = sadd.s32 %s223, 1
    %p227 = scmp.eq.s32.totalorder %s21, 1
    %p228 = scmp.ne.s32.totalorder %s223, %s225
    %p229 = scmp.eq.s32.totalorder %s21, 0
    %p230 = por %p228, %p229
    %p231 = scmp.ne.s32.totalorder %s223, %s225
    %p232 = scmp.eq.s32.totalorder %s26, 1
    %p233 = por %p231, %p232
    %p234 = scmp.ne.s32.totalorder %s225, %s226
    %p235 = scmp.eq.s32.totalorder %s26, 0
    %p236 = por %p234, %p235
    %p237 = scmp.ne.s32.totalorder %s225, %s226
    %p238 = scmp.eq.s32.totalorder %s27, 1
    %p239 = por %p237, %p238
    %p241 = scmp.ne.s32.totalorder %s226, %s240
    %p242 = scmp.eq.s32.totalorder %s27, 0
    %p243 = por %p241, %p242
    %s245 = sadd.s32 %s244, 1
    %p248 = scmp.eq.s32.totalorder %s21, 1
    %p249 = scmp.ne.s32.totalorder %s244, %s246
    %p250 = scmp.eq.s32.totalorder %s21, 0
    %p251 = por %p249, %p250
    %p252 = scmp.ne.s32.totalorder %s244, %s246
    %p253 = scmp.eq.s32.totalorder %s26, 1
    %p254 = por %p252, %p253
    %p255 = scmp.ne.s32.totalorder %s246, %s247
    %p256 = scmp.eq.s32.totalorder %s26, 0
    %p257 = por %p255, %p256
    %p258 = scmp.ne.s32.totalorder %s246, %s247
    %p259 = scmp.eq.s32.totalorder %s27, 1
    %p260 = por %p258, %p259
    %p262 = scmp.ne.s32.totalorder %s247, %s261
    %p263 = scmp.eq.s32.totalorder %s27, 0
    %p264 = por %p262, %p263
    %s266 = sadd.s32 %s265, 1
    %p269 = scmp.eq.s32.totalorder %s21, 1
    %p270 = scmp.ne.s32.totalorder %s265, %s267
    %p271 = scmp.eq.s32.totalorder %s21, 0
    %p272 = por %p270, %p271
    %p273 = scmp.ne.s32.totalorder %s265, %s267
    %p274 = scmp.eq.s32.totalorder %s26, 1
    %p275 = por %p273, %p274
    %p276 = scmp.ne.s32.totalorder %s267, %s268
    %p277 = scmp.eq.s32.totalorder %s26, 0
    %p278 = por %p276, %p277
    %p279 = scmp.ne.s32.totalorder %s267, %s268
    %p280 = scmp.eq.s32.totalorder %s27, 1
    %p281 = por %p279, %p280
    %p283 = scmp.ne.s32.totalorder %s268, %s282
    %p284 = scmp.eq.s32.totalorder %s27, 0
    %p285 = por %p283, %p284
    %s287 = sadd.s32 %s286, 1
    %p290 = scmp.eq.s32.totalorder %s21, 1
    %p291 = scmp.ne.s32.totalorder %s286, %s288
    %p292 = scmp.eq.s32.totalorder %s21, 0
    %p293 = por %p291, %p292
    %p294 = scmp.ne.s32.totalorder %s286, %s288
    %p295 = scmp.eq.s32.totalorder %s26, 1
    %p296 = por %p294, %p295
    %p297 = scmp.ne.s32.totalorder %s288, %s289
    %p298 = scmp.eq.s32.totalorder %s26, 0
    %p299 = por %p297, %p298
    %p300 = scmp.ne.s32.totalorder %s288, %s289
    %p301 = scmp.eq.s32.totalorder %s27, 1
    %p302 = por %p300, %p301
    %p304 = scmp.ne.s32.totalorder %s289, %s303
    %p305 = scmp.eq.s32.totalorder %s27, 0
    %p306 = por %p304, %p305
    %s307 = ssub.s32 %s21, %s28
    %p308 = scmp.eq.s32.totalorder %s307, 0
    %s310 = sadd.s32 %s309, 1
    %s311 = scalar_select %p308, %s309, %s310
    %p314 = pneg %p308
    %p315 = scmp.eq.s32.totalorder %s21, 1
    %p316 = por %p314, %p315
    %p317 = scmp.ne.s32.totalorder %s309, %s312
    %p318 = scmp.eq.s32.totalorder %s21, 0
    %p319 = por %p317, %p318
    %p320 = scmp.ne.s32.totalorder %s309, %s312
    %p321 = scmp.eq.s32.totalorder %s26, 1
    %p322 = por %p320, %p321
    %p323 = scmp.ne.s32.totalorder %s312, %s313
    %p324 = scmp.eq.s32.totalorder %s26, 0
    %p325 = por %p323, %p324
    %p326 = scmp.ne.s32.totalorder %s312, %s313
    %p327 = scmp.eq.s32.totalorder %s27, 1
    %p328 = por %p326, %p327
    %p330 = scmp.ne.s32.totalorder %s313, %s329
    %p331 = scmp.eq.s32.totalorder %s27, 0
    %p332 = por %p330, %p331
    %p333 = scmp.le.s32.totalorder 1, %s21
    %p334 = scmp.lt.s32.totalorder %s21, 3
    %p335 = pnand %p333, %p334
    %p336 = pneg %p335
    // Predicated region
    $region9: #{gnet_forward.1} parent=5 // pred_check
      _
    $region10: #{gnet_forward.1} parent=5 // pred_check_branch
      %338 = sbr.rel (%p335) target = $region12
    $region11: #{gnet_forward.1} parent=5 // pred_region
      %s339 = ssub.s32 %s21, 1
      // Predicated region
      $region13: #{gnet_forward.1} parent=11 // pred_check
        %p340 = pneg %p68
      $region14: #{gnet_forward.1} parent=11 // pred_check_branch
        %342 = sbr.rel (%p340) target = $region16
      $region15: #{gnet_forward.1} parent=11 // pred_region
        _
      $region16: #{gnet_forward.1} parent=11 // pred_fallthru
        _
      // Predicated region
      $region17: #{gnet_forward.1} parent=11 // pred_check
        %p343 = pneg %p89
      $region18: #{gnet_forward.1} parent=11 // pred_check_branch
        %345 = sbr.rel (%p343) target = $region20
      $region19: #{gnet_forward.1} parent=11 // pred_region
        _
      $region20: #{gnet_forward.1} parent=11 // pred_fallthru
        _
      // Predicated region
      $region21: #{gnet_forward.1} parent=11 // pred_check
        %p346 = pneg %p110
      $region22: #{gnet_forward.1} parent=11 // pred_check_branch
        %348 = sbr.rel (%p346) target = $region24
      $region23: #{gnet_forward.1} parent=11 // pred_region
        _
      $region24: #{gnet_forward.1} parent=11 // pred_fallthru
        _
      // Predicated region
      $region25: #{gnet_forward.1} parent=11 // pred_check
        %p349 = pneg %p131
      $region26: #{gnet_forward.1} parent=11 // pred_check_branch
        %351 = sbr.rel (%p349) target = $region28
      $region27: #{gnet_forward.1} parent=11 // pred_region
        _
      $region28: #{gnet_forward.1} parent=11 // pred_fallthru
        _
      // Predicated region
      $region29: #{gnet_forward.1} parent=11 // pred_check
        %p352 = pneg %p152
      $region30: #{gnet_forward.1} parent=11 // pred_check_branch
        %354 = sbr.rel (%p352) target = $region32
      $region31: #{gnet_forward.1} parent=11 // pred_region
        _
      $region32: #{gnet_forward.1} parent=11 // pred_fallthru
        _
      // Predicated region
      $region33: #{gnet_forward.1} parent=11 // pred_check
        %p355 = pneg %p173
      $region34: #{gnet_forward.1} parent=11 // pred_check_branch
        %357 = sbr.rel (%p355) target = $region36
      $region35: #{gnet_forward.1} parent=11 // pred_region
        _
      $region36: #{gnet_forward.1} parent=11 // pred_fallthru
        _
      // Predicated region
      $region37: #{gnet_forward.1} parent=11 // pred_check
        %p358 = pneg %p194
      $region38: #{gnet_forward.1} parent=11 // pred_check_branch
        %360 = sbr.rel (%p358) target = $region40
      $region39: #{gnet_forward.1} parent=11 // pred_region
        _
      $region40: #{gnet_forward.1} parent=11 // pred_fallthru
        _
      // Predicated region
      $region41: #{gnet_forward.1} parent=11 // pred_check
        %p361 = pneg %p215
      $region42: #{gnet_forward.1} parent=11 // pred_check_branch
        %363 = sbr.rel (%p361) target = $region44
      $region43: #{gnet_forward.1} parent=11 // pred_region
        _
      $region44: #{gnet_forward.1} parent=11 // pred_fallthru
        _
      // Predicated region
      $region45: #{gnet_forward.1} parent=11 // pred_check
        %p364 = pneg %p236
      $region46: #{gnet_forward.1} parent=11 // pred_check_branch
        %366 = sbr.rel (%p364) target = $region48
      $region47: #{gnet_forward.1} parent=11 // pred_region
        _
      $region48: #{gnet_forward.1} parent=11 // pred_fallthru
        _
      // Predicated region
      $region49: #{gnet_forward.1} parent=11 // pred_check
        %p367 = pneg %p257
      $region50: #{gnet_forward.1} parent=11 // pred_check_branch
        %369 = sbr.rel (%p367) target = $region52
      $region51: #{gnet_forward.1} parent=11 // pred_region
        _
      $region52: #{gnet_forward.1} parent=11 // pred_fallthru
        _
      // Predicated region
      $region53: #{gnet_forward.1} parent=11 // pred_check
        %p370 = pneg %p278
      $region54: #{gnet_forward.1} parent=11 // pred_check_branch
        %372 = sbr.rel (%p370) target = $region56
      $region55: #{gnet_forward.1} parent=11 // pred_region
        _
      $region56: #{gnet_forward.1} parent=11 // pred_fallthru
        _
      // Predicated region
      $region57: #{gnet_forward.1} parent=11 // pred_check
        %p373 = pneg %p299
      $region58: #{gnet_forward.1} parent=11 // pred_check_branch
        %375 = sbr.rel (%p373) target = $region60
      $region59: #{gnet_forward.1} parent=11 // pred_region
        _
      $region60: #{gnet_forward.1} parent=11 // pred_fallthru
        _
    $region12: #{gnet_forward.1} parent=5 // pred_fallthru
      _
    %p376 = scmp.lt.s32.totalorder %s21, 2
    // Predicated region
    $region61: #{gnet_forward.1} parent=5 // pred_check
      %p377 = pneg %p376
    $region62: #{gnet_forward.1} parent=5 // pred_check_branch
      %379 = sbr.rel (%p377) target = $region64
    $region63: #{gnet_forward.1} parent=5 // pred_region
      // Predicated region
      $region65: #{gnet_forward.1} parent=63 // pred_check
        %p380 = pneg %p41
      $region66: #{gnet_forward.1} parent=63 // pred_check_branch
        %382 = sbr.rel (%p380) target = $region68
      $region67: #{gnet_forward.1} parent=63 // pred_region
        %p383 = scmp.lt.s32.totalorder %s21, 1
        %s384 = scalar_select %p383, %s21, 1
        %s385 = smul.addr %s384, 8
        %s386 = scalar_lea.vmem %s0, %s385
      $region68: #{gnet_forward.1} parent=63 // pred_fallthru
        _
    $region64: #{gnet_forward.1} parent=5 // pred_fallthru
      _
    %p387 = scmp.le.s32.totalorder 1, %s21
    %p388 = scmp.lt.s32.totalorder %s21, 3
    %p389 = pnand %p387, %p388
    %p390 = pneg %p389
    // Predicated region
    $region69: #{gnet_forward.1} parent=5 // pred_check
      _
    $region70: #{gnet_forward.1} parent=5 // pred_check_branch
      %392 = sbr.rel (%p389) target = $region72
    $region71: #{gnet_forward.1} parent=5 // pred_region
      %s393 = ssub.s32 %s21, 1
      %p394 = scmp.lt.s32.totalorder %s26, 1
      %s395 = scalar_select %p394, %s26, 1
      %s396 = smul.addr %s395, 8
      %s397 = scalar_lea.vmem %s0, %s396
      %p398 = pneg %p47
      %p399 = pneg %p44
      %p400 = pneg %p68
      %p401 = pneg %p65
      %p402 = pneg %p89
      %p403 = pneg %p86
      %p404 = pneg %p110
      %p405 = pneg %p107
      %p406 = pneg %p131
      %p407 = pneg %p128
      %p408 = pneg %p152
      %p409 = pneg %p149
      %p410 = pneg %p173
      %p411 = pneg %p170
      %p412 = pneg %p194
      %p413 = pneg %p191
      %p414 = pneg %p215
      %p415 = pneg %p212
      %p416 = pneg %p236
      %p417 = pneg %p233
      %p418 = pneg %p257
      %p419 = pneg %p254
      %p420 = pneg %p278
      %p421 = pneg %p275
      %p422 = pneg %p299
      %p423 = pneg %p296
      %p424 = pneg %p325
      %p425 = pneg %p322
      %p426 = scmp.lt.s32.totalorder %s26, 1
      %s427 = scalar_select %p426, %s26, 1
      %s428 = smul.addr %s427, 7
      %s429 = scalar_lea.vmem %s13, %s428
      %p430 = scmp.lt.s32.totalorder %s26, 1
      %s431 = scalar_select %p430, %s26, 1
      %s432 = smul.addr %s431, 8
      %s433 = scalar_lea.vmem %s0, %s432
      %p434 = scmp.lt.s32.totalorder %s26, 1
      %s435 = scalar_select %p434, %s26, 1
      %s436 = smul.addr %s435, 7
      %s437 = scalar_lea.vmem %s13, %s436
      %v441 = vld [vmem:[%s433] sm:$0xff]
      %v442 = vlaneseq
      %v443 = vand.u32 %v442, 127
      %v444 = vadd.s32 %v443, 128
      %v445 = vadd.s32 %v443, 256
      %v446 = vadd.s32 %v443, 384
      %v447 = vadd.s32 %v443, 512
      %v448 = vadd.s32 %v443, 640
      %v449 = vadd.s32 %v443, 768
      %v450 = vadd.s32 %v443, 896
      %v451 = vlaneseq
      %v452 = vshrl.u32 %v451, 7
      %v453 = vadd.s32 %v452, 8
      %v454 = vadd.s32 %v452, 16
      %v455 = vadd.s32 %v452, 24
      %v456 = vmul.u32 %v452, 32
      %v457 = vmul.u32 %v453, 32
      %v458 = vmul.u32 %v454, 32
      %v459 = vmul.u32 %v455, 32
      %vm460 = vcmp.ge.s32.totalorder %v443, %v456
      %vm461 = vcmp.ge.s32.totalorder %v444, %v456
      %vm462 = vcmp.ge.s32.totalorder %v445, %v456
      %vm463 = vcmp.ge.s32.totalorder %v446, %v456
      %vm464 = vcmp.ge.s32.totalorder %v447, %v456
      %vm465 = vcmp.ge.s32.totalorder %v448, %v456
      %vm466 = vcmp.ge.s32.totalorder %v449, %v456
      %vm467 = vcmp.ge.s32.totalorder %v450, %v456
      %vm468 = vcmp.ge.s32.totalorder %v443, %v457
      %vm469 = vcmp.ge.s32.totalorder %v444, %v457
      %vm470 = vcmp.ge.s32.totalorder %v445, %v457
      %vm471 = vcmp.ge.s32.totalorder %v446, %v457
      %vm472 = vcmp.ge.s32.totalorder %v447, %v457
      %vm473 = vcmp.ge.s32.totalorder %v448, %v457
      %vm474 = vcmp.ge.s32.totalorder %v449, %v457
      %vm475 = vcmp.ge.s32.totalorder %v450, %v457
      %vm476 = vcmp.ge.s32.totalorder %v443, %v458
      %vm477 = vcmp.ge.s32.totalorder %v444, %v458
      %vm478 = vcmp.ge.s32.totalorder %v445, %v458
      %vm479 = vcmp.ge.s32.totalorder %v446, %v458
      %vm480 = vcmp.ge.s32.totalorder %v447, %v458
      %vm481 = vcmp.ge.s32.totalorder %v448, %v458
      %vm482 = vcmp.ge.s32.totalorder %v449, %v458
      %vm483 = vcmp.ge.s32.totalorder %v450, %v458
      %vm484 = vcmp.ge.s32.totalorder %v443, %v459
      %vm485 = vcmp.ge.s32.totalorder %v444, %v459
      %vm486 = vcmp.ge.s32.totalorder %v445, %v459
      %vm487 = vcmp.ge.s32.totalorder %v446, %v459
      %vm488 = vcmp.ge.s32.totalorder %v447, %v459
      %vm489 = vcmp.ge.s32.totalorder %v448, %v459
      %vm490 = vcmp.ge.s32.totalorder %v449, %v459
      %vm491 = vcmp.ge.s32.totalorder %v450, %v459
      %v492 = vadd.s32 %v456, 32
      %v493 = vadd.s32 %v457, 32
      %v494 = vadd.s32 %v458, 32
      %v495 = vadd.s32 %v459, 32
      %vm496 = vcmp.lt.s32.totalorder %v443, %v492
      %vm497 = vcmp.lt.s32.totalorder %v444, %v492
      %vm498 = vcmp.lt.s32.totalorder %v445, %v492
      %vm499 = vcmp.lt.s32.totalorder %v446, %v492
      %vm500 = vcmp.lt.s32.totalorder %v447, %v492
      %vm501 = vcmp.lt.s32.totalorder %v448, %v492
      %vm502 = vcmp.lt.s32.totalorder %v449, %v492
      %vm503 = vcmp.lt.s32.totalorder %v450, %v492
      %vm504 = vcmp.lt.s32.totalorder %v443, %v493
      %vm505 = vcmp.lt.s32.totalorder %v444, %v493
      %vm506 = vcmp.lt.s32.totalorder %v445, %v493
      %vm507 = vcmp.lt.s32.totalorder %v446, %v493
      %vm508 = vcmp.lt.s32.totalorder %v447, %v493
      %vm509 = vcmp.lt.s32.totalorder %v448, %v493
      %vm510 = vcmp.lt.s32.totalorder %v449, %v493
      %vm511 = vcmp.lt.s32.totalorder %v450, %v493
      %vm512 = vcmp.lt.s32.totalorder %v443, %v494
      %vm513 = vcmp.lt.s32.totalorder %v444, %v494
      %vm514 = vcmp.lt.s32.totalorder %v445, %v494
      %vm515 = vcmp.lt.s32.totalorder %v446, %v494
      %vm516 = vcmp.lt.s32.totalorder %v447, %v494
      %vm517 = vcmp.lt.s32.totalorder %v448, %v494
      %vm518 = vcmp.lt.s32.totalorder %v449, %v494
      %vm519 = vcmp.lt.s32.totalorder %v450, %v494
      %vm520 = vcmp.lt.s32.totalorder %v443, %v495
      %vm521 = vcmp.lt.s32.totalorder %v444, %v495
      %vm522 = vcmp.lt.s32.totalorder %v445, %v495
      %vm523 = vcmp.lt.s32.totalorder %v446, %v495
      %vm524 = vcmp.lt.s32.totalorder %v447, %v495
      %vm525 = vcmp.lt.s32.totalorder %v448, %v495
      %vm526 = vcmp.lt.s32.totalorder %v449, %v495
      %vm527 = vcmp.lt.s32.totalorder %v450, %v495
      %vm528 = vmand %vm460, %vm496
      %vm529 = vmand %vm461, %vm497
      %vm530 = vmand %vm462, %vm498
      %vm531 = vmand %vm463, %vm499
      %vm532 = vmand %vm464, %vm500
      %vm533 = vmand %vm465, %vm501
      %vm534 = vmand %vm466, %vm502
      %vm535 = vmand %vm467, %vm503
      %vm536 = vmand %vm468, %vm504
      %vm537 = vmand %vm469, %vm505
      %vm538 = vmand %vm470, %vm506
      %vm539 = vmand %vm471, %vm507
      %vm540 = vmand %vm472, %vm508
      %vm541 = vmand %vm473, %vm509
      %vm542 = vmand %vm474, %vm510
      %vm543 = vmand %vm475, %vm511
      %vm544 = vmand %vm476, %vm512
      %vm545 = vmand %vm477, %vm513
      %vm546 = vmand %vm478, %vm514
      %vm547 = vmand %vm479, %vm515
      %vm548 = vmand %vm480, %vm516
      %vm549 = vmand %vm481, %vm517
      %vm550 = vmand %vm482, %vm518
      %vm551 = vmand %vm483, %vm519
      %vm552 = vmand %vm484, %vm520
      %vm553 = vmand %vm485, %vm521
      %vm554 = vmand %vm486, %vm522
      %vm555 = vmand %vm487, %vm523
      %vm556 = vmand %vm488, %vm524
      %vm557 = vmand %vm489, %vm525
      %vm558 = vmand %vm490, %vm526
      %vm559 = vmand %vm491, %vm527
      %v561 = vlaneseq
      %v562 = vshrl.u32 %v561, 7
      %v563 = vsub.s32 0, %v562
      %v564 = vrot.slane %v441, %v563
      %v565 = vlaneseq
      %v566 = vshrl.u32 %v565, 7
      %v567 = vsub.s32 1, %v566
      %v568 = vrot.slane %v441, %v567
      %v569 = vlaneseq
      %v570 = vshrl.u32 %v569, 7
      %v571 = vsub.s32 2, %v570
      %v572 = vrot.slane %v441, %v571
      %v573 = vlaneseq
      %v574 = vshrl.u32 %v573, 7
      %v575 = vsub.s32 3, %v574
      %v576 = vrot.slane %v441, %v575
      %v577 = vlaneseq
      %v578 = vshrl.u32 %v577, 7
      %v579 = vsub.s32 4, %v578
      %v580 = vrot.slane %v441, %v579
      %v581 = vlaneseq
      %v582 = vshrl.u32 %v581, 7
      %v583 = vsub.s32 5, %v582
      %v584 = vrot.slane %v441, %v583
      %v585 = vlaneseq
      %v586 = vshrl.u32 %v585, 7
      %v587 = vsub.s32 6, %v586
      %v588 = vrot.slane %v441, %v587
      %v589 = vlaneseq
      %v590 = vshrl.u32 %v589, 7
      %v591 = vsub.s32 7, %v590
      %v592 = vrot.slane %v441, %v591
      %v601 = vsel %vm528, %v564, 0.0
      %v602 = vsel %vm529, %v568, 0.0
      %v603 = vsel %vm530, %v572, 0.0
      %v604 = vsel %vm531, %v576, 0.0
      %v605 = vsel %vm532, %v580, 0.0
      %v606 = vsel %vm533, %v584, 0.0
      %v607 = vsel %vm534, %v588, 0.0
      %v608 = vsel %vm535, %v592, 0.0
      %v609 = vsel %vm536, %v564, 0.0
      %v610 = vsel %vm537, %v568, 0.0
      %v611 = vsel %vm538, %v572, 0.0
      %v612 = vsel %vm539, %v576, 0.0
      %v613 = vsel %vm540, %v580, 0.0
      %v614 = vsel %vm541, %v584, 0.0
      %v615 = vsel %vm542, %v588, 0.0
      %v616 = vsel %vm543, %v592, 0.0
      %v617 = vsel %vm544, %v564, 0.0
      %v618 = vsel %vm545, %v568, 0.0
      %v619 = vsel %vm546, %v572, 0.0
      %v620 = vsel %vm547, %v576, 0.0
      %v621 = vsel %vm548, %v580, 0.0
      %v622 = vsel %vm549, %v584, 0.0
      %v623 = vsel %vm550, %v588, 0.0
      %v624 = vsel %vm551, %v592, 0.0
      %v625 = vsel %vm552, %v564, 0.0
      %v626 = vsel %vm553, %v568, 0.0
      %v627 = vsel %vm554, %v572, 0.0
      %v628 = vsel %vm555, %v576, 0.0
      %v629 = vsel %vm556, %v580, 0.0
      %v630 = vsel %vm557, %v584, 0.0
      %v631 = vsel %vm558, %v588, 0.0
      %v632 = vsel %vm559, %v592, 0.0
      %v633 = vpack.c.bf16 %v609, %v601
      %v634 = vpack.c.bf16 %v610, %v602
      %v635 = vpack.c.bf16 %v611, %v603
      %v636 = vpack.c.bf16 %v612, %v604
      %v637 = vpack.c.bf16 %v613, %v605
      %v638 = vpack.c.bf16 %v614, %v606
      %v639 = vpack.c.bf16 %v615, %v607
      %v640 = vpack.c.bf16 %v616, %v608
      %v641 = vpack.c.bf16 %v625, %v617
      %v642 = vpack.c.bf16 %v626, %v618
      %v643 = vpack.c.bf16 %v627, %v619
      %v644 = vpack.c.bf16 %v628, %v620
      %v645 = vpack.c.bf16 %v629, %v621
      %v646 = vpack.c.bf16 %v630, %v622
      %v647 = vpack.c.bf16 %v631, %v623
      %v648 = vpack.c.bf16 %v632, %v624
      %v649 = vld [vmem:[%s1] sm:$0xf]
      %v650 = vld [vmem:[%s1 + $0x4] sm:$0xf]
      %v651 = vld [vmem:[%s1 + $0x8] sm:$0xf]
      %v652 = vld [vmem:[%s1 + $0xc] sm:$0xf]
      %v653 = vld [vmem:[%s1 + $0x10] sm:$0xf]
      %v654 = vld [vmem:[%s1 + $0x14] sm:$0xf]
      %v655 = vld [vmem:[%s1 + $0x18] sm:$0xf]
      %v656 = vld [vmem:[%s1 + $0x1c] sm:$0xf]
      %v657 = vld [vmem:[%s1 + $0x20] sm:$0xf]
      %v658 = vld [vmem:[%s1 + $0x24] sm:$0xf]
      %v659 = vld [vmem:[%s1 + $0x28] sm:$0xf]
      %v660 = vld [vmem:[%s1 + $0x2c] sm:$0xf]
      %v661 = vld [vmem:[%s1 + $0x30] sm:$0xf]
      %v662 = vld [vmem:[%s1 + $0x34] sm:$0xf]
      %v663 = vld [vmem:[%s1 + $0x38] sm:$0xf]
      %v664 = vld [vmem:[%s1 + $0x3c] sm:$0xf]
      %v665 = vld [vmem:[%s1 + $0x40] sm:$0xf]
      %v666 = vld [vmem:[%s1 + $0x44] sm:$0xf]
      %v667 = vld [vmem:[%s1 + $0x48] sm:$0xf]
      %v668 = vld [vmem:[%s1 + $0x4c] sm:$0xf]
      %v669 = vld [vmem:[%s1 + $0x50] sm:$0xf]
      %v670 = vld [vmem:[%s1 + $0x54] sm:$0xf]
      %v671 = vld [vmem:[%s1 + $0x58] sm:$0xf]
      %v672 = vld [vmem:[%s1 + $0x5c] sm:$0xf]
      %v673 = vld [vmem:[%s1 + $0x60] sm:$0xf]
      %v674 = vld [vmem:[%s1 + $0x64] sm:$0xf]
      %v675 = vld [vmem:[%s1 + $0x68] sm:$0xf]
      %v676 = vld [vmem:[%s1 + $0x6c] sm:$0xf]
      %v677 = vld [vmem:[%s1 + $0x70] sm:$0xf]
      %v678 = vld [vmem:[%s1 + $0x74] sm:$0xf]
      %v679 = vld [vmem:[%s1 + $0x78] sm:$0xf]
      %v680 = vld [vmem:[%s1 + $0x7c] sm:$0xf]
      %v681 = vld [vmem:[%s1 + $0x80] sm:$0xf]
      %v682 = vld [vmem:[%s1 + $0x84] sm:$0xf]
      %v683 = vld [vmem:[%s1 + $0x88] sm:$0xf]
      %v684 = vld [vmem:[%s1 + $0x8c] sm:$0xf]
      %v685 = vld [vmem:[%s1 + $0x90] sm:$0xf]
      %v686 = vld [vmem:[%s1 + $0x94] sm:$0xf]
      %v687 = vld [vmem:[%s1 + $0x98] sm:$0xf]
      %v688 = vld [vmem:[%s1 + $0x9c] sm:$0xf]
      %v689 = vld [vmem:[%s1 + $0xa0] sm:$0xf]
      %v690 = vld [vmem:[%s1 + $0xa4] sm:$0xf]
      %v691 = vld [vmem:[%s1 + $0xa8] sm:$0xf]
      %v692 = vld [vmem:[%s1 + $0xac] sm:$0xf]
      %v693 = vld [vmem:[%s1 + $0xb0] sm:$0xf]
      %v694 = vld [vmem:[%s1 + $0xb4] sm:$0xf]
      %v695 = vld [vmem:[%s1 + $0xb8] sm:$0xf]
      %v696 = vld [vmem:[%s1 + $0xbc] sm:$0xf]
      %v697 = vld [vmem:[%s1 + $0xc0] sm:$0xf]
      %v698 = vld [vmem:[%s1 + $0xc4] sm:$0xf]
      %v699 = vld [vmem:[%s1 + $0xc8] sm:$0xf]
      %v700 = vld [vmem:[%s1 + $0xcc] sm:$0xf]
      %v701 = vld [vmem:[%s1 + $0xd0] sm:$0xf]
      %v702 = vld [vmem:[%s1 + $0xd4] sm:$0xf]
      %v703 = vld [vmem:[%s1 + $0xd8] sm:$0xf]
      %v704 = vld [vmem:[%s1 + $0xdc] sm:$0xf]
      %v705 = vld [vmem:[%s1 + $0xe0] sm:$0xf]
      %v706 = vld [vmem:[%s1 + $0xe4] sm:$0xf]
      %v707 = vld [vmem:[%s1 + $0xe8] sm:$0xf]
      %v708 = vld [vmem:[%s1 + $0xec] sm:$0xf]
      %v709 = vld [vmem:[%s1 + $0xf0] sm:$0xf]
      %v710 = vld [vmem:[%s1 + $0xf4] sm:$0xf]
      %v711 = vld [vmem:[%s1 + $0xf8] sm:$0xf]
      %v712 = vld [vmem:[%s1 + $0xfc] sm:$0xf]
      %v713 = vld [vmem:[%s1 + $0x100] sm:$0xf]
      %v714 = vld [vmem:[%s1 + $0x104] sm:$0xf]
      %v715 = vld [vmem:[%s1 + $0x108] sm:$0xf]
      %v716 = vld [vmem:[%s1 + $0x10c] sm:$0xf]
      %v717 = vld [vmem:[%s1 + $0x110] sm:$0xf]
      %v718 = vld [vmem:[%s1 + $0x114] sm:$0xf]
      %v719 = vld [vmem:[%s1 + $0x118] sm:$0xf]
      %v720 = vld [vmem:[%s1 + $0x11c] sm:$0xf]
      %v721 = vld [vmem:[%s1 + $0x120] sm:$0xf]
      %v722 = vld [vmem:[%s1 + $0x124] sm:$0xf]
      %v723 = vld [vmem:[%s1 + $0x128] sm:$0xf]
      %v724 = vld [vmem:[%s1 + $0x12c] sm:$0xf]
      %v725 = vld [vmem:[%s1 + $0x130] sm:$0xf]
      %v726 = vld [vmem:[%s1 + $0x134] sm:$0xf]
      %v727 = vld [vmem:[%s1 + $0x138] sm:$0xf]
      %v728 = vld [vmem:[%s1 + $0x13c] sm:$0xf]
      %v729 = vld [vmem:[%s1 + $0x140] sm:$0xf]
      %v730 = vld [vmem:[%s1 + $0x144] sm:$0xf]
      %v731 = vld [vmem:[%s1 + $0x148] sm:$0xf]
      %v732 = vld [vmem:[%s1 + $0x14c] sm:$0xf]
      %v733 = vld [vmem:[%s1 + $0x150] sm:$0xf]
      %v734 = vld [vmem:[%s1 + $0x154] sm:$0xf]
      %v735 = vld [vmem:[%s1 + $0x158] sm:$0xf]
      %v736 = vld [vmem:[%s1 + $0x15c] sm:$0xf]
      %v737 = vld [vmem:[%s1 + $0x160] sm:$0xf]
      %v738 = vld [vmem:[%s1 + $0x164] sm:$0xf]
      %v739 = vld [vmem:[%s1 + $0x168] sm:$0xf]
      %v740 = vld [vmem:[%s1 + $0x16c] sm:$0xf]
      %v741 = vld [vmem:[%s1 + $0x170] sm:$0xf]
      %v742 = vld [vmem:[%s1 + $0x174] sm:$0xf]
      %v743 = vld [vmem:[%s1 + $0x178] sm:$0xf]
      %v744 = vld [vmem:[%s1 + $0x17c] sm:$0xf]
      %v745 = vld [vmem:[%s1 + $0x180] sm:$0xf]
      %v746 = vld [vmem:[%s1 + $0x184] sm:$0xf]
      %v747 = vld [vmem:[%s1 + $0x188] sm:$0xf]
      %v748 = vld [vmem:[%s1 + $0x18c] sm:$0xf]
      %v749 = vld [vmem:[%s1 + $0x190] sm:$0xf]
      %v750 = vld [vmem:[%s1 + $0x194] sm:$0xf]
      %v751 = vld [vmem:[%s1 + $0x198] sm:$0xf]
      %v752 = vld [vmem:[%s1 + $0x19c] sm:$0xf]
      %v753 = vld [vmem:[%s1 + $0x1a0] sm:$0xf]
      %v754 = vld [vmem:[%s1 + $0x1a4] sm:$0xf]
      %v755 = vld [vmem:[%s1 + $0x1a8] sm:$0xf]
      %v756 = vld [vmem:[%s1 + $0x1ac] sm:$0xf]
      %v757 = vld [vmem:[%s1 + $0x1b0] sm:$0xf]
      %v758 = vld [vmem:[%s1 + $0x1b4] sm:$0xf]
      %v759 = vld [vmem:[%s1 + $0x1b8] sm:$0xf]
      %v760 = vld [vmem:[%s1 + $0x1bc] sm:$0xf]
      %v761 = vld [vmem:[%s1 + $0x1c0] sm:$0xf]
      %v762 = vld [vmem:[%s1 + $0x1c4] sm:$0xf]
      %v763 = vld [vmem:[%s1 + $0x1c8] sm:$0xf]
      %v764 = vld [vmem:[%s1 + $0x1cc] sm:$0xf]
      %v765 = vld [vmem:[%s1 + $0x1d0] sm:$0xf]
      %v766 = vld [vmem:[%s1 + $0x1d4] sm:$0xf]
      %v767 = vld [vmem:[%s1 + $0x1d8] sm:$0xf]
      %v768 = vld [vmem:[%s1 + $0x1dc] sm:$0xf]
      %v769 = vld [vmem:[%s1 + $0x1e0] sm:$0xf]
      %v770 = vld [vmem:[%s1 + $0x1e4] sm:$0xf]
      %v771 = vld [vmem:[%s1 + $0x1e8] sm:$0xf]
      %v772 = vld [vmem:[%s1 + $0x1ec] sm:$0xf]
      %v773 = vld [vmem:[%s1 + $0x1f0] sm:$0xf]
      %v774 = vld [vmem:[%s1 + $0x1f4] sm:$0xf]
      %v775 = vld [vmem:[%s1 + $0x1f8] sm:$0xf]
      %v776 = vld [vmem:[%s1 + $0x1fc] sm:$0xf]
      %v777 = vld [vmem:[%s2] sm:$0xff]
      %v778 = vld [vmem:[%s2 + $0x8] sm:$0xff]
      %v779 = vld [vmem:[%s2 + $0x10] sm:$0xff]
      %v780 = vld [vmem:[%s2 + $0x18] sm:$0xff]
      %v909 = vunpack.c.l.b16 %v649
      %v910 = vunpack.c.l.b16 %v650
      %v911 = vunpack.c.l.b16 %v651
      %v912 = vunpack.c.l.b16 %v652
      %v913 = vunpack.c.l.b16 %v653
      %v914 = vunpack.c.l.b16 %v654
      %v915 = vunpack.c.l.b16 %v655
      %v916 = vunpack.c.l.b16 %v656
      %v917 = vunpack.c.l.b16 %v657
      %v918 = vunpack.c.l.b16 %v658
      %v919 = vunpack.c.l.b16 %v659
      %v920 = vunpack.c.l.b16 %v660
      %v921 = vunpack.c.l.b16 %v661
      %v922 = vunpack.c.l.b16 %v662
      %v923 = vunpack.c.l.b16 %v663
      %v924 = vunpack.c.l.b16 %v664
      %v925 = vunpack.c.l.b16 %v665
      %v926 = vunpack.c.l.b16 %v666
      %v927 = vunpack.c.l.b16 %v667
      %v928 = vunpack.c.l.b16 %v668
      %v929 = vunpack.c.l.b16 %v669
      %v930 = vunpack.c.l.b16 %v670
      %v931 = vunpack.c.l.b16 %v671
      %v932 = vunpack.c.l.b16 %v672
      %v933 = vunpack.c.l.b16 %v673
      %v934 = vunpack.c.l.b16 %v674
      %v935 = vunpack.c.l.b16 %v675
      %v936 = vunpack.c.l.b16 %v676
      %v937 = vunpack.c.l.b16 %v677
      %v938 = vunpack.c.l.b16 %v678
      %v939 = vunpack.c.l.b16 %v679
      %v940 = vunpack.c.l.b16 %v680
      %v941 = vunpack.c.l.b16 %v681
      %v942 = vunpack.c.l.b16 %v682
      %v943 = vunpack.c.l.b16 %v683
      %v944 = vunpack.c.l.b16 %v684
      %v945 = vunpack.c.l.b16 %v685
      %v946 = vunpack.c.l.b16 %v686
      %v947 = vunpack.c.l.b16 %v687
      %v948 = vunpack.c.l.b16 %v688
      %v949 = vunpack.c.l.b16 %v689
      %v950 = vunpack.c.l.b16 %v690
      %v951 = vunpack.c.l.b16 %v691
      %v952 = vunpack.c.l.b16 %v692
      %v953 = vunpack.c.l.b16 %v693
      %v954 = vunpack.c.l.b16 %v694
      %v955 = vunpack.c.l.b16 %v695
      %v956 = vunpack.c.l.b16 %v696
      %v957 = vunpack.c.l.b16 %v697
      %v958 = vunpack.c.l.b16 %v698
      %v959 = vunpack.c.l.b16 %v699
      %v960 = vunpack.c.l.b16 %v700
      %v961 = vunpack.c.l.b16 %v701
      %v962 = vunpack.c.l.b16 %v702
      %v963 = vunpack.c.l.b16 %v703
      %v964 = vunpack.c.l.b16 %v704
      %v965 = vunpack.c.l.b16 %v705
      %v966 = vunpack.c.l.b16 %v706
      %v967 = vunpack.c.l.b16 %v707
      %v968 = vunpack.c.l.b16 %v708
      %v969 = vunpack.c.l.b16 %v709
      %v970 = vunpack.c.l.b16 %v710
      %v971 = vunpack.c.l.b16 %v711
      %v972 = vunpack.c.l.b16 %v712
      %v973 = vunpack.c.l.b16 %v713
      %v974 = vunpack.c.l.b16 %v714
      %v975 = vunpack.c.l.b16 %v715
      %v976 = vunpack.c.l.b16 %v716
      %v977 = vunpack.c.l.b16 %v717
      %v978 = vunpack.c.l.b16 %v718
      %v979 = vunpack.c.l.b16 %v719
      %v980 = vunpack.c.l.b16 %v720
      %v981 = vunpack.c.l.b16 %v721
      %v982 = vunpack.c.l.b16 %v722
      %v983 = vunpack.c.l.b16 %v723
      %v984 = vunpack.c.l.b16 %v724
      %v985 = vunpack.c.l.b16 %v725
      %v986 = vunpack.c.l.b16 %v726
      %v987 = vunpack.c.l.b16 %v727
      %v988 = vunpack.c.l.b16 %v728
      %v989 = vunpack.c.l.b16 %v729
      %v990 = vunpack.c.l.b16 %v730
      %v991 = vunpack.c.l.b16 %v731
      %v992 = vunpack.c.l.b16 %v732
      %v993 = vunpack.c.l.b16 %v733
      %v994 = vunpack.c.l.b16 %v734
      %v995 = vunpack.c.l.b16 %v735
      %v996 = vunpack.c.l.b16 %v736
      %v997 = vunpack.c.l.b16 %v737
      %v998 = vunpack.c.l.b16 %v738
      %v999 = vunpack.c.l.b16 %v739
      %v1000 = vunpack.c.l.b16 %v740
      %v1001 = vunpack.c.l.b16 %v741
      %v1002 = vunpack.c.l.b16 %v742
      %v1003 = vunpack.c.l.b16 %v743
      %v1004 = vunpack.c.l.b16 %v744
      %v1005 = vunpack.c.l.b16 %v745
      %v1006 = vunpack.c.l.b16 %v746
      %v1007 = vunpack.c.l.b16 %v747
      %v1008 = vunpack.c.l.b16 %v748
      %v1009 = vunpack.c.l.b16 %v749
      %v1010 = vunpack.c.l.b16 %v750
      %v1011 = vunpack.c.l.b16 %v751
      %v1012 = vunpack.c.l.b16 %v752
      %v1013 = vunpack.c.l.b16 %v753
      %v1014 = vunpack.c.l.b16 %v754
      %v1015 = vunpack.c.l.b16 %v755
      %v1016 = vunpack.c.l.b16 %v756
      %v1017 = vunpack.c.l.b16 %v757
      %v1018 = vunpack.c.l.b16 %v758
      %v1019 = vunpack.c.l.b16 %v759
      %v1020 = vunpack.c.l.b16 %v760
      %v1021 = vunpack.c.l.b16 %v761
      %v1022 = vunpack.c.l.b16 %v762
      %v1023 = vunpack.c.l.b16 %v763
      %v1024 = vunpack.c.l.b16 %v764
      %v1025 = vunpack.c.l.b16 %v765
      %v1026 = vunpack.c.l.b16 %v766
      %v1027 = vunpack.c.l.b16 %v767
      %v1028 = vunpack.c.l.b16 %v768
      %v1029 = vunpack.c.l.b16 %v769
      %v1030 = vunpack.c.l.b16 %v770
      %v1031 = vunpack.c.l.b16 %v771
      %v1032 = vunpack.c.l.b16 %v772
      %v1033 = vunpack.c.l.b16 %v773
      %v1034 = vunpack.c.l.b16 %v774
      %v1035 = vunpack.c.l.b16 %v775
      %v1036 = vunpack.c.l.b16 %v776
      %v1037 = vpack.c.b16 %v910, %v909
      %v1038 = vpack.c.b16 %v912, %v911
      %v1039 = vpack.c.b16 %v914, %v913
      %v1040 = vpack.c.b16 %v916, %v915
      %v1041 = vpack.c.b16 %v918, %v917
      %v1042 = vpack.c.b16 %v920, %v919
      %v1043 = vpack.c.b16 %v922, %v921
      %v1044 = vpack.c.b16 %v924, %v923
      %v1045 = vpack.c.b16 %v926, %v925
      %v1046 = vpack.c.b16 %v928, %v927
      %v1047 = vpack.c.b16 %v930, %v929
      %v1048 = vpack.c.b16 %v932, %v931
      %v1049 = vpack.c.b16 %v934, %v933
      %v1050 = vpack.c.b16 %v936, %v935
      %v1051 = vpack.c.b16 %v938, %v937
      %v1052 = vpack.c.b16 %v940, %v939
      %v1053 = vpack.c.b16 %v942, %v941
      %v1054 = vpack.c.b16 %v944, %v943
      %v1055 = vpack.c.b16 %v946, %v945
      %v1056 = vpack.c.b16 %v948, %v947
      %v1057 = vpack.c.b16 %v950, %v949
      %v1058 = vpack.c.b16 %v952, %v951
      %v1059 = vpack.c.b16 %v954, %v953
      %v1060 = vpack.c.b16 %v956, %v955
      %v1061 = vpack.c.b16 %v958, %v957
      %v1062 = vpack.c.b16 %v960, %v959
      %v1063 = vpack.c.b16 %v962, %v961
      %v1064 = vpack.c.b16 %v964, %v963
      %v1065 = vpack.c.b16 %v966, %v965
      %v1066 = vpack.c.b16 %v968, %v967
      %v1067 = vpack.c.b16 %v970, %v969
      %v1068 = vpack.c.b16 %v972, %v971
      %v1069 = vpack.c.b16 %v974, %v973
      %v1070 = vpack.c.b16 %v976, %v975
      %v1071 = vpack.c.b16 %v978, %v977
      %v1072 = vpack.c.b16 %v980, %v979
      %v1073 = vpack.c.b16 %v982, %v981
      %v1074 = vpack.c.b16 %v984, %v983
      %v1075 = vpack.c.b16 %v986, %v985
      %v1076 = vpack.c.b16 %v988, %v987
      %v1077 = vpack.c.b16 %v990, %v989
      %v1078 = vpack.c.b16 %v992, %v991
      %v1079 = vpack.c.b16 %v994, %v993
      %v1080 = vpack.c.b16 %v996, %v995
      %v1081 = vpack.c.b16 %v998, %v997
      %v1082 = vpack.c.b16 %v1000, %v999
      %v1083 = vpack.c.b16 %v1002, %v1001
      %v1084 = vpack.c.b16 %v1004, %v1003
      %v1085 = vpack.c.b16 %v1006, %v1005
      %v1086 = vpack.c.b16 %v1008, %v1007
      %v1087 = vpack.c.b16 %v1010, %v1009
      %v1088 = vpack.c.b16 %v1012, %v1011
      %v1089 = vpack.c.b16 %v1014, %v1013
      %v1090 = vpack.c.b16 %v1016, %v1015
      %v1091 = vpack.c.b16 %v1018, %v1017
      %v1092 = vpack.c.b16 %v1020, %v1019
      %v1093 = vpack.c.b16 %v1022, %v1021
      %v1094 = vpack.c.b16 %v1024, %v1023
      %v1095 = vpack.c.b16 %v1026, %v1025
      %v1096 = vpack.c.b16 %v1028, %v1027
      %v1097 = vpack.c.b16 %v1030, %v1029
      %v1098 = vpack.c.b16 %v1032, %v1031
      %v1099 = vpack.c.b16 %v1034, %v1033
      %v1100 = vpack.c.b16 %v1036, %v1035
      %1165 = vmatprep.subr.bf16.mxu0 0
      %1166 = vmatpush1.bf16.msra.mxu0 %v1037
      %1167 = vmatprep.subr.bf16.mxu0 0
      %1168 = vmatpush1.bf16.msra.mxu0 %v1038
      %1169 = vmatprep.subr.bf16.mxu0 0
      %1170 = vmatpush1.bf16.msra.mxu0 %v1039
      %1171 = vmatprep.subr.bf16.mxu0 0
      %1172 = vmatpush1.bf16.msra.mxu0 %v1040
      %1173 = vmatprep.subr.bf16.mxu0 0
      %1174 = vmatpush1.bf16.msra.mxu0 %v1041
      %1175 = vmatprep.subr.bf16.mxu0 0
      %1176 = vmatpush1.bf16.msra.mxu0 %v1042
      %1177 = vmatprep.subr.bf16.mxu0 0
      %1178 = vmatpush1.bf16.msra.mxu0 %v1043
      %1179 = vmatprep.subr.bf16.mxu0 0
      %1180 = vmatpush1.bf16.msra.mxu0 %v1044
      %1181 = vmatprep.subr.bf16.mxu0 0
      %1182 = vmatpush1.bf16.msra.mxu0 %v1045
      %1183 = vmatprep.subr.bf16.mxu0 0
      %1184 = vmatpush1.bf16.msra.mxu0 %v1046
      %1185 = vmatprep.subr.bf16.mxu0 0
      %1186 = vmatpush1.bf16.msra.mxu0 %v1047
      %1187 = vmatprep.subr.bf16.mxu0 0
      %1188 = vmatpush1.bf16.msra.mxu0 %v1048
      %1189 = vmatprep.subr.bf16.mxu0 0
      %1190 = vmatpush1.bf16.msra.mxu0 %v1049
      %1191 = vmatprep.subr.bf16.mxu0 0
      %1192 = vmatpush1.bf16.msra.mxu0 %v1050
      %1193 = vmatprep.subr.bf16.mxu0 0
      %1194 = vmatpush1.bf16.msra.mxu0 %v1051
      %1195 = vmatprep.subr.bf16.mxu0 0
      %1196 = vmatpush1.bf16.msra.mxu0 %v1052
      %1197 = vmatprep.mubr.bf16.mxu0 %v634
      %1198 = vmatmul.mubr.bf16.gmra.mrb[0].mxu0 %v633
      %v1199 = vpop.f32.mrb[0].mxu0
      %v1200 = vadd.f32 %v777, %v1199
      %v1201 = vpop.f32.mrb[0].mxu0
      %v1202 = vpop.f32.mrb[0].mxu0
      %v1203 = vadd.f32 %v778, %v1202
      %v1204 = vpop.f32.mrb[0].mxu0
      %1205 = vmatprep.mubr.bf16.mxu0 %v642
      %1206 = vmatmul.mubr.bf16.gmra.mrb[0].mxu0 %v641
      %v1207 = vpop.f32.mrb[0].mxu0
      %v1208 = vadd.f32 %v779, %v1207
      %v1209 = vpop.f32.mrb[0].mxu0
      %v1210 = vpop.f32.mrb[0].mxu0
      %v1211 = vadd.f32 %v780, %v1210
      %v1212 = vpop.f32.mrb[0].mxu0
      %1213 = vdwg.mxu0
      %1214 = vmatprep.subr.bf16.mxu0 0
      %1215 = vmatpush1.bf16.msra.mxu0 %v1053
      %1216 = vmatprep.subr.bf16.mxu0 0
      %1217 = vmatpush1.bf16.msra.mxu0 %v1054
      %1218 = vmatprep.subr.bf16.mxu0 0
      %1219 = vmatpush1.bf16.msra.mxu0 %v1055
      %1220 = vmatprep.subr.bf16.mxu0 0
      %1221 = vmatpush1.bf16.msra.mxu0 %v1056
      %1222 = vmatprep.subr.bf16.mxu0 0
      %1223 = vmatpush1.bf16.msra.mxu0 %v1057
      %1224 = vmatprep.subr.bf16.mxu0 0
      %1225 = vmatpush1.bf16.msra.mxu0 %v1058
      %1226 = vmatprep.subr.bf16.mxu0 0
      %1227 = vmatpush1.bf16.msra.mxu0 %v1059
      %1228 = vmatprep.subr.bf16.mxu0 0
      %1229 = vmatpush1.bf16.msra.mxu0 %v1060
      %1230 = vmatprep.subr.bf16.mxu0 0
      %1231 = vmatpush1.bf16.msra.mxu0 %v1061
      %1232 = vmatprep.subr.bf16.mxu0 0
      %1233 = vmatpush1.bf16.msra.mxu0 %v1062
      %1234 = vmatprep.subr.bf16.mxu0 0
      %1235 = vmatpush1.bf16.msra.mxu0 %v1063
      %1236 = vmatprep.subr.bf16.mxu0 0
      %1237 = vmatpush1.bf16.msra.mxu0 %v1064
      %1238 = vmatprep.subr.bf16.mxu0 0
      %1239 = vmatpush1.bf16.msra.mxu0 %v1065
      %1240 = vmatprep.subr.bf16.mxu0 0
      %1241 = vmatpush1.bf16.msra.mxu0 %v1066
      %1242 = vmatprep.subr.bf16.mxu0 0
      %1243 = vmatpush1.bf16.msra.mxu0 %v1067
      %1244 = vmatprep.subr.bf16.mxu0 0
      %1245 = vmatpush1.bf16.msra.mxu0 %v1068
      %1246 = vmatprep.mubr.bf16.mxu0 %v636
      %1247 = vmatmul.mubr.bf16.gmra.mrb[0].mxu0 %v635
      %v1248 = vpop.f32.mrb[0].mxu0
      %v1249 = vadd.f32 %v1200, %v1248
      %v1250 = vpop.f32.mrb[0].mxu0
      %v1251 = vpop.f32.mrb[0].mxu0
      %v1252 = vadd.f32 %v1203, %v1251
      %v1253 = vpop.f32.mrb[0].mxu0
      %1254 = vmatprep.mubr.bf16.mxu0 %v644
      %1255 = vmatmul.mubr.bf16.gmra.mrb[0].mxu0 %v643
      %v1256 = vpop.f32.mrb[0].mxu0
      %v1257 = vadd.f32 %v1208, %v1256
      %v1258 = vpop.f32.mrb[0].mxu0
      %v1259 = vpop.f32.mrb[0].mxu0
      %v1260 = vadd.f32 %v1211, %v1259
      %v1261 = vpop.f32.mrb[0].mxu0
      %1262 = vdwg.mxu0
      %1263 = vmatprep.subr.bf16.mxu0 0
      %1264 = vmatpush1.bf16.msra.mxu0 %v1069
      %1265 = vmatprep.subr.bf16.mxu0 0
      %1266 = vmatpush1.bf16.msra.mxu0 %v1070
      %1267 = vmatprep.subr.bf16.mxu0 0
      %1268 = vmatpush1.bf16.msra.mxu0 %v1071
      %1269 = vmatprep.subr.bf16.mxu0 0
      %1270 = vmatpush1.bf16.msra.mxu0 %v1072
      %1271 = vmatprep.subr.bf16.mxu0 0
      %1272 = vmatpush1.bf16.msra.mxu0 %v1073
      %1273 = vmatprep.subr.bf16.mxu0 0
      %1274 = vmatpush1.bf16.msra.mxu0 %v1074
      %1275 = vmatprep.subr.bf16.mxu0 0
      %1276 = vmatpush1.bf16.msra.mxu0 %v1075
      %1277 = vmatprep.subr.bf16.mxu0 0
      %1278 = vmatpush1.bf16.msra.mxu0 %v1076
      %1279 = vmatprep.subr.bf16.mxu0 0
      %1280 = vmatpush1.bf16.msra.mxu0 %v1077
      %1281 = vmatprep.subr.bf16.mxu0 0
      %1282 = vmatpush1.bf16.msra.mxu0 %v1078
      %1283 = vmatprep.subr.bf16.mxu0 0
      %1284 = vmatpush1.bf16.msra.mxu0 %v1079
      %1285 = vmatprep.subr.bf16.mxu0 0
      %1286 = vmatpush1.bf16.msra.mxu0 %v1080
      %1287 = vmatprep.subr.bf16.mxu0 0
      %1288 = vmatpush1.bf16.msra.mxu0 %v1081
      %1289 = vmatprep.subr.bf16.mxu0 0
      %1290 = vmatpush1.bf16.msra.mxu0 %v1082
      %1291 = vmatprep.subr.bf16.mxu0 0
      %1292 = vmatpush1.bf16.msra.mxu0 %v1083
      %1293 = vmatprep.subr.bf16.mxu0 0
      %1294 = vmatpush1.bf16.msra.mxu0 %v1084
      %1295 = vmatprep.mubr.bf16.mxu0 %v638
      %1296 = vmatmul.mubr.bf16.gmra.mrb[0].mxu0 %v637
      %v1297 = vpop.f32.mrb[0].mxu0
      %v1298 = vadd.f32 %v1249, %v1297
      %v1299 = vpop.f32.mrb[0].mxu0
      %v1300 = vpop.f32.mrb[0].mxu0
      %v1301 = vadd.f32 %v1252, %v1300
      %v1302 = vpop.f32.mrb[0].mxu0
      %1303 = vmatprep.mubr.bf16.mxu0 %v646
      %1304 = vmatmul.mubr.bf16.gmra.mrb[0].mxu0 %v645
      %v1305 = vpop.f32.mrb[0].mxu0
      %v1306 = vadd.f32 %v1257, %v1305
      %v1307 = vpop.f32.mrb[0].mxu0
      %v1308 = vpop.f32.mrb[0].mxu0
      %v1309 = vadd.f32 %v1260, %v1308
      %v1310 = vpop.f32.mrb[0].mxu0
      %1311 = vdwg.mxu0
      %1312 = vmatprep.subr.bf16.mxu0 0
      %1313 = vmatpush1.bf16.msra.mxu0 %v1085
      %1314 = vmatprep.subr.bf16.mxu0 0
      %1315 = vmatpush1.bf16.msra.mxu0 %v1086
      %1316 = vmatprep.subr.bf16.mxu0 0
      %1317 = vmatpush1.bf16.msra.mxu0 %v1087
      %1318 = vmatprep.subr.bf16.mxu0 0
      %1319 = vmatpush1.bf16.msra.mxu0 %v1088
      %1320 = vmatprep.subr.bf16.mxu0 0
      %1321 = vmatpush1.bf16.msra.mxu0 %v1089
      %1322 = vmatprep.subr.bf16.mxu0 0
      %1323 = vmatpush1.bf16.msra.mxu0 %v1090
      %1324 = vmatprep.subr.bf16.mxu0 0
      %1325 = vmatpush1.bf16.msra.mxu0 %v1091
      %1326 = vmatprep.subr.bf16.mxu0 0
      %1327 = vmatpush1.bf16.msra.mxu0 %v1092
      %1328 = vmatprep.subr.bf16.mxu0 0
      %1329 = vmatpush1.bf16.msra.mxu0 %v1093
      %1330 = vmatprep.subr.bf16.mxu0 0
      %1331 = vmatpush1.bf16.msra.mxu0 %v1094
      %1332 = vmatprep.subr.bf16.mxu0 0
      %1333 = vmatpush1.bf16.msra.mxu0 %v1095
      %1334 = vmatprep.subr.bf16.mxu0 0
      %1335 = vmatpush1.bf16.msra.mxu0 %v1096
      %1336 = vmatprep.subr.bf16.mxu0 0
      %1337 = vmatpush1.bf16.msra.mxu0 %v1097
      %1338 = vmatprep.subr.bf16.mxu0 0
      %1339 = vmatpush1.bf16.msra.mxu0 %v1098
      %1340 = vmatprep.subr.bf16.mxu0 0
      %1341 = vmatpush1.bf16.msra.mxu0 %v1099
      %1342 = vmatprep.subr.bf16.mxu0 0
      %1343 = vmatpush1.bf16.msra.mxu0 %v1100
      %1344 = vmatprep.mubr.bf16.mxu0 %v640
      %1345 = vmatmul.mubr.bf16.gmra.mrb[0].mxu0 %v639
      %v1346 = vpop.f32.mrb[0].mxu0
      %v1347 = vadd.f32 %v1298, %v1346
      %v1348 = vpop.f32.mrb[0].mxu0
      %v1349 = vpop.f32.mrb[0].mxu0
      %v1350 = vadd.f32 %v1301, %v1349
      %v1351 = vpop.f32.mrb[0].mxu0
      %1352 = vmatprep.mubr.bf16.mxu0 %v648
      %1353 = vmatmul.mubr.bf16.gmra.mrb[0].mxu0 %v647
      %v1354 = vpop.f32.mrb[0].mxu0
      %v1355 = vadd.f32 %v1306, %v1354
      %v1356 = vpop.f32.mrb[0].mxu0
      %v1357 = vpop.f32.mrb[0].mxu0
      %v1358 = vadd.f32 %v1309, %v1357
      %v1359 = vpop.f32.mrb[0].mxu0
      %1360 = vdwg.mxu0
      %v1361 = vmul.f32 %v1347, 0.2
      %v1362 = vmul.f32 %v1350, 0.2
      %v1363 = vmul.f32 %v1355, 0.2
      %v1364 = vmul.f32 %v1358, 0.2
      %v1365 = vmax.f32 %v1347, %v1361
      %v1366 = vmax.f32 %v1350, %v1362
      %v1367 = vmax.f32 %v1355, %v1363
      %v1368 = vmax.f32 %v1358, %v1364
      %v1369 = vpack.c.bf16 %v1366, %v1365
      %v1370 = vpack.c.bf16 %v1368, %v1367
      %v1371 = vld [vmem:[%s3] sm:$0xff]
      %v1372 = vld [vmem:[%s3 + $0x8] sm:$0xff]
      %v1373 = vld [vmem:[%s3 + $0x10] sm:$0xff]
      %v1374 = vld [vmem:[%s3 + $0x18] sm:$0xff]
      %v1375 = vld [vmem:[%s3 + $0x20] sm:$0xff]
      %v1376 = vld [vmem:[%s3 + $0x28] sm:$0xff]
      %v1377 = vld [vmem:[%s3 + $0x30] sm:$0x11]
      %v1385 = vunpack.c.l.b16 %v1371
      %v1386 = vunpack.c.h.b16 %v1371
      %v1387 = vunpack.c.l.b16 %v1372
      %v1388 = vunpack.c.h.b16 %v1372
      %v1389 = vunpack.c.l.b16 %v1373
      %v1390 = vunpack.c.h.b16 %v1373
      %v1391 = vunpack.c.l.b16 %v1374
      %v1392 = vunpack.c.h.b16 %v1374
      %v1393 = vunpack.c.l.b16 %v1375
      %v1394 = vunpack.c.h.b16 %v1375
      %v1395 = vunpack.c.l.b16 %v1376
      %v1396 = vunpack.c.h.b16 %v1376
      %v1397 = vunpack.c.l.b16 %v1377
      %v1398 = vunpack.c.h.b16 %v1377
      %v1399 = vpack.c.b16 %v1387, %v1385
      %v1400 = vpack.c.b16 %v1388, %v1386
      %v1401 = vpack.c.b16 %v1391, %v1389
      %v1402 = vpack.c.b16 %v1392, %v1390
      %v1403 = vpack.c.b16 %v1395, %v1393
      %v1404 = vpack.c.b16 %v1396, %v1394
      %v1405 = vpack.c.b16 %v1397, %v1397
      %v1406 = vpack.c.b16 %v1398, %v1398
      %vm1413 = vcmask 400384
      %v1415 = vsel %vm1413, %v1369, 0
      %v1418 = vsel %vm1413, %v1370, 0
      %vm1420 = vcmask 1040384
      %v1421 = vsel 0, 4294967295, 65535
      %v1422 = vsel %vm1420, %v1421, 0
      %v1424 = vand.u32 %v1405, %v1422
      %v1427 = vand.u32 %v1406, %v1422
      %1429 = vmatprep.subr.bf16.mxu0 %v1400
      %1430 = vmatpush1.bf16.msra.mxu0 %v1399
      %1431 = vmatprep.subr.bf16.mxu0 %v1402
      %1432 = vmatpush1.bf16.msra.mxu0 %v1401
      %1433 = vmatprep.subr.bf16.mxu0 %v1404
      %1434 = vmatpush1.bf16.msra.mxu0 %v1403
      %1435 = vmatprep.subr.bf16.mxu0 %v1427
      %1436 = vmatpush1.bf16.msra.mxu0 %v1424
      %1437 = vmatprep.subr.bf16.mxu0 0
      %1438 = vmatpush1.bf16.msra.mxu0 0
      %1439 = vmatprep.subr.bf16.mxu0 0
      %1440 = vmatpush1.bf16.msra.mxu0 0
      %1441 = vmatprep.subr.bf16.mxu0 0
      %1442 = vmatpush1.bf16.msra.mxu0 0
      %1443 = vmatprep.subr.bf16.mxu0 0
      %1444 = vmatpush1.bf16.msra.mxu0 0
      %1445 = vmatprep.subr.bf16.mxu0 0
      %1446 = vmatpush1.bf16.msra.mxu0 0
      %1447 = vmatprep.subr.bf16.mxu0 0
      %1448 = vmatpush1.bf16.msra.mxu0 0
      %1449 = vmatprep.subr.bf16.mxu0 0
      %1450 = vmatpush1.bf16.msra.mxu0 0
      %1451 = vmatprep.subr.bf16.mxu0 0
      %1452 = vmatpush1.bf16.msra.mxu0 0
      %1453 = vmatprep.subr.bf16.mxu0 0
      %1454 = vmatpush1.bf16.msra.mxu0 0
      %1455 = vmatprep.subr.bf16.mxu0 0
      %1456 = vmatpush1.bf16.msra.mxu0 0
      %1457 = vmatprep.subr.bf16.mxu0 0
      %1458 = vmatpush1.bf16.msra.mxu0 0
      %1459 = vmatprep.subr.bf16.mxu0 0
      %1460 = vmatpush1.bf16.msra.mxu0 0
      %1461 = vmatprep.mubr.bf16.mxu0 0
      %1462 = vmatmul.mubr.bf16.gmra.mrb[0].mxu0 %v1415
      %v1463 = vpop.f32.mrb[0].mxu0
      %v1464 = vadd.f32 0.0, %v1463
      %v1465 = vpop.f32.mrb[0].mxu0
      %v1466 = vadd.f32 0.0, %v1465
      %v1467 = vpop.f32.mrb[0].mxu0
      %v1468 = vadd.f32 0.0, %v1467
      %v1469 = vpop.f32.mrb[0].mxu0
      %v1470 = vadd.f32 0.0, %v1469
      %1471 = vmatprep.mubr.bf16.mxu0 0
      %1472 = vmatmul.mubr.bf16.gmra.mrb[0].mxu0 %v1418
      %v1473 = vpop.f32.mrb[0].mxu0
      %v1474 = vadd.f32 0.0, %v1473
      %v1475 = vpop.f32.mrb[0].mxu0
      %v1476 = vadd.f32 0.0, %v1475
      %v1477 = vpop.f32.mrb[0].mxu0
      %v1478 = vadd.f32 0.0, %v1477
      %v1479 = vpop.f32.mrb[0].mxu0
      %v1480 = vadd.f32 0.0, %v1479
      %1481 = vdwg.mxu0
      %v1482 = vld [vmem:[%s6] sm:$0xff]
      %v1483 = vld [vmem:[%s6 + $0x8] sm:$0xff]
      %v1484 = vld [vmem:[%s11] sm:$0x3]
      %v1485 = vpack.c.bf16 %v1468, %v1464
      %v1486 = vpack.c.bf16 %v1470, %v1466
      %v1487 = vpack.c.bf16 %v1478, %v1474
      %v1488 = vpack.c.bf16 %v1480, %v1476
      %1493 = vrot.lane.b32.xlu0 %v1485, 15
      %v1494 = vpop.permute.xlu0 %1493
      %1495 = vrot.lane.b32.xlu0 %v1486, 15
      %v1496 = vpop.permute.xlu0 %1495
      %1497 = vrot.lane.b32.xlu0 %v1487, 15
      %v1498 = vpop.permute.xlu0 %1497
      %1499 = vrot.lane.b32.xlu0 %v1488, 15
      %v1500 = vpop.permute.xlu0 %1499
      %vm1501 = vcmask 121856
      %v1502 = vsel %vm1501, %v1494, %v1496
      %v1503 = vsel %vm1501, %v1498, %v1500
      %vm1504 = vcmask 121856
      %v1507 = vsel %vm1504, 0, %v1494
      %v1510 = vsel %vm1504, 0, %v1498
      %vm1512 = vcmask 678912
      %v1514 = vsel %vm1512, %v1502, 0
      %v1517 = vsel %vm1512, %v1503, 0
      %v1519 = vlaneseq
      %v1520 = vshrl.u32 %v1519, 7
      %v1521 = vsub.s32 0, %v1520
      %v1522 = vrot.slane %v1484, %v1521
      %v1523 = vlaneseq
      %v1524 = vshrl.u32 %v1523, 7
      %v1525 = vsub.s32 1, %v1524
      %v1526 = vrot.slane %v1484, %v1525
      %v1527 = vadd.s32 %v1522, 4294967295
      %v1528 = vadd.s32 %v1526, 4294967295
      %vm1529 = vcmp.ge.s32.totalorder %v1527, 0
      %vm1530 = vcmp.ge.s32.totalorder %v1528, 0
      %vm1531 = vcmp.lt.s32.totalorder %v1527, 14
      %vm1532 = vcmp.lt.s32.totalorder %v1528, 14
      %vm1533 = vmand %vm1529, %vm1531
      %vm1534 = vmand %vm1530, %vm1532
      %vm1535 = vmpackc.low %vm1534, %vm1533
      %v1536 = vsel %vm1535, 65537, 0
      %v1537 = vlaneseq
      %v1538 = vshrl.u32 %v1537, 7
      %v1539 = vsub.s32 0, %v1538
      %v1540 = vrot.slane %v1536, %v1539
      %v1541 = vlaneseq
      %v1542 = vshrl.u32 %v1541, 7
      %v1543 = vsub.s32 4, %v1542
      %v1544 = vrot.slane %v1536, %v1543
      %vm1545 = vcmp.ne.s16.totalorder %v1540, 0
      %vm1546 = vcmp.ne.s16.totalorder %v1544, 0
      %v1547 = vsel %vm1545, %v1507, 0
      %v1548 = vsel %vm1546, %v1514, 0
      %v1549 = vsel %vm1545, %v1510, 0
      %v1550 = vsel %vm1546, %v1517, 0
      %v1551 = vld [vmem:[%s5] sm:$0xf]
      %v1552 = vld [vmem:[%s5 + $0x4] sm:$0xf]
      %s1553 = scalar_lea.vmem %s5, 8
      %v1554 = vld [vmem:[%s1553] sm:$0xf]
      %v1555 = vld [vmem:[%s1553 + $0x4] sm:$0xf]
      %v1558 = vunpack.c.l.b16 %v1554
      %v1559 = vunpack.c.l.b16 %v1555
      %v1560 = vpack.c.b16 %v1559, %v1558
      %1565 = vrot.lane.b32.xlu0 %v1507, 127
      %v1566 = vpop.permute.xlu0 %1565
      %1567 = vrot.lane.b32.xlu0 %v1514, 127
      %v1568 = vpop.permute.xlu0 %1567
      %1569 = vrot.lane.b32.xlu0 %v1510, 127
      %v1570 = vpop.permute.xlu0 %1569
      %1571 = vrot.lane.b32.xlu0 %v1517, 127
      %v1572 = vpop.permute.xlu0 %1571
      %vm1573 = vcmask 1039360
      %v1574 = vsel %vm1573, %v1566, %v1568
      %v1575 = vsel %vm1573, %v1570, %v1572
      %vm1580 = vcmask 261120
      %v1582 = vsel %vm1580, %v1560, 0
      %1584 = vmatprep.subr.bf16.mxu0 %v1568
      %1585 = vmatpush1.bf16.msra.mxu0 %v1574
      %1586 = vmatprep.subr.bf16.mxu0 %v1572
      %1587 = vmatpush1.bf16.msra.mxu0 %v1575
      %1588 = vmatprep.subr.bf16.mxu0 0
      %1589 = vmatpush1.bf16.msra.mxu0 0
      %1590 = vmatprep.subr.bf16.mxu0 0
      %1591 = vmatpush1.bf16.msra.mxu0 0
      %1592 = vmatprep.subr.bf16.mxu0 0
      %1593 = vmatpush1.bf16.msra.mxu0 0
      %1594 = vmatprep.subr.bf16.mxu0 0
      %1595 = vmatpush1.bf16.msra.mxu0 0
      %1596 = vmatprep.subr.bf16.mxu0 0
      %1597 = vmatpush1.bf16.msra.mxu0 0
      %1598 = vmatprep.subr.bf16.mxu0 0
      %1599 = vmatpush1.bf16.msra.mxu0 0
      %1600 = vmatprep.subr.bf16.mxu0 0
      %1601 = vmatpush1.bf16.msra.mxu0 0
      %1602 = vmatprep.subr.bf16.mxu0 0
      %1603 = vmatpush1.bf16.msra.mxu0 0
      %1604 = vmatprep.subr.bf16.mxu0 0
      %1605 = vmatpush1.bf16.msra.mxu0 0
      %1606 = vmatprep.subr.bf16.mxu0 0
      %1607 = vmatpush1.bf16.msra.mxu0 0
      %1608 = vmatprep.subr.bf16.mxu0 0
      %1609 = vmatpush1.bf16.msra.mxu0 0
      %1610 = vmatprep.subr.bf16.mxu0 0
      %1611 = vmatpush1.bf16.msra.mxu0 0
      %1612 = vmatprep.subr.bf16.mxu0 0
      %1613 = vmatpush1.bf16.msra.mxu0 0
      %1614 = vmatprep.subr.bf16.mxu0 0
      %1615 = vmatpush1.bf16.msra.mxu0 0
      %1616 = vmatprep.mubr.bf16.mxu0 0
      %1617 = vmatmul.mubr.bf16.gmra.mrb[0].mxu0 %v1582
      %v1618 = vpop.f32.mrb[0].mxu0
      %v1619 = vadd.f32 0.0, %v1618
      %v1620 = vpop.f32.mrb[0].mxu0
      %v1621 = vadd.f32 0.0, %v1620
      %v1622 = vpop.f32.mrb[0].mxu0
      %v1623 = vadd.f32 0.0, %v1622
      %v1624 = vpop.f32.mrb[0].mxu0
      %v1625 = vadd.f32 0.0, %v1624
      %1626 = vdwg.mxu0
      %v1629 = vunpack.c.l.b16 %v1551
      %v1630 = vunpack.c.l.b16 %v1552
      %v1631 = vpack.c.b16 %v1630, %v1629
      %v1633 = vsel %vm1580, %v1631, 0
      %1635 = vmatprep.subr.bf16.mxu0 %v1548
      %1636 = vmatpush1.bf16.msra.mxu0 %v1547
      %1637 = vmatprep.subr.bf16.mxu0 %v1550
      %1638 = vmatpush1.bf16.msra.mxu0 %v1549
      %1639 = vmatprep.subr.bf16.mxu0 0
      %1640 = vmatpush1.bf16.msra.mxu0 0
      %1641 = vmatprep.subr.bf16.mxu0 0
      %1642 = vmatpush1.bf16.msra.mxu0 0
      %1643 = vmatprep.subr.bf16.mxu0 0
      %1644 = vmatpush1.bf16.msra.mxu0 0
      %1645 = vmatprep.subr.bf16.mxu0 0
      %1646 = vmatpush1.bf16.msra.mxu0 0
      %1647 = vmatprep.subr.bf16.mxu0 0
      %1648 = vmatpush1.bf16.msra.mxu0 0
      %1649 = vmatprep.subr.bf16.mxu0 0
      %1650 = vmatpush1.bf16.msra.mxu0 0
      %1651 = vmatprep.subr.bf16.mxu0 0
      %1652 = vmatpush1.bf16.msra.mxu0 0
      %1653 = vmatprep.subr.bf16.mxu0 0
      %1654 = vmatpush1.bf16.msra.mxu0 0
      %1655 = vmatprep.subr.bf16.mxu0 0
      %1656 = vmatpush1.bf16.msra.mxu0 0
      %1657 = vmatprep.subr.bf16.mxu0 0
      %1658 = vmatpush1.bf16.msra.mxu0 0
      %1659 = vmatprep.subr.bf16.mxu0 0
      %1660 = vmatpush1.bf16.msra.mxu0 0
      %1661 = vmatprep.subr.bf16.mxu0 0
      %1662 = vmatpush1.bf16.msra.mxu0 0
      %1663 = vmatprep.subr.bf16.mxu0 0
      %1664 = vmatpush1.bf16.msra.mxu0 0
      %1665 = vmatprep.subr.bf16.mxu0 0
      %1666 = vmatpush1.bf16.msra.mxu0 0
      %1667 = vmatprep.mubr.bf16.mxu0 0
      %1668 = vmatmul.mubr.bf16.gmra.mrb[0].mxu0 %v1633
      %v1669 = vpop.f32.mrb[0].mxu0
      %v1670 = vadd.f32 %v1619, %v1669
      %v1671 = vpop.f32.mrb[0].mxu0
      %v1672 = vadd.f32 %v1621, %v1671
      %v1673 = vpop.f32.mrb[0].mxu0
      %v1674 = vadd.f32 %v1623, %v1673
      %v1675 = vpop.f32.mrb[0].mxu0
      %v1676 = vadd.f32 %v1625, %v1675
      %1677 = vdwg.mxu0
      %v1678 = vadd.s32 %v1522, 1
      %v1679 = vadd.s32 %v1526, 1
      %vm1680 = vcmp.ge.s32.totalorder %v1678, 0
      %vm1681 = vcmp.ge.s32.totalorder %v1679, 0
      %vm1682 = vcmp.lt.s32.totalorder %v1678, 14
      %vm1683 = vcmp.lt.s32.totalorder %v1679, 14
      %vm1684 = vmand %vm1680, %vm1682
      %vm1685 = vmand %vm1681, %vm1683
      %vm1686 = vmpackc.low %vm1685, %vm1684
      %v1687 = vsel %vm1686, 65537, 0
      %v1688 = vlaneseq
      %v1689 = vshrl.u32 %v1688, 7
      %v1690 = vsub.s32 0, %v1689
      %v1691 = vrot.slane %v1687, %v1690
      %v1692 = vlaneseq
      %v1693 = vshrl.u32 %v1692, 7
      %v1694 = vsub.s32 4, %v1693
      %v1695 = vrot.slane %v1687, %v1694
      %1696 = vrot.lane.b32.xlu0 %v1691, 2
      %v1697 = vpop.permute.xlu0 %1696
      %1698 = vrot.lane.b32.xlu0 %v1695, 2
      %v1699 = vpop.permute.xlu0 %1698
      %vm1700 = vcmask 15360
      %v1701 = vsel %vm1700, %v1697, %v1699
      %vm1702 = vcmp.ne.s16.totalorder %v1697, 0
      %vm1703 = vcmp.ne.s16.totalorder %v1701, 0
      %v1704 = vsel %vm1702, %v1507, 0
      %v1705 = vsel %vm1703, %v1514, 0
      %v1706 = vsel %vm1702, %v1510, 0
      %v1707 = vsel %vm1703, %v1517, 0
      %s1708 = scalar_lea.vmem %s5, 16
      %v1709 = vld [vmem:[%s1708] sm:$0xf]
      %v1710 = vld [vmem:[%s1708 + $0x4] sm:$0xf]
      %v1713 = vunpack.c.l.b16 %v1709
      %v1714 = vunpack.c.l.b16 %v1710
      %v1715 = vpack.c.b16 %v1714, %v1713
      %1720 = vrot.lane.b32.xlu0 %v1704, 126
      %v1721 = vpop.permute.xlu0 %1720
      %1722 = vrot.lane.b32.xlu0 %v1705, 126
      %v1723 = vpop.permute.xlu0 %1722
      %1724 = vrot.lane.b32.xlu0 %v1706, 126
      %v1725 = vpop.permute.xlu0 %1724
      %1726 = vrot.lane.b32.xlu0 %v1707, 126
      %v1727 = vpop.permute.xlu0 %1726
      %vm1728 = vcmask 1031168
      %v1729 = vsel %vm1728, %v1721, %v1723
      %v1730 = vsel %vm1728, %v1725, %v1727
      %v1736 = vsel %vm1580, %v1715, 0
      %1738 = vmatprep.subr.bf16.mxu0 %v1723
      %1739 = vmatpush1.bf16.msra.mxu0 %v1729
      %1740 = vmatprep.subr.bf16.mxu0 %v1727
      %1741 = vmatpush1.bf16.msra.mxu0 %v1730
      %1742 = vmatprep.subr.bf16.mxu0 0
      %1743 = vmatpush1.bf16.msra.mxu0 0
      %1744 = vmatprep.subr.bf16.mxu0 0
      %1745 = vmatpush1.bf16.msra.mxu0 0
      %1746 = vmatprep.subr.bf16.mxu0 0
      %1747 = vmatpush1.bf16.msra.mxu0 0
      %1748 = vmatprep.subr.bf16.mxu0 0
      %1749 = vmatpush1.bf16.msra.mxu0 0
      %1750 = vmatprep.subr.bf16.mxu0 0
      %1751 = vmatpush1.bf16.msra.mxu0 0
      %1752 = vmatprep.subr.bf16.mxu0 0
      %1753 = vmatpush1.bf16.msra.mxu0 0
      %1754 = vmatprep.subr.bf16.mxu0 0
      %1755 = vmatpush1.bf16.msra.mxu0 0
      %1756 = vmatprep.subr.bf16.mxu0 0
      %1757 = vmatpush1.bf16.msra.mxu0 0
      %1758 = vmatprep.subr.bf16.mxu0 0
      %1759 = vmatpush1.bf16.msra.mxu0 0
      %1760 = vmatprep.subr.bf16.mxu0 0
      %1761 = vmatpush1.bf16.msra.mxu0 0
      %1762 = vmatprep.subr.bf16.mxu0 0
      %1763 = vmatpush1.bf16.msra.mxu0 0
      %1764 = vmatprep.subr.bf16.mxu0 0
      %1765 = vmatpush1.bf16.msra.mxu0 0
      %1766 = vmatprep.subr.bf16.mxu0 0
      %1767 = vmatpush1.bf16.msra.mxu0 0
      %1768 = vmatprep.subr.bf16.mxu0 0
      %1769 = vmatpush1.bf16.msra.mxu0 0
      %1770 = vmatprep.mubr.bf16.mxu0 0
      %1771 = vmatmul.mubr.bf16.gmra.mrb[0].mxu0 %v1736
      %v1772 = vpop.f32.mrb[0].mxu0
      %v1773 = vadd.f32 0.0, %v1772
      %v1774 = vpop.f32.mrb[0].mxu0
      %v1775 = vadd.f32 0.0, %v1774
      %v1776 = vpop.f32.mrb[0].mxu0
      %v1777 = vadd.f32 0.0, %v1776
      %v1778 = vpop.f32.mrb[0].mxu0
      %v1779 = vadd.f32 0.0, %v1778
      %1780 = vdwg.mxu0
      %v1781 = vadd.f32 %v1670, %v1773
      %v1782 = vadd.f32 %v1672, %v1775
      %v1783 = vadd.f32 %v1674, %v1777
      %v1784 = vadd.f32 %v1676, %v1779
      %1785 = vrot.lane.b32.xlu0 %v1540, 14
      %v1786 = vpop.permute.xlu0 %1785
      %1787 = vrot.lane.b32.xlu0 %v1544, 14
      %v1788 = vpop.permute.xlu0 %1787
      %vm1789 = vcmask 113664
      %v1790 = vsel %vm1789, %v1786, %v1788
      %vm1791 = vcmp.ne.s16.totalorder %v1786, 0
      %vm1792 = vcmp.ne.s16.totalorder %v1790, 0
      %v1793 = vsel %vm1791, %v1507, 0
      %v1794 = vsel %vm1792, %v1514, 0
      %v1795 = vsel %vm1791, %v1510, 0
      %v1796 = vsel %vm1792, %v1517, 0
      %s1797 = scalar_lea.vmem %s5, 24
      %v1798 = vld [vmem:[%s1797] sm:$0xf]
      %v1799 = vld [vmem:[%s1797 + $0x4] sm:$0xf]
      %v1802 = vunpack.c.l.b16 %v1798
      %v1803 = vunpack.c.l.b16 %v1799
      %v1804 = vpack.c.b16 %v1803, %v1802
      %1809 = vrot.lane.b32.xlu0 %v1793, 114
      %v1810 = vpop.permute.xlu0 %1809
      %1811 = vrot.lane.b32.xlu0 %v1794, 114
      %v1812 = vpop.permute.xlu0 %1811
      %1813 = vrot.lane.b32.xlu0 %v1795, 114
      %v1814 = vpop.permute.xlu0 %1813
      %1815 = vrot.lane.b32.xlu0 %v1796, 114
      %v1816 = vpop.permute.xlu0 %1815
      %vm1817 = vcmask 932864
      %v1818 = vsel %vm1817, %v1810, %v1812
      %v1819 = vsel %vm1817, %v1814, %v1816
      %v1825 = vsel %vm1580, %v1804, 0
      %1827 = vmatprep.subr.bf16.mxu0 %v1812
      %1828 = vmatpush1.bf16.msra.mxu0 %v1818
      %1829 = vmatprep.subr.bf16.mxu0 %v1816
      %1830 = vmatpush1.bf16.msra.mxu0 %v1819
      %1831 = vmatprep.subr.bf16.mxu0 0
      %1832 = vmatpush1.bf16.msra.mxu0 0
      %1833 = vmatprep.subr.bf16.mxu0 0
      %1834 = vmatpush1.bf16.msra.mxu0 0
      %1835 = vmatprep.subr.bf16.mxu0 0
      %1836 = vmatpush1.bf16.msra.mxu0 0
      %1837 = vmatprep.subr.bf16.mxu0 0
      %1838 = vmatpush1.bf16.msra.mxu0 0
      %1839 = vmatprep.subr.bf16.mxu0 0
      %1840 = vmatpush1.bf16.msra.mxu0 0
      %1841 = vmatprep.subr.bf16.mxu0 0
      %1842 = vmatpush1.bf16.msra.mxu0 0
      %1843 = vmatprep.subr.bf16.mxu0 0
      %1844 = vmatpush1.bf16.msra.mxu0 0
      %1845 = vmatprep.subr.bf16.mxu0 0
      %1846 = vmatpush1.bf16.msra.mxu0 0
      %1847 = vmatprep.subr.bf16.mxu0 0
      %1848 = vmatpush1.bf16.msra.mxu0 0
      %1849 = vmatprep.subr.bf16.mxu0 0
      %1850 = vmatpush1.bf16.msra.mxu0 0
      %1851 = vmatprep.subr.bf16.mxu0 0
      %1852 = vmatpush1.bf16.msra.mxu0 0
      %1853 = vmatprep.subr.bf16.mxu0 0
      %1854 = vmatpush1.bf16.msra.mxu0 0
      %1855 = vmatprep.subr.bf16.mxu0 0
      %1856 = vmatpush1.bf16.msra.mxu0 0
      %1857 = vmatprep.subr.bf16.mxu0 0
      %1858 = vmatpush1.bf16.msra.mxu0 0
      %1859 = vmatprep.mubr.bf16.mxu0 0
      %1860 = vmatmul.mubr.bf16.gmra.mrb[0].mxu0 %v1825
      %v1861 = vpop.f32.mrb[0].mxu0
      %v1862 = vadd.f32 0.0, %v1861
      %v1863 = vpop.f32.mrb[0].mxu0
      %v1864 = vadd.f32 0.0, %v1863
      %v1865 = vpop.f32.mrb[0].mxu0
      %v1866 = vadd.f32 0.0, %v1865
      %v1867 = vpop.f32.mrb[0].mxu0
      %v1868 = vadd.f32 0.0, %v1867
      %1869 = vdwg.mxu0
      %v1870 = vadd.f32 %v1781, %v1862
      %v1871 = vadd.f32 %v1782, %v1864
      %v1872 = vadd.f32 %v1783, %v1866
      %v1873 = vadd.f32 %v1784, %v1868
      %s1874 = scalar_lea.vmem %s5, 32
      %v1875 = vld [vmem:[%s1874] sm:$0xf]
      %v1876 = vld [vmem:[%s1874 + $0x4] sm:$0xf]
      %v1879 = vunpack.c.l.b16 %v1875
      %v1880 = vunpack.c.l.b16 %v1876
      %v1881 = vpack.c.b16 %v1880, %v1879
      %1882 = vrot.lane.b32.xlu0 %v1507, 113
      %v1883 = vpop.permute.xlu0 %1882
      %1884 = vrot.lane.b32.xlu0 %v1514, 113
      %v1885 = vpop.permute.xlu0 %1884
      %1886 = vrot.lane.b32.xlu0 %v1510, 113
      %v1887 = vpop.permute.xlu0 %1886
      %1888 = vrot.lane.b32.xlu0 %v1517, 113
      %v1889 = vpop.permute.xlu0 %1888
      %vm1890 = vcmask 924672
      %v1891 = vsel %vm1890, %v1883, %v1885
      %v1892 = vsel %vm1890, %v1887, %v1889
      %v1898 = vsel %vm1580, %v1881, 0
      %1900 = vmatprep.subr.bf16.mxu0 %v1885
      %1901 = vmatpush1.bf16.msra.mxu0 %v1891
      %1902 = vmatprep.subr.bf16.mxu0 %v1889
      %1903 = vmatpush1.bf16.msra.mxu0 %v1892
      %1904 = vmatprep.subr.bf16.mxu0 0
      %1905 = vmatpush1.bf16.msra.mxu0 0
      %1906 = vmatprep.subr.bf16.mxu0 0
      %1907 = vmatpush1.bf16.msra.mxu0 0
      %1908 = vmatprep.subr.bf16.mxu0 0
      %1909 = vmatpush1.bf16.msra.mxu0 0
      %1910 = vmatprep.subr.bf16.mxu0 0
      %1911 = vmatpush1.bf16.msra.mxu0 0
      %1912 = vmatprep.subr.bf16.mxu0 0
      %1913 = vmatpush1.bf16.msra.mxu0 0
      %1914 = vmatprep.subr.bf16.mxu0 0
      %1915 = vmatpush1.bf16.msra.mxu0 0
      %1916 = vmatprep.subr.bf16.mxu0 0
      %1917 = vmatpush1.bf16.msra.mxu0 0
      %1918 = vmatprep.subr.bf16.mxu0 0
      %1919 = vmatpush1.bf16.msra.mxu0 0
      %1920 = vmatprep.subr.bf16.mxu0 0
      %1921 = vmatpush1.bf16.msra.mxu0 0
      %1922 = vmatprep.subr.bf16.mxu0 0
      %1923 = vmatpush1.bf16.msra.mxu0 0
      %1924 = vmatprep.subr.bf16.mxu0 0
      %1925 = vmatpush1.bf16.msra.mxu0 0
      %1926 = vmatprep.subr.bf16.mxu0 0
      %1927 = vmatpush1.bf16.msra.mxu0 0
      %1928 = vmatprep.subr.bf16.mxu0 0
      %1929 = vmatpush1.bf16.msra.mxu0 0
      %1930 = vmatprep.subr.bf16.mxu0 0
      %1931 = vmatpush1.bf16.msra.mxu0 0
      %1932 = vmatprep.mubr.bf16.mxu0 0
      %1933 = vmatmul.mubr.bf16.gmra.mrb[0].mxu0 %v1898
      %v1934 = vpop.f32.mrb[0].mxu0
      %v1935 = vadd.f32 0.0, %v1934
      %v1936 = vpop.f32.mrb[0].mxu0
      %v1937 = vadd.f32 0.0, %v1936
      %v1938 = vpop.f32.mrb[0].mxu0
      %v1939 = vadd.f32 0.0, %v1938
      %v1940 = vpop.f32.mrb[0].mxu0
      %v1941 = vadd.f32 0.0, %v1940
      %1942 = vdwg.mxu0
      %v1943 = vadd.f32 %v1870, %v1935
      %v1944 = vadd.f32 %v1871, %v1937
      %v1945 = vadd.f32 %v1872, %v1939
      %v1946 = vadd.f32 %v1873, %v1941
      %1947 = vrot.lane.b32.xlu0 %v1691, 16
      %v1948 = vpop.permute.xlu0 %1947
      %1949 = vrot.lane.b32.xlu0 %v1695, 16
      %v1950 = vpop.permute.xlu0 %1949
      %vm1951 = vcmask 130048
      %v1952 = vsel %vm1951, %v1948, %v1950
      %vm1953 = vcmp.ne.s16.totalorder %v1948, 0
      %vm1954 = vcmp.ne.s16.totalorder %v1952, 0
      %v1955 = vsel %vm1953, %v1507, 0
      %v1956 = vsel %vm1954, %v1514, 0
      %v1957 = vsel %vm1953, %v1510, 0
      %v1958 = vsel %vm1954, %v1517, 0
      %s1959 = scalar_lea.vmem %s5, 40
      %v1960 = vld [vmem:[%s1959] sm:$0xf]
      %v1961 = vld [vmem:[%s1959 + $0x4] sm:$0xf]
      %v1964 = vunpack.c.l.b16 %v1960
      %v1965 = vunpack.c.l.b16 %v1961
      %v1966 = vpack.c.b16 %v1965, %v1964
      %1971 = vrot.lane.b32.xlu0 %v1955, 112
      %v1972 = vpop.permute.xlu0 %1971
      %1973 = vrot.lane.b32.xlu0 %v1956, 112
      %v1974 = vpop.permute.xlu0 %1973
      %1975 = vrot.lane.b32.xlu0 %v1957, 112
      %v1976 = vpop.permute.xlu0 %1975
      %1977 = vrot.lane.b32.xlu0 %v1958, 112
      %v1978 = vpop.permute.xlu0 %1977
      %vm1979 = vcmask 916480
      %v1980 = vsel %vm1979, %v1972, %v1974
      %v1981 = vsel %vm1979, %v1976, %v1978
      %v1987 = vsel %vm1580, %v1966, 0
      %1989 = vmatprep.subr.bf16.mxu0 %v1974
      %1990 = vmatpush1.bf16.msra.mxu0 %v1980
      %1991 = vmatprep.subr.bf16.mxu0 %v1978
      %1992 = vmatpush1.bf16.msra.mxu0 %v1981
      %1993 = vmatprep.subr.bf16.mxu0 0
      %1994 = vmatpush1.bf16.msra.mxu0 0
      %1995 = vmatprep.subr.bf16.mxu0 0
      %1996 = vmatpush1.bf16.msra.mxu0 0
      %1997 = vmatprep.subr.bf16.mxu0 0
      %1998 = vmatpush1.bf16.msra.mxu0 0
      %1999 = vmatprep.subr.bf16.mxu0 0
      %2000 = vmatpush1.bf16.msra.mxu0 0
      %2001 = vmatprep.subr.bf16.mxu0 0
      %2002 = vmatpush1.bf16.msra.mxu0 0
      %2003 = vmatprep.subr.bf16.mxu0 0
      %2004 = vmatpush1.bf16.msra.mxu0 0
      %2005 = vmatprep.subr.bf16.mxu0 0
      %2006 = vmatpush1.bf16.msra.mxu0 0
      %2007 = vmatprep.subr.bf16.mxu0 0
      %2008 = vmatpush1.bf16.msra.mxu0 0
      %2009 = vmatprep.subr.bf16.mxu0 0
      %2010 = vmatpush1.bf16.msra.mxu0 0
      %2011 = vmatprep.subr.bf16.mxu0 0
      %2012 = vmatpush1.bf16.msra.mxu0 0
      %2013 = vmatprep.subr.bf16.mxu0 0
      %2014 = vmatpush1.bf16.msra.mxu0 0
      %2015 = vmatprep.subr.bf16.mxu0 0
      %2016 = vmatpush1.bf16.msra.mxu0 0
      %2017 = vmatprep.subr.bf16.mxu0 0
      %2018 = vmatpush1.bf16.msra.mxu0 0
      %2019 = vmatprep.subr.bf16.mxu0 0
      %2020 = vmatpush1.bf16.msra.mxu0 0
      %2021 = vmatprep.mubr.bf16.mxu0 0
      %2022 = vmatmul.mubr.bf16.gmra.mrb[0].mxu0 %v1987
      %v2023 = vpop.f32.mrb[0].mxu0
      %v2024 = vadd.f32 0.0, %v2023
      %v2025 = vpop.f32.mrb[0].mxu0
      %v2026 = vadd.f32 0.0, %v2025
      %v2027 = vpop.f32.mrb[0].mxu0
      %v2028 = vadd.f32 0.0, %v2027
      %v2029 = vpop.f32.mrb[0].mxu0
      %v2030 = vadd.f32 0.0, %v2029
      %2031 = vdwg.mxu0
      %v2032 = vadd.f32 %v1943, %v2024
      %v2033 = vadd.f32 %v1944, %v2026
      %v2034 = vadd.f32 %v1945, %v2028
      %v2035 = vadd.f32 %v1946, %v2030
      %2036 = vrot.lane.b32.xlu0 %v1540, 28
      %v2037 = vpop.permute.xlu0 %2036
      %2038 = vrot.lane.b32.xlu0 %v1544, 28
      %v2039 = vpop.permute.xlu0 %2038
      %vm2040 = vcmask 228352
      %v2041 = vsel %vm2040, %v2037, %v2039
      %vm2042 = vcmp.ne.s16.totalorder %v2037, 0
      %vm2043 = vcmp.ne.s16.totalorder %v2041, 0
      %v2044 = vsel %vm2042, %v1507, 0
      %v2045 = vsel %vm2043, %v1514, 0
      %v2046 = vsel %vm2042, %v1510, 0
      %v2047 = vsel %vm2043, %v1517, 0
      %s2048 = scalar_lea.vmem %s5, 48
      %v2049 = vld [vmem:[%s2048] sm:$0xf]
      %v2050 = vld [vmem:[%s2048 + $0x4] sm:$0xf]
      %v2053 = vunpack.c.l.b16 %v2049
      %v2054 = vunpack.c.l.b16 %v2050
      %v2055 = vpack.c.b16 %v2054, %v2053
      %2060 = vrot.lane.b32.xlu0 %v2044, 100
      %v2061 = vpop.permute.xlu0 %2060
      %2062 = vrot.lane.b32.xlu0 %v2045, 100
      %v2063 = vpop.permute.xlu0 %2062
      %2064 = vrot.lane.b32.xlu0 %v2046, 100
      %v2065 = vpop.permute.xlu0 %2064
      %2066 = vrot.lane.b32.xlu0 %v2047, 100
      %v2067 = vpop.permute.xlu0 %2066
      %vm2068 = vcmask 818176
      %v2069 = vsel %vm2068, %v2061, %v2063
      %v2070 = vsel %vm2068, %v2065, %v2067
      %v2076 = vsel %vm1580, %v2055, 0
      %2078 = vmatprep.subr.bf16.mxu0 %v2063
      %2079 = vmatpush1.bf16.msra.mxu0 %v2069
      %2080 = vmatprep.subr.bf16.mxu0 %v2067
      %2081 = vmatpush1.bf16.msra.mxu0 %v2070
      %2082 = vmatprep.subr.bf16.mxu0 0
      %2083 = vmatpush1.bf16.msra.mxu0 0
      %2084 = vmatprep.subr.bf16.mxu0 0
      %2085 = vmatpush1.bf16.msra.mxu0 0
      %2086 = vmatprep.subr.bf16.mxu0 0
      %2087 = vmatpush1.bf16.msra.mxu0 0
      %2088 = vmatprep.subr.bf16.mxu0 0
      %2089 = vmatpush1.bf16.msra.mxu0 0
      %2090 = vmatprep.subr.bf16.mxu0 0
      %2091 = vmatpush1.bf16.msra.mxu0 0
      %2092 = vmatprep.subr.bf16.mxu0 0
      %2093 = vmatpush1.bf16.msra.mxu0 0
      %2094 = vmatprep.subr.bf16.mxu0 0
      %2095 = vmatpush1.bf16.msra.mxu0 0
      %2096 = vmatprep.subr.bf16.mxu0 0
      %2097 = vmatpush1.bf16.msra.mxu0 0
      %2098 = vmatprep.subr.bf16.mxu0 0
      %2099 = vmatpush1.bf16.msra.mxu0 0
      %2100 = vmatprep.subr.bf16.mxu0 0
      %2101 = vmatpush1.bf16.msra.mxu0 0
      %2102 = vmatprep.subr.bf16.mxu0 0
      %2103 = vmatpush1.bf16.msra.mxu0 0
      %2104 = vmatprep.subr.bf16.mxu0 0
      %2105 = vmatpush1.bf16.msra.mxu0 0
      %2106 = vmatprep.subr.bf16.mxu0 0
      %2107 = vmatpush1.bf16.msra.mxu0 0
      %2108 = vmatprep.subr.bf16.mxu0 0
      %2109 = vmatpush1.bf16.msra.mxu0 0
      %2110 = vmatprep.mubr.bf16.mxu0 0
      %2111 = vmatmul.mubr.bf16.gmra.mrb[0].mxu0 %v2076
      %v2112 = vpop.f32.mrb[0].mxu0
      %v2113 = vadd.f32 0.0, %v2112
      %v2114 = vpop.f32.mrb[0].mxu0
      %v2115 = vadd.f32 0.0, %v2114
      %v2116 = vpop.f32.mrb[0].mxu0
      %v2117 = vadd.f32 0.0, %v2116
      %v2118 = vpop.f32.mrb[0].mxu0
      %v2119 = vadd.f32 0.0, %v2118
      %2120 = vdwg.mxu0
      %v2121 = vadd.f32 %v2032, %v2113
      %v2122 = vadd.f32 %v2033, %v2115
      %v2123 = vadd.f32 %v2034, %v2117
      %v2124 = vadd.f32 %v2035, %v2119
      %s2125 = scalar_lea.vmem %s5, 56
      %v2126 = vld [vmem:[%s2125] sm:$0xf]
      %v2127 = vld [vmem:[%s2125 + $0x4] sm:$0xf]
      %v2130 = vunpack.c.l.b16 %v2126
      %v2131 = vunpack.c.l.b16 %v2127
      %v2132 = vpack.c.b16 %v2131, %v2130
      %2133 = vrot.lane.b32.xlu0 %v1507, 99
      %v2134 = vpop.permute.xlu0 %2133
      %2135 = vrot.lane.b32.xlu0 %v1514, 99
      %v2136 = vpop.permute.xlu0 %2135
      %2137 = vrot.lane.b32.xlu0 %v1510, 99
      %v2138 = vpop.permute.xlu0 %2137
      %2139 = vrot.lane.b32.xlu0 %v1517, 99
      %v2140 = vpop.permute.xlu0 %2139
      %vm2141 = vcmask 809984
      %v2142 = vsel %vm2141, %v2134, %v2136
      %v2143 = vsel %vm2141, %v2138, %v2140
      %v2149 = vsel %vm1580, %v2132, 0
      %2151 = vmatprep.subr.bf16.mxu0 %v2136
      %2152 = vmatpush1.bf16.msra.mxu0 %v2142
      %2153 = vmatprep.subr.bf16.mxu0 %v2140
      %2154 = vmatpush1.bf16.msra.mxu0 %v2143
      %2155 = vmatprep.subr.bf16.mxu0 0
      %2156 = vmatpush1.bf16.msra.mxu0 0
      %2157 = vmatprep.subr.bf16.mxu0 0
      %2158 = vmatpush1.bf16.msra.mxu0 0
      %2159 = vmatprep.subr.bf16.mxu0 0
      %2160 = vmatpush1.bf16.msra.mxu0 0
      %2161 = vmatprep.subr.bf16.mxu0 0
      %2162 = vmatpush1.bf16.msra.mxu0 0
      %2163 = vmatprep.subr.bf16.mxu0 0
      %2164 = vmatpush1.bf16.msra.mxu0 0
      %2165 = vmatprep.subr.bf16.mxu0 0
      %2166 = vmatpush1.bf16.msra.mxu0 0
      %2167 = vmatprep.subr.bf16.mxu0 0
      %2168 = vmatpush1.bf16.msra.mxu0 0
      %2169 = vmatprep.subr.bf16.mxu0 0
      %2170 = vmatpush1.bf16.msra.mxu0 0
      %2171 = vmatprep.subr.bf16.mxu0 0
      %2172 = vmatpush1.bf16.msra.mxu0 0
      %2173 = vmatprep.subr.bf16.mxu0 0
      %2174 = vmatpush1.bf16.msra.mxu0 0
      %2175 = vmatprep.subr.bf16.mxu0 0
      %2176 = vmatpush1.bf16.msra.mxu0 0
      %2177 = vmatprep.subr.bf16.mxu0 0
      %2178 = vmatpush1.bf16.msra.mxu0 0
      %2179 = vmatprep.subr.bf16.mxu0 0
      %2180 = vmatpush1.bf16.msra.mxu0 0
      %2181 = vmatprep.subr.bf16.mxu0 0
      %2182 = vmatpush1.bf16.msra.mxu0 0
      %2183 = vmatprep.mubr.bf16.mxu0 0
      %2184 = vmatmul.mubr.bf16.gmra.mrb[0].mxu0 %v2149
      %v2185 = vpop.f32.mrb[0].mxu0
      %v2186 = vadd.f32 0.0, %v2185
      %v2187 = vpop.f32.mrb[0].mxu0
      %v2188 = vadd.f32 0.0, %v2187
      %v2189 = vpop.f32.mrb[0].mxu0
      %v2190 = vadd.f32 0.0, %v2189
      %v2191 = vpop.f32.mrb[0].mxu0
      %v2192 = vadd.f32 0.0, %v2191
      %2193 = vdwg.mxu0
      %v2194 = vadd.f32 %v2121, %v2186
      %v2195 = vadd.f32 %v2122, %v2188
      %v2196 = vadd.f32 %v2123, %v2190
      %v2197 = vadd.f32 %v2124, %v2192
      %2198 = vrot.lane.b32.xlu0 %v1691, 30
      %v2199 = vpop.permute.xlu0 %2198
      %2200 = vrot.lane.b32.xlu0 %v1695, 30
      %v2201 = vpop.permute.xlu0 %2200
      %vm2202 = vcmask 244736
      %v2203 = vsel %vm2202, %v2199, %v2201
      %vm2204 = vcmp.ne.s16.totalorder %v2199, 0
      %vm2205 = vcmp.ne.s16.totalorder %v2203, 0
      %v2206 = vsel %vm2204, %v1507, 0
      %v2207 = vsel %vm2205, %v1514, 0
      %v2208 = vsel %vm2204, %v1510, 0
      %v2209 = vsel %vm2205, %v1517, 0
      %s2210 = scalar_lea.vmem %s5, 64
      %v2211 = vld [vmem:[%s2210] sm:$0xf]
      %v2212 = vld [vmem:[%s2210 + $0x4] sm:$0xf]
      %v2215 = vunpack.c.l.b16 %v2211
      %v2216 = vunpack.c.l.b16 %v2212
      %v2217 = vpack.c.b16 %v2216, %v2215
      %2222 = vrot.lane.b32.xlu0 %v2206, 98
      %v2223 = vpop.permute.xlu0 %2222
      %2224 = vrot.lane.b32.xlu0 %v2207, 98
      %v2225 = vpop.permute.xlu0 %2224
      %2226 = vrot.lane.b32.xlu0 %v2208, 98
      %v2227 = vpop.permute.xlu0 %2226
      %2228 = vrot.lane.b32.xlu0 %v2209, 98
      %v2229 = vpop.permute.xlu0 %2228
      %vm2230 = vcmask 801792
      %v2231 = vsel %vm2230, %v2223, %v2225
      %v2232 = vsel %vm2230, %v2227, %v2229
      %v2238 = vsel %vm1580, %v2217, 0
      %2240 = vmatprep.subr.bf16.mxu0 %v2225
      %2241 = vmatpush1.bf16.msra.mxu0 %v2231
      %2242 = vmatprep.subr.bf16.mxu0 %v2229
      %2243 = vmatpush1.bf16.msra.mxu0 %v2232
      %2244 = vmatprep.subr.bf16.mxu0 0
      %2245 = vmatpush1.bf16.msra.mxu0 0
      %2246 = vmatprep.subr.bf16.mxu0 0
      %2247 = vmatpush1.bf16.msra.mxu0 0
      %2248 = vmatprep.subr.bf16.mxu0 0
      %2249 = vmatpush1.bf16.msra.mxu0 0
      %2250 = vmatprep.subr.bf16.mxu0 0
      %2251 = vmatpush1.bf16.msra.mxu0 0
      %2252 = vmatprep.subr.bf16.mxu0 0
      %2253 = vmatpush1.bf16.msra.mxu0 0
      %2254 = vmatprep.subr.bf16.mxu0 0
      %2255 = vmatpush1.bf16.msra.mxu0 0
      %2256 = vmatprep.subr.bf16.mxu0 0
      %2257 = vmatpush1.bf16.msra.mxu0 0
      %2258 = vmatprep.subr.bf16.mxu0 0
      %2259 = vmatpush1.bf16.msra.mxu0 0
      %2260 = vmatprep.subr.bf16.mxu0 0
      %2261 = vmatpush1.bf16.msra.mxu0 0
      %2262 = vmatprep.subr.bf16.mxu0 0
      %2263 = vmatpush1.bf16.msra.mxu0 0
      %2264 = vmatprep.subr.bf16.mxu0 0
      %2265 = vmatpush1.bf16.msra.mxu0 0
      %2266 = vmatprep.subr.bf16.mxu0 0
      %2267 = vmatpush1.bf16.msra.mxu0 0
      %2268 = vmatprep.subr.bf16.mxu0 0
      %2269 = vmatpush1.bf16.msra.mxu0 0
      %2270 = vmatprep.subr.bf16.mxu0 0
      %2271 = vmatpush1.bf16.msra.mxu0 0
      %2272 = vmatprep.mubr.bf16.mxu0 0
      %2273 = vmatmul.mubr.bf16.gmra.mrb[0].mxu0 %v2238
      %v2274 = vpop.f32.mrb[0].mxu0
      %v2275 = vadd.f32 0.0, %v2274
      %v2276 = vpop.f32.mrb[0].mxu0
      %v2277 = vadd.f32 0.0, %v2276
      %v2278 = vpop.f32.mrb[0].mxu0
      %v2279 = vadd.f32 0.0, %v2278
      %v2280 = vpop.f32.mrb[0].mxu0
      %v2281 = vadd.f32 0.0, %v2280
      %2282 = vdwg.mxu0
      %v2283 = vadd.f32 %v2194, %v2275
      %v2284 = vadd.f32 %v2195, %v2277
      %v2285 = vadd.f32 %v2196, %v2279
      %v2286 = vadd.f32 %v2197, %v2281
      %2288 = vset.pattern.permute.xlu0 0
      %2289 = vperm.xlu0 %2288, %v1482
      %v2290 = vpop.permute.xlu0 %2289
      %2293 = vset.pattern.permute.xlu0 0
      %2294 = vperm.xlu0 %2293, %v1483
      %v2295 = vpop.permute.xlu0 %2294
      %v2297 = vadd.f32 %v2283, %v2290
      %v2298 = vadd.f32 %v2284, %v2290
      %v2299 = vadd.f32 %v2285, %v2295
      %v2300 = vadd.f32 %v2286, %v2295
      %v2301 = vmul.f32 %v2297, 0.2
      %v2302 = vmul.f32 %v2298, 0.2
      %v2303 = vmul.f32 %v2299, 0.2
      %v2304 = vmul.f32 %v2300, 0.2
      %v2305 = vmax.f32 %v2297, %v2301
      %v2306 = vmax.f32 %v2298, %v2302
      %v2307 = vmax.f32 %v2299, %v2303
      %v2308 = vmax.f32 %v2300, %v2304
      %v2309 = vpack.c.bf16 %v2307, %v2305
      %v2310 = vpack.c.bf16 %v2308, %v2306
      %v2311 = vld [vmem:[%s4] sm:$0xff]
      %v2312 = vld [vmem:[%s4 + $0x8] sm:$0xff]
      %v2313 = vld [vmem:[%s4 + $0x10] sm:$0xff]
      %v2314 = vld [vmem:[%s4 + $0x18] sm:$0xf]
      %v2315 = vld [vmem:[%s4 + $0x1c] sm:$0xff]
      %v2316 = vld [vmem:[%s4 + $0x24] sm:$0xff]
      %v2317 = vld [vmem:[%s4 + $0x2c] sm:$0xff]
      %v2318 = vld [vmem:[%s4 + $0x34] sm:$0xf]
      %v2319 = vld [vmem:[%s4 + $0x38] sm:$0xff]
      %v2320 = vld [vmem:[%s4 + $0x40] sm:$0xff]
      %v2321 = vld [vmem:[%s4 + $0x48] sm:$0xff]
      %v2322 = vld [vmem:[%s4 + $0x50] sm:$0xf]
      %v2323 = vld [vmem:[%s4 + $0x54] sm:$0xff]
      %v2324 = vld [vmem:[%s4 + $0x5c] sm:$0xff]
      %v2325 = vld [vmem:[%s4 + $0x64] sm:$0xff]
      %v2326 = vld [vmem:[%s4 + $0x6c] sm:$0xf]
      %v2327 = vld [vmem:[%s4 + $0x70] sm:$0xff]
      %v2328 = vld [vmem:[%s4 + $0x78] sm:$0xff]
      %v2329 = vld [vmem:[%s4 + $0x80] sm:$0xff]
      %v2330 = vld [vmem:[%s4 + $0x88] sm:$0xf]
      %v2331 = vld [vmem:[%s4 + $0x8c] sm:$0xff]
      %v2332 = vld [vmem:[%s4 + $0x94] sm:$0xff]
      %v2333 = vld [vmem:[%s4 + $0x9c] sm:$0xff]
      %v2334 = vld [vmem:[%s4 + $0xa4] sm:$0xf]
      %v2335 = vld [vmem:[%s4 + $0xa8] sm:$0xff]
      %v2336 = vld [vmem:[%s4 + $0xb0] sm:$0xff]
      %v2337 = vld [vmem:[%s4 + $0xb8] sm:$0xff]
      %v2338 = vld [vmem:[%s4 + $0xc0] sm:$0xf]
      %v2339 = vld [vmem:[%s4 + $0xc4] sm:$0xff]
      %v2340 = vld [vmem:[%s4 + $0xcc] sm:$0xff]
      %v2341 = vld [vmem:[%s4 + $0xd4] sm:$0xff]
      %v2342 = vld [vmem:[%s4 + $0xdc] sm:$0xf]
      %v2343 = vld [vmem:[%s4 + $0xe0] sm:$0xff]
      %v2344 = vld [vmem:[%s4 + $0xe8] sm:$0xff]
      %v2345 = vld [vmem:[%s4 + $0xf0] sm:$0xff]
      %v2346 = vld [vmem:[%s4 + $0xf8] sm:$0xf]
      %v2347 = vld [vmem:[%s4 + $0xfc] sm:$0xff]
      %v2348 = vld [vmem:[%s4 + $0x104] sm:$0xff]
      %v2349 = vld [vmem:[%s4 + $0x10c] sm:$0xff]
      %v2350 = vld [vmem:[%s4 + $0x114] sm:$0xf]
      %v2351 = vld [vmem:[%s4 + $0x118] sm:$0xff]
      %v2352 = vld [vmem:[%s4 + $0x120] sm:$0xff]
      %v2353 = vld [vmem:[%s4 + $0x128] sm:$0xff]
      %v2354 = vld [vmem:[%s4 + $0x130] sm:$0xf]
      %v2355 = vld [vmem:[%s4 + $0x134] sm:$0xff]
      %v2356 = vld [vmem:[%s4 + $0x13c] sm:$0xff]
      %v2357 = vld [vmem:[%s4 + $0x144] sm:$0xff]
      %v2358 = vld [vmem:[%s4 + $0x14c] sm:$0xf]
      %v2359 = vld [vmem:[%s4 + $0x150] sm:$0xff]
      %v2360 = vld [vmem:[%s4 + $0x158] sm:$0xff]
      %v2361 = vld [vmem:[%s4 + $0x160] sm:$0xff]
      %v2362 = vld [vmem:[%s4 + $0x168] sm:$0xf]
      %v2363 = vld [vmem:[%s4 + $0x16c] sm:$0xff]
      %v2364 = vld [vmem:[%s4 + $0x174] sm:$0xff]
      %v2365 = vld [vmem:[%s4 + $0x17c] sm:$0xff]
      %v2366 = vld [vmem:[%s4 + $0x184] sm:$0xf]
      %v2367 = vld [vmem:[%s4 + $0x188] sm:$0xff]
      %v2368 = vld [vmem:[%s4 + $0x190] sm:$0xff]
      %v2369 = vld [vmem:[%s4 + $0x198] sm:$0xff]
      %v2370 = vld [vmem:[%s4 + $0x1a0] sm:$0xf]
      %v2371 = vld [vmem:[%s4 + $0x1a4] sm:$0xff]
      %v2372 = vld [vmem:[%s4 + $0x1ac] sm:$0xff]
      %v2373 = vld [vmem:[%s4 + $0x1b4] sm:$0xff]
      %v2374 = vld [vmem:[%s4 + $0x1bc] sm:$0xf]
      %v2375 = vld [vmem:[%s4 + $0x1c0] sm:$0xff]
      %v2376 = vld [vmem:[%s4 + $0x1c8] sm:$0xff]
      %v2377 = vld [vmem:[%s4 + $0x1d0] sm:$0xff]
      %v2378 = vld [vmem:[%s4 + $0x1d8] sm:$0xf]
      %v2379 = vld [vmem:[%s4 + $0x1dc] sm:$0xff]
      %v2380 = vld [vmem:[%s4 + $0x1e4] sm:$0xff]
      %v2381 = vld [vmem:[%s4 + $0x1ec] sm:$0xff]
      %v2382 = vld [vmem:[%s4 + $0x1f4] sm:$0xf]
      %v2383 = vld [vmem:[%s4 + $0x1f8] sm:$0xff]
      %v2384 = vld [vmem:[%s4 + $0x200] sm:$0xff]
      %v2385 = vld [vmem:[%s4 + $0x208] sm:$0xff]
      %v2386 = vld [vmem:[%s4 + $0x210] sm:$0xf]
      %v2387 = vld [vmem:[%s4 + $0x214] sm:$0xff]
      %v2388 = vld [vmem:[%s4 + $0x21c] sm:$0xff]
      %v2389 = vld [vmem:[%s4 + $0x224] sm:$0xff]
      %v2390 = vld [vmem:[%s4 + $0x22c] sm:$0xf]
      %v2391 = vld [vmem:[%s4 + $0x230] sm:$0xff]
      %v2392 = vld [vmem:[%s4 + $0x238] sm:$0xff]
      %v2393 = vld [vmem:[%s4 + $0x240] sm:$0xff]
      %v2394 = vld [vmem:[%s4 + $0x248] sm:$0xf]
      %v2395 = vld [vmem:[%s4 + $0x24c] sm:$0xff]
      %v2396 = vld [vmem:[%s4 + $0x254] sm:$0xff]
      %v2397 = vld [vmem:[%s4 + $0x25c] sm:$0xff]
      %v2398 = vld [vmem:[%s4 + $0x264] sm:$0xf]
      %v2399 = vld [vmem:[%s4 + $0x268] sm:$0xff]
      %v2400 = vld [vmem:[%s4 + $0x270] sm:$0xff]
      %v2401 = vld [vmem:[%s4 + $0x278] sm:$0xff]
      %v2402 = vld [vmem:[%s4 + $0x280] sm:$0xf]
      %v2403 = vld [vmem:[%s4 + $0x284] sm:$0xff]
      %v2404 = vld [vmem:[%s4 + $0x28c] sm:$0xff]
      %v2405 = vld [vmem:[%s4 + $0x294] sm:$0xff]
      %v2406 = vld [vmem:[%s4 + $0x29c] sm:$0xf]
      %v2407 = vld [vmem:[%s4 + $0x2a0] sm:$0x33]
      %v2408 = vld [vmem:[%s4 + $0x2a8] sm:$0x33]
      %v2409 = vld [vmem:[%s4 + $0x2b0] sm:$0x33]
      %v2410 = vld [vmem:[%s4 + $0x2b8] sm:$0x3]
      %v2511 = vunpack.c.l.b16 %v2311
      %v2512 = vunpack.c.h.b16 %v2311
      %v2513 = vunpack.c.l.b16 %v2312
      %v2514 = vunpack.c.h.b16 %v2312
      %v2515 = vunpack.c.l.b16 %v2313
      %v2516 = vunpack.c.h.b16 %v2313
      %v2517 = vunpack.c.l.b16 %v2314
      %v2518 = vunpack.c.l.b16 %v2315
      %v2519 = vunpack.c.h.b16 %v2315
      %v2520 = vunpack.c.l.b16 %v2316
      %v2521 = vunpack.c.h.b16 %v2316
      %v2522 = vunpack.c.l.b16 %v2317
      %v2523 = vunpack.c.h.b16 %v2317
      %v2524 = vunpack.c.l.b16 %v2318
      %v2525 = vunpack.c.l.b16 %v2319
      %v2526 = vunpack.c.h.b16 %v2319
      %v2527 = vunpack.c.l.b16 %v2320
      %v2528 = vunpack.c.h.b16 %v2320
      %v2529 = vunpack.c.l.b16 %v2321
      %v2530 = vunpack.c.h.b16 %v2321
      %v2531 = vunpack.c.l.b16 %v2322
      %v2532 = vunpack.c.l.b16 %v2323
      %v2533 = vunpack.c.h.b16 %v2323
      %v2534 = vunpack.c.l.b16 %v2324
      %v2535 = vunpack.c.h.b16 %v2324
      %v2536 = vunpack.c.l.b16 %v2325
      %v2537 = vunpack.c.h.b16 %v2325
      %v2538 = vunpack.c.l.b16 %v2326
      %v2539 = vunpack.c.l.b16 %v2327
      %v2540 = vunpack.c.h.b16 %v2327
      %v2541 = vunpack.c.l.b16 %v2328
      %v2542 = vunpack.c.h.b16 %v2328
      %v2543 = vunpack.c.l.b16 %v2329
      %v2544 = vunpack.c.h.b16 %v2329
      %v2545 = vunpack.c.l.b16 %v2330
      %v2546 = vunpack.c.l.b16 %v2331
      %v2547 = vunpack.c.h.b16 %v2331
      %v2548 = vunpack.c.l.b16 %v2332
      %v2549 = vunpack.c.h.b16 %v2332
      %v2550 = vunpack.c.l.b16 %v2333
      %v2551 = vunpack.c.h.b16 %v2333
      %v2552 = vunpack.c.l.b16 %v2334
      %v2553 = vunpack.c.l.b16 %v2335
      %v2554 = vunpack.c.h.b16 %v2335
      %v2555 = vunpack.c.l.b16 %v2336
      %v2556 = vunpack.c.h.b16 %v2336
      %v2557 = vunpack.c.l.b16 %v2337
      %v2558 = vunpack.c.h.b16 %v2337
      %v2559 = vunpack.c.l.b16 %v2338
      %v2560 = vunpack.c.l.b16 %v2339
      %v2561 = vunpack.c.h.b16 %v2339
      %v2562 = vunpack.c.l.b16 %v2340
      %v2563 = vunpack.c.h.b16 %v2340
      %v2564 = vunpack.c.l.b16 %v2341
      %v2565 = vunpack.c.h.b16 %v2341
      %v2566 = vunpack.c.l.b16 %v2342
      %v2567 = vunpack.c.l.b16 %v2343
      %v2568 = vunpack.c.h.b16 %v2343
      %v2569 = vunpack.c.l.b16 %v2344
      %v2570 = vunpack.c.h.b16 %v2344
      %v2571 = vunpack.c.l.b16 %v2345
      %v2572 = vunpack.c.h.b16 %v2345
      %v2573 = vunpack.c.l.b16 %v2346
      %v2574 = vunpack.c.l.b16 %v2347
      %v2575 = vunpack.c.h.b16 %v2347
      %v2576 = vunpack.c.l.b16 %v2348
      %v2577 = vunpack.c.h.b16 %v2348
      %v2578 = vunpack.c.l.b16 %v2349
      %v2579 = vunpack.c.h.b16 %v2349
      %v2580 = vunpack.c.l.b16 %v2350
      %v2581 = vunpack.c.l.b16 %v2351
      %v2582 = vunpack.c.h.b16 %v2351
      %v2583 = vunpack.c.l.b16 %v2352
      %v2584 = vunpack.c.h.b16 %v2352
      %v2585 = vunpack.c.l.b16 %v2353
      %v2586 = vunpack.c.h.b16 %v2353
      %v2587 = vunpack.c.l.b16 %v2354
      %v2588 = vunpack.c.l.b16 %v2355
      %v2589 = vunpack.c.h.b16 %v2355
      %v2590 = vunpack.c.l.b16 %v2356
      %v2591 = vunpack.c.h.b16 %v2356
      %v2592 = vunpack.c.l.b16 %v2357
      %v2593 = vunpack.c.h.b16 %v2357
      %v2594 = vunpack.c.l.b16 %v2358
      %v2595 = vunpack.c.l.b16 %v2359
      %v2596 = vunpack.c.h.b16 %v2359
      %v2597 = vunpack.c.l.b16 %v2360
      %v2598 = vunpack.c.h.b16 %v2360
      %v2599 = vunpack.c.l.b16 %v2361
      %v2600 = vunpack.c.h.b16 %v2361
      %v2601 = vunpack.c.l.b16 %v2362
      %v2602 = vunpack.c.l.b16 %v2363
      %v2603 = vunpack.c.h.b16 %v2363
      %v2604 = vunpack.c.l.b16 %v2364
      %v2605 = vunpack.c.h.b16 %v2364
      %v2606 = vunpack.c.l.b16 %v2365
      %v2607 = vunpack.c.h.b16 %v2365
      %v2608 = vunpack.c.l.b16 %v2366
      %v2609 = vunpack.c.l.b16 %v2367
      %v2610 = vunpack.c.h.b16 %v2367
      %v2611 = vunpack.c.l.b16 %v2368
      %v2612 = vunpack.c.h.b16 %v2368
      %v2613 = vunpack.c.l.b16 %v2369
      %v2614 = vunpack.c.h.b16 %v2369
      %v2615 = vunpack.c.l.b16 %v2370
      %v2616 = vunpack.c.l.b16 %v2371
      %v2617 = vunpack.c.h.b16 %v2371
      %v2618 = vunpack.c.l.b16 %v2372
      %v2619 = vunpack.c.h.b16 %v2372
      %v2620 = vunpack.c.l.b16 %v2373
      %v2621 = vunpack.c.h.b16 %v2373
      %v2622 = vunpack.c.l.b16 %v2374
      %v2623 = vunpack.c.l.b16 %v2375
      %v2624 = vunpack.c.h.b16 %v2375
      %v2625 = vunpack.c.l.b16 %v2376
      %v2626 = vunpack.c.h.b16 %v2376
      %v2627 = vunpack.c.l.b16 %v2377
      %v2628 = vunpack.c.h.b16 %v2377
      %v2629 = vunpack.c.l.b16 %v2378
      %v2630 = vunpack.c.l.b16 %v2379
      %v2631 = vunpack.c.h.b16 %v2379
      %v2632 = vunpack.c.l.b16 %v2380
      %v2633 = vunpack.c.h.b16 %v2380
      %v2634 = vunpack.c.l.b16 %v2381
      %v2635 = vunpack.c.h.b16 %v2381
      %v2636 = vunpack.c.l.b16 %v2382
      %v2637 = vunpack.c.l.b16 %v2383
      %v2638 = vunpack.c.h.b16 %v2383
      %v2639 = vunpack.c.l.b16 %v2384
      %v2640 = vunpack.c.h.b16 %v2384
      %v2641 = vunpack.c.l.b16 %v2385
      %v2642 = vunpack.c.h.b16 %v2385
      %v2643 = vunpack.c.l.b16 %v2386
      %v2644 = vunpack.c.l.b16 %v2387
      %v2645 = vunpack.c.h.b16 %v2387
      %v2646 = vunpack.c.l.b16 %v2388
      %v2647 = vunpack.c.h.b16 %v2388
      %v2648 = vunpack.c.l.b16 %v2389
      %v2649 = vunpack.c.h.b16 %v2389
      %v2650 = vunpack.c.l.b16 %v2390
      %v2651 = vunpack.c.l.b16 %v2391
      %v2652 = vunpack.c.h.b16 %v2391
      %v2653 = vunpack.c.l.b16 %v2392
      %v2654 = vunpack.c.h.b16 %v2392
      %v2655 = vunpack.c.l.b16 %v2393
      %v2656 = vunpack.c.h.b16 %v2393
      %v2657 = vunpack.c.l.b16 %v2394
      %v2658 = vunpack.c.l.b16 %v2395
      %v2659 = vunpack.c.h.b16 %v2395
      %v2660 = vunpack.c.l.b16 %v2396
      %v2661 = vunpack.c.h.b16 %v2396
      %v2662 = vunpack.c.l.b16 %v2397
      %v2663 = vunpack.c.h.b16 %v2397
      %v2664 = vunpack.c.l.b16 %v2398
      %v2665 = vunpack.c.l.b16 %v2399
      %v2666 = vunpack.c.h.b16 %v2399
      %v2667 = vunpack.c.l.b16 %v2400
      %v2668 = vunpack.c.h.b16 %v2400
      %v2669 = vunpack.c.l.b16 %v2401
      %v2670 = vunpack.c.h.b16 %v2401
      %v2671 = vunpack.c.l.b16 %v2402
      %v2672 = vunpack.c.l.b16 %v2403
      %v2673 = vunpack.c.h.b16 %v2403
      %v2674 = vunpack.c.l.b16 %v2404
      %v2675 = vunpack.c.h.b16 %v2404
      %v2676 = vunpack.c.l.b16 %v2405
      %v2677 = vunpack.c.h.b16 %v2405
      %v2678 = vunpack.c.l.b16 %v2406
      %v2679 = vunpack.c.l.b16 %v2407
      %v2680 = vunpack.c.h.b16 %v2407
      %v2681 = vunpack.c.l.b16 %v2408
      %v2682 = vunpack.c.h.b16 %v2408
      %v2683 = vunpack.c.l.b16 %v2409
      %v2684 = vunpack.c.h.b16 %v2409
      %v2685 = vunpack.c.l.b16 %v2410
      %v2686 = vpack.c.b16 %v2518, %v2511
      %v2687 = vpack.c.b16 %v2519, %v2512
      %v2688 = vpack.c.b16 %v2520, %v2513
      %v2689 = vpack.c.b16 %v2521, %v2514
      %v2690 = vpack.c.b16 %v2522, %v2515
      %v2691 = vpack.c.b16 %v2523, %v2516
      %v2692 = vpack.c.b16 %v2524, %v2517
      %v2693 = vpack.c.b16 %v2532, %v2525
      %v2694 = vpack.c.b16 %v2533, %v2526
      %v2695 = vpack.c.b16 %v2534, %v2527
      %v2696 = vpack.c.b16 %v2535, %v2528
      %v2697 = vpack.c.b16 %v2536, %v2529
      %v2698 = vpack.c.b16 %v2537, %v2530
      %v2699 = vpack.c.b16 %v2538, %v2531
      %v2700 = vpack.c.b16 %v2546, %v2539
      %v2701 = vpack.c.b16 %v2547, %v2540
      %v2702 = vpack.c.b16 %v2548, %v2541
      %v2703 = vpack.c.b16 %v2549, %v2542
      %v2704 = vpack.c.b16 %v2550, %v2543
      %v2705 = vpack.c.b16 %v2551, %v2544
      %v2706 = vpack.c.b16 %v2552, %v2545
      %v2707 = vpack.c.b16 %v2560, %v2553
      %v2708 = vpack.c.b16 %v2561, %v2554
      %v2709 = vpack.c.b16 %v2562, %v2555
      %v2710 = vpack.c.b16 %v2563, %v2556
      %v2711 = vpack.c.b16 %v2564, %v2557
      %v2712 = vpack.c.b16 %v2565, %v2558
      %v2713 = vpack.c.b16 %v2566, %v2559
      %v2714 = vpack.c.b16 %v2574, %v2567
      %v2715 = vpack.c.b16 %v2575, %v2568
      %v2716 = vpack.c.b16 %v2576, %v2569
      %v2717 = vpack.c.b16 %v2577, %v2570
      %v2718 = vpack.c.b16 %v2578, %v2571
      %v2719 = vpack.c.b16 %v2579, %v2572
      %v2720 = vpack.c.b16 %v2580, %v2573
      %v2721 = vpack.c.b16 %v2588, %v2581
      %v2722 = vpack.c.b16 %v2589, %v2582
      %v2723 = vpack.c.b16 %v2590, %v2583
      %v2724 = vpack.c.b16 %v2591, %v2584
      %v2725 = vpack.c.b16 %v2592, %v2585
      %v2726 = vpack.c.b16 %v2593, %v2586
      %v2727 = vpack.c.b16 %v2594, %v2587
      %v2728 = vpack.c.b16 %v2602, %v2595
      %v2729 = vpack.c.b16 %v2603, %v2596
      %v2730 = vpack.c.b16 %v2604, %v2597
      %v2731 = vpack.c.b16 %v2605, %v2598
      %v2732 = vpack.c.b16 %v2606, %v2599
      %v2733 = vpack.c.b16 %v2607, %v2600
      %v2734 = vpack.c.b16 %v2608, %v2601
      %v2735 = vpack.c.b16 %v2616, %v2609
      %v2736 = vpack.c.b16 %v2617, %v2610
      %v2737 = vpack.c.b16 %v2618, %v2611
      %v2738 = vpack.c.b16 %v2619, %v2612
      %v2739 = vpack.c.b16 %v2620, %v2613
      %v2740 = vpack.c.b16 %v2621, %v2614
      %v2741 = vpack.c.b16 %v2622, %v2615
      %v2742 = vpack.c.b16 %v2630, %v2623
      %v2743 = vpack.c.b16 %v2631, %v2624
      %v2744 = vpack.c.b16 %v2632, %v2625
      %v2745 = vpack.c.b16 %v2633, %v2626
      %v2746 = vpack.c.b16 %v2634, %v2627
      %v2747 = vpack.c.b16 %v2635, %v2628
      %v2748 = vpack.c.b16 %v2636, %v2629
      %v2749 = vpack.c.b16 %v2644, %v2637
      %v2750 = vpack.c.b16 %v2645, %v2638
      %v2751 = vpack.c.b16 %v2646, %v2639
      %v2752 = vpack.c.b16 %v2647, %v2640
      %v2753 = vpack.c.b16 %v2648, %v2641
      %v2754 = vpack.c.b16 %v2649, %v2642
      %v2755 = vpack.c.b16 %v2650, %v2643
      %v2756 = vpack.c.b16 %v2658, %v2651
      %v2757 = vpack.c.b16 %v2659, %v2652
      %v2758 = vpack.c.b16 %v2660, %v2653
      %v2759 = vpack.c.b16 %v2661, %v2654
      %v2760 = vpack.c.b16 %v2662, %v2655
      %v2761 = vpack.c.b16 %v2663, %v2656
      %v2762 = vpack.c.b16 %v2664, %v2657
      %v2763 = vpack.c.b16 %v2672, %v2665
      %v2764 = vpack.c.b16 %v2673, %v2666
      %v2765 = vpack.c.b16 %v2674, %v2667
      %v2766 = vpack.c.b16 %v2675, %v2668
      %v2767 = vpack.c.b16 %v2676, %v2669
      %v2768 = vpack.c.b16 %v2677, %v2670
      %v2769 = vpack.c.b16 %v2678, %v2671
      %v2770 = vpack.c.b16 %v2679, %v2679
      %v2771 = vpack.c.b16 %v2680, %v2680
      %v2772 = vpack.c.b16 %v2681, %v2681
      %v2773 = vpack.c.b16 %v2682, %v2682
      %v2774 = vpack.c.b16 %v2683, %v2683
      %v2775 = vpack.c.b16 %v2684, %v2684
      %v2776 = vpack.c.b16 %v2685, %v2685
      %vm2861 = vcmask 556032
      %v2863 = vsel %vm2861, %v2310, 0
      %vm2865 = vcmask 1041408
      %v2867 = vsel %vm2865, %v2770, 0
      %v2870 = vsel %vm2865, %v2771, 0
      %v2873 = vsel %vm2865, %v2772, 0
      %v2876 = vsel %vm2865, %v2773, 0
      %v2879 = vsel %vm2865, %v2774, 0
      %v2882 = vsel %vm2865, %v2775, 0
      %v2885 = vsel %vm2865, %v2776, 0
      %2887 = vmatprep.subr.bf16.mxu0 %v2687
      %2888 = vmatpush1.bf16.msra.mxu0 %v2686
      %2889 = vmatprep.subr.bf16.mxu0 %v2694
      %2890 = vmatpush1.bf16.msra.mxu0 %v2693
      %2891 = vmatprep.subr.bf16.mxu0 %v2701
      %2892 = vmatpush1.bf16.msra.mxu0 %v2700
      %2893 = vmatprep.subr.bf16.mxu0 %v2708
      %2894 = vmatpush1.bf16.msra.mxu0 %v2707
      %2895 = vmatprep.subr.bf16.mxu0 %v2715
      %2896 = vmatpush1.bf16.msra.mxu0 %v2714
      %2897 = vmatprep.subr.bf16.mxu0 %v2722
      %2898 = vmatpush1.bf16.msra.mxu0 %v2721
      %2899 = vmatprep.subr.bf16.mxu0 %v2729
      %2900 = vmatpush1.bf16.msra.mxu0 %v2728
      %2901 = vmatprep.subr.bf16.mxu0 %v2736
      %2902 = vmatpush1.bf16.msra.mxu0 %v2735
      %2903 = vmatprep.subr.bf16.mxu0 %v2743
      %2904 = vmatpush1.bf16.msra.mxu0 %v2742
      %2905 = vmatprep.subr.bf16.mxu0 %v2750
      %2906 = vmatpush1.bf16.msra.mxu0 %v2749
      %2907 = vmatprep.subr.bf16.mxu0 %v2757
      %2908 = vmatpush1.bf16.msra.mxu0 %v2756
      %2909 = vmatprep.subr.bf16.mxu0 %v2764
      %2910 = vmatpush1.bf16.msra.mxu0 %v2763
      %2911 = vmatprep.subr.bf16.mxu0 %v2870
      %2912 = vmatpush1.bf16.msra.mxu0 %v2867
      %2913 = vmatprep.subr.bf16.mxu0 0
      %2914 = vmatpush1.bf16.msra.mxu0 0
      %2915 = vmatprep.subr.bf16.mxu0 0
      %2916 = vmatpush1.bf16.msra.mxu0 0
      %2917 = vmatprep.subr.bf16.mxu0 0
      %2918 = vmatpush1.bf16.msra.mxu0 0
      %2919 = vmatprep.mubr.bf16.mxu0 %v2863
      %2920 = vmatmul.mubr.bf16.gmra.mrb[0].mxu0 %v2309
      %v2921 = vpop.f32.mrb[0].mxu0
      %v2922 = vadd.f32 0.0, %v2921
      %v2923 = vpop.f32.mrb[0].mxu0
      %v2924 = vadd.f32 0.0, %v2923
      %v2925 = vpop.f32.mrb[0].mxu0
      %v2926 = vadd.f32 0.0, %v2925
      %v2927 = vpop.f32.mrb[0].mxu0
      %v2928 = vadd.f32 0.0, %v2927
      %2929 = vdwg.mxu0
      %2930 = vmatprep.subr.bf16.mxu0 %v2689
      %2931 = vmatpush1.bf16.msra.mxu0 %v2688
      %2932 = vmatprep.subr.bf16.mxu0 %v2696
      %2933 = vmatpush1.bf16.msra.mxu0 %v2695
      %2934 = vmatprep.subr.bf16.mxu0 %v2703
      %2935 = vmatpush1.bf16.msra.mxu0 %v2702
      %2936 = vmatprep.subr.bf16.mxu0 %v2710
      %2937 = vmatpush1.bf16.msra.mxu0 %v2709
      %2938 = vmatprep.subr.bf16.mxu0 %v2717
      %2939 = vmatpush1.bf16.msra.mxu0 %v2716
      %2940 = vmatprep.subr.bf16.mxu0 %v2724
      %2941 = vmatpush1.bf16.msra.mxu0 %v2723
      %2942 = vmatprep.subr.bf16.mxu0 %v2731
      %2943 = vmatpush1.bf16.msra.mxu0 %v2730
      %2944 = vmatprep.subr.bf16.mxu0 %v2738
      %2945 = vmatpush1.bf16.msra.mxu0 %v2737
      %2946 = vmatprep.subr.bf16.mxu0 %v2745
      %2947 = vmatpush1.bf16.msra.mxu0 %v2744
      %2948 = vmatprep.subr.bf16.mxu0 %v2752
      %2949 = vmatpush1.bf16.msra.mxu0 %v2751
      %2950 = vmatprep.subr.bf16.mxu0 %v2759
      %2951 = vmatpush1.bf16.msra.mxu0 %v2758
      %2952 = vmatprep.subr.bf16.mxu0 %v2766
      %2953 = vmatpush1.bf16.msra.mxu0 %v2765
      %2954 = vmatprep.subr.bf16.mxu0 %v2876
      %2955 = vmatpush1.bf16.msra.mxu0 %v2873
      %2956 = vmatprep.subr.bf16.mxu0 0
      %2957 = vmatpush1.bf16.msra.mxu0 0
      %2958 = vmatprep.subr.bf16.mxu0 0
      %2959 = vmatpush1.bf16.msra.mxu0 0
      %2960 = vmatprep.subr.bf16.mxu0 0
      %2961 = vmatpush1.bf16.msra.mxu0 0
      %2962 = vmatprep.mubr.bf16.mxu0 %v2863
      %2963 = vmatmul.mubr.bf16.gmra.mrb[0].mxu0 %v2309
      %v2964 = vpop.f32.mrb[0].mxu0
      %v2965 = vadd.f32 0.0, %v2964
      %v2966 = vpop.f32.mrb[0].mxu0
      %v2967 = vadd.f32 0.0, %v2966
      %v2968 = vpop.f32.mrb[0].mxu0
      %v2969 = vadd.f32 0.0, %v2968
      %v2970 = vpop.f32.mrb[0].mxu0
      %v2971 = vadd.f32 0.0, %v2970
      %2972 = vdwg.mxu0
      %2973 = vmatprep.subr.bf16.mxu0 %v2691
      %2974 = vmatpush1.bf16.msra.mxu0 %v2690
      %2975 = vmatprep.subr.bf16.mxu0 %v2698
      %2976 = vmatpush1.bf16.msra.mxu0 %v2697
      %2977 = vmatprep.subr.bf16.mxu0 %v2705
      %2978 = vmatpush1.bf16.msra.mxu0 %v2704
      %2979 = vmatprep.subr.bf16.mxu0 %v2712
      %2980 = vmatpush1.bf16.msra.mxu0 %v2711
      %2981 = vmatprep.subr.bf16.mxu0 %v2719
      %2982 = vmatpush1.bf16.msra.mxu0 %v2718
      %2983 = vmatprep.subr.bf16.mxu0 %v2726
      %2984 = vmatpush1.bf16.msra.mxu0 %v2725
      %2985 = vmatprep.subr.bf16.mxu0 %v2733
      %2986 = vmatpush1.bf16.msra.mxu0 %v2732
      %2987 = vmatprep.subr.bf16.mxu0 %v2740
      %2988 = vmatpush1.bf16.msra.mxu0 %v2739
      %2989 = vmatprep.subr.bf16.mxu0 %v2747
      %2990 = vmatpush1.bf16.msra.mxu0 %v2746
      %2991 = vmatprep.subr.bf16.mxu0 %v2754
      %2992 = vmatpush1.bf16.msra.mxu0 %v2753
      %2993 = vmatprep.subr.bf16.mxu0 %v2761
      %2994 = vmatpush1.bf16.msra.mxu0 %v2760
      %2995 = vmatprep.subr.bf16.mxu0 %v2768
      %2996 = vmatpush1.bf16.msra.mxu0 %v2767
      %2997 = vmatprep.subr.bf16.mxu0 %v2882
      %2998 = vmatpush1.bf16.msra.mxu0 %v2879
      %2999 = vmatprep.subr.bf16.mxu0 0
      %3000 = vmatpush1.bf16.msra.mxu0 0
      %3001 = vmatprep.subr.bf16.mxu0 0
      %3002 = vmatpush1.bf16.msra.mxu0 0
      %3003 = vmatprep.subr.bf16.mxu0 0
      %3004 = vmatpush1.bf16.msra.mxu0 0
      %3005 = vmatprep.mubr.bf16.mxu0 %v2863
      %3006 = vmatmul.mubr.bf16.gmra.mrb[0].mxu0 %v2309
      %v3007 = vpop.f32.mrb[0].mxu0
      %v3008 = vadd.f32 0.0, %v3007
      %v3009 = vpop.f32.mrb[0].mxu0
      %v3010 = vadd.f32 0.0, %v3009
      %v3011 = vpop.f32.mrb[0].mxu0
      %v3012 = vadd.f32 0.0, %v3011
      %v3013 = vpop.f32.mrb[0].mxu0
      %v3014 = vadd.f32 0.0, %v3013
      %3015 = vdwg.mxu0
      %3016 = vmatprep.subr.bf16.mxu0 0
      %3017 = vmatpush1.bf16.msra.mxu0 %v2692
      %3018 = vmatprep.subr.bf16.mxu0 0
      %3019 = vmatpush1.bf16.msra.mxu0 %v2699
      %3020 = vmatprep.subr.bf16.mxu0 0
      %3021 = vmatpush1.bf16.msra.mxu0 %v2706
      %3022 = vmatprep.subr.bf16.mxu0 0
      %3023 = vmatpush1.bf16.msra.mxu0 %v2713
      %3024 = vmatprep.subr.bf16.mxu0 0
      %3025 = vmatpush1.bf16.msra.mxu0 %v2720
      %3026 = vmatprep.subr.bf16.mxu0 0
      %3027 = vmatpush1.bf16.msra.mxu0 %v2727
      %3028 = vmatprep.subr.bf16.mxu0 0
      %3029 = vmatpush1.bf16.msra.mxu0 %v2734
      %3030 = vmatprep.subr.bf16.mxu0 0
      %3031 = vmatpush1.bf16.msra.mxu0 %v2741
      %3032 = vmatprep.subr.bf16.mxu0 0
      %3033 = vmatpush1.bf16.msra.mxu0 %v2748
      %3034 = vmatprep.subr.bf16.mxu0 0
      %3035 = vmatpush1.bf16.msra.mxu0 %v2755
      %3036 = vmatprep.subr.bf16.mxu0 0
      %3037 = vmatpush1.bf16.msra.mxu0 %v2762
      %3038 = vmatprep.subr.bf16.mxu0 0
      %3039 = vmatpush1.bf16.msra.mxu0 %v2769
      %3040 = vmatprep.subr.bf16.mxu0 0
      %3041 = vmatpush1.bf16.msra.mxu0 %v2885
      %3042 = vmatprep.subr.bf16.mxu0 0
      %3043 = vmatpush1.bf16.msra.mxu0 0
      %3044 = vmatprep.subr.bf16.mxu0 0
      %3045 = vmatpush1.bf16.msra.mxu0 0
      %3046 = vmatprep.subr.bf16.mxu0 0
      %3047 = vmatpush1.bf16.msra.mxu0 0
      %3048 = vmatprep.mubr.bf16.mxu0 %v2863
      %3049 = vmatmul.mubr.bf16.gmra.mrb[0].mxu0 %v2309
      %v3050 = vpop.f32.mrb[0].mxu0
      %v3051 = vadd.f32 0.0, %v3050
      %v3052 = vpop.f32.mrb[0].mxu0
      %v3053 = vpop.f32.mrb[0].mxu0
      %v3054 = vadd.f32 0.0, %v3053
      %v3055 = vpop.f32.mrb[0].mxu0
      %3056 = vdwg.mxu0
      %v3057 = vld [vmem:[%s8] sm:$0xff]
      %v3058 = vld [vmem:[%s12] sm:$0x7f]
      %v3059 = vpack.c.bf16 %v2926, %v2922
      %v3060 = vpack.c.bf16 %v2928, %v2924
      %v3061 = vpack.c.bf16 %v2969, %v2965
      %v3062 = vpack.c.bf16 %v2971, %v2967
      %v3063 = vpack.c.bf16 %v3012, %v3008
      %v3064 = vpack.c.bf16 %v3014, %v3010
      %v3065 = vpack.c.bf16 %v3054, %v3051
      %3073 = vrot.lane.b32.xlu0 %v3059, 29
      %v3074 = vpop.permute.xlu0 %3073
      %3075 = vrot.lane.b32.xlu0 %v3060, 29
      %v3076 = vpop.permute.xlu0 %3075
      %3077 = vrot.lane.b32.xlu0 %v3061, 29
      %v3078 = vpop.permute.xlu0 %3077
      %3079 = vrot.lane.b32.xlu0 %v3062, 29
      %v3080 = vpop.permute.xlu0 %3079
      %3081 = vrot.lane.b32.xlu0 %v3063, 29
      %v3082 = vpop.permute.xlu0 %3081
      %3083 = vrot.lane.b32.xlu0 %v3064, 29
      %v3084 = vpop.permute.xlu0 %3083
      %3085 = vrot.lane.b32.xlu0 %v3065, 29
      %v3086 = vpop.permute.xlu0 %3085
      %vm3087 = vcmask 236544
      %v3088 = vsel %vm3087, %v3074, %v3076
      %v3089 = vsel %vm3087, %v3076, %v3078
      %v3090 = vsel %vm3087, %v3078, %v3080
      %v3091 = vsel %vm3087, %v3080, %v3082
      %v3092 = vsel %vm3087, %v3082, %v3084
      %v3093 = vsel %vm3087, %v3084, %v3086
      %vm3099 = vcmask 236544
      %v3101 = vsel %vm3099, 0, %v3074
      %vm3103 = vcmask 367616
      %v3105 = vsel %vm3103, %v3093, 0
      %v3107 = vlaneseq
      %v3108 = vshrl.u32 %v3107, 7
      %v3109 = vsub.s32 0, %v3108
      %v3110 = vrot.slane %v3058, %v3109
      %v3111 = vlaneseq
      %v3112 = vshrl.u32 %v3111, 7
      %v3113 = vsub.s32 1, %v3112
      %v3114 = vrot.slane %v3058, %v3113
      %v3115 = vlaneseq
      %v3116 = vshrl.u32 %v3115, 7
      %v3117 = vsub.s32 2, %v3116
      %v3118 = vrot.slane %v3058, %v3117
      %v3119 = vlaneseq
      %v3120 = vshrl.u32 %v3119, 7
      %v3121 = vsub.s32 3, %v3120
      %v3122 = vrot.slane %v3058, %v3121
      %v3123 = vlaneseq
      %v3124 = vshrl.u32 %v3123, 7
      %v3125 = vsub.s32 4, %v3124
      %v3126 = vrot.slane %v3058, %v3125
      %v3127 = vlaneseq
      %v3128 = vshrl.u32 %v3127, 7
      %v3129 = vsub.s32 5, %v3128
      %v3130 = vrot.slane %v3058, %v3129
      %v3131 = vlaneseq
      %v3132 = vshrl.u32 %v3131, 7
      %v3133 = vsub.s32 6, %v3132
      %v3134 = vrot.slane %v3058, %v3133
      %v3135 = vadd.s32 %v3110, 4294967295
      %v3136 = vadd.s32 %v3114, 4294967295
      %v3137 = vadd.s32 %v3118, 4294967295
      %v3138 = vadd.s32 %v3122, 4294967295
      %v3139 = vadd.s32 %v3126, 4294967295
      %v3140 = vadd.s32 %v3130, 4294967295
      %v3141 = vadd.s32 %v3134, 4294967295
      %vm3142 = vcmp.ge.s32.totalorder %v3135, 0
      %vm3143 = vcmp.ge.s32.totalorder %v3136, 0
      %vm3144 = vcmp.ge.s32.totalorder %v3137, 0
      %vm3145 = vcmp.ge.s32.totalorder %v3138, 0
      %vm3146 = vcmp.ge.s32.totalorder %v3139, 0
      %vm3147 = vcmp.ge.s32.totalorder %v3140, 0
      %vm3148 = vcmp.ge.s32.totalorder %v3141, 0
      %vm3149 = vcmp.lt.s32.totalorder %v3135, 28
      %vm3150 = vcmp.lt.s32.totalorder %v3136, 28
      %vm3151 = vcmp.lt.s32.totalorder %v3137, 28
      %vm3152 = vcmp.lt.s32.totalorder %v3138, 28
      %vm3153 = vcmp.lt.s32.totalorder %v3139, 28
      %vm3154 = vcmp.lt.s32.totalorder %v3140, 28
      %vm3155 = vcmp.lt.s32.totalorder %v3141, 28
      %vm3156 = vmand %vm3142, %vm3149
      %vm3157 = vmand %vm3143, %vm3150
      %vm3158 = vmand %vm3144, %vm3151
      %vm3159 = vmand %vm3145, %vm3152
      %vm3160 = vmand %vm3146, %vm3153
      %vm3161 = vmand %vm3147, %vm3154
      %vm3162 = vmand %vm3148, %vm3155
      %vm3163 = vmpackc.low %vm3157, %vm3156
      %vm3164 = vmpackc.low %vm3159, %vm3158
      %vm3165 = vmpackc.low %vm3161, %vm3160
      %vm3166 = vmpackc.low %vm3162, %vm3162
      %v3167 = vsel %vm3163, 65537, 0
      %v3168 = vsel %vm3164, 65537, 0
      %v3169 = vsel %vm3165, 65537, 0
      %v3170 = vsel %vm3166, 65537, 0
      %v3171 = vlaneseq
      %v3172 = vshrl.u32 %v3171, 7
      %v3173 = vsub.s32 0, %v3172
      %v3174 = vrot.slane %v3167, %v3173
      %v3175 = vlaneseq
      %v3176 = vshrl.u32 %v3175, 7
      %v3177 = vsub.s32 4, %v3176
      %v3178 = vrot.slane %v3167, %v3177
      %v3179 = vlaneseq
      %v3180 = vshrl.u32 %v3179, 7
      %v3181 = vsub.s32 0, %v3180
      %v3182 = vrot.slane %v3168, %v3181
      %v3183 = vlaneseq
      %v3184 = vshrl.u32 %v3183, 7
      %v3185 = vsub.s32 4, %v3184
      %v3186 = vrot.slane %v3168, %v3185
      %v3187 = vlaneseq
      %v3188 = vshrl.u32 %v3187, 7
      %v3189 = vsub.s32 0, %v3188
      %v3190 = vrot.slane %v3169, %v3189
      %v3191 = vlaneseq
      %v3192 = vshrl.u32 %v3191, 7
      %v3193 = vsub.s32 4, %v3192
      %v3194 = vrot.slane %v3169, %v3193
      %v3195 = vlaneseq
      %v3196 = vshrl.u32 %v3195, 7
      %v3197 = vsub.s32 0, %v3196
      %v3198 = vrot.slane %v3170, %v3197
      %vm3199 = vcmp.ne.s16.totalorder %v3174, 0
      %vm3200 = vcmp.ne.s16.totalorder %v3178, 0
      %vm3201 = vcmp.ne.s16.totalorder %v3182, 0
      %vm3202 = vcmp.ne.s16.totalorder %v3186, 0
      %vm3203 = vcmp.ne.s16.totalorder %v3190, 0
      %vm3204 = vcmp.ne.s16.totalorder %v3194, 0
      %vm3205 = vcmp.ne.s16.totalorder %v3198, 0
      %v3206 = vsel %vm3199, %v3101, 0
      %v3207 = vsel %vm3200, %v3088, 0
      %v3208 = vsel %vm3201, %v3089, 0
      %v3209 = vsel %vm3202, %v3090, 0
      %v3210 = vsel %vm3203, %v3091, 0
      %v3211 = vsel %vm3204, %v3092, 0
      %v3212 = vsel %vm3205, %v3105, 0
      %v3213 = vld [vmem:[%s7] sm:$0xf]
      %s3214 = scalar_lea.vmem %s7, 4
      %v3215 = vld [vmem:[%s3214] sm:$0xf]
      %3218 = vrot.lane.b32.xlu0 %v3101, 127
      %v3219 = vpop.permute.xlu0 %3218
      %3220 = vrot.lane.b32.xlu0 %v3088, 127
      %v3221 = vpop.permute.xlu0 %3220
      %3222 = vrot.lane.b32.xlu0 %v3089, 127
      %v3223 = vpop.permute.xlu0 %3222
      %3224 = vrot.lane.b32.xlu0 %v3090, 127
      %v3225 = vpop.permute.xlu0 %3224
      %3226 = vrot.lane.b32.xlu0 %v3091, 127
      %v3227 = vpop.permute.xlu0 %3226
      %3228 = vrot.lane.b32.xlu0 %v3092, 127
      %v3229 = vpop.permute.xlu0 %3228
      %3230 = vrot.lane.b32.xlu0 %v3105, 127
      %v3231 = vpop.permute.xlu0 %3230
      %v3232 = vsel %vm1573, %v3219, %v3221
      %v3233 = vsel %vm1573, %v3221, %v3223
      %v3234 = vsel %vm1573, %v3223, %v3225
      %v3235 = vsel %vm1573, %v3225, %v3227
      %v3236 = vsel %vm1573, %v3227, %v3229
      %v3237 = vsel %vm1573, %v3229, %v3231
      %vm3245 = vcmask 130048
      %v3247 = vsel %vm3245, %v3215, 0
      %3249 = vmatprep.subr.bf16.mxu0 %v3233
      %3250 = vmatpush1.bf16.msra.mxu0 %v3232
      %3251 = vmatprep.subr.bf16.mxu0 0
      %3252 = vmatpush1.bf16.msra.mxu0 0
      %3253 = vmatprep.subr.bf16.mxu0 0
      %3254 = vmatpush1.bf16.msra.mxu0 0
      %3255 = vmatprep.subr.bf16.mxu0 0
      %3256 = vmatpush1.bf16.msra.mxu0 0
      %3257 = vmatprep.subr.bf16.mxu0 0
      %3258 = vmatpush1.bf16.msra.mxu0 0
      %3259 = vmatprep.subr.bf16.mxu0 0
      %3260 = vmatpush1.bf16.msra.mxu0 0
      %3261 = vmatprep.subr.bf16.mxu0 0
      %3262 = vmatpush1.bf16.msra.mxu0 0
      %3263 = vmatprep.subr.bf16.mxu0 0
      %3264 = vmatpush1.bf16.msra.mxu0 0
      %3265 = vmatprep.subr.bf16.mxu0 0
      %3266 = vmatpush1.bf16.msra.mxu0 0
      %3267 = vmatprep.subr.bf16.mxu0 0
      %3268 = vmatpush1.bf16.msra.mxu0 0
      %3269 = vmatprep.subr.bf16.mxu0 0
      %3270 = vmatpush1.bf16.msra.mxu0 0
      %3271 = vmatprep.subr.bf16.mxu0 0
      %3272 = vmatpush1.bf16.msra.mxu0 0
      %3273 = vmatprep.subr.bf16.mxu0 0
      %3274 = vmatpush1.bf16.msra.mxu0 0
      %3275 = vmatprep.subr.bf16.mxu0 0
      %3276 = vmatpush1.bf16.msra.mxu0 0
      %3277 = vmatprep.subr.bf16.mxu0 0
      %3278 = vmatpush1.bf16.msra.mxu0 0
      %3279 = vmatprep.subr.bf16.mxu0 0
      %3280 = vmatpush1.bf16.msra.mxu0 0
      %3281 = vmatprep.mubr.bf16.mxu0 0
      %3282 = vmatmul.mubr.bf16.gmra.mrb[0].mxu0 %v3247
      %v3283 = vpop.f32.mrb[0].mxu0
      %v3284 = vadd.f32 0.0, %v3283
      %v3285 = vpop.f32.mrb[0].mxu0
      %v3286 = vadd.f32 0.0, %v3285
      %v3287 = vpop.f32.mrb[0].mxu0
      %v3288 = vpop.f32.mrb[0].mxu0
      %3289 = vdwg.mxu0
      %3290 = vmatprep.subr.bf16.mxu0 %v3235
      %3291 = vmatpush1.bf16.msra.mxu0 %v3234
      %3292 = vmatprep.subr.bf16.mxu0 0
      %3293 = vmatpush1.bf16.msra.mxu0 0
      %3294 = vmatprep.subr.bf16.mxu0 0
      %3295 = vmatpush1.bf16.msra.mxu0 0
      %3296 = vmatprep.subr.bf16.mxu0 0
      %3297 = vmatpush1.bf16.msra.mxu0 0
      %3298 = vmatprep.subr.bf16.mxu0 0
      %3299 = vmatpush1.bf16.msra.mxu0 0
      %3300 = vmatprep.subr.bf16.mxu0 0
      %3301 = vmatpush1.bf16.msra.mxu0 0
      %3302 = vmatprep.subr.bf16.mxu0 0
      %3303 = vmatpush1.bf16.msra.mxu0 0
      %3304 = vmatprep.subr.bf16.mxu0 0
      %3305 = vmatpush1.bf16.msra.mxu0 0
      %3306 = vmatprep.subr.bf16.mxu0 0
      %3307 = vmatpush1.bf16.msra.mxu0 0
      %3308 = vmatprep.subr.bf16.mxu0 0
      %3309 = vmatpush1.bf16.msra.mxu0 0
      %3310 = vmatprep.subr.bf16.mxu0 0
      %3311 = vmatpush1.bf16.msra.mxu0 0
      %3312 = vmatprep.subr.bf16.mxu0 0
      %3313 = vmatpush1.bf16.msra.mxu0 0
      %3314 = vmatprep.subr.bf16.mxu0 0
      %3315 = vmatpush1.bf16.msra.mxu0 0
      %3316 = vmatprep.subr.bf16.mxu0 0
      %3317 = vmatpush1.bf16.msra.mxu0 0
      %3318 = vmatprep.subr.bf16.mxu0 0
      %3319 = vmatpush1.bf16.msra.mxu0 0
      %3320 = vmatprep.subr.bf16.mxu0 0
      %3321 = vmatpush1.bf16.msra.mxu0 0
      %3322 = vmatprep.mubr.bf16.mxu0 0
      %3323 = vmatmul.mubr.bf16.gmra.mrb[0].mxu0 %v3247
      %v3324 = vpop.f32.mrb[0].mxu0
      %v3325 = vadd.f32 0.0, %v3324
      %v3326 = vpop.f32.mrb[0].mxu0
      %v3327 = vadd.f32 0.0, %v3326
      %v3328 = vpop.f32.mrb[0].mxu0
      %v3329 = vpop.f32.mrb[0].mxu0
      %3330 = vdwg.mxu0
      %3331 = vmatprep.subr.bf16.mxu0 %v3237
      %3332 = vmatpush1.bf16.msra.mxu0 %v3236
      %3333 = vmatprep.subr.bf16.mxu0 0
      %3334 = vmatpush1.bf16.msra.mxu0 0
      %3335 = vmatprep.subr.bf16.mxu0 0
      %3336 = vmatpush1.bf16.msra.mxu0 0
      %3337 = vmatprep.subr.bf16.mxu0 0
      %3338 = vmatpush1.bf16.msra.mxu0 0
      %3339 = vmatprep.subr.bf16.mxu0 0
      %3340 = vmatpush1.bf16.msra.mxu0 0
      %3341 = vmatprep.subr.bf16.mxu0 0
      %3342 = vmatpush1.bf16.msra.mxu0 0
      %3343 = vmatprep.subr.bf16.mxu0 0
      %3344 = vmatpush1.bf16.msra.mxu0 0
      %3345 = vmatprep.subr.bf16.mxu0 0
      %3346 = vmatpush1.bf16.msra.mxu0 0
      %3347 = vmatprep.subr.bf16.mxu0 0
      %3348 = vmatpush1.bf16.msra.mxu0 0
      %3349 = vmatprep.subr.bf16.mxu0 0
      %3350 = vmatpush1.bf16.msra.mxu0 0
      %3351 = vmatprep.subr.bf16.mxu0 0
      %3352 = vmatpush1.bf16.msra.mxu0 0
      %3353 = vmatprep.subr.bf16.mxu0 0
      %3354 = vmatpush1.bf16.msra.mxu0 0
      %3355 = vmatprep.subr.bf16.mxu0 0
      %3356 = vmatpush1.bf16.msra.mxu0 0
      %3357 = vmatprep.subr.bf16.mxu0 0
      %3358 = vmatpush1.bf16.msra.mxu0 0
      %3359 = vmatprep.subr.bf16.mxu0 0
      %3360 = vmatpush1.bf16.msra.mxu0 0
      %3361 = vmatprep.subr.bf16.mxu0 0
      %3362 = vmatpush1.bf16.msra.mxu0 0
      %3363 = vmatprep.mubr.bf16.mxu0 0
      %3364 = vmatmul.mubr.bf16.gmra.mrb[0].mxu0 %v3247
      %v3365 = vpop.f32.mrb[0].mxu0
      %v3366 = vadd.f32 0.0, %v3365
      %v3367 = vpop.f32.mrb[0].mxu0
      %v3368 = vadd.f32 0.0, %v3367
      %v3369 = vpop.f32.mrb[0].mxu0
      %v3370 = vpop.f32.mrb[0].mxu0
      %3371 = vdwg.mxu0
      %3372 = vmatprep.subr.bf16.mxu0 0
      %3373 = vmatpush1.bf16.msra.mxu0 %v3231
      %3374 = vmatprep.subr.bf16.mxu0 0
      %3375 = vmatpush1.bf16.msra.mxu0 0
      %3376 = vmatprep.subr.bf16.mxu0 0
      %3377 = vmatpush1.bf16.msra.mxu0 0
      %3378 = vmatprep.subr.bf16.mxu0 0
      %3379 = vmatpush1.bf16.msra.mxu0 0
      %3380 = vmatprep.subr.bf16.mxu0 0
      %3381 = vmatpush1.bf16.msra.mxu0 0
      %3382 = vmatprep.subr.bf16.mxu0 0
      %3383 = vmatpush1.bf16.msra.mxu0 0
      %3384 = vmatprep.subr.bf16.mxu0 0
      %3385 = vmatpush1.bf16.msra.mxu0 0
      %3386 = vmatprep.subr.bf16.mxu0 0
      %3387 = vmatpush1.bf16.msra.mxu0 0
      %3388 = vmatprep.subr.bf16.mxu0 0
      %3389 = vmatpush1.bf16.msra.mxu0 0
      %3390 = vmatprep.subr.bf16.mxu0 0
      %3391 = vmatpush1.bf16.msra.mxu0 0
      %3392 = vmatprep.subr.bf16.mxu0 0
      %3393 = vmatpush1.bf16.msra.mxu0 0
      %3394 = vmatprep.subr.bf16.mxu0 0
      %3395 = vmatpush1.bf16.msra.mxu0 0
      %3396 = vmatprep.subr.bf16.mxu0 0
      %3397 = vmatpush1.bf16.msra.mxu0 0
      %3398 = vmatprep.subr.bf16.mxu0 0
      %3399 = vmatpush1.bf16.msra.mxu0 0
      %3400 = vmatprep.subr.bf16.mxu0 0
      %3401 = vmatpush1.bf16.msra.mxu0 0
      %3402 = vmatprep.subr.bf16.mxu0 0
      %3403 = vmatpush1.bf16.msra.mxu0 0
      %3404 = vmatprep.mubr.bf16.mxu0 0
      %3405 = vmatmul.mubr.bf16.gmra.mrb[0].mxu0 %v3247
      %v3406 = vpop.f32.mrb[0].mxu0
      %v3407 = vadd.f32 0.0, %v3406
      %v3408 = vpop.f32.mrb[0].mxu0
      %v3409 = vpop.f32.mrb[0].mxu0
      %v3410 = vpop.f32.mrb[0].mxu0
      %3411 = vdwg.mxu0
      %v3413 = vsel %vm3245, %v3213, 0
      %3415 = vmatprep.subr.bf16.mxu0 %v3207
      %3416 = vmatpush1.bf16.msra.mxu0 %v3206
      %3417 = vmatprep.subr.bf16.mxu0 0
      %3418 = vmatpush1.bf16.msra.mxu0 0
      %3419 = vmatprep.subr.bf16.mxu0 0
      %3420 = vmatpush1.bf16.msra.mxu0 0
      %3421 = vmatprep.subr.bf16.mxu0 0
      %3422 = vmatpush1.bf16.msra.mxu0 0
      %3423 = vmatprep.subr.bf16.mxu0 0
      %3424 = vmatpush1.bf16.msra.mxu0 0
      %3425 = vmatprep.subr.bf16.mxu0 0
      %3426 = vmatpush1.bf16.msra.mxu0 0
      %3427 = vmatprep.subr.bf16.mxu0 0
      %3428 = vmatpush1.bf16.msra.mxu0 0
      %3429 = vmatprep.subr.bf16.mxu0 0
      %3430 = vmatpush1.bf16.msra.mxu0 0
      %3431 = vmatprep.subr.bf16.mxu0 0
      %3432 = vmatpush1.bf16.msra.mxu0 0
      %3433 = vmatprep.subr.bf16.mxu0 0
      %3434 = vmatpush1.bf16.msra.mxu0 0
      %3435 = vmatprep.subr.bf16.mxu0 0
      %3436 = vmatpush1.bf16.msra.mxu0 0
      %3437 = vmatprep.subr.bf16.mxu0 0
      %3438 = vmatpush1.bf16.msra.mxu0 0
      %3439 = vmatprep.subr.bf16.mxu0 0
      %3440 = vmatpush1.bf16.msra.mxu0 0
      %3441 = vmatprep.subr.bf16.mxu0 0
      %3442 = vmatpush1.bf16.msra.mxu0 0
      %3443 = vmatprep.subr.bf16.mxu0 0
      %3444 = vmatpush1.bf16.msra.mxu0 0
      %3445 = vmatprep.subr.bf16.mxu0 0
      %3446 = vmatpush1.bf16.msra.mxu0 0
      %3447 = vmatprep.mubr.bf16.mxu0 0
      %3448 = vmatmul.mubr.bf16.gmra.mrb[0].mxu0 %v3413
      %v3449 = vpop.f32.mrb[0].mxu0
      %v3450 = vadd.f32 %v3284, %v3449
      %v3451 = vpop.f32.mrb[0].mxu0
      %v3452 = vadd.f32 %v3286, %v3451
      %v3453 = vpop.f32.mrb[0].mxu0
      %v3454 = vpop.f32.mrb[0].mxu0
      %3455 = vdwg.mxu0
      %3456 = vmatprep.subr.bf16.mxu0 %v3209
      %3457 = vmatpush1.bf16.msra.mxu0 %v3208
      %3458 = vmatprep.subr.bf16.mxu0 0
      %3459 = vmatpush1.bf16.msra.mxu0 0
      %3460 = vmatprep.subr.bf16.mxu0 0
      %3461 = vmatpush1.bf16.msra.mxu0 0
      %3462 = vmatprep.subr.bf16.mxu0 0
      %3463 = vmatpush1.bf16.msra.mxu0 0
      %3464 = vmatprep.subr.bf16.mxu0 0
      %3465 = vmatpush1.bf16.msra.mxu0 0
      %3466 = vmatprep.subr.bf16.mxu0 0
      %3467 = vmatpush1.bf16.msra.mxu0 0
      %3468 = vmatprep.subr.bf16.mxu0 0
      %3469 = vmatpush1.bf16.msra.mxu0 0
      %3470 = vmatprep.subr.bf16.mxu0 0
      %3471 = vmatpush1.bf16.msra.mxu0 0
      %3472 = vmatprep.subr.bf16.mxu0 0
      %3473 = vmatpush1.bf16.msra.mxu0 0
      %3474 = vmatprep.subr.bf16.mxu0 0
      %3475 = vmatpush1.bf16.msra.mxu0 0
      %3476 = vmatprep.subr.bf16.mxu0 0
      %3477 = vmatpush1.bf16.msra.mxu0 0
      %3478 = vmatprep.subr.bf16.mxu0 0
      %3479 = vmatpush1.bf16.msra.mxu0 0
      %3480 = vmatprep.subr.bf16.mxu0 0
      %3481 = vmatpush1.bf16.msra.mxu0 0
      %3482 = vmatprep.subr.bf16.mxu0 0
      %3483 = vmatpush1.bf16.msra.mxu0 0
      %3484 = vmatprep.subr.bf16.mxu0 0
      %3485 = vmatpush1.bf16.msra.mxu0 0
      %3486 = vmatprep.subr.bf16.mxu0 0
      %3487 = vmatpush1.bf16.msra.mxu0 0
      %3488 = vmatprep.mubr.bf16.mxu0 0
      %3489 = vmatmul.mubr.bf16.gmra.mrb[0].mxu0 %v3413
      %v3490 = vpop.f32.mrb[0].mxu0
      %v3491 = vadd.f32 %v3325, %v3490
      %v3492 = vpop.f32.mrb[0].mxu0
      %v3493 = vadd.f32 %v3327, %v3492
      %v3494 = vpop.f32.mrb[0].mxu0
      %v3495 = vpop.f32.mrb[0].mxu0
      %3496 = vdwg.mxu0
      %3497 = vmatprep.subr.bf16.mxu0 %v3211
      %3498 = vmatpush1.bf16.msra.mxu0 %v3210
      %3499 = vmatprep.subr.bf16.mxu0 0
      %3500 = vmatpush1.bf16.msra.mxu0 0
      %3501 = vmatprep.subr.bf16.mxu0 0
      %3502 = vmatpush1.bf16.msra.mxu0 0
      %3503 = vmatprep.subr.bf16.mxu0 0
      %3504 = vmatpush1.bf16.msra.mxu0 0
      %3505 = vmatprep.subr.bf16.mxu0 0
      %3506 = vmatpush1.bf16.msra.mxu0 0
      %3507 = vmatprep.subr.bf16.mxu0 0
      %3508 = vmatpush1.bf16.msra.mxu0 0
      %3509 = vmatprep.subr.bf16.mxu0 0
      %3510 = vmatpush1.bf16.msra.mxu0 0
      %3511 = vmatprep.subr.bf16.mxu0 0
      %3512 = vmatpush1.bf16.msra.mxu0 0
      %3513 = vmatprep.subr.bf16.mxu0 0
      %3514 = vmatpush1.bf16.msra.mxu0 0
      %3515 = vmatprep.subr.bf16.mxu0 0
      %3516 = vmatpush1.bf16.msra.mxu0 0
      %3517 = vmatprep.subr.bf16.mxu0 0
      %3518 = vmatpush1.bf16.msra.mxu0 0
      %3519 = vmatprep.subr.bf16.mxu0 0
      %3520 = vmatpush1.bf16.msra.mxu0 0
      %3521 = vmatprep.subr.bf16.mxu0 0
      %3522 = vmatpush1.bf16.msra.mxu0 0
      %3523 = vmatprep.subr.bf16.mxu0 0
      %3524 = vmatpush1.bf16.msra.mxu0 0
      %3525 = vmatprep.subr.bf16.mxu0 0
      %3526 = vmatpush1.bf16.msra.mxu0 0
      %3527 = vmatprep.subr.bf16.mxu0 0
      %3528 = vmatpush1.bf16.msra.mxu0 0
      %3529 = vmatprep.mubr.bf16.mxu0 0
      %3530 = vmatmul.mubr.bf16.gmra.mrb[0].mxu0 %v3413
      %v3531 = vpop.f32.mrb[0].mxu0
      %v3532 = vadd.f32 %v3366, %v3531
      %v3533 = vpop.f32.mrb[0].mxu0
      %v3534 = vadd.f32 %v3368, %v3533
      %v3535 = vpop.f32.mrb[0].mxu0
      %v3536 = vpop.f32.mrb[0].mxu0
      %3537 = vdwg.mxu0
      %3538 = vmatprep.subr.bf16.mxu0 0
      %3539 = vmatpush1.bf16.msra.mxu0 %v3212
      %3540 = vmatprep.subr.bf16.mxu0 0
      %3541 = vmatpush1.bf16.msra.mxu0 0
      %3542 = vmatprep.subr.bf16.mxu0 0
      %3543 = vmatpush1.bf16.msra.mxu0 0
      %3544 = vmatprep.subr.bf16.mxu0 0
      %3545 = vmatpush1.bf16.msra.mxu0 0
      %3546 = vmatprep.subr.bf16.mxu0 0
      %3547 = vmatpush1.bf16.msra.mxu0 0
      %3548 = vmatprep.subr.bf16.mxu0 0
      %3549 = vmatpush1.bf16.msra.mxu0 0
      %3550 = vmatprep.subr.bf16.mxu0 0
      %3551 = vmatpush1.bf16.msra.mxu0 0
      %3552 = vmatprep.subr.bf16.mxu0 0
      %3553 = vmatpush1.bf16.msra.mxu0 0
      %3554 = vmatprep.subr.bf16.mxu0 0
      %3555 = vmatpush1.bf16.msra.mxu0 0
      %3556 = vmatprep.subr.bf16.mxu0 0
      %3557 = vmatpush1.bf16.msra.mxu0 0
      %3558 = vmatprep.subr.bf16.mxu0 0
      %3559 = vmatpush1.bf16.msra.mxu0 0
      %3560 = vmatprep.subr.bf16.mxu0 0
      %3561 = vmatpush1.bf16.msra.mxu0 0
      %3562 = vmatprep.subr.bf16.mxu0 0
      %3563 = vmatpush1.bf16.msra.mxu0 0
      %3564 = vmatprep.subr.bf16.mxu0 0
      %3565 = vmatpush1.bf16.msra.mxu0 0
      %3566 = vmatprep.subr.bf16.mxu0 0
      %3567 = vmatpush1.bf16.msra.mxu0 0
      %3568 = vmatprep.subr.bf16.mxu0 0
      %3569 = vmatpush1.bf16.msra.mxu0 0
      %3570 = vmatprep.mubr.bf16.mxu0 0
      %3571 = vmatmul.mubr.bf16.gmra.mrb[0].mxu0 %v3413
      %v3572 = vpop.f32.mrb[0].mxu0
      %v3573 = vadd.f32 %v3407, %v3572
      %v3574 = vpop.f32.mrb[0].mxu0
      %v3575 = vpop.f32.mrb[0].mxu0
      %v3576 = vpop.f32.mrb[0].mxu0
      %3577 = vdwg.mxu0
      %v3578 = vadd.s32 %v3110, 1
      %v3579 = vadd.s32 %v3114, 1
      %v3580 = vadd.s32 %v3118, 1
      %v3581 = vadd.s32 %v3122, 1
      %v3582 = vadd.s32 %v3126, 1
      %v3583 = vadd.s32 %v3130, 1
      %v3584 = vadd.s32 %v3134, 1
      %vm3585 = vcmp.ge.s32.totalorder %v3578, 0
      %vm3586 = vcmp.ge.s32.totalorder %v3579, 0
      %vm3587 = vcmp.ge.s32.totalorder %v3580, 0
      %vm3588 = vcmp.ge.s32.totalorder %v3581, 0
      %vm3589 = vcmp.ge.s32.totalorder %v3582, 0
      %vm3590 = vcmp.ge.s32.totalorder %v3583, 0
      %vm3591 = vcmp.ge.s32.totalorder %v3584, 0
      %vm3592 = vcmp.lt.s32.totalorder %v3578, 28
      %vm3593 = vcmp.lt.s32.totalorder %v3579, 28
      %vm3594 = vcmp.lt.s32.totalorder %v3580, 28
      %vm3595 = vcmp.lt.s32.totalorder %v3581, 28
      %vm3596 = vcmp.lt.s32.totalorder %v3582, 28
      %vm3597 = vcmp.lt.s32.totalorder %v3583, 28
      %vm3598 = vcmp.lt.s32.totalorder %v3584, 28
      %vm3599 = vmand %vm3585, %vm3592
      %vm3600 = vmand %vm3586, %vm3593
      %vm3601 = vmand %vm3587, %vm3594
      %vm3602 = vmand %vm3588, %vm3595
      %vm3603 = vmand %vm3589, %vm3596
      %vm3604 = vmand %vm3590, %vm3597
      %vm3605 = vmand %vm3591, %vm3598
      %vm3606 = vmpackc.low %vm3600, %vm3599
      %vm3607 = vmpackc.low %vm3602, %vm3601
      %vm3608 = vmpackc.low %vm3604, %vm3603
      %vm3609 = vmpackc.low %vm3605, %vm3605
      %v3610 = vsel %vm3606, 65537, 0
      %v3611 = vsel %vm3607, 65537, 0
      %v3612 = vsel %vm3608, 65537, 0
      %v3613 = vsel %vm3609, 65537, 0
      %v3614 = vlaneseq
      %v3615 = vshrl.u32 %v3614, 7
      %v3616 = vsub.s32 0, %v3615
      %v3617 = vrot.slane %v3610, %v3616
      %v3618 = vlaneseq
      %v3619 = vshrl.u32 %v3618, 7
      %v3620 = vsub.s32 4, %v3619
      %v3621 = vrot.slane %v3610, %v3620
      %v3622 = vlaneseq
      %v3623 = vshrl.u32 %v3622, 7
      %v3624 = vsub.s32 0, %v3623
      %v3625 = vrot.slane %v3611, %v3624
      %v3626 = vlaneseq
      %v3627 = vshrl.u32 %v3626, 7
      %v3628 = vsub.s32 4, %v3627
      %v3629 = vrot.slane %v3611, %v3628
      %v3630 = vlaneseq
      %v3631 = vshrl.u32 %v3630, 7
      %v3632 = vsub.s32 0, %v3631
      %v3633 = vrot.slane %v3612, %v3632
      %v3634 = vlaneseq
      %v3635 = vshrl.u32 %v3634, 7
      %v3636 = vsub.s32 4, %v3635
      %v3637 = vrot.slane %v3612, %v3636
      %v3638 = vlaneseq
      %v3639 = vshrl.u32 %v3638, 7
      %v3640 = vsub.s32 0, %v3639
      %v3641 = vrot.slane %v3613, %v3640
      %3642 = vrot.lane.b32.xlu0 %v3617, 2
      %v3643 = vpop.permute.xlu0 %3642
      %3644 = vrot.lane.b32.xlu0 %v3621, 2
      %v3645 = vpop.permute.xlu0 %3644
      %3646 = vrot.lane.b32.xlu0 %v3625, 2
      %v3647 = vpop.permute.xlu0 %3646
      %3648 = vrot.lane.b32.xlu0 %v3629, 2
      %v3649 = vpop.permute.xlu0 %3648
      %3650 = vrot.lane.b32.xlu0 %v3633, 2
      %v3651 = vpop.permute.xlu0 %3650
      %3652 = vrot.lane.b32.xlu0 %v3637, 2
      %v3653 = vpop.permute.xlu0 %3652
      %3654 = vrot.lane.b32.xlu0 %v3641, 2
      %v3655 = vpop.permute.xlu0 %3654
      %v3656 = vsel %vm1700, %v3643, %v3645
      %v3657 = vsel %vm1700, %v3645, %v3647
      %v3658 = vsel %vm1700, %v3647, %v3649
      %v3659 = vsel %vm1700, %v3649, %v3651
      %v3660 = vsel %vm1700, %v3651, %v3653
      %v3661 = vsel %vm1700, %v3653, %v3655
      %vm3662 = vcmp.ne.s16.totalorder %v3643, 0
      %vm3663 = vcmp.ne.s16.totalorder %v3656, 0
      %vm3664 = vcmp.ne.s16.totalorder %v3657, 0
      %vm3665 = vcmp.ne.s16.totalorder %v3658, 0
      %vm3666 = vcmp.ne.s16.totalorder %v3659, 0
      %vm3667 = vcmp.ne.s16.totalorder %v3660, 0
      %vm3668 = vcmp.ne.s16.totalorder %v3661, 0
      %v3669 = vsel %vm3662, %v3101, 0
      %v3670 = vsel %vm3663, %v3088, 0
      %v3671 = vsel %vm3664, %v3089, 0
      %v3672 = vsel %vm3665, %v3090, 0
      %v3673 = vsel %vm3666, %v3091, 0
      %v3674 = vsel %vm3667, %v3092, 0
      %v3675 = vsel %vm3668, %v3105, 0
      %s3676 = scalar_lea.vmem %s7, 8
      %v3677 = vld [vmem:[%s3676] sm:$0xf]
      %3685 = vrot.lane.b32.xlu0 %v3669, 126
      %v3686 = vpop.permute.xlu0 %3685
      %3687 = vrot.lane.b32.xlu0 %v3670, 126
      %v3688 = vpop.permute.xlu0 %3687
      %3689 = vrot.lane.b32.xlu0 %v3671, 126
      %v3690 = vpop.permute.xlu0 %3689
      %3691 = vrot.lane.b32.xlu0 %v3672, 126
      %v3692 = vpop.permute.xlu0 %3691
      %3693 = vrot.lane.b32.xlu0 %v3673, 126
      %v3694 = vpop.permute.xlu0 %3693
      %3695 = vrot.lane.b32.xlu0 %v3674, 126
      %v3696 = vpop.permute.xlu0 %3695
      %3697 = vrot.lane.b32.xlu0 %v3675, 126
      %v3698 = vpop.permute.xlu0 %3697
      %v3699 = vsel %vm1728, %v3686, %v3688
      %v3700 = vsel %vm1728, %v3688, %v3690
      %v3701 = vsel %vm1728, %v3690, %v3692
      %v3702 = vsel %vm1728, %v3692, %v3694
      %v3703 = vsel %vm1728, %v3694, %v3696
      %v3704 = vsel %vm1728, %v3696, %v3698
      %v3713 = vsel %vm3245, %v3677, 0
      %3715 = vmatprep.subr.bf16.mxu0 %v3700
      %3716 = vmatpush1.bf16.msra.mxu0 %v3699
      %3717 = vmatprep.subr.bf16.mxu0 0
      %3718 = vmatpush1.bf16.msra.mxu0 0
      %3719 = vmatprep.subr.bf16.mxu0 0
      %3720 = vmatpush1.bf16.msra.mxu0 0
      %3721 = vmatprep.subr.bf16.mxu0 0
      %3722 = vmatpush1.bf16.msra.mxu0 0
      %3723 = vmatprep.subr.bf16.mxu0 0
      %3724 = vmatpush1.bf16.msra.mxu0 0
      %3725 = vmatprep.subr.bf16.mxu0 0
      %3726 = vmatpush1.bf16.msra.mxu0 0
      %3727 = vmatprep.subr.bf16.mxu0 0
      %3728 = vmatpush1.bf16.msra.mxu0 0
      %3729 = vmatprep.subr.bf16.mxu0 0
      %3730 = vmatpush1.bf16.msra.mxu0 0
      %3731 = vmatprep.subr.bf16.mxu0 0
      %3732 = vmatpush1.bf16.msra.mxu0 0
      %3733 = vmatprep.subr.bf16.mxu0 0
      %3734 = vmatpush1.bf16.msra.mxu0 0
      %3735 = vmatprep.subr.bf16.mxu0 0
      %3736 = vmatpush1.bf16.msra.mxu0 0
      %3737 = vmatprep.subr.bf16.mxu0 0
      %3738 = vmatpush1.bf16.msra.mxu0 0
      %3739 = vmatprep.subr.bf16.mxu0 0
      %3740 = vmatpush1.bf16.msra.mxu0 0
      %3741 = vmatprep.subr.bf16.mxu0 0
      %3742 = vmatpush1.bf16.msra.mxu0 0
      %3743 = vmatprep.subr.bf16.mxu0 0
      %3744 = vmatpush1.bf16.msra.mxu0 0
      %3745 = vmatprep.subr.bf16.mxu0 0
      %3746 = vmatpush1.bf16.msra.mxu0 0
      %3747 = vmatprep.mubr.bf16.mxu0 0
      %3748 = vmatmul.mubr.bf16.gmra.mrb[0].mxu0 %v3713
      %v3749 = vpop.f32.mrb[0].mxu0
      %v3750 = vadd.f32 0.0, %v3749
      %v3751 = vpop.f32.mrb[0].mxu0
      %v3752 = vadd.f32 0.0, %v3751
      %v3753 = vpop.f32.mrb[0].mxu0
      %v3754 = vpop.f32.mrb[0].mxu0
      %3755 = vdwg.mxu0
      %3756 = vmatprep.subr.bf16.mxu0 %v3702
      %3757 = vmatpush1.bf16.msra.mxu0 %v3701
      %3758 = vmatprep.subr.bf16.mxu0 0
      %3759 = vmatpush1.bf16.msra.mxu0 0
      %3760 = vmatprep.subr.bf16.mxu0 0
      %3761 = vmatpush1.bf16.msra.mxu0 0
      %3762 = vmatprep.subr.bf16.mxu0 0
      %3763 = vmatpush1.bf16.msra.mxu0 0
      %3764 = vmatprep.subr.bf16.mxu0 0
      %3765 = vmatpush1.bf16.msra.mxu0 0
      %3766 = vmatprep.subr.bf16.mxu0 0
      %3767 = vmatpush1.bf16.msra.mxu0 0
      %3768 = vmatprep.subr.bf16.mxu0 0
      %3769 = vmatpush1.bf16.msra.mxu0 0
      %3770 = vmatprep.subr.bf16.mxu0 0
      %3771 = vmatpush1.bf16.msra.mxu0 0
      %3772 = vmatprep.subr.bf16.mxu0 0
      %3773 = vmatpush1.bf16.msra.mxu0 0
      %3774 = vmatprep.subr.bf16.mxu0 0
      %3775 = vmatpush1.bf16.msra.mxu0 0
      %3776 = vmatprep.subr.bf16.mxu0 0
      %3777 = vmatpush1.bf16.msra.mxu0 0
      %3778 = vmatprep.subr.bf16.mxu0 0
      %3779 = vmatpush1.bf16.msra.mxu0 0
      %3780 = vmatprep.subr.bf16.mxu0 0
      %3781 = vmatpush1.bf16.msra.mxu0 0
      %3782 = vmatprep.subr.bf16.mxu0 0
      %3783 = vmatpush1.bf16.msra.mxu0 0
      %3784 = vmatprep.subr.bf16.mxu0 0
      %3785 = vmatpush1.bf16.msra.mxu0 0
      %3786 = vmatprep.subr.bf16.mxu0 0
      %3787 = vmatpush1.bf16.msra.mxu0 0
      %3788 = vmatprep.mubr.bf16.mxu0 0
      %3789 = vmatmul.mubr.bf16.gmra.mrb[0].mxu0 %v3713
      %v3790 = vpop.f32.mrb[0].mxu0
      %v3791 = vadd.f32 0.0, %v3790
      %v3792 = vpop.f32.mrb[0].mxu0
      %v3793 = vadd.f32 0.0, %v3792
      %v3794 = vpop.f32.mrb[0].mxu0
      %v3795 = vpop.f32.mrb[0].mxu0
      %3796 = vdwg.mxu0
      %3797 = vmatprep.subr.bf16.mxu0 %v3704
      %3798 = vmatpush1.bf16.msra.mxu0 %v3703
      %3799 = vmatprep.subr.bf16.mxu0 0
      %3800 = vmatpush1.bf16.msra.mxu0 0
      %3801 = vmatprep.subr.bf16.mxu0 0
      %3802 = vmatpush1.bf16.msra.mxu0 0
      %3803 = vmatprep.subr.bf16.mxu0 0
      %3804 = vmatpush1.bf16.msra.mxu0 0
      %3805 = vmatprep.subr.bf16.mxu0 0
      %3806 = vmatpush1.bf16.msra.mxu0 0
      %3807 = vmatprep.subr.bf16.mxu0 0
      %3808 = vmatpush1.bf16.msra.mxu0 0
      %3809 = vmatprep.subr.bf16.mxu0 0
      %3810 = vmatpush1.bf16.msra.mxu0 0
      %3811 = vmatprep.subr.bf16.mxu0 0
      %3812 = vmatpush1.bf16.msra.mxu0 0
      %3813 = vmatprep.subr.bf16.mxu0 0
      %3814 = vmatpush1.bf16.msra.mxu0 0
      %3815 = vmatprep.subr.bf16.mxu0 0
      %3816 = vmatpush1.bf16.msra.mxu0 0
      %3817 = vmatprep.subr.bf16.mxu0 0
      %3818 = vmatpush1.bf16.msra.mxu0 0
      %3819 = vmatprep.subr.bf16.mxu0 0
      %3820 = vmatpush1.bf16.msra.mxu0 0
      %3821 = vmatprep.subr.bf16.mxu0 0
      %3822 = vmatpush1.bf16.msra.mxu0 0
      %3823 = vmatprep.subr.bf16.mxu0 0
      %3824 = vmatpush1.bf16.msra.mxu0 0
      %3825 = vmatprep.subr.bf16.mxu0 0
      %3826 = vmatpush1.bf16.msra.mxu0 0
      %3827 = vmatprep.subr.bf16.mxu0 0
      %3828 = vmatpush1.bf16.msra.mxu0 0
      %3829 = vmatprep.mubr.bf16.mxu0 0
      %3830 = vmatmul.mubr.bf16.gmra.mrb[0].mxu0 %v3713
      %v3831 = vpop.f32.mrb[0].mxu0
      %v3832 = vadd.f32 0.0, %v3831
      %v3833 = vpop.f32.mrb[0].mxu0
      %v3834 = vadd.f32 0.0, %v3833
      %v3835 = vpop.f32.mrb[0].mxu0
      %v3836 = vpop.f32.mrb[0].mxu0
      %3837 = vdwg.mxu0
      %3838 = vmatprep.subr.bf16.mxu0 0
      %3839 = vmatpush1.bf16.msra.mxu0 %v3698
      %3840 = vmatprep.subr.bf16.mxu0 0
      %3841 = vmatpush1.bf16.msra.mxu0 0
      %3842 = vmatprep.subr.bf16.mxu0 0
      %3843 = vmatpush1.bf16.msra.mxu0 0
      %3844 = vmatprep.subr.bf16.mxu0 0
      %3845 = vmatpush1.bf16.msra.mxu0 0
      %3846 = vmatprep.subr.bf16.mxu0 0
      %3847 = vmatpush1.bf16.msra.mxu0 0
      %3848 = vmatprep.subr.bf16.mxu0 0
      %3849 = vmatpush1.bf16.msra.mxu0 0
      %3850 = vmatprep.subr.bf16.mxu0 0
      %3851 = vmatpush1.bf16.msra.mxu0 0
      %3852 = vmatprep.subr.bf16.mxu0 0
      %3853 = vmatpush1.bf16.msra.mxu0 0
      %3854 = vmatprep.subr.bf16.mxu0 0
      %3855 = vmatpush1.bf16.msra.mxu0 0
      %3856 = vmatprep.subr.bf16.mxu0 0
      %3857 = vmatpush1.bf16.msra.mxu0 0
      %3858 = vmatprep.subr.bf16.mxu0 0
      %3859 = vmatpush1.bf16.msra.mxu0 0
      %3860 = vmatprep.subr.bf16.mxu0 0
      %3861 = vmatpush1.bf16.msra.mxu0 0
      %3862 = vmatprep.subr.bf16.mxu0 0
      %3863 = vmatpush1.bf16.msra.mxu0 0
      %3864 = vmatprep.subr.bf16.mxu0 0
      %3865 = vmatpush1.bf16.msra.mxu0 0
      %3866 = vmatprep.subr.bf16.mxu0 0
      %3867 = vmatpush1.bf16.msra.mxu0 0
      %3868 = vmatprep.subr.bf16.mxu0 0
      %3869 = vmatpush1.bf16.msra.mxu0 0
      %3870 = vmatprep.mubr.bf16.mxu0 0
      %3871 = vmatmul.mubr.bf16.gmra.mrb[0].mxu0 %v3713
      %v3872 = vpop.f32.mrb[0].mxu0
      %v3873 = vadd.f32 0.0, %v3872
      %v3874 = vpop.f32.mrb[0].mxu0
      %v3875 = vpop.f32.mrb[0].mxu0
      %v3876 = vpop.f32.mrb[0].mxu0
      %3877 = vdwg.mxu0
      %v3878 = vadd.f32 %v3450, %v3750
      %v3879 = vadd.f32 %v3452, %v3752
      %v3880 = vadd.f32 %v3491, %v3791
      %v3881 = vadd.f32 %v3493, %v3793
      %v3882 = vadd.f32 %v3532, %v3832
      %v3883 = vadd.f32 %v3534, %v3834
      %v3884 = vadd.f32 %v3573, %v3873
      %3885 = vrot.lane.b32.xlu0 %v3174, 28
      %v3886 = vpop.permute.xlu0 %3885
      %3887 = vrot.lane.b32.xlu0 %v3178, 28
      %v3888 = vpop.permute.xlu0 %3887
      %3889 = vrot.lane.b32.xlu0 %v3182, 28
      %v3890 = vpop.permute.xlu0 %3889
      %3891 = vrot.lane.b32.xlu0 %v3186, 28
      %v3892 = vpop.permute.xlu0 %3891
      %3893 = vrot.lane.b32.xlu0 %v3190, 28
      %v3894 = vpop.permute.xlu0 %3893
      %3895 = vrot.lane.b32.xlu0 %v3194, 28
      %v3896 = vpop.permute.xlu0 %3895
      %3897 = vrot.lane.b32.xlu0 %v3198, 28
      %v3898 = vpop.permute.xlu0 %3897
      %v3899 = vsel %vm2040, %v3886, %v3888
      %v3900 = vsel %vm2040, %v3888, %v3890
      %v3901 = vsel %vm2040, %v3890, %v3892
      %v3902 = vsel %vm2040, %v3892, %v3894
      %v3903 = vsel %vm2040, %v3894, %v3896
      %v3904 = vsel %vm2040, %v3896, %v3898
      %vm3905 = vcmp.ne.s16.totalorder %v3886, 0
      %vm3906 = vcmp.ne.s16.totalorder %v3899, 0
      %vm3907 = vcmp.ne.s16.totalorder %v3900, 0
      %vm3908 = vcmp.ne.s16.totalorder %v3901, 0
      %vm3909 = vcmp.ne.s16.totalorder %v3902, 0
      %vm3910 = vcmp.ne.s16.totalorder %v3903, 0
      %vm3911 = vcmp.ne.s16.totalorder %v3904, 0
      %v3912 = vsel %vm3905, %v3101, 0
      %v3913 = vsel %vm3906, %v3088, 0
      %v3914 = vsel %vm3907, %v3089, 0
      %v3915 = vsel %vm3908, %v3090, 0
      %v3916 = vsel %vm3909, %v3091, 0
      %v3917 = vsel %vm3910, %v3092, 0
      %v3918 = vsel %vm3911, %v3105, 0
      %s3919 = scalar_lea.vmem %s7, 12
      %v3920 = vld [vmem:[%s3919] sm:$0xf]
      %3928 = vrot.lane.b32.xlu0 %v3912, 100
      %v3929 = vpop.permute.xlu0 %3928
      %3930 = vrot.lane.b32.xlu0 %v3913, 100
      %v3931 = vpop.permute.xlu0 %3930
      %3932 = vrot.lane.b32.xlu0 %v3914, 100
      %v3933 = vpop.permute.xlu0 %3932
      %3934 = vrot.lane.b32.xlu0 %v3915, 100
      %v3935 = vpop.permute.xlu0 %3934
      %3936 = vrot.lane.b32.xlu0 %v3916, 100
      %v3937 = vpop.permute.xlu0 %3936
      %3938 = vrot.lane.b32.xlu0 %v3917, 100
      %v3939 = vpop.permute.xlu0 %3938
      %3940 = vrot.lane.b32.xlu0 %v3918, 100
      %v3941 = vpop.permute.xlu0 %3940
      %v3942 = vsel %vm2068, %v3929, %v3931
      %v3943 = vsel %vm2068, %v3931, %v3933
      %v3944 = vsel %vm2068, %v3933, %v3935
      %v3945 = vsel %vm2068, %v3935, %v3937
      %v3946 = vsel %vm2068, %v3937, %v3939
      %v3947 = vsel %vm2068, %v3939, %v3941
      %v3956 = vsel %vm3245, %v3920, 0
      %3958 = vmatprep.subr.bf16.mxu0 %v3943
      %3959 = vmatpush1.bf16.msra.mxu0 %v3942
      %3960 = vmatprep.subr.bf16.mxu0 0
      %3961 = vmatpush1.bf16.msra.mxu0 0
      %3962 = vmatprep.subr.bf16.mxu0 0
      %3963 = vmatpush1.bf16.msra.mxu0 0
      %3964 = vmatprep.subr.bf16.mxu0 0
      %3965 = vmatpush1.bf16.msra.mxu0 0
      %3966 = vmatprep.subr.bf16.mxu0 0
      %3967 = vmatpush1.bf16.msra.mxu0 0
      %3968 = vmatprep.subr.bf16.mxu0 0
      %3969 = vmatpush1.bf16.msra.mxu0 0
      %3970 = vmatprep.subr.bf16.mxu0 0
      %3971 = vmatpush1.bf16.msra.mxu0 0
      %3972 = vmatprep.subr.bf16.mxu0 0
      %3973 = vmatpush1.bf16.msra.mxu0 0
      %3974 = vmatprep.subr.bf16.mxu0 0
      %3975 = vmatpush1.bf16.msra.mxu0 0
      %3976 = vmatprep.subr.bf16.mxu0 0
      %3977 = vmatpush1.bf16.msra.mxu0 0
      %3978 = vmatprep.subr.bf16.mxu0 0
      %3979 = vmatpush1.bf16.msra.mxu0 0
      %3980 = vmatprep.subr.bf16.mxu0 0
      %3981 = vmatpush1.bf16.msra.mxu0 0
      %3982 = vmatprep.subr.bf16.mxu0 0
      %3983 = vmatpush1.bf16.msra.mxu0 0
      %3984 = vmatprep.subr.bf16.mxu0 0
      %3985 = vmatpush1.bf16.msra.mxu0 0
      %3986 = vmatprep.subr.bf16.mxu0 0
      %3987 = vmatpush1.bf16.msra.mxu0 0
      %3988 = vmatprep.subr.bf16.mxu0 0
      %3989 = vmatpush1.bf16.msra.mxu0 0
      %3990 = vmatprep.mubr.bf16.mxu0 0
      %3991 = vmatmul.mubr.bf16.gmra.mrb[0].mxu0 %v3956
      %v3992 = vpop.f32.mrb[0].mxu0
      %v3993 = vadd.f32 0.0, %v3992
      %v3994 = vpop.f32.mrb[0].mxu0
      %v3995 = vadd.f32 0.0, %v3994
      %v3996 = vpop.f32.mrb[0].mxu0
      %v3997 = vpop.f32.mrb[0].mxu0
      %3998 = vdwg.mxu0
      %3999 = vmatprep.subr.bf16.mxu0 %v3945
      %4000 = vmatpush1.bf16.msra.mxu0 %v3944
      %4001 = vmatprep.subr.bf16.mxu0 0
      %4002 = vmatpush1.bf16.msra.mxu0 0
      %4003 = vmatprep.subr.bf16.mxu0 0
      %4004 = vmatpush1.bf16.msra.mxu0 0
      %4005 = vmatprep.subr.bf16.mxu0 0
      %4006 = vmatpush1.bf16.msra.mxu0 0
      %4007 = vmatprep.subr.bf16.mxu0 0
      %4008 = vmatpush1.bf16.msra.mxu0 0
      %4009 = vmatprep.subr.bf16.mxu0 0
      %4010 = vmatpush1.bf16.msra.mxu0 0
      %4011 = vmatprep.subr.bf16.mxu0 0
      %4012 = vmatpush1.bf16.msra.mxu0 0
      %4013 = vmatprep.subr.bf16.mxu0 0
      %4014 = vmatpush1.bf16.msra.mxu0 0
      %4015 = vmatprep.subr.bf16.mxu0 0
      %4016 = vmatpush1.bf16.msra.mxu0 0
      %4017 = vmatprep.subr.bf16.mxu0 0
      %4018 = vmatpush1.bf16.msra.mxu0 0
      %4019 = vmatprep.subr.bf16.mxu0 0
      %4020 = vmatpush1.bf16.msra.mxu0 0
      %4021 = vmatprep.subr.bf16.mxu0 0
      %4022 = vmatpush1.bf16.msra.mxu0 0
      %4023 = vmatprep.subr.bf16.mxu0 0
      %4024 = vmatpush1.bf16.msra.mxu0 0
      %4025 = vmatprep.subr.bf16.mxu0 0
      %4026 = vmatpush1.bf16.msra.mxu0 0
      %4027 = vmatprep.subr.bf16.mxu0 0
      %4028 = vmatpush1.bf16.msra.mxu0 0
      %4029 = vmatprep.subr.bf16.mxu0 0
      %4030 = vmatpush1.bf16.msra.mxu0 0
      %4031 = vmatprep.mubr.bf16.mxu0 0
      %4032 = vmatmul.mubr.bf16.gmra.mrb[0].mxu0 %v3956
      %v4033 = vpop.f32.mrb[0].mxu0
      %v4034 = vadd.f32 0.0, %v4033
      %v4035 = vpop.f32.mrb[0].mxu0
      %v4036 = vadd.f32 0.0, %v4035
      %v4037 = vpop.f32.mrb[0].mxu0
      %v4038 = vpop.f32.mrb[0].mxu0
      %4039 = vdwg.mxu0
      %4040 = vmatprep.subr.bf16.mxu0 %v3947
      %4041 = vmatpush1.bf16.msra.mxu0 %v3946
      %4042 = vmatprep.subr.bf16.mxu0 0
      %4043 = vmatpush1.bf16.msra.mxu0 0
      %4044 = vmatprep.subr.bf16.mxu0 0
      %4045 = vmatpush1.bf16.msra.mxu0 0
      %4046 = vmatprep.subr.bf16.mxu0 0
      %4047 = vmatpush1.bf16.msra.mxu0 0
      %4048 = vmatprep.subr.bf16.mxu0 0
      %4049 = vmatpush1.bf16.msra.mxu0 0
      %4050 = vmatprep.subr.bf16.mxu0 0
      %4051 = vmatpush1.bf16.msra.mxu0 0
      %4052 = vmatprep.subr.bf16.mxu0 0
      %4053 = vmatpush1.bf16.msra.mxu0 0
      %4054 = vmatprep.subr.bf16.mxu0 0
      %4055 = vmatpush1.bf16.msra.mxu0 0
      %4056 = vmatprep.subr.bf16.mxu0 0
      %4057 = vmatpush1.bf16.msra.mxu0 0
      %4058 = vmatprep.subr.bf16.mxu0 0
      %4059 = vmatpush1.bf16.msra.mxu0 0
      %4060 = vmatprep.subr.bf16.mxu0 0
      %4061 = vmatpush1.bf16.msra.mxu0 0
      %4062 = vmatprep.subr.bf16.mxu0 0
      %4063 = vmatpush1.bf16.msra.mxu0 0
      %4064 = vmatprep.subr.bf16.mxu0 0
      %4065 = vmatpush1.bf16.msra.mxu0 0
      %4066 = vmatprep.subr.bf16.mxu0 0
      %4067 = vmatpush1.bf16.msra.mxu0 0
      %4068 = vmatprep.subr.bf16.mxu0 0
      %4069 = vmatpush1.bf16.msra.mxu0 0
      %4070 = vmatprep.subr.bf16.mxu0 0
      %4071 = vmatpush1.bf16.msra.mxu0 0
      %4072 = vmatprep.mubr.bf16.mxu0 0
      %4073 = vmatmul.mubr.bf16.gmra.mrb[0].mxu0 %v3956
      %v4074 = vpop.f32.mrb[0].mxu0
      %v4075 = vadd.f32 0.0, %v4074
      %v4076 = vpop.f32.mrb[0].mxu0
      %v4077 = vadd.f32 0.0, %v4076
      %v4078 = vpop.f32.mrb[0].mxu0
      %v4079 = vpop.f32.mrb[0].mxu0
      %4080 = vdwg.mxu0
      %4081 = vmatprep.subr.bf16.mxu0 0
      %4082 = vmatpush1.bf16.msra.mxu0 %v3941
      %4083 = vmatprep.subr.bf16.mxu0 0
      %4084 = vmatpush1.bf16.msra.mxu0 0
      %4085 = vmatprep.subr.bf16.mxu0 0
      %4086 = vmatpush1.bf16.msra.mxu0 0
      %4087 = vmatprep.subr.bf16.mxu0 0
      %4088 = vmatpush1.bf16.msra.mxu0 0
      %4089 = vmatprep.subr.bf16.mxu0 0
      %4090 = vmatpush1.bf16.msra.mxu0 0
      %4091 = vmatprep.subr.bf16.mxu0 0
      %4092 = vmatpush1.bf16.msra.mxu0 0
      %4093 = vmatprep.subr.bf16.mxu0 0
      %4094 = vmatpush1.bf16.msra.mxu0 0
      %4095 = vmatprep.subr.bf16.mxu0 0
      %4096 = vmatpush1.bf16.msra.mxu0 0
      %4097 = vmatprep.subr.bf16.mxu0 0
      %4098 = vmatpush1.bf16.msra.mxu0 0
      %4099 = vmatprep.subr.bf16.mxu0 0
      %4100 = vmatpush1.bf16.msra.mxu0 0
      %4101 = vmatprep.subr.bf16.mxu0 0
      %4102 = vmatpush1.bf16.msra.mxu0 0
      %4103 = vmatprep.subr.bf16.mxu0 0
      %4104 = vmatpush1.bf16.msra.mxu0 0
      %4105 = vmatprep.subr.bf16.mxu0 0
      %4106 = vmatpush1.bf16.msra.mxu0 0
      %4107 = vmatprep.subr.bf16.mxu0 0
      %4108 = vmatpush1.bf16.msra.mxu0 0
      %4109 = vmatprep.subr.bf16.mxu0 0
      %4110 = vmatpush1.bf16.msra.mxu0 0
      %4111 = vmatprep.subr.bf16.mxu0 0
      %4112 = vmatpush1.bf16.msra.mxu0 0
      %4113 = vmatprep.mubr.bf16.mxu0 0
      %4114 = vmatmul.mubr.bf16.gmra.mrb[0].mxu0 %v3956
      %v4115 = vpop.f32.mrb[0].mxu0
      %v4116 = vadd.f32 0.0, %v4115
      %v4117 = vpop.f32.mrb[0].mxu0
      %v4118 = vpop.f32.mrb[0].mxu0
      %v4119 = vpop.f32.mrb[0].mxu0
      %4120 = vdwg.mxu0
      %v4121 = vadd.f32 %v3878, %v3993
      %v4122 = vadd.f32 %v3879, %v3995
      %v4123 = vadd.f32 %v3880, %v4034
      %v4124 = vadd.f32 %v3881, %v4036
      %v4125 = vadd.f32 %v3882, %v4075
      %v4126 = vadd.f32 %v3883, %v4077
      %v4127 = vadd.f32 %v3884, %v4116
      %s4128 = scalar_lea.vmem %s7, 16
      %v4129 = vld [vmem:[%s4128] sm:$0xf]
      %4130 = vrot.lane.b32.xlu0 %v3101, 99
      %v4131 = vpop.permute.xlu0 %4130
      %4132 = vrot.lane.b32.xlu0 %v3088, 99
      %v4133 = vpop.permute.xlu0 %4132
      %4134 = vrot.lane.b32.xlu0 %v3089, 99
      %v4135 = vpop.permute.xlu0 %4134
      %4136 = vrot.lane.b32.xlu0 %v3090, 99
      %v4137 = vpop.permute.xlu0 %4136
      %4138 = vrot.lane.b32.xlu0 %v3091, 99
      %v4139 = vpop.permute.xlu0 %4138
      %4140 = vrot.lane.b32.xlu0 %v3092, 99
      %v4141 = vpop.permute.xlu0 %4140
      %4142 = vrot.lane.b32.xlu0 %v3105, 99
      %v4143 = vpop.permute.xlu0 %4142
      %v4144 = vsel %vm2141, %v4131, %v4133
      %v4145 = vsel %vm2141, %v4133, %v4135
      %v4146 = vsel %vm2141, %v4135, %v4137
      %v4147 = vsel %vm2141, %v4137, %v4139
      %v4148 = vsel %vm2141, %v4139, %v4141
      %v4149 = vsel %vm2141, %v4141, %v4143
      %v4158 = vsel %vm3245, %v4129, 0
      %4160 = vmatprep.subr.bf16.mxu0 %v4145
      %4161 = vmatpush1.bf16.msra.mxu0 %v4144
      %4162 = vmatprep.subr.bf16.mxu0 0
      %4163 = vmatpush1.bf16.msra.mxu0 0
      %4164 = vmatprep.subr.bf16.mxu0 0
      %4165 = vmatpush1.bf16.msra.mxu0 0
      %4166 = vmatprep.subr.bf16.mxu0 0
      %4167 = vmatpush1.bf16.msra.mxu0 0
      %4168 = vmatprep.subr.bf16.mxu0 0
      %4169 = vmatpush1.bf16.msra.mxu0 0
      %4170 = vmatprep.subr.bf16.mxu0 0
      %4171 = vmatpush1.bf16.msra.mxu0 0
      %4172 = vmatprep.subr.bf16.mxu0 0
      %4173 = vmatpush1.bf16.msra.mxu0 0
      %4174 = vmatprep.subr.bf16.mxu0 0
      %4175 = vmatpush1.bf16.msra.mxu0 0
      %4176 = vmatprep.subr.bf16.mxu0 0
      %4177 = vmatpush1.bf16.msra.mxu0 0
      %4178 = vmatprep.subr.bf16.mxu0 0
      %4179 = vmatpush1.bf16.msra.mxu0 0
      %4180 = vmatprep.subr.bf16.mxu0 0
      %4181 = vmatpush1.bf16.msra.mxu0 0
      %4182 = vmatprep.subr.bf16.mxu0 0
      %4183 = vmatpush1.bf16.msra.mxu0 0
      %4184 = vmatprep.subr.bf16.mxu0 0
      %4185 = vmatpush1.bf16.msra.mxu0 0
      %4186 = vmatprep.subr.bf16.mxu0 0
      %4187 = vmatpush1.bf16.msra.mxu0 0
      %4188 = vmatprep.subr.bf16.mxu0 0
      %4189 = vmatpush1.bf16.msra.mxu0 0
      %4190 = vmatprep.subr.bf16.mxu0 0
      %4191 = vmatpush1.bf16.msra.mxu0 0
      %4192 = vmatprep.mubr.bf16.mxu0 0
      %4193 = vmatmul.mubr.bf16.gmra.mrb[0].mxu0 %v4158
      %v4194 = vpop.f32.mrb[0].mxu0
      %v4195 = vadd.f32 0.0, %v4194
      %v4196 = vpop.f32.mrb[0].mxu0
      %v4197 = vadd.f32 0.0, %v4196
      %v4198 = vpop.f32.mrb[0].mxu0
      %v4199 = vpop.f32.mrb[0].mxu0
      %4200 = vdwg.mxu0
      %4201 = vmatprep.subr.bf16.mxu0 %v4147
      %4202 = vmatpush1.bf16.msra.mxu0 %v4146
      %4203 = vmatprep.subr.bf16.mxu0 0
      %4204 = vmatpush1.bf16.msra.mxu0 0
      %4205 = vmatprep.subr.bf16.mxu0 0
      %4206 = vmatpush1.bf16.msra.mxu0 0
      %4207 = vmatprep.subr.bf16.mxu0 0
      %4208 = vmatpush1.bf16.msra.mxu0 0
      %4209 = vmatprep.subr.bf16.mxu0 0
      %4210 = vmatpush1.bf16.msra.mxu0 0
      %4211 = vmatprep.subr.bf16.mxu0 0
      %4212 = vmatpush1.bf16.msra.mxu0 0
      %4213 = vmatprep.subr.bf16.mxu0 0
      %4214 = vmatpush1.bf16.msra.mxu0 0
      %4215 = vmatprep.subr.bf16.mxu0 0
      %4216 = vmatpush1.bf16.msra.mxu0 0
      %4217 = vmatprep.subr.bf16.mxu0 0
      %4218 = vmatpush1.bf16.msra.mxu0 0
      %4219 = vmatprep.subr.bf16.mxu0 0
      %4220 = vmatpush1.bf16.msra.mxu0 0
      %4221 = vmatprep.subr.bf16.mxu0 0
      %4222 = vmatpush1.bf16.msra.mxu0 0
      %4223 = vmatprep.subr.bf16.mxu0 0
      %4224 = vmatpush1.bf16.msra.mxu0 0
      %4225 = vmatprep.subr.bf16.mxu0 0
      %4226 = vmatpush1.bf16.msra.mxu0 0
      %4227 = vmatprep.subr.bf16.mxu0 0
      %4228 = vmatpush1.bf16.msra.mxu0 0
      %4229 = vmatprep.subr.bf16.mxu0 0
      %4230 = vmatpush1.bf16.msra.mxu0 0
      %4231 = vmatprep.subr.bf16.mxu0 0
      %4232 = vmatpush1.bf16.msra.mxu0 0
      %4233 = vmatprep.mubr.bf16.mxu0 0
      %4234 = vmatmul.mubr.bf16.gmra.mrb[0].mxu0 %v4158
      %v4235 = vpop.f32.mrb[0].mxu0
      %v4236 = vadd.f32 0.0, %v4235
      %v4237 = vpop.f32.mrb[0].mxu0
      %v4238 = vadd.f32 0.0, %v4237
      %v4239 = vpop.f32.mrb[0].mxu0
      %v4240 = vpop.f32.mrb[0].mxu0
      %4241 = vdwg.mxu0
      %4242 = vmatprep.subr.bf16.mxu0 %v4149
      %4243 = vmatpush1.bf16.msra.mxu0 %v4148
      %4244 = vmatprep.subr.bf16.mxu0 0
      %4245 = vmatpush1.bf16.msra.mxu0 0
      %4246 = vmatprep.subr.bf16.mxu0 0
      %4247 = vmatpush1.bf16.msra.mxu0 0
      %4248 = vmatprep.subr.bf16.mxu0 0
      %4249 = vmatpush1.bf16.msra.mxu0 0
      %4250 = vmatprep.subr.bf16.mxu0 0
      %4251 = vmatpush1.bf16.msra.mxu0 0
      %4252 = vmatprep.subr.bf16.mxu0 0
      %4253 = vmatpush1.bf16.msra.mxu0 0
      %4254 = vmatprep.subr.bf16.mxu0 0
      %4255 = vmatpush1.bf16.msra.mxu0 0
      %4256 = vmatprep.subr.bf16.mxu0 0
      %4257 = vmatpush1.bf16.msra.mxu0 0
      %4258 = vmatprep.subr.bf16.mxu0 0
      %4259 = vmatpush1.bf16.msra.mxu0 0
      %4260 = vmatprep.subr.bf16.mxu0 0
      %4261 = vmatpush1.bf16.msra.mxu0 0
      %4262 = vmatprep.subr.bf16.mxu0 0
      %4263 = vmatpush1.bf16.msra.mxu0 0
      %4264 = vmatprep.subr.bf16.mxu0 0
      %4265 = vmatpush1.bf16.msra.mxu0 0
      %4266 = vmatprep.subr.bf16.mxu0 0
      %4267 = vmatpush1.bf16.msra.mxu0 0
      %4268 = vmatprep.subr.bf16.mxu0 0
      %4269 = vmatpush1.bf16.msra.mxu0 0
      %4270 = vmatprep.subr.bf16.mxu0 0
      %4271 = vmatpush1.bf16.msra.mxu0 0
      %4272 = vmatprep.subr.bf16.mxu0 0
      %4273 = vmatpush1.bf16.msra.mxu0 0
      %4274 = vmatprep.mubr.bf16.mxu0 0
      %4275 = vmatmul.mubr.bf16.gmra.mrb[0].mxu0 %v4158
      %v4276 = vpop.f32.mrb[0].mxu0
      %v4277 = vadd.f32 0.0, %v4276
      %v4278 = vpop.f32.mrb[0].mxu0
      %v4279 = vadd.f32 0.0, %v4278
      %v4280 = vpop.f32.mrb[0].mxu0
      %v4281 = vpop.f32.mrb[0].mxu0
      %4282 = vdwg.mxu0
      %4283 = vmatprep.subr.bf16.mxu0 0
      %4284 = vmatpush1.bf16.msra.mxu0 %v4143
      %4285 = vmatprep.subr.bf16.mxu0 0
      %4286 = vmatpush1.bf16.msra.mxu0 0
      %4287 = vmatprep.subr.bf16.mxu0 0
      %4288 = vmatpush1.bf16.msra.mxu0 0
      %4289 = vmatprep.subr.bf16.mxu0 0
      %4290 = vmatpush1.bf16.msra.mxu0 0
      %4291 = vmatprep.subr.bf16.mxu0 0
      %4292 = vmatpush1.bf16.msra.mxu0 0
      %4293 = vmatprep.subr.bf16.mxu0 0
      %4294 = vmatpush1.bf16.msra.mxu0 0
      %4295 = vmatprep.subr.bf16.mxu0 0
      %4296 = vmatpush1.bf16.msra.mxu0 0
      %4297 = vmatprep.subr.bf16.mxu0 0
      %4298 = vmatpush1.bf16.msra.mxu0 0
      %4299 = vmatprep.subr.bf16.mxu0 0
      %4300 = vmatpush1.bf16.msra.mxu0 0
      %4301 = vmatprep.subr.bf16.mxu0 0
      %4302 = vmatpush1.bf16.msra.mxu0 0
      %4303 = vmatprep.subr.bf16.mxu0 0
      %4304 = vmatpush1.bf16.msra.mxu0 0
      %4305 = vmatprep.subr.bf16.mxu0 0
      %4306 = vmatpush1.bf16.msra.mxu0 0
      %4307 = vmatprep.subr.bf16.mxu0 0
      %4308 = vmatpush1.bf16.msra.mxu0 0
      %4309 = vmatprep.subr.bf16.mxu0 0
      %4310 = vmatpush1.bf16.msra.mxu0 0
      %4311 = vmatprep.subr.bf16.mxu0 0
      %4312 = vmatpush1.bf16.msra.mxu0 0
      %4313 = vmatprep.subr.bf16.mxu0 0
      %4314 = vmatpush1.bf16.msra.mxu0 0
      %4315 = vmatprep.mubr.bf16.mxu0 0
      %4316 = vmatmul.mubr.bf16.gmra.mrb[0].mxu0 %v4158
      %v4317 = vpop.f32.mrb[0].mxu0
      %v4318 = vadd.f32 0.0, %v4317
      %v4319 = vpop.f32.mrb[0].mxu0
      %v4320 = vpop.f32.mrb[0].mxu0
      %v4321 = vpop.f32.mrb[0].mxu0
      %4322 = vdwg.mxu0
      %v4323 = vadd.f32 %v4121, %v4195
      %v4324 = vadd.f32 %v4122, %v4197
      %v4325 = vadd.f32 %v4123, %v4236
      %v4326 = vadd.f32 %v4124, %v4238
      %v4327 = vadd.f32 %v4125, %v4277
      %v4328 = vadd.f32 %v4126, %v4279
      %v4329 = vadd.f32 %v4127, %v4318
      %4330 = vrot.lane.b32.xlu0 %v3617, 30
      %v4331 = vpop.permute.xlu0 %4330
      %4332 = vrot.lane.b32.xlu0 %v3621, 30
      %v4333 = vpop.permute.xlu0 %4332
      %4334 = vrot.lane.b32.xlu0 %v3625, 30
      %v4335 = vpop.permute.xlu0 %4334
      %4336 = vrot.lane.b32.xlu0 %v3629, 30
      %v4337 = vpop.permute.xlu0 %4336
      %4338 = vrot.lane.b32.xlu0 %v3633, 30
      %v4339 = vpop.permute.xlu0 %4338
      %4340 = vrot.lane.b32.xlu0 %v3637, 30
      %v4341 = vpop.permute.xlu0 %4340
      %4342 = vrot.lane.b32.xlu0 %v3641, 30
      %v4343 = vpop.permute.xlu0 %4342
      %v4344 = vsel %vm2202, %v4331, %v4333
      %v4345 = vsel %vm2202, %v4333, %v4335
      %v4346 = vsel %vm2202, %v4335, %v4337
      %v4347 = vsel %vm2202, %v4337, %v4339
      %v4348 = vsel %vm2202, %v4339, %v4341
      %v4349 = vsel %vm2202, %v4341, %v4343
      %vm4350 = vcmp.ne.s16.totalorder %v4331, 0
      %vm4351 = vcmp.ne.s16.totalorder %v4344, 0
      %vm4352 = vcmp.ne.s16.totalorder %v4345, 0
      %vm4353 = vcmp.ne.s16.totalorder %v4346, 0
      %vm4354 = vcmp.ne.s16.totalorder %v4347, 0
      %vm4355 = vcmp.ne.s16.totalorder %v4348, 0
      %vm4356 = vcmp.ne.s16.totalorder %v4349, 0
      %v4357 = vsel %vm4350, %v3101, 0
      %v4358 = vsel %vm4351, %v3088, 0
      %v4359 = vsel %vm4352, %v3089, 0
      %v4360 = vsel %vm4353, %v3090, 0
      %v4361 = vsel %vm4354, %v3091, 0
      %v4362 = vsel %vm4355, %v3092, 0
      %v4363 = vsel %vm4356, %v3105, 0
      %s4364 = scalar_lea.vmem %s7, 20
      %v4365 = vld [vmem:[%s4364] sm:$0xf]
      %4373 = vrot.lane.b32.xlu0 %v4357, 98
      %v4374 = vpop.permute.xlu0 %4373
      %4375 = vrot.lane.b32.xlu0 %v4358, 98
      %v4376 = vpop.permute.xlu0 %4375
      %4377 = vrot.lane.b32.xlu0 %v4359, 98
      %v4378 = vpop.permute.xlu0 %4377
      %4379 = vrot.lane.b32.xlu0 %v4360, 98
      %v4380 = vpop.permute.xlu0 %4379
      %4381 = vrot.lane.b32.xlu0 %v4361, 98
      %v4382 = vpop.permute.xlu0 %4381
      %4383 = vrot.lane.b32.xlu0 %v4362, 98
      %v4384 = vpop.permute.xlu0 %4383
      %4385 = vrot.lane.b32.xlu0 %v4363, 98
      %v4386 = vpop.permute.xlu0 %4385
      %v4387 = vsel %vm2230, %v4374, %v4376
      %v4388 = vsel %vm2230, %v4376, %v4378
      %v4389 = vsel %vm2230, %v4378, %v4380
      %v4390 = vsel %vm2230, %v4380, %v4382
      %v4391 = vsel %vm2230, %v4382, %v4384
      %v4392 = vsel %vm2230, %v4384, %v4386
      %v4401 = vsel %vm3245, %v4365, 0
      %4403 = vmatprep.subr.bf16.mxu0 %v4388
      %4404 = vmatpush1.bf16.msra.mxu0 %v4387
      %4405 = vmatprep.subr.bf16.mxu0 0
      %4406 = vmatpush1.bf16.msra.mxu0 0
      %4407 = vmatprep.subr.bf16.mxu0 0
      %4408 = vmatpush1.bf16.msra.mxu0 0
      %4409 = vmatprep.subr.bf16.mxu0 0
      %4410 = vmatpush1.bf16.msra.mxu0 0
      %4411 = vmatprep.subr.bf16.mxu0 0
      %4412 = vmatpush1.bf16.msra.mxu0 0
      %4413 = vmatprep.subr.bf16.mxu0 0
      %4414 = vmatpush1.bf16.msra.mxu0 0
      %4415 = vmatprep.subr.bf16.mxu0 0
      %4416 = vmatpush1.bf16.msra.mxu0 0
      %4417 = vmatprep.subr.bf16.mxu0 0
      %4418 = vmatpush1.bf16.msra.mxu0 0
      %4419 = vmatprep.subr.bf16.mxu0 0
      %4420 = vmatpush1.bf16.msra.mxu0 0
      %4421 = vmatprep.subr.bf16.mxu0 0
      %4422 = vmatpush1.bf16.msra.mxu0 0
      %4423 = vmatprep.subr.bf16.mxu0 0
      %4424 = vmatpush1.bf16.msra.mxu0 0
      %4425 = vmatprep.subr.bf16.mxu0 0
      %4426 = vmatpush1.bf16.msra.mxu0 0
      %4427 = vmatprep.subr.bf16.mxu0 0
      %4428 = vmatpush1.bf16.msra.mxu0 0
      %4429 = vmatprep.subr.bf16.mxu0 0
      %4430 = vmatpush1.bf16.msra.mxu0 0
      %4431 = vmatprep.subr.bf16.mxu0 0
      %4432 = vmatpush1.bf16.msra.mxu0 0
      %4433 = vmatprep.subr.bf16.mxu0 0
      %4434 = vmatpush1.bf16.msra.mxu0 0
      %4435 = vmatprep.mubr.bf16.mxu0 0
      %4436 = vmatmul.mubr.bf16.gmra.mrb[0].mxu0 %v4401
      %v4437 = vpop.f32.mrb[0].mxu0
      %v4438 = vadd.f32 0.0, %v4437
      %v4439 = vpop.f32.mrb[0].mxu0
      %v4440 = vadd.f32 0.0, %v4439
      %v4441 = vpop.f32.mrb[0].mxu0
      %v4442 = vpop.f32.mrb[0].mxu0
      %4443 = vdwg.mxu0
      %4444 = vmatprep.subr.bf16.mxu0 %v4390
      %4445 = vmatpush1.bf16.msra.mxu0 %v4389
      %4446 = vmatprep.subr.bf16.mxu0 0
      %4447 = vmatpush1.bf16.msra.mxu0 0
      %4448 = vmatprep.subr.bf16.mxu0 0
      %4449 = vmatpush1.bf16.msra.mxu0 0
      %4450 = vmatprep.subr.bf16.mxu0 0
      %4451 = vmatpush1.bf16.msra.mxu0 0
      %4452 = vmatprep.subr.bf16.mxu0 0
      %4453 = vmatpush1.bf16.msra.mxu0 0
      %4454 = vmatprep.subr.bf16.mxu0 0
      %4455 = vmatpush1.bf16.msra.mxu0 0
      %4456 = vmatprep.subr.bf16.mxu0 0
      %4457 = vmatpush1.bf16.msra.mxu0 0
      %4458 = vmatprep.subr.bf16.mxu0 0
      %4459 = vmatpush1.bf16.msra.mxu0 0
      %4460 = vmatprep.subr.bf16.mxu0 0
      %4461 = vmatpush1.bf16.msra.mxu0 0
      %4462 = vmatprep.subr.bf16.mxu0 0
      %4463 = vmatpush1.bf16.msra.mxu0 0
      %4464 = vmatprep.subr.bf16.mxu0 0
      %4465 = vmatpush1.bf16.msra.mxu0 0
      %4466 = vmatprep.subr.bf16.mxu0 0
      %4467 = vmatpush1.bf16.msra.mxu0 0
      %4468 = vmatprep.subr.bf16.mxu0 0
      %4469 = vmatpush1.bf16.msra.mxu0 0
      %4470 = vmatprep.subr.bf16.mxu0 0
      %4471 = vmatpush1.bf16.msra.mxu0 0
      %4472 = vmatprep.subr.bf16.mxu0 0
      %4473 = vmatpush1.bf16.msra.mxu0 0
      %4474 = vmatprep.subr.bf16.mxu0 0
      %4475 = vmatpush1.bf16.msra.mxu0 0
      %4476 = vmatprep.mubr.bf16.mxu0 0
      %4477 = vmatmul.mubr.bf16.gmra.mrb[0].mxu0 %v4401
      %v4478 = vpop.f32.mrb[0].mxu0
      %v4479 = vadd.f32 0.0, %v4478
      %v4480 = vpop.f32.mrb[0].mxu0
      %v4481 = vadd.f32 0.0, %v4480
      %v4482 = vpop.f32.mrb[0].mxu0
      %v4483 = vpop.f32.mrb[0].mxu0
      %4484 = vdwg.mxu0
      %4485 = vmatprep.subr.bf16.mxu0 %v4392
      %4486 = vmatpush1.bf16.msra.mxu0 %v4391
      %4487 = vmatprep.subr.bf16.mxu0 0
      %4488 = vmatpush1.bf16.msra.mxu0 0
      %4489 = vmatprep.subr.bf16.mxu0 0
      %4490 = vmatpush1.bf16.msra.mxu0 0
      %4491 = vmatprep.subr.bf16.mxu0 0
      %4492 = vmatpush1.bf16.msra.mxu0 0
      %4493 = vmatprep.subr.bf16.mxu0 0
      %4494 = vmatpush1.bf16.msra.mxu0 0
      %4495 = vmatprep.subr.bf16.mxu0 0
      %4496 = vmatpush1.bf16.msra.mxu0 0
      %4497 = vmatprep.subr.bf16.mxu0 0
      %4498 = vmatpush1.bf16.msra.mxu0 0
      %4499 = vmatprep.subr.bf16.mxu0 0
      %4500 = vmatpush1.bf16.msra.mxu0 0
      %4501 = vmatprep.subr.bf16.mxu0 0
      %4502 = vmatpush1.bf16.msra.mxu0 0
      %4503 = vmatprep.subr.bf16.mxu0 0
      %4504 = vmatpush1.bf16.msra.mxu0 0
      %4505 = vmatprep.subr.bf16.mxu0 0
      %4506 = vmatpush1.bf16.msra.mxu0 0
      %4507 = vmatprep.subr.bf16.mxu0 0
      %4508 = vmatpush1.bf16.msra.mxu0 0
      %4509 = vmatprep.subr.bf16.mxu0 0
      %4510 = vmatpush1.bf16.msra.mxu0 0
      %4511 = vmatprep.subr.bf16.mxu0 0
      %4512 = vmatpush1.bf16.msra.mxu0 0
      %4513 = vmatprep.subr.bf16.mxu0 0
      %4514 = vmatpush1.bf16.msra.mxu0 0
      %4515 = vmatprep.subr.bf16.mxu0 0
      %4516 = vmatpush1.bf16.msra.mxu0 0
      %4517 = vmatprep.mubr.bf16.mxu0 0
      %4518 = vmatmul.mubr.bf16.gmra.mrb[0].mxu0 %v4401
      %v4519 = vpop.f32.mrb[0].mxu0
      %v4520 = vadd.f32 0.0, %v4519
      %v4521 = vpop.f32.mrb[0].mxu0
      %v4522 = vadd.f32 0.0, %v4521
      %v4523 = vpop.f32.mrb[0].mxu0
      %v4524 = vpop.f32.mrb[0].mxu0
      %4525 = vdwg.mxu0
      %4526 = vmatprep.subr.bf16.mxu0 0
      %4527 = vmatpush1.bf16.msra.mxu0 %v4386
      %4528 = vmatprep.subr.bf16.mxu0 0
      %4529 = vmatpush1.bf16.msra.mxu0 0
      %4530 = vmatprep.subr.bf16.mxu0 0
      %4531 = vmatpush1.bf16.msra.mxu0 0
      %4532 = vmatprep.subr.bf16.mxu0 0
      %4533 = vmatpush1.bf16.msra.mxu0 0
      %4534 = vmatprep.subr.bf16.mxu0 0
      %4535 = vmatpush1.bf16.msra.mxu0 0
      %4536 = vmatprep.subr.bf16.mxu0 0
      %4537 = vmatpush1.bf16.msra.mxu0 0
      %4538 = vmatprep.subr.bf16.mxu0 0
      %4539 = vmatpush1.bf16.msra.mxu0 0
      %4540 = vmatprep.subr.bf16.mxu0 0
      %4541 = vmatpush1.bf16.msra.mxu0 0
      %4542 = vmatprep.subr.bf16.mxu0 0
      %4543 = vmatpush1.bf16.msra.mxu0 0
      %4544 = vmatprep.subr.bf16.mxu0 0
      %4545 = vmatpush1.bf16.msra.mxu0 0
      %4546 = vmatprep.subr.bf16.mxu0 0
      %4547 = vmatpush1.bf16.msra.mxu0 0
      %4548 = vmatprep.subr.bf16.mxu0 0
      %4549 = vmatpush1.bf16.msra.mxu0 0
      %4550 = vmatprep.subr.bf16.mxu0 0
      %4551 = vmatpush1.bf16.msra.mxu0 0
      %4552 = vmatprep.subr.bf16.mxu0 0
      %4553 = vmatpush1.bf16.msra.mxu0 0
      %4554 = vmatprep.subr.bf16.mxu0 0
      %4555 = vmatpush1.bf16.msra.mxu0 0
      %4556 = vmatprep.subr.bf16.mxu0 0
      %4557 = vmatpush1.bf16.msra.mxu0 0
      %4558 = vmatprep.mubr.bf16.mxu0 0
      %4559 = vmatmul.mubr.bf16.gmra.mrb[0].mxu0 %v4401
      %v4560 = vpop.f32.mrb[0].mxu0
      %v4561 = vadd.f32 0.0, %v4560
      %v4562 = vpop.f32.mrb[0].mxu0
      %v4563 = vpop.f32.mrb[0].mxu0
      %v4564 = vpop.f32.mrb[0].mxu0
      %4565 = vdwg.mxu0
      %v4566 = vadd.f32 %v4323, %v4438
      %v4567 = vadd.f32 %v4324, %v4440
      %v4568 = vadd.f32 %v4325, %v4479
      %v4569 = vadd.f32 %v4326, %v4481
      %v4570 = vadd.f32 %v4327, %v4520
      %v4571 = vadd.f32 %v4328, %v4522
      %v4572 = vadd.f32 %v4329, %v4561
      %4573 = vrot.lane.b32.xlu0 %v3174, 56
      %v4574 = vpop.permute.xlu0 %4573
      %4575 = vrot.lane.b32.xlu0 %v3178, 56
      %v4576 = vpop.permute.xlu0 %4575
      %4577 = vrot.lane.b32.xlu0 %v3182, 56
      %v4578 = vpop.permute.xlu0 %4577
      %4579 = vrot.lane.b32.xlu0 %v3186, 56
      %v4580 = vpop.permute.xlu0 %4579
      %4581 = vrot.lane.b32.xlu0 %v3190, 56
      %v4582 = vpop.permute.xlu0 %4581
      %4583 = vrot.lane.b32.xlu0 %v3194, 56
      %v4584 = vpop.permute.xlu0 %4583
      %4585 = vrot.lane.b32.xlu0 %v3198, 56
      %v4586 = vpop.permute.xlu0 %4585
      %vm4587 = vcmask 457728
      %v4588 = vsel %vm4587, %v4574, %v4576
      %v4589 = vsel %vm4587, %v4576, %v4578
      %v4590 = vsel %vm4587, %v4578, %v4580
      %v4591 = vsel %vm4587, %v4580, %v4582
      %v4592 = vsel %vm4587, %v4582, %v4584
      %v4593 = vsel %vm4587, %v4584, %v4586
      %vm4594 = vcmp.ne.s16.totalorder %v4574, 0
      %vm4595 = vcmp.ne.s16.totalorder %v4588, 0
      %vm4596 = vcmp.ne.s16.totalorder %v4589, 0
      %vm4597 = vcmp.ne.s16.totalorder %v4590, 0
      %vm4598 = vcmp.ne.s16.totalorder %v4591, 0
      %vm4599 = vcmp.ne.s16.totalorder %v4592, 0
      %vm4600 = vcmp.ne.s16.totalorder %v4593, 0
      %v4601 = vsel %vm4594, %v3101, 0
      %v4602 = vsel %vm4595, %v3088, 0
      %v4603 = vsel %vm4596, %v3089, 0
      %v4604 = vsel %vm4597, %v3090, 0
      %v4605 = vsel %vm4598, %v3091, 0
      %v4606 = vsel %vm4599, %v3092, 0
      %v4607 = vsel %vm4600, %v3105, 0
      %s4608 = scalar_lea.vmem %s7, 24
      %v4609 = vld [vmem:[%s4608] sm:$0xf]
      %4617 = vrot.lane.b32.xlu0 %v4601, 72
      %v4618 = vpop.permute.xlu0 %4617
      %4619 = vrot.lane.b32.xlu0 %v4602, 72
      %v4620 = vpop.permute.xlu0 %4619
      %4621 = vrot.lane.b32.xlu0 %v4603, 72
      %v4622 = vpop.permute.xlu0 %4621
      %4623 = vrot.lane.b32.xlu0 %v4604, 72
      %v4624 = vpop.permute.xlu0 %4623
      %4625 = vrot.lane.b32.xlu0 %v4605, 72
      %v4626 = vpop.permute.xlu0 %4625
      %4627 = vrot.lane.b32.xlu0 %v4606, 72
      %v4628 = vpop.permute.xlu0 %4627
      %4629 = vrot.lane.b32.xlu0 %v4607, 72
      %v4630 = vpop.permute.xlu0 %4629
      %vm4631 = vcmask 588800
      %v4632 = vsel %vm4631, %v4618, %v4620
      %v4633 = vsel %vm4631, %v4620, %v4622
      %v4634 = vsel %vm4631, %v4622, %v4624
      %v4635 = vsel %vm4631, %v4624, %v4626
      %v4636 = vsel %vm4631, %v4626, %v4628
      %v4637 = vsel %vm4631, %v4628, %v4630
      %v4646 = vsel %vm3245, %v4609, 0
      %4648 = vmatprep.subr.bf16.mxu0 %v4633
      %4649 = vmatpush1.bf16.msra.mxu0 %v4632
      %4650 = vmatprep.subr.bf16.mxu0 0
      %4651 = vmatpush1.bf16.msra.mxu0 0
      %4652 = vmatprep.subr.bf16.mxu0 0
      %4653 = vmatpush1.bf16.msra.mxu0 0
      %4654 = vmatprep.subr.bf16.mxu0 0
      %4655 = vmatpush1.bf16.msra.mxu0 0
      %4656 = vmatprep.subr.bf16.mxu0 0
      %4657 = vmatpush1.bf16.msra.mxu0 0
      %4658 = vmatprep.subr.bf16.mxu0 0
      %4659 = vmatpush1.bf16.msra.mxu0 0
      %4660 = vmatprep.subr.bf16.mxu0 0
      %4661 = vmatpush1.bf16.msra.mxu0 0
      %4662 = vmatprep.subr.bf16.mxu0 0
      %4663 = vmatpush1.bf16.msra.mxu0 0
      %4664 = vmatprep.subr.bf16.mxu0 0
      %4665 = vmatpush1.bf16.msra.mxu0 0
      %4666 = vmatprep.subr.bf16.mxu0 0
      %4667 = vmatpush1.bf16.msra.mxu0 0
      %4668 = vmatprep.subr.bf16.mxu0 0
      %4669 = vmatpush1.bf16.msra.mxu0 0
      %4670 = vmatprep.subr.bf16.mxu0 0
      %4671 = vmatpush1.bf16.msra.mxu0 0
      %4672 = vmatprep.subr.bf16.mxu0 0
      %4673 = vmatpush1.bf16.msra.mxu0 0
      %4674 = vmatprep.subr.bf16.mxu0 0
      %4675 = vmatpush1.bf16.msra.mxu0 0
      %4676 = vmatprep.subr.bf16.mxu0 0
      %4677 = vmatpush1.bf16.msra.mxu0 0
      %4678 = vmatprep.subr.bf16.mxu0 0
      %4679 = vmatpush1.bf16.msra.mxu0 0
      %4680 = vmatprep.mubr.bf16.mxu0 0
      %4681 = vmatmul.mubr.bf16.gmra.mrb[0].mxu0 %v4646
      %v4682 = vpop.f32.mrb[0].mxu0
      %v4683 = vadd.f32 0.0, %v4682
      %v4684 = vpop.f32.mrb[0].mxu0
      %v4685 = vadd.f32 0.0, %v4684
      %v4686 = vpop.f32.mrb[0].mxu0
      %v4687 = vpop.f32.mrb[0].mxu0
      %4688 = vdwg.mxu0
      %4689 = vmatprep.subr.bf16.mxu0 %v4635
      %4690 = vmatpush1.bf16.msra.mxu0 %v4634
      %4691 = vmatprep.subr.bf16.mxu0 0
      %4692 = vmatpush1.bf16.msra.mxu0 0
      %4693 = vmatprep.subr.bf16.mxu0 0
      %4694 = vmatpush1.bf16.msra.mxu0 0
      %4695 = vmatprep.subr.bf16.mxu0 0
      %4696 = vmatpush1.bf16.msra.mxu0 0
      %4697 = vmatprep.subr.bf16.mxu0 0
      %4698 = vmatpush1.bf16.msra.mxu0 0
      %4699 = vmatprep.subr.bf16.mxu0 0
      %4700 = vmatpush1.bf16.msra.mxu0 0
      %4701 = vmatprep.subr.bf16.mxu0 0
      %4702 = vmatpush1.bf16.msra.mxu0 0
      %4703 = vmatprep.subr.bf16.mxu0 0
      %4704 = vmatpush1.bf16.msra.mxu0 0
      %4705 = vmatprep.subr.bf16.mxu0 0
      %4706 = vmatpush1.bf16.msra.mxu0 0
      %4707 = vmatprep.subr.bf16.mxu0 0
      %4708 = vmatpush1.bf16.msra.mxu0 0
      %4709 = vmatprep.subr.bf16.mxu0 0
      %4710 = vmatpush1.bf16.msra.mxu0 0
      %4711 = vmatprep.subr.bf16.mxu0 0
      %4712 = vmatpush1.bf16.msra.mxu0 0
      %4713 = vmatprep.subr.bf16.mxu0 0
      %4714 = vmatpush1.bf16.msra.mxu0 0
      %4715 = vmatprep.subr.bf16.mxu0 0
      %4716 = vmatpush1.bf16.msra.mxu0 0
      %4717 = vmatprep.subr.bf16.mxu0 0
      %4718 = vmatpush1.bf16.msra.mxu0 0
      %4719 = vmatprep.subr.bf16.mxu0 0
      %4720 = vmatpush1.bf16.msra.mxu0 0
      %4721 = vmatprep.mubr.bf16.mxu0 0
      %4722 = vmatmul.mubr.bf16.gmra.mrb[0].mxu0 %v4646
      %v4723 = vpop.f32.mrb[0].mxu0
      %v4724 = vadd.f32 0.0, %v4723
      %v4725 = vpop.f32.mrb[0].mxu0
      %v4726 = vadd.f32 0.0, %v4725
      %v4727 = vpop.f32.mrb[0].mxu0
      %v4728 = vpop.f32.mrb[0].mxu0
      %4729 = vdwg.mxu0
      %4730 = vmatprep.subr.bf16.mxu0 %v4637
      %4731 = vmatpush1.bf16.msra.mxu0 %v4636
      %4732 = vmatprep.subr.bf16.mxu0 0
      %4733 = vmatpush1.bf16.msra.mxu0 0
      %4734 = vmatprep.subr.bf16.mxu0 0
      %4735 = vmatpush1.bf16.msra.mxu0 0
      %4736 = vmatprep.subr.bf16.mxu0 0
      %4737 = vmatpush1.bf16.msra.mxu0 0
      %4738 = vmatprep.subr.bf16.mxu0 0
      %4739 = vmatpush1.bf16.msra.mxu0 0
      %4740 = vmatprep.subr.bf16.mxu0 0
      %4741 = vmatpush1.bf16.msra.mxu0 0
      %4742 = vmatprep.subr.bf16.mxu0 0
      %4743 = vmatpush1.bf16.msra.mxu0 0
      %4744 = vmatprep.subr.bf16.mxu0 0
      %4745 = vmatpush1.bf16.msra.mxu0 0
      %4746 = vmatprep.subr.bf16.mxu0 0
      %4747 = vmatpush1.bf16.msra.mxu0 0
      %4748 = vmatprep.subr.bf16.mxu0 0
      %4749 = vmatpush1.bf16.msra.mxu0 0
      %4750 = vmatprep.subr.bf16.mxu0 0
      %4751 = vmatpush1.bf16.msra.mxu0 0
      %4752 = vmatprep.subr.bf16.mxu0 0
      %4753 = vmatpush1.bf16.msra.mxu0 0
      %4754 = vmatprep.subr.bf16.mxu0 0
      %4755 = vmatpush1.bf16.msra.mxu0 0
      %4756 = vmatprep.subr.bf16.mxu0 0
      %4757 = vmatpush1.bf16.msra.mxu0 0
      %4758 = vmatprep.subr.bf16.mxu0 0
      %4759 = vmatpush1.bf16.msra.mxu0 0
      %4760 = vmatprep.subr.bf16.mxu0 0
      %4761 = vmatpush1.bf16.msra.mxu0 0
      %4762 = vmatprep.mubr.bf16.mxu0 0
      %4763 = vmatmul.mubr.bf16.gmra.mrb[0].mxu0 %v4646
      %v4764 = vpop.f32.mrb[0].mxu0
      %v4765 = vadd.f32 0.0, %v4764
      %v4766 = vpop.f32.mrb[0].mxu0
      %v4767 = vadd.f32 0.0, %v4766
      %v4768 = vpop.f32.mrb[0].mxu0
      %v4769 = vpop.f32.mrb[0].mxu0
      %4770 = vdwg.mxu0
      %4771 = vmatprep.subr.bf16.mxu0 0
      %4772 = vmatpush1.bf16.msra.mxu0 %v4630
      %4773 = vmatprep.subr.bf16.mxu0 0
      %4774 = vmatpush1.bf16.msra.mxu0 0
      %4775 = vmatprep.subr.bf16.mxu0 0
      %4776 = vmatpush1.bf16.msra.mxu0 0
      %4777 = vmatprep.subr.bf16.mxu0 0
      %4778 = vmatpush1.bf16.msra.mxu0 0
      %4779 = vmatprep.subr.bf16.mxu0 0
      %4780 = vmatpush1.bf16.msra.mxu0 0
      %4781 = vmatprep.subr.bf16.mxu0 0
      %4782 = vmatpush1.bf16.msra.mxu0 0
      %4783 = vmatprep.subr.bf16.mxu0 0
      %4784 = vmatpush1.bf16.msra.mxu0 0
      %4785 = vmatprep.subr.bf16.mxu0 0
      %4786 = vmatpush1.bf16.msra.mxu0 0
      %4787 = vmatprep.subr.bf16.mxu0 0
      %4788 = vmatpush1.bf16.msra.mxu0 0
      %4789 = vmatprep.subr.bf16.mxu0 0
      %4790 = vmatpush1.bf16.msra.mxu0 0
      %4791 = vmatprep.subr.bf16.mxu0 0
      %4792 = vmatpush1.bf16.msra.mxu0 0
      %4793 = vmatprep.subr.bf16.mxu0 0
      %4794 = vmatpush1.bf16.msra.mxu0 0
      %4795 = vmatprep.subr.bf16.mxu0 0
      %4796 = vmatpush1.bf16.msra.mxu0 0
      %4797 = vmatprep.subr.bf16.mxu0 0
      %4798 = vmatpush1.bf16.msra.mxu0 0
      %4799 = vmatprep.subr.bf16.mxu0 0
      %4800 = vmatpush1.bf16.msra.mxu0 0
      %4801 = vmatprep.subr.bf16.mxu0 0
      %4802 = vmatpush1.bf16.msra.mxu0 0
      %4803 = vmatprep.mubr.bf16.mxu0 0
      %4804 = vmatmul.mubr.bf16.gmra.mrb[0].mxu0 %v4646
      %v4805 = vpop.f32.mrb[0].mxu0
      %v4806 = vadd.f32 0.0, %v4805
      %v4807 = vpop.f32.mrb[0].mxu0
      %v4808 = vpop.f32.mrb[0].mxu0
      %v4809 = vpop.f32.mrb[0].mxu0
      %4810 = vdwg.mxu0
      %v4811 = vadd.f32 %v4566, %v4683
      %v4812 = vadd.f32 %v4567, %v4685
      %v4813 = vadd.f32 %v4568, %v4724
      %v4814 = vadd.f32 %v4569, %v4726
      %v4815 = vadd.f32 %v4570, %v4765
      %v4816 = vadd.f32 %v4571, %v4767
      %v4817 = vadd.f32 %v4572, %v4806
      %s4818 = scalar_lea.vmem %s7, 28
      %v4819 = vld [vmem:[%s4818] sm:$0xf]
      %4820 = vrot.lane.b32.xlu0 %v3101, 71
      %v4821 = vpop.permute.xlu0 %4820
      %4822 = vrot.lane.b32.xlu0 %v3088, 71
      %v4823 = vpop.permute.xlu0 %4822
      %4824 = vrot.lane.b32.xlu0 %v3089, 71
      %v4825 = vpop.permute.xlu0 %4824
      %4826 = vrot.lane.b32.xlu0 %v3090, 71
      %v4827 = vpop.permute.xlu0 %4826
      %4828 = vrot.lane.b32.xlu0 %v3091, 71
      %v4829 = vpop.permute.xlu0 %4828
      %4830 = vrot.lane.b32.xlu0 %v3092, 71
      %v4831 = vpop.permute.xlu0 %4830
      %4832 = vrot.lane.b32.xlu0 %v3105, 71
      %v4833 = vpop.permute.xlu0 %4832
      %vm4834 = vcmask 580608
      %v4835 = vsel %vm4834, %v4821, %v4823
      %v4836 = vsel %vm4834, %v4823, %v4825
      %v4837 = vsel %vm4834, %v4825, %v4827
      %v4838 = vsel %vm4834, %v4827, %v4829
      %v4839 = vsel %vm4834, %v4829, %v4831
      %v4840 = vsel %vm4834, %v4831, %v4833
      %v4849 = vsel %vm3245, %v4819, 0
      %4851 = vmatprep.subr.bf16.mxu0 %v4836
      %4852 = vmatpush1.bf16.msra.mxu0 %v4835
      %4853 = vmatprep.subr.bf16.mxu0 0
      %4854 = vmatpush1.bf16.msra.mxu0 0
      %4855 = vmatprep.subr.bf16.mxu0 0
      %4856 = vmatpush1.bf16.msra.mxu0 0
      %4857 = vmatprep.subr.bf16.mxu0 0
      %4858 = vmatpush1.bf16.msra.mxu0 0
      %4859 = vmatprep.subr.bf16.mxu0 0
      %4860 = vmatpush1.bf16.msra.mxu0 0
      %4861 = vmatprep.subr.bf16.mxu0 0
      %4862 = vmatpush1.bf16.msra.mxu0 0
      %4863 = vmatprep.subr.bf16.mxu0 0
      %4864 = vmatpush1.bf16.msra.mxu0 0
      %4865 = vmatprep.subr.bf16.mxu0 0
      %4866 = vmatpush1.bf16.msra.mxu0 0
      %4867 = vmatprep.subr.bf16.mxu0 0
      %4868 = vmatpush1.bf16.msra.mxu0 0
      %4869 = vmatprep.subr.bf16.mxu0 0
      %4870 = vmatpush1.bf16.msra.mxu0 0
      %4871 = vmatprep.subr.bf16.mxu0 0
      %4872 = vmatpush1.bf16.msra.mxu0 0
      %4873 = vmatprep.subr.bf16.mxu0 0
      %4874 = vmatpush1.bf16.msra.mxu0 0
      %4875 = vmatprep.subr.bf16.mxu0 0
      %4876 = vmatpush1.bf16.msra.mxu0 0
      %4877 = vmatprep.subr.bf16.mxu0 0
      %4878 = vmatpush1.bf16.msra.mxu0 0
      %4879 = vmatprep.subr.bf16.mxu0 0
      %4880 = vmatpush1.bf16.msra.mxu0 0
      %4881 = vmatprep.subr.bf16.mxu0 0
      %4882 = vmatpush1.bf16.msra.mxu0 0
      %4883 = vmatprep.mubr.bf16.mxu0 0
      %4884 = vmatmul.mubr.bf16.gmra.mrb[0].mxu0 %v4849
      %v4885 = vpop.f32.mrb[0].mxu0
      %v4886 = vadd.f32 0.0, %v4885
      %v4887 = vpop.f32.mrb[0].mxu0
      %v4888 = vadd.f32 0.0, %v4887
      %v4889 = vpop.f32.mrb[0].mxu0
      %v4890 = vpop.f32.mrb[0].mxu0
      %4891 = vdwg.mxu0
      %4892 = vmatprep.subr.bf16.mxu0 %v4838
      %4893 = vmatpush1.bf16.msra.mxu0 %v4837
      %4894 = vmatprep.subr.bf16.mxu0 0
      %4895 = vmatpush1.bf16.msra.mxu0 0
      %4896 = vmatprep.subr.bf16.mxu0 0
      %4897 = vmatpush1.bf16.msra.mxu0 0
      %4898 = vmatprep.subr.bf16.mxu0 0
      %4899 = vmatpush1.bf16.msra.mxu0 0
      %4900 = vmatprep.subr.bf16.mxu0 0
      %4901 = vmatpush1.bf16.msra.mxu0 0
      %4902 = vmatprep.subr.bf16.mxu0 0
      %4903 = vmatpush1.bf16.msra.mxu0 0
      %4904 = vmatprep.subr.bf16.mxu0 0
      %4905 = vmatpush1.bf16.msra.mxu0 0
      %4906 = vmatprep.subr.bf16.mxu0 0
      %4907 = vmatpush1.bf16.msra.mxu0 0
      %4908 = vmatprep.subr.bf16.mxu0 0
      %4909 = vmatpush1.bf16.msra.mxu0 0
      %4910 = vmatprep.subr.bf16.mxu0 0
      %4911 = vmatpush1.bf16.msra.mxu0 0
      %4912 = vmatprep.subr.bf16.mxu0 0
      %4913 = vmatpush1.bf16.msra.mxu0 0
      %4914 = vmatprep.subr.bf16.mxu0 0
      %4915 = vmatpush1.bf16.msra.mxu0 0
      %4916 = vmatprep.subr.bf16.mxu0 0
      %4917 = vmatpush1.bf16.msra.mxu0 0
      %4918 = vmatprep.subr.bf16.mxu0 0
      %4919 = vmatpush1.bf16.msra.mxu0 0
      %4920 = vmatprep.subr.bf16.mxu0 0
      %4921 = vmatpush1.bf16.msra.mxu0 0
      %4922 = vmatprep.subr.bf16.mxu0 0
      %4923 = vmatpush1.bf16.msra.mxu0 0
      %4924 = vmatprep.mubr.bf16.mxu0 0
      %4925 = vmatmul.mubr.bf16.gmra.mrb[0].mxu0 %v4849
      %v4926 = vpop.f32.mrb[0].mxu0
      %v4927 = vadd.f32 0.0, %v4926
      %v4928 = vpop.f32.mrb[0].mxu0
      %v4929 = vadd.f32 0.0, %v4928
      %v4930 = vpop.f32.mrb[0].mxu0
      %v4931 = vpop.f32.mrb[0].mxu0
      %4932 = vdwg.mxu0
      %4933 = vmatprep.subr.bf16.mxu0 %v4840
      %4934 = vmatpush1.bf16.msra.mxu0 %v4839
      %4935 = vmatprep.subr.bf16.mxu0 0
      %4936 = vmatpush1.bf16.msra.mxu0 0
      %4937 = vmatprep.subr.bf16.mxu0 0
      %4938 = vmatpush1.bf16.msra.mxu0 0
      %4939 = vmatprep.subr.bf16.mxu0 0
      %4940 = vmatpush1.bf16.msra.mxu0 0
      %4941 = vmatprep.subr.bf16.mxu0 0
      %4942 = vmatpush1.bf16.msra.mxu0 0
      %4943 = vmatprep.subr.bf16.mxu0 0
      %4944 = vmatpush1.bf16.msra.mxu0 0
      %4945 = vmatprep.subr.bf16.mxu0 0
      %4946 = vmatpush1.bf16.msra.mxu0 0
      %4947 = vmatprep.subr.bf16.mxu0 0
      %4948 = vmatpush1.bf16.msra.mxu0 0
      %4949 = vmatprep.subr.bf16.mxu0 0
      %4950 = vmatpush1.bf16.msra.mxu0 0
      %4951 = vmatprep.subr.bf16.mxu0 0
      %4952 = vmatpush1.bf16.msra.mxu0 0
      %4953 = vmatprep.subr.bf16.mxu0 0
      %4954 = vmatpush1.bf16.msra.mxu0 0
      %4955 = vmatprep.subr.bf16.mxu0 0
      %4956 = vmatpush1.bf16.msra.mxu0 0
      %4957 = vmatprep.subr.bf16.mxu0 0
      %4958 = vmatpush1.bf16.msra.mxu0 0
      %4959 = vmatprep.subr.bf16.mxu0 0
      %4960 = vmatpush1.bf16.msra.mxu0 0
      %4961 = vmatprep.subr.bf16.mxu0 0
      %4962 = vmatpush1.bf16.msra.mxu0 0
      %4963 = vmatprep.subr.bf16.mxu0 0
      %4964 = vmatpush1.bf16.msra.mxu0 0
      %4965 = vmatprep.mubr.bf16.mxu0 0
      %4966 = vmatmul.mubr.bf16.gmra.mrb[0].mxu0 %v4849
      %v4967 = vpop.f32.mrb[0].mxu0
      %v4968 = vadd.f32 0.0, %v4967
      %v4969 = vpop.f32.mrb[0].mxu0
      %v4970 = vadd.f32 0.0, %v4969
      %v4971 = vpop.f32.mrb[0].mxu0
      %v4972 = vpop.f32.mrb[0].mxu0
      %4973 = vdwg.mxu0
      %4974 = vmatprep.subr.bf16.mxu0 0
      %4975 = vmatpush1.bf16.msra.mxu0 %v4833
      %4976 = vmatprep.subr.bf16.mxu0 0
      %4977 = vmatpush1.bf16.msra.mxu0 0
      %4978 = vmatprep.subr.bf16.mxu0 0
      %4979 = vmatpush1.bf16.msra.mxu0 0
      %4980 = vmatprep.subr.bf16.mxu0 0
      %4981 = vmatpush1.bf16.msra.mxu0 0
      %4982 = vmatprep.subr.bf16.mxu0 0
      %4983 = vmatpush1.bf16.msra.mxu0 0
      %4984 = vmatprep.subr.bf16.mxu0 0
      %4985 = vmatpush1.bf16.msra.mxu0 0
      %4986 = vmatprep.subr.bf16.mxu0 0
      %4987 = vmatpush1.bf16.msra.mxu0 0
      %4988 = vmatprep.subr.bf16.mxu0 0
      %4989 = vmatpush1.bf16.msra.mxu0 0
      %4990 = vmatprep.subr.bf16.mxu0 0
      %4991 = vmatpush1.bf16.msra.mxu0 0
      %4992 = vmatprep.subr.bf16.mxu0 0
      %4993 = vmatpush1.bf16.msra.mxu0 0
      %4994 = vmatprep.subr.bf16.mxu0 0
      %4995 = vmatpush1.bf16.msra.mxu0 0
      %4996 = vmatprep.subr.bf16.mxu0 0
      %4997 = vmatpush1.bf16.msra.mxu0 0
      %4998 = vmatprep.subr.bf16.mxu0 0
      %4999 = vmatpush1.bf16.msra.mxu0 0
      %5000 = vmatprep.subr.bf16.mxu0 0
      %5001 = vmatpush1.bf16.msra.mxu0 0
      %5002 = vmatprep.subr.bf16.mxu0 0
      %5003 = vmatpush1.bf16.msra.mxu0 0
      %5004 = vmatprep.subr.bf16.mxu0 0
      %5005 = vmatpush1.bf16.msra.mxu0 0
      %5006 = vmatprep.mubr.bf16.mxu0 0
      %5007 = vmatmul.mubr.bf16.gmra.mrb[0].mxu0 %v4849
      %v5008 = vpop.f32.mrb[0].mxu0
      %v5009 = vadd.f32 0.0, %v5008
      %v5010 = vpop.f32.mrb[0].mxu0
      %v5011 = vpop.f32.mrb[0].mxu0
      %v5012 = vpop.f32.mrb[0].mxu0
      %5013 = vdwg.mxu0
      %v5014 = vadd.f32 %v4811, %v4886
      %v5015 = vadd.f32 %v4812, %v4888
      %v5016 = vadd.f32 %v4813, %v4927
      %v5017 = vadd.f32 %v4814, %v4929
      %v5018 = vadd.f32 %v4815, %v4968
      %v5019 = vadd.f32 %v4816, %v4970
      %v5020 = vadd.f32 %v4817, %v5009
      %5021 = vrot.lane.b32.xlu0 %v3617, 58
      %v5022 = vpop.permute.xlu0 %5021
      %5023 = vrot.lane.b32.xlu0 %v3621, 58
      %v5024 = vpop.permute.xlu0 %5023
      %5025 = vrot.lane.b32.xlu0 %v3625, 58
      %v5026 = vpop.permute.xlu0 %5025
      %5027 = vrot.lane.b32.xlu0 %v3629, 58
      %v5028 = vpop.permute.xlu0 %5027
      %5029 = vrot.lane.b32.xlu0 %v3633, 58
      %v5030 = vpop.permute.xlu0 %5029
      %5031 = vrot.lane.b32.xlu0 %v3637, 58
      %v5032 = vpop.permute.xlu0 %5031
      %5033 = vrot.lane.b32.xlu0 %v3641, 58
      %v5034 = vpop.permute.xlu0 %5033
      %vm5035 = vcmask 474112
      %v5036 = vsel %vm5035, %v5022, %v5024
      %v5037 = vsel %vm5035, %v5024, %v5026
      %v5038 = vsel %vm5035, %v5026, %v5028
      %v5039 = vsel %vm5035, %v5028, %v5030
      %v5040 = vsel %vm5035, %v5030, %v5032
      %v5041 = vsel %vm5035, %v5032, %v5034
      %vm5042 = vcmp.ne.s16.totalorder %v5022, 0
      %vm5043 = vcmp.ne.s16.totalorder %v5036, 0
      %vm5044 = vcmp.ne.s16.totalorder %v5037, 0
      %vm5045 = vcmp.ne.s16.totalorder %v5038, 0
      %vm5046 = vcmp.ne.s16.totalorder %v5039, 0
      %vm5047 = vcmp.ne.s16.totalorder %v5040, 0
      %vm5048 = vcmp.ne.s16.totalorder %v5041, 0
      %v5049 = vsel %vm5042, %v3101, 0
      %v5050 = vsel %vm5043, %v3088, 0
      %v5051 = vsel %vm5044, %v3089, 0
      %v5052 = vsel %vm5045, %v3090, 0
      %v5053 = vsel %vm5046, %v3091, 0
      %v5054 = vsel %vm5047, %v3092, 0
      %v5055 = vsel %vm5048, %v3105, 0
      %s5056 = scalar_lea.vmem %s7, 32
      %v5057 = vld [vmem:[%s5056] sm:$0xf]
      %5065 = vrot.lane.b32.xlu0 %v5049, 70
      %v5066 = vpop.permute.xlu0 %5065
      %5067 = vrot.lane.b32.xlu0 %v5050, 70
      %v5068 = vpop.permute.xlu0 %5067
      %5069 = vrot.lane.b32.xlu0 %v5051, 70
      %v5070 = vpop.permute.xlu0 %5069
      %5071 = vrot.lane.b32.xlu0 %v5052, 70
      %v5072 = vpop.permute.xlu0 %5071
      %5073 = vrot.lane.b32.xlu0 %v5053, 70
      %v5074 = vpop.permute.xlu0 %5073
      %5075 = vrot.lane.b32.xlu0 %v5054, 70
      %v5076 = vpop.permute.xlu0 %5075
      %5077 = vrot.lane.b32.xlu0 %v5055, 70
      %v5078 = vpop.permute.xlu0 %5077
      %vm5079 = vcmask 572416
      %v5080 = vsel %vm5079, %v5066, %v5068
      %v5081 = vsel %vm5079, %v5068, %v5070
      %v5082 = vsel %vm5079, %v5070, %v5072
      %v5083 = vsel %vm5079, %v5072, %v5074
      %v5084 = vsel %vm5079, %v5074, %v5076
      %v5085 = vsel %vm5079, %v5076, %v5078
      %v5094 = vsel %vm3245, %v5057, 0
      %5096 = vmatprep.subr.bf16.mxu0 %v5081
      %5097 = vmatpush1.bf16.msra.mxu0 %v5080
      %5098 = vmatprep.subr.bf16.mxu0 0
      %5099 = vmatpush1.bf16.msra.mxu0 0
      %5100 = vmatprep.subr.bf16.mxu0 0
      %5101 = vmatpush1.bf16.msra.mxu0 0
      %5102 = vmatprep.subr.bf16.mxu0 0
      %5103 = vmatpush1.bf16.msra.mxu0 0
      %5104 = vmatprep.subr.bf16.mxu0 0
      %5105 = vmatpush1.bf16.msra.mxu0 0
      %5106 = vmatprep.subr.bf16.mxu0 0
      %5107 = vmatpush1.bf16.msra.mxu0 0
      %5108 = vmatprep.subr.bf16.mxu0 0
      %5109 = vmatpush1.bf16.msra.mxu0 0
      %5110 = vmatprep.subr.bf16.mxu0 0
      %5111 = vmatpush1.bf16.msra.mxu0 0
      %5112 = vmatprep.subr.bf16.mxu0 0
      %5113 = vmatpush1.bf16.msra.mxu0 0
      %5114 = vmatprep.subr.bf16.mxu0 0
      %5115 = vmatpush1.bf16.msra.mxu0 0
      %5116 = vmatprep.subr.bf16.mxu0 0
      %5117 = vmatpush1.bf16.msra.mxu0 0
      %5118 = vmatprep.subr.bf16.mxu0 0
      %5119 = vmatpush1.bf16.msra.mxu0 0
      %5120 = vmatprep.subr.bf16.mxu0 0
      %5121 = vmatpush1.bf16.msra.mxu0 0
      %5122 = vmatprep.subr.bf16.mxu0 0
      %5123 = vmatpush1.bf16.msra.mxu0 0
      %5124 = vmatprep.subr.bf16.mxu0 0
      %5125 = vmatpush1.bf16.msra.mxu0 0
      %5126 = vmatprep.subr.bf16.mxu0 0
      %5127 = vmatpush1.bf16.msra.mxu0 0
      %5128 = vmatprep.mubr.bf16.mxu0 0
      %5129 = vmatmul.mubr.bf16.gmra.mrb[0].mxu0 %v5094
      %v5130 = vpop.f32.mrb[0].mxu0
      %v5131 = vadd.f32 0.0, %v5130
      %v5132 = vpop.f32.mrb[0].mxu0
      %v5133 = vadd.f32 0.0, %v5132
      %v5134 = vpop.f32.mrb[0].mxu0
      %v5135 = vpop.f32.mrb[0].mxu0
      %5136 = vdwg.mxu0
      %5137 = vmatprep.subr.bf16.mxu0 %v5083
      %5138 = vmatpush1.bf16.msra.mxu0 %v5082
      %5139 = vmatprep.subr.bf16.mxu0 0
      %5140 = vmatpush1.bf16.msra.mxu0 0
      %5141 = vmatprep.subr.bf16.mxu0 0
      %5142 = vmatpush1.bf16.msra.mxu0 0
      %5143 = vmatprep.subr.bf16.mxu0 0
      %5144 = vmatpush1.bf16.msra.mxu0 0
      %5145 = vmatprep.subr.bf16.mxu0 0
      %5146 = vmatpush1.bf16.msra.mxu0 0
      %5147 = vmatprep.subr.bf16.mxu0 0
      %5148 = vmatpush1.bf16.msra.mxu0 0
      %5149 = vmatprep.subr.bf16.mxu0 0
      %5150 = vmatpush1.bf16.msra.mxu0 0
      %5151 = vmatprep.subr.bf16.mxu0 0
      %5152 = vmatpush1.bf16.msra.mxu0 0
      %5153 = vmatprep.subr.bf16.mxu0 0
      %5154 = vmatpush1.bf16.msra.mxu0 0
      %5155 = vmatprep.subr.bf16.mxu0 0
      %5156 = vmatpush1.bf16.msra.mxu0 0
      %5157 = vmatprep.subr.bf16.mxu0 0
      %5158 = vmatpush1.bf16.msra.mxu0 0
      %5159 = vmatprep.subr.bf16.mxu0 0
      %5160 = vmatpush1.bf16.msra.mxu0 0
      %5161 = vmatprep.subr.bf16.mxu0 0
      %5162 = vmatpush1.bf16.msra.mxu0 0
      %5163 = vmatprep.subr.bf16.mxu0 0
      %5164 = vmatpush1.bf16.msra.mxu0 0
      %5165 = vmatprep.subr.bf16.mxu0 0
      %5166 = vmatpush1.bf16.msra.mxu0 0
      %5167 = vmatprep.subr.bf16.mxu0 0
      %5168 = vmatpush1.bf16.msra.mxu0 0
      %5169 = vmatprep.mubr.bf16.mxu0 0
      %5170 = vmatmul.mubr.bf16.gmra.mrb[0].mxu0 %v5094
      %v5171 = vpop.f32.mrb[0].mxu0
      %v5172 = vadd.f32 0.0, %v5171
      %v5173 = vpop.f32.mrb[0].mxu0
      %v5174 = vadd.f32 0.0, %v5173
      %v5175 = vpop.f32.mrb[0].mxu0
      %v5176 = vpop.f32.mrb[0].mxu0
      %5177 = vdwg.mxu0
      %5178 = vmatprep.subr.bf16.mxu0 %v5085
      %5179 = vmatpush1.bf16.msra.mxu0 %v5084
      %5180 = vmatprep.subr.bf16.mxu0 0
      %5181 = vmatpush1.bf16.msra.mxu0 0
      %5182 = vmatprep.subr.bf16.mxu0 0
      %5183 = vmatpush1.bf16.msra.mxu0 0
      %5184 = vmatprep.subr.bf16.mxu0 0
      %5185 = vmatpush1.bf16.msra.mxu0 0
      %5186 = vmatprep.subr.bf16.mxu0 0
      %5187 = vmatpush1.bf16.msra.mxu0 0
      %5188 = vmatprep.subr.bf16.mxu0 0
      %5189 = vmatpush1.bf16.msra.mxu0 0
      %5190 = vmatprep.subr.bf16.mxu0 0
      %5191 = vmatpush1.bf16.msra.mxu0 0
      %5192 = vmatprep.subr.bf16.mxu0 0
      %5193 = vmatpush1.bf16.msra.mxu0 0
      %5194 = vmatprep.subr.bf16.mxu0 0
      %5195 = vmatpush1.bf16.msra.mxu0 0
      %5196 = vmatprep.subr.bf16.mxu0 0
      %5197 = vmatpush1.bf16.msra.mxu0 0
      %5198 = vmatprep.subr.bf16.mxu0 0
      %5199 = vmatpush1.bf16.msra.mxu0 0
      %5200 = vmatprep.subr.bf16.mxu0 0
      %5201 = vmatpush1.bf16.msra.mxu0 0
      %5202 = vmatprep.subr.bf16.mxu0 0
      %5203 = vmatpush1.bf16.msra.mxu0 0
      %5204 = vmatprep.subr.bf16.mxu0 0
      %5205 = vmatpush1.bf16.msra.mxu0 0
      %5206 = vmatprep.subr.bf16.mxu0 0
      %5207 = vmatpush1.bf16.msra.mxu0 0
      %5208 = vmatprep.subr.bf16.mxu0 0
      %5209 = vmatpush1.bf16.msra.mxu0 0
      %5210 = vmatprep.mubr.bf16.mxu0 0
      %5211 = vmatmul.mubr.bf16.gmra.mrb[0].mxu0 %v5094
      %v5212 = vpop.f32.mrb[0].mxu0
      %v5213 = vadd.f32 0.0, %v5212
      %v5214 = vpop.f32.mrb[0].mxu0
      %v5215 = vadd.f32 0.0, %v5214
      %v5216 = vpop.f32.mrb[0].mxu0
      %v5217 = vpop.f32.mrb[0].mxu0
      %5218 = vdwg.mxu0
      %5219 = vmatprep.subr.bf16.mxu0 0
      %5220 = vmatpush1.bf16.msra.mxu0 %v5078
      %5221 = vmatprep.subr.bf16.mxu0 0
      %5222 = vmatpush1.bf16.msra.mxu0 0
      %5223 = vmatprep.subr.bf16.mxu0 0
      %5224 = vmatpush1.bf16.msra.mxu0 0
      %5225 = vmatprep.subr.bf16.mxu0 0
      %5226 = vmatpush1.bf16.msra.mxu0 0
      %5227 = vmatprep.subr.bf16.mxu0 0
      %5228 = vmatpush1.bf16.msra.mxu0 0
      %5229 = vmatprep.subr.bf16.mxu0 0
      %5230 = vmatpush1.bf16.msra.mxu0 0
      %5231 = vmatprep.subr.bf16.mxu0 0
      %5232 = vmatpush1.bf16.msra.mxu0 0
      %5233 = vmatprep.subr.bf16.mxu0 0
      %5234 = vmatpush1.bf16.msra.mxu0 0
      %5235 = vmatprep.subr.bf16.mxu0 0
      %5236 = vmatpush1.bf16.msra.mxu0 0
      %5237 = vmatprep.subr.bf16.mxu0 0
      %5238 = vmatpush1.bf16.msra.mxu0 0
      %5239 = vmatprep.subr.bf16.mxu0 0
      %5240 = vmatpush1.bf16.msra.mxu0 0
      %5241 = vmatprep.subr.bf16.mxu0 0
      %5242 = vmatpush1.bf16.msra.mxu0 0
      %5243 = vmatprep.subr.bf16.mxu0 0
      %5244 = vmatpush1.bf16.msra.mxu0 0
      %5245 = vmatprep.subr.bf16.mxu0 0
      %5246 = vmatpush1.bf16.msra.mxu0 0
      %5247 = vmatprep.subr.bf16.mxu0 0
      %5248 = vmatpush1.bf16.msra.mxu0 0
      %5249 = vmatprep.subr.bf16.mxu0 0
      %5250 = vmatpush1.bf16.msra.mxu0 0
      %5251 = vmatprep.mubr.bf16.mxu0 0
      %5252 = vmatmul.mubr.bf16.gmra.mrb[0].mxu0 %v5094
      %v5253 = vpop.f32.mrb[0].mxu0
      %v5254 = vadd.f32 0.0, %v5253
      %v5255 = vpop.f32.mrb[0].mxu0
      %v5256 = vpop.f32.mrb[0].mxu0
      %v5257 = vpop.f32.mrb[0].mxu0
      %5258 = vdwg.mxu0
      %v5259 = vadd.f32 %v5014, %v5131
      %v5260 = vadd.f32 %v5015, %v5133
      %v5261 = vadd.f32 %v5016, %v5172
      %v5262 = vadd.f32 %v5017, %v5174
      %v5263 = vadd.f32 %v5018, %v5213
      %v5264 = vadd.f32 %v5019, %v5215
      %v5265 = vadd.f32 %v5020, %v5254
      %5267 = vset.pattern.permute.xlu0 0
      %5268 = vperm.xlu0 %5267, %v3057
      %v5269 = vpop.permute.xlu0 %5268
      %v5271 = vadd.f32 %v5259, %v5269
      %v5272 = vadd.f32 %v5260, %v5269
      %v5273 = vadd.f32 %v5261, %v5269
      %v5274 = vadd.f32 %v5262, %v5269
      %v5275 = vadd.f32 %v5263, %v5269
      %v5276 = vadd.f32 %v5264, %v5269
      %v5277 = vadd.f32 %v5265, %v5269
      %v5278 = vmul.f32 %v5271, 0.2
      %v5279 = vmul.f32 %v5272, 0.2
      %v5280 = vmul.f32 %v5273, 0.2
      %v5281 = vmul.f32 %v5274, 0.2
      %v5282 = vmul.f32 %v5275, 0.2
      %v5283 = vmul.f32 %v5276, 0.2
      %v5284 = vmul.f32 %v5277, 0.2
      %v5285 = vmax.f32 %v5271, %v5278
      %v5286 = vmax.f32 %v5272, %v5279
      %v5287 = vmax.f32 %v5273, %v5280
      %v5288 = vmax.f32 %v5274, %v5281
      %v5289 = vmax.f32 %v5275, %v5282
      %v5290 = vmax.f32 %v5276, %v5283
      %v5291 = vmax.f32 %v5277, %v5284
      %v5292 = vld [vmem:[#allocation2] sm:$0x1]
      %v5293 = vpack.c.bf16 %v5285, %v5285
      %v5294 = vpack.c.bf16 %v5286, %v5286
      %v5295 = vpack.c.bf16 %v5287, %v5287
      %v5296 = vpack.c.bf16 %v5288, %v5288
      %v5297 = vpack.c.bf16 %v5289, %v5289
      %v5298 = vpack.c.bf16 %v5290, %v5290
      %v5299 = vpack.c.bf16 %v5291, %v5291
      %5307 = vrot.lane.b32.xlu0 %v5293, 29
      %v5308 = vpop.permute.xlu0 %5307
      %5309 = vrot.lane.b32.xlu0 %v5294, 29
      %v5310 = vpop.permute.xlu0 %5309
      %5311 = vrot.lane.b32.xlu0 %v5295, 29
      %v5312 = vpop.permute.xlu0 %5311
      %5313 = vrot.lane.b32.xlu0 %v5296, 29
      %v5314 = vpop.permute.xlu0 %5313
      %5315 = vrot.lane.b32.xlu0 %v5297, 29
      %v5316 = vpop.permute.xlu0 %5315
      %5317 = vrot.lane.b32.xlu0 %v5298, 29
      %v5318 = vpop.permute.xlu0 %5317
      %5319 = vrot.lane.b32.xlu0 %v5299, 29
      %v5320 = vpop.permute.xlu0 %5319
      %v5321 = vsel %vm3087, %v5308, %v5310
      %v5322 = vsel %vm3087, %v5310, %v5312
      %v5323 = vsel %vm3087, %v5312, %v5314
      %v5324 = vsel %vm3087, %v5314, %v5316
      %v5325 = vsel %vm3087, %v5316, %v5318
      %v5326 = vsel %vm3087, %v5318, %v5320
      %v5333 = vsel %vm3099, 0, %v5308
      %v5336 = vsel %vm3103, %v5326, 0
      %v5338 = vsel %vm3199, %v5333, 0
      %v5339 = vsel %vm3200, %v5321, 0
      %v5340 = vsel %vm3201, %v5322, 0
      %v5341 = vsel %vm3202, %v5323, 0
      %v5342 = vsel %vm3203, %v5324, 0
      %v5343 = vsel %vm3204, %v5325, 0
      %v5344 = vsel %vm3205, %v5336, 0
      %v5345 = vld [vmem:[%s9] sm:$0x1]
      %s5346 = scalar_lea.vmem %s9, 1
      %v5347 = vld [vmem:[%s5346] sm:$0x1]
      %5350 = vrot.lane.b32.xlu0 %v5333, 127
      %v5351 = vpop.permute.xlu0 %5350
      %5352 = vrot.lane.b32.xlu0 %v5321, 127
      %v5353 = vpop.permute.xlu0 %5352
      %5354 = vrot.lane.b32.xlu0 %v5322, 127
      %v5355 = vpop.permute.xlu0 %5354
      %5356 = vrot.lane.b32.xlu0 %v5323, 127
      %v5357 = vpop.permute.xlu0 %5356
      %5358 = vrot.lane.b32.xlu0 %v5324, 127
      %v5359 = vpop.permute.xlu0 %5358
      %5360 = vrot.lane.b32.xlu0 %v5325, 127
      %v5361 = vpop.permute.xlu0 %5360
      %5362 = vrot.lane.b32.xlu0 %v5336, 127
      %v5363 = vpop.permute.xlu0 %5362
      %v5364 = vsel %vm1573, %v5351, %v5353
      %v5365 = vsel %vm1573, %v5353, %v5355
      %v5366 = vsel %vm1573, %v5355, %v5357
      %v5367 = vsel %vm1573, %v5357, %v5359
      %v5368 = vsel %vm1573, %v5359, %v5361
      %v5369 = vsel %vm1573, %v5361, %v5363
      %vm5370 = vcmask 64512
      %v5372 = vsel %vm5370, %v5347, 0
      %vm5374 = vcmask 1043456
      %v5376 = vsel %vm5374, %v5364, 0
      %v5379 = vsel %vm5374, %v5365, 0
      %v5382 = vsel %vm5374, %v5366, 0
      %v5385 = vsel %vm5374, %v5367, 0
      %v5388 = vsel %vm5374, %v5368, 0
      %v5391 = vsel %vm5374, %v5369, 0
      %v5394 = vsel %vm5374, %v5363, 0
      %5396 = vmatprep.subr.bf16.mxu0 %v5379
      %5397 = vmatpush1.bf16.msra.mxu0 %v5376
      %5398 = vmatprep.subr.bf16.mxu0 0
      %5399 = vmatpush1.bf16.msra.mxu0 0
      %5400 = vmatprep.subr.bf16.mxu0 0
      %5401 = vmatpush1.bf16.msra.mxu0 0
      %5402 = vmatprep.subr.bf16.mxu0 0
      %5403 = vmatpush1.bf16.msra.mxu0 0
      %5404 = vmatprep.subr.bf16.mxu0 0
      %5405 = vmatpush1.bf16.msra.mxu0 0
      %5406 = vmatprep.subr.bf16.mxu0 0
      %5407 = vmatpush1.bf16.msra.mxu0 0
      %5408 = vmatprep.subr.bf16.mxu0 0
      %5409 = vmatpush1.bf16.msra.mxu0 0
      %5410 = vmatprep.subr.bf16.mxu0 0
      %5411 = vmatpush1.bf16.msra.mxu0 0
      %5412 = vmatprep.subr.bf16.mxu0 0
      %5413 = vmatpush1.bf16.msra.mxu0 0
      %5414 = vmatprep.subr.bf16.mxu0 0
      %5415 = vmatpush1.bf16.msra.mxu0 0
      %5416 = vmatprep.subr.bf16.mxu0 0
      %5417 = vmatpush1.bf16.msra.mxu0 0
      %5418 = vmatprep.subr.bf16.mxu0 0
      %5419 = vmatpush1.bf16.msra.mxu0 0
      %5420 = vmatprep.subr.bf16.mxu0 0
      %5421 = vmatpush1.bf16.msra.mxu0 0
      %5422 = vmatprep.subr.bf16.mxu0 0
      %5423 = vmatpush1.bf16.msra.mxu0 0
      %5424 = vmatprep.subr.bf16.mxu0 0
      %5425 = vmatpush1.bf16.msra.mxu0 0
      %5426 = vmatprep.subr.bf16.mxu0 0
      %5427 = vmatpush1.bf16.msra.mxu0 0
      %5428 = vmatprep.mubr.bf16.mxu0 0
      %5429 = vmatmul.mubr.bf16.gmra.mrb[0].mxu0 %v5372
      %v5430 = vpop.f32.mrb[0].mxu0
      %v5431 = vadd.f32 0.0, %v5430
      %v5432 = vpop.f32.mrb[0].mxu0
      %v5433 = vadd.f32 0.0, %v5432
      %v5434 = vpop.f32.mrb[0].mxu0
      %v5435 = vpop.f32.mrb[0].mxu0
      %5436 = vdwg.mxu0
      %5437 = vmatprep.subr.bf16.mxu0 %v5385
      %5438 = vmatpush1.bf16.msra.mxu0 %v5382
      %5439 = vmatprep.subr.bf16.mxu0 0
      %5440 = vmatpush1.bf16.msra.mxu0 0
      %5441 = vmatprep.subr.bf16.mxu0 0
      %5442 = vmatpush1.bf16.msra.mxu0 0
      %5443 = vmatprep.subr.bf16.mxu0 0
      %5444 = vmatpush1.bf16.msra.mxu0 0
      %5445 = vmatprep.subr.bf16.mxu0 0
      %5446 = vmatpush1.bf16.msra.mxu0 0
      %5447 = vmatprep.subr.bf16.mxu0 0
      %5448 = vmatpush1.bf16.msra.mxu0 0
      %5449 = vmatprep.subr.bf16.mxu0 0
      %5450 = vmatpush1.bf16.msra.mxu0 0
      %5451 = vmatprep.subr.bf16.mxu0 0
      %5452 = vmatpush1.bf16.msra.mxu0 0
      %5453 = vmatprep.subr.bf16.mxu0 0
      %5454 = vmatpush1.bf16.msra.mxu0 0
      %5455 = vmatprep.subr.bf16.mxu0 0
      %5456 = vmatpush1.bf16.msra.mxu0 0
      %5457 = vmatprep.subr.bf16.mxu0 0
      %5458 = vmatpush1.bf16.msra.mxu0 0
      %5459 = vmatprep.subr.bf16.mxu0 0
      %5460 = vmatpush1.bf16.msra.mxu0 0
      %5461 = vmatprep.subr.bf16.mxu0 0
      %5462 = vmatpush1.bf16.msra.mxu0 0
      %5463 = vmatprep.subr.bf16.mxu0 0
      %5464 = vmatpush1.bf16.msra.mxu0 0
      %5465 = vmatprep.subr.bf16.mxu0 0
      %5466 = vmatpush1.bf16.msra.mxu0 0
      %5467 = vmatprep.subr.bf16.mxu0 0
      %5468 = vmatpush1.bf16.msra.mxu0 0
      %5469 = vmatprep.mubr.bf16.mxu0 0
      %5470 = vmatmul.mubr.bf16.gmra.mrb[0].mxu0 %v5372
      %v5471 = vpop.f32.mrb[0].mxu0
      %v5472 = vadd.f32 0.0, %v5471
      %v5473 = vpop.f32.mrb[0].mxu0
      %v5474 = vadd.f32 0.0, %v5473
      %v5475 = vpop.f32.mrb[0].mxu0
      %v5476 = vpop.f32.mrb[0].mxu0
      %5477 = vdwg.mxu0
      %5478 = vmatprep.subr.bf16.mxu0 %v5391
      %5479 = vmatpush1.bf16.msra.mxu0 %v5388
      %5480 = vmatprep.subr.bf16.mxu0 0
      %5481 = vmatpush1.bf16.msra.mxu0 0
      %5482 = vmatprep.subr.bf16.mxu0 0
      %5483 = vmatpush1.bf16.msra.mxu0 0
      %5484 = vmatprep.subr.bf16.mxu0 0
      %5485 = vmatpush1.bf16.msra.mxu0 0
      %5486 = vmatprep.subr.bf16.mxu0 0
      %5487 = vmatpush1.bf16.msra.mxu0 0
      %5488 = vmatprep.subr.bf16.mxu0 0
      %5489 = vmatpush1.bf16.msra.mxu0 0
      %5490 = vmatprep.subr.bf16.mxu0 0
      %5491 = vmatpush1.bf16.msra.mxu0 0
      %5492 = vmatprep.subr.bf16.mxu0 0
      %5493 = vmatpush1.bf16.msra.mxu0 0
      %5494 = vmatprep.subr.bf16.mxu0 0
      %5495 = vmatpush1.bf16.msra.mxu0 0
      %5496 = vmatprep.subr.bf16.mxu0 0
      %5497 = vmatpush1.bf16.msra.mxu0 0
      %5498 = vmatprep.subr.bf16.mxu0 0
      %5499 = vmatpush1.bf16.msra.mxu0 0
      %5500 = vmatprep.subr.bf16.mxu0 0
      %5501 = vmatpush1.bf16.msra.mxu0 0
      %5502 = vmatprep.subr.bf16.mxu0 0
      %5503 = vmatpush1.bf16.msra.mxu0 0
      %5504 = vmatprep.subr.bf16.mxu0 0
      %5505 = vmatpush1.bf16.msra.mxu0 0
      %5506 = vmatprep.subr.bf16.mxu0 0
      %5507 = vmatpush1.bf16.msra.mxu0 0
      %5508 = vmatprep.subr.bf16.mxu0 0
      %5509 = vmatpush1.bf16.msra.mxu0 0
      %5510 = vmatprep.mubr.bf16.mxu0 0
      %5511 = vmatmul.mubr.bf16.gmra.mrb[0].mxu0 %v5372
      %v5512 = vpop.f32.mrb[0].mxu0
      %v5513 = vadd.f32 0.0, %v5512
      %v5514 = vpop.f32.mrb[0].mxu0
      %v5515 = vadd.f32 0.0, %v5514
      %v5516 = vpop.f32.mrb[0].mxu0
      %v5517 = vpop.f32.mrb[0].mxu0
      %5518 = vdwg.mxu0
      %5519 = vmatprep.subr.bf16.mxu0 0
      %5520 = vmatpush1.bf16.msra.mxu0 %v5394
      %5521 = vmatprep.subr.bf16.mxu0 0
      %5522 = vmatpush1.bf16.msra.mxu0 0
      %5523 = vmatprep.subr.bf16.mxu0 0
      %5524 = vmatpush1.bf16.msra.mxu0 0
      %5525 = vmatprep.subr.bf16.mxu0 0
      %5526 = vmatpush1.bf16.msra.mxu0 0
      %5527 = vmatprep.subr.bf16.mxu0 0
      %5528 = vmatpush1.bf16.msra.mxu0 0
      %5529 = vmatprep.subr.bf16.mxu0 0
      %5530 = vmatpush1.bf16.msra.mxu0 0
      %5531 = vmatprep.subr.bf16.mxu0 0
      %5532 = vmatpush1.bf16.msra.mxu0 0
      %5533 = vmatprep.subr.bf16.mxu0 0
      %5534 = vmatpush1.bf16.msra.mxu0 0
      %5535 = vmatprep.subr.bf16.mxu0 0
      %5536 = vmatpush1.bf16.msra.mxu0 0
      %5537 = vmatprep.subr.bf16.mxu0 0
      %5538 = vmatpush1.bf16.msra.mxu0 0
      %5539 = vmatprep.subr.bf16.mxu0 0
      %5540 = vmatpush1.bf16.msra.mxu0 0
      %5541 = vmatprep.subr.bf16.mxu0 0
      %5542 = vmatpush1.bf16.msra.mxu0 0
      %5543 = vmatprep.subr.bf16.mxu0 0
      %5544 = vmatpush1.bf16.msra.mxu0 0
      %5545 = vmatprep.subr.bf16.mxu0 0
      %5546 = vmatpush1.bf16.msra.mxu0 0
      %5547 = vmatprep.subr.bf16.mxu0 0
      %5548 = vmatpush1.bf16.msra.mxu0 0
      %5549 = vmatprep.subr.bf16.mxu0 0
      %5550 = vmatpush1.bf16.msra.mxu0 0
      %5551 = vmatprep.mubr.bf16.mxu0 0
      %5552 = vmatmul.mubr.bf16.gmra.mrb[0].mxu0 %v5372
      %v5553 = vpop.f32.mrb[0].mxu0
      %v5554 = vadd.f32 0.0, %v5553
      %v5555 = vpop.f32.mrb[0].mxu0
      %v5556 = vpop.f32.mrb[0].mxu0
      %v5557 = vpop.f32.mrb[0].mxu0
      %5558 = vdwg.mxu0
      %v5560 = vsel %vm5370, %v5345, 0
      %v5563 = vsel %vm5374, %v5338, 0
      %v5566 = vsel %vm5374, %v5339, 0
      %v5569 = vsel %vm5374, %v5340, 0
      %v5572 = vsel %vm5374, %v5341, 0
      %v5575 = vsel %vm5374, %v5342, 0
      %v5578 = vsel %vm5374, %v5343, 0
      %v5581 = vsel %vm5374, %v5344, 0
      %5583 = vmatprep.subr.bf16.mxu0 %v5566
      %5584 = vmatpush1.bf16.msra.mxu0 %v5563
      %5585 = vmatprep.subr.bf16.mxu0 0
      %5586 = vmatpush1.bf16.msra.mxu0 0
      %5587 = vmatprep.subr.bf16.mxu0 0
      %5588 = vmatpush1.bf16.msra.mxu0 0
      %5589 = vmatprep.subr.bf16.mxu0 0
      %5590 = vmatpush1.bf16.msra.mxu0 0
      %5591 = vmatprep.subr.bf16.mxu0 0
      %5592 = vmatpush1.bf16.msra.mxu0 0
      %5593 = vmatprep.subr.bf16.mxu0 0
      %5594 = vmatpush1.bf16.msra.mxu0 0
      %5595 = vmatprep.subr.bf16.mxu0 0
      %5596 = vmatpush1.bf16.msra.mxu0 0
      %5597 = vmatprep.subr.bf16.mxu0 0
      %5598 = vmatpush1.bf16.msra.mxu0 0
      %5599 = vmatprep.subr.bf16.mxu0 0
      %5600 = vmatpush1.bf16.msra.mxu0 0
      %5601 = vmatprep.subr.bf16.mxu0 0
      %5602 = vmatpush1.bf16.msra.mxu0 0
      %5603 = vmatprep.subr.bf16.mxu0 0
      %5604 = vmatpush1.bf16.msra.mxu0 0
      %5605 = vmatprep.subr.bf16.mxu0 0
      %5606 = vmatpush1.bf16.msra.mxu0 0
      %5607 = vmatprep.subr.bf16.mxu0 0
      %5608 = vmatpush1.bf16.msra.mxu0 0
      %5609 = vmatprep.subr.bf16.mxu0 0
      %5610 = vmatpush1.bf16.msra.mxu0 0
      %5611 = vmatprep.subr.bf16.mxu0 0
      %5612 = vmatpush1.bf16.msra.mxu0 0
      %5613 = vmatprep.subr.bf16.mxu0 0
      %5614 = vmatpush1.bf16.msra.mxu0 0
      %5615 = vmatprep.mubr.bf16.mxu0 0
      %5616 = vmatmul.mubr.bf16.gmra.mrb[0].mxu0 %v5560
      %v5617 = vpop.f32.mrb[0].mxu0
      %v5618 = vadd.f32 %v5431, %v5617
      %v5619 = vpop.f32.mrb[0].mxu0
      %v5620 = vadd.f32 %v5433, %v5619
      %v5621 = vpop.f32.mrb[0].mxu0
      %v5622 = vpop.f32.mrb[0].mxu0
      %5623 = vdwg.mxu0
      %5624 = vmatprep.subr.bf16.mxu0 %v5572
      %5625 = vmatpush1.bf16.msra.mxu0 %v5569
      %5626 = vmatprep.subr.bf16.mxu0 0
      %5627 = vmatpush1.bf16.msra.mxu0 0
      %5628 = vmatprep.subr.bf16.mxu0 0
      %5629 = vmatpush1.bf16.msra.mxu0 0
      %5630 = vmatprep.subr.bf16.mxu0 0
      %5631 = vmatpush1.bf16.msra.mxu0 0
      %5632 = vmatprep.subr.bf16.mxu0 0
      %5633 = vmatpush1.bf16.msra.mxu0 0
      %5634 = vmatprep.subr.bf16.mxu0 0
      %5635 = vmatpush1.bf16.msra.mxu0 0
      %5636 = vmatprep.subr.bf16.mxu0 0
      %5637 = vmatpush1.bf16.msra.mxu0 0
      %5638 = vmatprep.subr.bf16.mxu0 0
      %5639 = vmatpush1.bf16.msra.mxu0 0
      %5640 = vmatprep.subr.bf16.mxu0 0
      %5641 = vmatpush1.bf16.msra.mxu0 0
      %5642 = vmatprep.subr.bf16.mxu0 0
      %5643 = vmatpush1.bf16.msra.mxu0 0
      %5644 = vmatprep.subr.bf16.mxu0 0
      %5645 = vmatpush1.bf16.msra.mxu0 0
      %5646 = vmatprep.subr.bf16.mxu0 0
      %5647 = vmatpush1.bf16.msra.mxu0 0
      %5648 = vmatprep.subr.bf16.mxu0 0
      %5649 = vmatpush1.bf16.msra.mxu0 0
      %5650 = vmatprep.subr.bf16.mxu0 0
      %5651 = vmatpush1.bf16.msra.mxu0 0
      %5652 = vmatprep.subr.bf16.mxu0 0
      %5653 = vmatpush1.bf16.msra.mxu0 0
      %5654 = vmatprep.subr.bf16.mxu0 0
      %5655 = vmatpush1.bf16.msra.mxu0 0
      %5656 = vmatprep.mubr.bf16.mxu0 0
      %5657 = vmatmul.mubr.bf16.gmra.mrb[0].mxu0 %v5560
      %v5658 = vpop.f32.mrb[0].mxu0
      %v5659 = vadd.f32 %v5472, %v5658
      %v5660 = vpop.f32.mrb[0].mxu0
      %v5661 = vadd.f32 %v5474, %v5660
      %v5662 = vpop.f32.mrb[0].mxu0
      %v5663 = vpop.f32.mrb[0].mxu0
      %5664 = vdwg.mxu0
      %5665 = vmatprep.subr.bf16.mxu0 %v5578
      %5666 = vmatpush1.bf16.msra.mxu0 %v5575
      %5667 = vmatprep.subr.bf16.mxu0 0
      %5668 = vmatpush1.bf16.msra.mxu0 0
      %5669 = vmatprep.subr.bf16.mxu0 0
      %5670 = vmatpush1.bf16.msra.mxu0 0
      %5671 = vmatprep.subr.bf16.mxu0 0
      %5672 = vmatpush1.bf16.msra.mxu0 0
      %5673 = vmatprep.subr.bf16.mxu0 0
      %5674 = vmatpush1.bf16.msra.mxu0 0
      %5675 = vmatprep.subr.bf16.mxu0 0
      %5676 = vmatpush1.bf16.msra.mxu0 0
      %5677 = vmatprep.subr.bf16.mxu0 0
      %5678 = vmatpush1.bf16.msra.mxu0 0
      %5679 = vmatprep.subr.bf16.mxu0 0
      %5680 = vmatpush1.bf16.msra.mxu0 0
      %5681 = vmatprep.subr.bf16.mxu0 0
      %5682 = vmatpush1.bf16.msra.mxu0 0
      %5683 = vmatprep.subr.bf16.mxu0 0
      %5684 = vmatpush1.bf16.msra.mxu0 0
      %5685 = vmatprep.subr.bf16.mxu0 0
      %5686 = vmatpush1.bf16.msra.mxu0 0
      %5687 = vmatprep.subr.bf16.mxu0 0
      %5688 = vmatpush1.bf16.msra.mxu0 0
      %5689 = vmatprep.subr.bf16.mxu0 0
      %5690 = vmatpush1.bf16.msra.mxu0 0
      %5691 = vmatprep.subr.bf16.mxu0 0
      %5692 = vmatpush1.bf16.msra.mxu0 0
      %5693 = vmatprep.subr.bf16.mxu0 0
      %5694 = vmatpush1.bf16.msra.mxu0 0
      %5695 = vmatprep.subr.bf16.mxu0 0
      %5696 = vmatpush1.bf16.msra.mxu0 0
      %5697 = vmatprep.mubr.bf16.mxu0 0
      %5698 = vmatmul.mubr.bf16.gmra.mrb[0].mxu0 %v5560
      %v5699 = vpop.f32.mrb[0].mxu0
      %v5700 = vadd.f32 %v5513, %v5699
      %v5701 = vpop.f32.mrb[0].mxu0
      %v5702 = vadd.f32 %v5515, %v5701
      %v5703 = vpop.f32.mrb[0].mxu0
      %v5704 = vpop.f32.mrb[0].mxu0
      %5705 = vdwg.mxu0
      %5706 = vmatprep.subr.bf16.mxu0 0
      %5707 = vmatpush1.bf16.msra.mxu0 %v5581
      %5708 = vmatprep.subr.bf16.mxu0 0
      %5709 = vmatpush1.bf16.msra.mxu0 0
      %5710 = vmatprep.subr.bf16.mxu0 0
      %5711 = vmatpush1.bf16.msra.mxu0 0
      %5712 = vmatprep.subr.bf16.mxu0 0
      %5713 = vmatpush1.bf16.msra.mxu0 0
      %5714 = vmatprep.subr.bf16.mxu0 0
      %5715 = vmatpush1.bf16.msra.mxu0 0
      %5716 = vmatprep.subr.bf16.mxu0 0
      %5717 = vmatpush1.bf16.msra.mxu0 0
      %5718 = vmatprep.subr.bf16.mxu0 0
      %5719 = vmatpush1.bf16.msra.mxu0 0
      %5720 = vmatprep.subr.bf16.mxu0 0
      %5721 = vmatpush1.bf16.msra.mxu0 0
      %5722 = vmatprep.subr.bf16.mxu0 0
      %5723 = vmatpush1.bf16.msra.mxu0 0
      %5724 = vmatprep.subr.bf16.mxu0 0
      %5725 = vmatpush1.bf16.msra.mxu0 0
      %5726 = vmatprep.subr.bf16.mxu0 0
      %5727 = vmatpush1.bf16.msra.mxu0 0
      %5728 = vmatprep.subr.bf16.mxu0 0
      %5729 = vmatpush1.bf16.msra.mxu0 0
      %5730 = vmatprep.subr.bf16.mxu0 0
      %5731 = vmatpush1.bf16.msra.mxu0 0
      %5732 = vmatprep.subr.bf16.mxu0 0
      %5733 = vmatpush1.bf16.msra.mxu0 0
      %5734 = vmatprep.subr.bf16.mxu0 0
      %5735 = vmatpush1.bf16.msra.mxu0 0
      %5736 = vmatprep.subr.bf16.mxu0 0
      %5737 = vmatpush1.bf16.msra.mxu0 0
      %5738 = vmatprep.mubr.bf16.mxu0 0
      %5739 = vmatmul.mubr.bf16.gmra.mrb[0].mxu0 %v5560
      %v5740 = vpop.f32.mrb[0].mxu0
      %v5741 = vadd.f32 %v5554, %v5740
      %v5742 = vpop.f32.mrb[0].mxu0
      %v5743 = vpop.f32.mrb[0].mxu0
      %v5744 = vpop.f32.mrb[0].mxu0
      %5745 = vdwg.mxu0
      %v5746 = vsel %vm3662, %v5333, 0
      %v5747 = vsel %vm3663, %v5321, 0
      %v5748 = vsel %vm3664, %v5322, 0
      %v5749 = vsel %vm3665, %v5323, 0
      %v5750 = vsel %vm3666, %v5324, 0
      %v5751 = vsel %vm3667, %v5325, 0
      %v5752 = vsel %vm3668, %v5336, 0
      %s5753 = scalar_lea.vmem %s9, 2
      %v5754 = vld [vmem:[%s5753] sm:$0x1]
      %5762 = vrot.lane.b32.xlu0 %v5746, 126
      %v5763 = vpop.permute.xlu0 %5762
      %5764 = vrot.lane.b32.xlu0 %v5747, 126
      %v5765 = vpop.permute.xlu0 %5764
      %5766 = vrot.lane.b32.xlu0 %v5748, 126
      %v5767 = vpop.permute.xlu0 %5766
      %5768 = vrot.lane.b32.xlu0 %v5749, 126
      %v5769 = vpop.permute.xlu0 %5768
      %5770 = vrot.lane.b32.xlu0 %v5750, 126
      %v5771 = vpop.permute.xlu0 %5770
      %5772 = vrot.lane.b32.xlu0 %v5751, 126
      %v5773 = vpop.permute.xlu0 %5772
      %5774 = vrot.lane.b32.xlu0 %v5752, 126
      %v5775 = vpop.permute.xlu0 %5774
      %v5776 = vsel %vm1728, %v5763, %v5765
      %v5777 = vsel %vm1728, %v5765, %v5767
      %v5778 = vsel %vm1728, %v5767, %v5769
      %v5779 = vsel %vm1728, %v5769, %v5771
      %v5780 = vsel %vm1728, %v5771, %v5773
      %v5781 = vsel %vm1728, %v5773, %v5775
      %v5783 = vsel %vm5370, %v5754, 0
      %v5786 = vsel %vm5374, %v5776, 0
      %v5789 = vsel %vm5374, %v5777, 0
      %v5792 = vsel %vm5374, %v5778, 0
      %v5795 = vsel %vm5374, %v5779, 0
      %v5798 = vsel %vm5374, %v5780, 0
      %v5801 = vsel %vm5374, %v5781, 0
      %v5804 = vsel %vm5374, %v5775, 0
      %5806 = vmatprep.subr.bf16.mxu0 %v5789
      %5807 = vmatpush1.bf16.msra.mxu0 %v5786
      %5808 = vmatprep.subr.bf16.mxu0 0
      %5809 = vmatpush1.bf16.msra.mxu0 0
      %5810 = vmatprep.subr.bf16.mxu0 0
      %5811 = vmatpush1.bf16.msra.mxu0 0
      %5812 = vmatprep.subr.bf16.mxu0 0
      %5813 = vmatpush1.bf16.msra.mxu0 0
      %5814 = vmatprep.subr.bf16.mxu0 0
      %5815 = vmatpush1.bf16.msra.mxu0 0
      %5816 = vmatprep.subr.bf16.mxu0 0
      %5817 = vmatpush1.bf16.msra.mxu0 0
      %5818 = vmatprep.subr.bf16.mxu0 0
      %5819 = vmatpush1.bf16.msra.mxu0 0
      %5820 = vmatprep.subr.bf16.mxu0 0
      %5821 = vmatpush1.bf16.msra.mxu0 0
      %5822 = vmatprep.subr.bf16.mxu0 0
      %5823 = vmatpush1.bf16.msra.mxu0 0
      %5824 = vmatprep.subr.bf16.mxu0 0
      %5825 = vmatpush1.bf16.msra.mxu0 0
      %5826 = vmatprep.subr.bf16.mxu0 0
      %5827 = vmatpush1.bf16.msra.mxu0 0
      %5828 = vmatprep.subr.bf16.mxu0 0
      %5829 = vmatpush1.bf16.msra.mxu0 0
      %5830 = vmatprep.subr.bf16.mxu0 0
      %5831 = vmatpush1.bf16.msra.mxu0 0
      %5832 = vmatprep.subr.bf16.mxu0 0
      %5833 = vmatpush1.bf16.msra.mxu0 0
      %5834 = vmatprep.subr.bf16.mxu0 0
      %5835 = vmatpush1.bf16.msra.mxu0 0
      %5836 = vmatprep.subr.bf16.mxu0 0
      %5837 = vmatpush1.bf16.msra.mxu0 0
      %5838 = vmatprep.mubr.bf16.mxu0 0
      %5839 = vmatmul.mubr.bf16.gmra.mrb[0].mxu0 %v5783
      %v5840 = vpop.f32.mrb[0].mxu0
      %v5841 = vadd.f32 0.0, %v5840
      %v5842 = vpop.f32.mrb[0].mxu0
      %v5843 = vadd.f32 0.0, %v5842
      %v5844 = vpop.f32.mrb[0].mxu0
      %v5845 = vpop.f32.mrb[0].mxu0
      %5846 = vdwg.mxu0
      %5847 = vmatprep.subr.bf16.mxu0 %v5795
      %5848 = vmatpush1.bf16.msra.mxu0 %v5792
      %5849 = vmatprep.subr.bf16.mxu0 0
      %5850 = vmatpush1.bf16.msra.mxu0 0
      %5851 = vmatprep.subr.bf16.mxu0 0
      %5852 = vmatpush1.bf16.msra.mxu0 0
      %5853 = vmatprep.subr.bf16.mxu0 0
      %5854 = vmatpush1.bf16.msra.mxu0 0
      %5855 = vmatprep.subr.bf16.mxu0 0
      %5856 = vmatpush1.bf16.msra.mxu0 0
      %5857 = vmatprep.subr.bf16.mxu0 0
      %5858 = vmatpush1.bf16.msra.mxu0 0
      %5859 = vmatprep.subr.bf16.mxu0 0
      %5860 = vmatpush1.bf16.msra.mxu0 0
      %5861 = vmatprep.subr.bf16.mxu0 0
      %5862 = vmatpush1.bf16.msra.mxu0 0
      %5863 = vmatprep.subr.bf16.mxu0 0
      %5864 = vmatpush1.bf16.msra.mxu0 0
      %5865 = vmatprep.subr.bf16.mxu0 0
      %5866 = vmatpush1.bf16.msra.mxu0 0
      %5867 = vmatprep.subr.bf16.mxu0 0
      %5868 = vmatpush1.bf16.msra.mxu0 0
      %5869 = vmatprep.subr.bf16.mxu0 0
      %5870 = vmatpush1.bf16.msra.mxu0 0
      %5871 = vmatprep.subr.bf16.mxu0 0
      %5872 = vmatpush1.bf16.msra.mxu0 0
      %5873 = vmatprep.subr.bf16.mxu0 0
      %5874 = vmatpush1.bf16.msra.mxu0 0
      %5875 = vmatprep.subr.bf16.mxu0 0
      %5876 = vmatpush1.bf16.msra.mxu0 0
      %5877 = vmatprep.subr.bf16.mxu0 0
      %5878 = vmatpush1.bf16.msra.mxu0 0
      %5879 = vmatprep.mubr.bf16.mxu0 0
      %5880 = vmatmul.mubr.bf16.gmra.mrb[0].mxu0 %v5783
      %v5881 = vpop.f32.mrb[0].mxu0
      %v5882 = vadd.f32 0.0, %v5881
      %v5883 = vpop.f32.mrb[0].mxu0
      %v5884 = vadd.f32 0.0, %v5883
      %v5885 = vpop.f32.mrb[0].mxu0
      %v5886 = vpop.f32.mrb[0].mxu0
      %5887 = vdwg.mxu0
      %5888 = vmatprep.subr.bf16.mxu0 %v5801
      %5889 = vmatpush1.bf16.msra.mxu0 %v5798
      %5890 = vmatprep.subr.bf16.mxu0 0
      %5891 = vmatpush1.bf16.msra.mxu0 0
      %5892 = vmatprep.subr.bf16.mxu0 0
      %5893 = vmatpush1.bf16.msra.mxu0 0
      %5894 = vmatprep.subr.bf16.mxu0 0
      %5895 = vmatpush1.bf16.msra.mxu0 0
      %5896 = vmatprep.subr.bf16.mxu0 0
      %5897 = vmatpush1.bf16.msra.mxu0 0
      %5898 = vmatprep.subr.bf16.mxu0 0
      %5899 = vmatpush1.bf16.msra.mxu0 0
      %5900 = vmatprep.subr.bf16.mxu0 0
      %5901 = vmatpush1.bf16.msra.mxu0 0
      %5902 = vmatprep.subr.bf16.mxu0 0
      %5903 = vmatpush1.bf16.msra.mxu0 0
      %5904 = vmatprep.subr.bf16.mxu0 0
      %5905 = vmatpush1.bf16.msra.mxu0 0
      %5906 = vmatprep.subr.bf16.mxu0 0
      %5907 = vmatpush1.bf16.msra.mxu0 0
      %5908 = vmatprep.subr.bf16.mxu0 0
      %5909 = vmatpush1.bf16.msra.mxu0 0
      %5910 = vmatprep.subr.bf16.mxu0 0
      %5911 = vmatpush1.bf16.msra.mxu0 0
      %5912 = vmatprep.subr.bf16.mxu0 0
      %5913 = vmatpush1.bf16.msra.mxu0 0
      %5914 = vmatprep.subr.bf16.mxu0 0
      %5915 = vmatpush1.bf16.msra.mxu0 0
      %5916 = vmatprep.subr.bf16.mxu0 0
      %5917 = vmatpush1.bf16.msra.mxu0 0
      %5918 = vmatprep.subr.bf16.mxu0 0
      %5919 = vmatpush1.bf16.msra.mxu0 0
      %5920 = vmatprep.mubr.bf16.mxu0 0
      %5921 = vmatmul.mubr.bf16.gmra.mrb[0].mxu0 %v5783
      %v5922 = vpop.f32.mrb[0].mxu0
      %v5923 = vadd.f32 0.0, %v5922
      %v5924 = vpop.f32.mrb[0].mxu0
      %v5925 = vadd.f32 0.0, %v5924
      %v5926 = vpop.f32.mrb[0].mxu0
      %v5927 = vpop.f32.mrb[0].mxu0
      %5928 = vdwg.mxu0
      %5929 = vmatprep.subr.bf16.mxu0 0
      %5930 = vmatpush1.bf16.msra.mxu0 %v5804
      %5931 = vmatprep.subr.bf16.mxu0 0
      %5932 = vmatpush1.bf16.msra.mxu0 0
      %5933 = vmatprep.subr.bf16.mxu0 0
      %5934 = vmatpush1.bf16.msra.mxu0 0
      %5935 = vmatprep.subr.bf16.mxu0 0
      %5936 = vmatpush1.bf16.msra.mxu0 0
      %5937 = vmatprep.subr.bf16.mxu0 0
      %5938 = vmatpush1.bf16.msra.mxu0 0
      %5939 = vmatprep.subr.bf16.mxu0 0
      %5940 = vmatpush1.bf16.msra.mxu0 0
      %5941 = vmatprep.subr.bf16.mxu0 0
      %5942 = vmatpush1.bf16.msra.mxu0 0
      %5943 = vmatprep.subr.bf16.mxu0 0
      %5944 = vmatpush1.bf16.msra.mxu0 0
      %5945 = vmatprep.subr.bf16.mxu0 0
      %5946 = vmatpush1.bf16.msra.mxu0 0
      %5947 = vmatprep.subr.bf16.mxu0 0
      %5948 = vmatpush1.bf16.msra.mxu0 0
      %5949 = vmatprep.subr.bf16.mxu0 0
      %5950 = vmatpush1.bf16.msra.mxu0 0
      %5951 = vmatprep.subr.bf16.mxu0 0
      %5952 = vmatpush1.bf16.msra.mxu0 0
      %5953 = vmatprep.subr.bf16.mxu0 0
      %5954 = vmatpush1.bf16.msra.mxu0 0
      %5955 = vmatprep.subr.bf16.mxu0 0
      %5956 = vmatpush1.bf16.msra.mxu0 0
      %5957 = vmatprep.subr.bf16.mxu0 0
      %5958 = vmatpush1.bf16.msra.mxu0 0
      %5959 = vmatprep.subr.bf16.mxu0 0
      %5960 = vmatpush1.bf16.msra.mxu0 0
      %5961 = vmatprep.mubr.bf16.mxu0 0
      %5962 = vmatmul.mubr.bf16.gmra.mrb[0].mxu0 %v5783
      %v5963 = vpop.f32.mrb[0].mxu0
      %v5964 = vadd.f32 0.0, %v5963
      %v5965 = vpop.f32.mrb[0].mxu0
      %v5966 = vpop.f32.mrb[0].mxu0
      %v5967 = vpop.f32.mrb[0].mxu0
      %5968 = vdwg.mxu0
      %v5969 = vadd.f32 %v5618, %v5841
      %v5970 = vadd.f32 %v5620, %v5843
      %v5971 = vadd.f32 %v5659, %v5882
      %v5972 = vadd.f32 %v5661, %v5884
      %v5973 = vadd.f32 %v5700, %v5923
      %v5974 = vadd.f32 %v5702, %v5925
      %v5975 = vadd.f32 %v5741, %v5964
      %v5976 = vsel %vm3905, %v5333, 0
      %v5977 = vsel %vm3906, %v5321, 0
      %v5978 = vsel %vm3907, %v5322, 0
      %v5979 = vsel %vm3908, %v5323, 0
      %v5980 = vsel %vm3909, %v5324, 0
      %v5981 = vsel %vm3910, %v5325, 0
      %v5982 = vsel %vm3911, %v5336, 0
      %s5983 = scalar_lea.vmem %s9, 3
      %v5984 = vld [vmem:[%s5983] sm:$0x1]
      %5992 = vrot.lane.b32.xlu0 %v5976, 100
      %v5993 = vpop.permute.xlu0 %5992
      %5994 = vrot.lane.b32.xlu0 %v5977, 100
      %v5995 = vpop.permute.xlu0 %5994
      %5996 = vrot.lane.b32.xlu0 %v5978, 100
      %v5997 = vpop.permute.xlu0 %5996
      %5998 = vrot.lane.b32.xlu0 %v5979, 100
      %v5999 = vpop.permute.xlu0 %5998
      %6000 = vrot.lane.b32.xlu0 %v5980, 100
      %v6001 = vpop.permute.xlu0 %6000
      %6002 = vrot.lane.b32.xlu0 %v5981, 100
      %v6003 = vpop.permute.xlu0 %6002
      %6004 = vrot.lane.b32.xlu0 %v5982, 100
      %v6005 = vpop.permute.xlu0 %6004
      %v6006 = vsel %vm2068, %v5993, %v5995
      %v6007 = vsel %vm2068, %v5995, %v5997
      %v6008 = vsel %vm2068, %v5997, %v5999
      %v6009 = vsel %vm2068, %v5999, %v6001
      %v6010 = vsel %vm2068, %v6001, %v6003
      %v6011 = vsel %vm2068, %v6003, %v6005
      %v6013 = vsel %vm5370, %v5984, 0
      %v6016 = vsel %vm5374, %v6006, 0
      %v6019 = vsel %vm5374, %v6007, 0
      %v6022 = vsel %vm5374, %v6008, 0
      %v6025 = vsel %vm5374, %v6009, 0
      %v6028 = vsel %vm5374, %v6010, 0
      %v6031 = vsel %vm5374, %v6011, 0
      %v6034 = vsel %vm5374, %v6005, 0
      %6036 = vmatprep.subr.bf16.mxu0 %v6019
      %6037 = vmatpush1.bf16.msra.mxu0 %v6016
      %6038 = vmatprep.subr.bf16.mxu0 0
      %6039 = vmatpush1.bf16.msra.mxu0 0
      %6040 = vmatprep.subr.bf16.mxu0 0
      %6041 = vmatpush1.bf16.msra.mxu0 0
      %6042 = vmatprep.subr.bf16.mxu0 0
      %6043 = vmatpush1.bf16.msra.mxu0 0
      %6044 = vmatprep.subr.bf16.mxu0 0
      %6045 = vmatpush1.bf16.msra.mxu0 0
      %6046 = vmatprep.subr.bf16.mxu0 0
      %6047 = vmatpush1.bf16.msra.mxu0 0
      %6048 = vmatprep.subr.bf16.mxu0 0
      %6049 = vmatpush1.bf16.msra.mxu0 0
      %6050 = vmatprep.subr.bf16.mxu0 0
      %6051 = vmatpush1.bf16.msra.mxu0 0
      %6052 = vmatprep.subr.bf16.mxu0 0
      %6053 = vmatpush1.bf16.msra.mxu0 0
      %6054 = vmatprep.subr.bf16.mxu0 0
      %6055 = vmatpush1.bf16.msra.mxu0 0
      %6056 = vmatprep.subr.bf16.mxu0 0
      %6057 = vmatpush1.bf16.msra.mxu0 0
      %6058 = vmatprep.subr.bf16.mxu0 0
      %6059 = vmatpush1.bf16.msra.mxu0 0
      %6060 = vmatprep.subr.bf16.mxu0 0
      %6061 = vmatpush1.bf16.msra.mxu0 0
      %6062 = vmatprep.subr.bf16.mxu0 0
      %6063 = vmatpush1.bf16.msra.mxu0 0
      %6064 = vmatprep.subr.bf16.mxu0 0
      %6065 = vmatpush1.bf16.msra.mxu0 0
      %6066 = vmatprep.subr.bf16.mxu0 0
      %6067 = vmatpush1.bf16.msra.mxu0 0
      %6068 = vmatprep.mubr.bf16.mxu0 0
      %6069 = vmatmul.mubr.bf16.gmra.mrb[0].mxu0 %v6013
      %v6070 = vpop.f32.mrb[0].mxu0
      %v6071 = vadd.f32 0.0, %v6070
      %v6072 = vpop.f32.mrb[0].mxu0
      %v6073 = vadd.f32 0.0, %v6072
      %v6074 = vpop.f32.mrb[0].mxu0
      %v6075 = vpop.f32.mrb[0].mxu0
      %6076 = vdwg.mxu0
      %6077 = vmatprep.subr.bf16.mxu0 %v6025
      %6078 = vmatpush1.bf16.msra.mxu0 %v6022
      %6079 = vmatprep.subr.bf16.mxu0 0
      %6080 = vmatpush1.bf16.msra.mxu0 0
      %6081 = vmatprep.subr.bf16.mxu0 0
      %6082 = vmatpush1.bf16.msra.mxu0 0
      %6083 = vmatprep.subr.bf16.mxu0 0
      %6084 = vmatpush1.bf16.msra.mxu0 0
      %6085 = vmatprep.subr.bf16.mxu0 0
      %6086 = vmatpush1.bf16.msra.mxu0 0
      %6087 = vmatprep.subr.bf16.mxu0 0
      %6088 = vmatpush1.bf16.msra.mxu0 0
      %6089 = vmatprep.subr.bf16.mxu0 0
      %6090 = vmatpush1.bf16.msra.mxu0 0
      %6091 = vmatprep.subr.bf16.mxu0 0
      %6092 = vmatpush1.bf16.msra.mxu0 0
      %6093 = vmatprep.subr.bf16.mxu0 0
      %6094 = vmatpush1.bf16.msra.mxu0 0
      %6095 = vmatprep.subr.bf16.mxu0 0
      %6096 = vmatpush1.bf16.msra.mxu0 0
      %6097 = vmatprep.subr.bf16.mxu0 0
      %6098 = vmatpush1.bf16.msra.mxu0 0
      %6099 = vmatprep.subr.bf16.mxu0 0
      %6100 = vmatpush1.bf16.msra.mxu0 0
      %6101 = vmatprep.subr.bf16.mxu0 0
      %6102 = vmatpush1.bf16.msra.mxu0 0
      %6103 = vmatprep.subr.bf16.mxu0 0
      %6104 = vmatpush1.bf16.msra.mxu0 0
      %6105 = vmatprep.subr.bf16.mxu0 0
      %6106 = vmatpush1.bf16.msra.mxu0 0
      %6107 = vmatprep.subr.bf16.mxu0 0
      %6108 = vmatpush1.bf16.msra.mxu0 0
      %6109 = vmatprep.mubr.bf16.mxu0 0
      %6110 = vmatmul.mubr.bf16.gmra.mrb[0].mxu0 %v6013
      %v6111 = vpop.f32.mrb[0].mxu0
      %v6112 = vadd.f32 0.0, %v6111
      %v6113 = vpop.f32.mrb[0].mxu0
      %v6114 = vadd.f32 0.0, %v6113
      %v6115 = vpop.f32.mrb[0].mxu0
      %v6116 = vpop.f32.mrb[0].mxu0
      %6117 = vdwg.mxu0
      %6118 = vmatprep.subr.bf16.mxu0 %v6031
      %6119 = vmatpush1.bf16.msra.mxu0 %v6028
      %6120 = vmatprep.subr.bf16.mxu0 0
      %6121 = vmatpush1.bf16.msra.mxu0 0
      %6122 = vmatprep.subr.bf16.mxu0 0
      %6123 = vmatpush1.bf16.msra.mxu0 0
      %6124 = vmatprep.subr.bf16.mxu0 0
      %6125 = vmatpush1.bf16.msra.mxu0 0
      %6126 = vmatprep.subr.bf16.mxu0 0
      %6127 = vmatpush1.bf16.msra.mxu0 0
      %6128 = vmatprep.subr.bf16.mxu0 0
      %6129 = vmatpush1.bf16.msra.mxu0 0
      %6130 = vmatprep.subr.bf16.mxu0 0
      %6131 = vmatpush1.bf16.msra.mxu0 0
      %6132 = vmatprep.subr.bf16.mxu0 0
      %6133 = vmatpush1.bf16.msra.mxu0 0
      %6134 = vmatprep.subr.bf16.mxu0 0
      %6135 = vmatpush1.bf16.msra.mxu0 0
      %6136 = vmatprep.subr.bf16.mxu0 0
      %6137 = vmatpush1.bf16.msra.mxu0 0
      %6138 = vmatprep.subr.bf16.mxu0 0
      %6139 = vmatpush1.bf16.msra.mxu0 0
      %6140 = vmatprep.subr.bf16.mxu0 0
      %6141 = vmatpush1.bf16.msra.mxu0 0
      %6142 = vmatprep.subr.bf16.mxu0 0
      %6143 = vmatpush1.bf16.msra.mxu0 0
      %6144 = vmatprep.subr.bf16.mxu0 0
      %6145 = vmatpush1.bf16.msra.mxu0 0
      %6146 = vmatprep.subr.bf16.mxu0 0
      %6147 = vmatpush1.bf16.msra.mxu0 0
      %6148 = vmatprep.subr.bf16.mxu0 0
      %6149 = vmatpush1.bf16.msra.mxu0 0
      %6150 = vmatprep.mubr.bf16.mxu0 0
      %6151 = vmatmul.mubr.bf16.gmra.mrb[0].mxu0 %v6013
      %v6152 = vpop.f32.mrb[0].mxu0
      %v6153 = vadd.f32 0.0, %v6152
      %v6154 = vpop.f32.mrb[0].mxu0
      %v6155 = vadd.f32 0.0, %v6154
      %v6156 = vpop.f32.mrb[0].mxu0
      %v6157 = vpop.f32.mrb[0].mxu0
      %6158 = vdwg.mxu0
      %6159 = vmatprep.subr.bf16.mxu0 0
      %6160 = vmatpush1.bf16.msra.mxu0 %v6034
      %6161 = vmatprep.subr.bf16.mxu0 0
      %6162 = vmatpush1.bf16.msra.mxu0 0
      %6163 = vmatprep.subr.bf16.mxu0 0
      %6164 = vmatpush1.bf16.msra.mxu0 0
      %6165 = vmatprep.subr.bf16.mxu0 0
      %6166 = vmatpush1.bf16.msra.mxu0 0
      %6167 = vmatprep.subr.bf16.mxu0 0
      %6168 = vmatpush1.bf16.msra.mxu0 0
      %6169 = vmatprep.subr.bf16.mxu0 0
      %6170 = vmatpush1.bf16.msra.mxu0 0
      %6171 = vmatprep.subr.bf16.mxu0 0
      %6172 = vmatpush1.bf16.msra.mxu0 0
      %6173 = vmatprep.subr.bf16.mxu0 0
      %6174 = vmatpush1.bf16.msra.mxu0 0
      %6175 = vmatprep.subr.bf16.mxu0 0
      %6176 = vmatpush1.bf16.msra.mxu0 0
      %6177 = vmatprep.subr.bf16.mxu0 0
      %6178 = vmatpush1.bf16.msra.mxu0 0
      %6179 = vmatprep.subr.bf16.mxu0 0
      %6180 = vmatpush1.bf16.msra.mxu0 0
      %6181 = vmatprep.subr.bf16.mxu0 0
      %6182 = vmatpush1.bf16.msra.mxu0 0
      %6183 = vmatprep.subr.bf16.mxu0 0
      %6184 = vmatpush1.bf16.msra.mxu0 0
      %6185 = vmatprep.subr.bf16.mxu0 0
      %6186 = vmatpush1.bf16.msra.mxu0 0
      %6187 = vmatprep.subr.bf16.mxu0 0
      %6188 = vmatpush1.bf16.msra.mxu0 0
      %6189 = vmatprep.subr.bf16.mxu0 0
      %6190 = vmatpush1.bf16.msra.mxu0 0
      %6191 = vmatprep.mubr.bf16.mxu0 0
      %6192 = vmatmul.mubr.bf16.gmra.mrb[0].mxu0 %v6013
      %v6193 = vpop.f32.mrb[0].mxu0
      %v6194 = vadd.f32 0.0, %v6193
      %v6195 = vpop.f32.mrb[0].mxu0
      %v6196 = vpop.f32.mrb[0].mxu0
      %v6197 = vpop.f32.mrb[0].mxu0
      %6198 = vdwg.mxu0
      %v6199 = vadd.f32 %v5969, %v6071
      %v6200 = vadd.f32 %v5970, %v6073
      %v6201 = vadd.f32 %v5971, %v6112
      %v6202 = vadd.f32 %v5972, %v6114
      %v6203 = vadd.f32 %v5973, %v6153
      %v6204 = vadd.f32 %v5974, %v6155
      %v6205 = vadd.f32 %v5975, %v6194
      %s6206 = scalar_lea.vmem %s9, 4
      %v6207 = vld [vmem:[%s6206] sm:$0x1]
      %6208 = vrot.lane.b32.xlu0 %v5333, 99
      %v6209 = vpop.permute.xlu0 %6208
      %6210 = vrot.lane.b32.xlu0 %v5321, 99
      %v6211 = vpop.permute.xlu0 %6210
      %6212 = vrot.lane.b32.xlu0 %v5322, 99
      %v6213 = vpop.permute.xlu0 %6212
      %6214 = vrot.lane.b32.xlu0 %v5323, 99
      %v6215 = vpop.permute.xlu0 %6214
      %6216 = vrot.lane.b32.xlu0 %v5324, 99
      %v6217 = vpop.permute.xlu0 %6216
      %6218 = vrot.lane.b32.xlu0 %v5325, 99
      %v6219 = vpop.permute.xlu0 %6218
      %6220 = vrot.lane.b32.xlu0 %v5336, 99
      %v6221 = vpop.permute.xlu0 %6220
      %v6222 = vsel %vm2141, %v6209, %v6211
      %v6223 = vsel %vm2141, %v6211, %v6213
      %v6224 = vsel %vm2141, %v6213, %v6215
      %v6225 = vsel %vm2141, %v6215, %v6217
      %v6226 = vsel %vm2141, %v6217, %v6219
      %v6227 = vsel %vm2141, %v6219, %v6221
      %v6229 = vsel %vm5370, %v6207, 0
      %v6232 = vsel %vm5374, %v6222, 0
      %v6235 = vsel %vm5374, %v6223, 0
      %v6238 = vsel %vm5374, %v6224, 0
      %v6241 = vsel %vm5374, %v6225, 0
      %v6244 = vsel %vm5374, %v6226, 0
      %v6247 = vsel %vm5374, %v6227, 0
      %v6250 = vsel %vm5374, %v6221, 0
      %6252 = vmatprep.subr.bf16.mxu0 %v6235
      %6253 = vmatpush1.bf16.msra.mxu0 %v6232
      %6254 = vmatprep.subr.bf16.mxu0 0
      %6255 = vmatpush1.bf16.msra.mxu0 0
      %6256 = vmatprep.subr.bf16.mxu0 0
      %6257 = vmatpush1.bf16.msra.mxu0 0
      %6258 = vmatprep.subr.bf16.mxu0 0
      %6259 = vmatpush1.bf16.msra.mxu0 0
      %6260 = vmatprep.subr.bf16.mxu0 0
      %6261 = vmatpush1.bf16.msra.mxu0 0
      %6262 = vmatprep.subr.bf16.mxu0 0
      %6263 = vmatpush1.bf16.msra.mxu0 0
      %6264 = vmatprep.subr.bf16.mxu0 0
      %6265 = vmatpush1.bf16.msra.mxu0 0
      %6266 = vmatprep.subr.bf16.mxu0 0
      %6267 = vmatpush1.bf16.msra.mxu0 0
      %6268 = vmatprep.subr.bf16.mxu0 0
      %6269 = vmatpush1.bf16.msra.mxu0 0
      %6270 = vmatprep.subr.bf16.mxu0 0
      %6271 = vmatpush1.bf16.msra.mxu0 0
      %6272 = vmatprep.subr.bf16.mxu0 0
      %6273 = vmatpush1.bf16.msra.mxu0 0
      %6274 = vmatprep.subr.bf16.mxu0 0
      %6275 = vmatpush1.bf16.msra.mxu0 0
      %6276 = vmatprep.subr.bf16.mxu0 0
      %6277 = vmatpush1.bf16.msra.mxu0 0
      %6278 = vmatprep.subr.bf16.mxu0 0
      %6279 = vmatpush1.bf16.msra.mxu0 0
      %6280 = vmatprep.subr.bf16.mxu0 0
      %6281 = vmatpush1.bf16.msra.mxu0 0
      %6282 = vmatprep.subr.bf16.mxu0 0
      %6283 = vmatpush1.bf16.msra.mxu0 0
      %6284 = vmatprep.mubr.bf16.mxu0 0
      %6285 = vmatmul.mubr.bf16.gmra.mrb[0].mxu0 %v6229
      %v6286 = vpop.f32.mrb[0].mxu0
      %v6287 = vadd.f32 0.0, %v6286
      %v6288 = vpop.f32.mrb[0].mxu0
      %v6289 = vadd.f32 0.0, %v6288
      %v6290 = vpop.f32.mrb[0].mxu0
      %v6291 = vpop.f32.mrb[0].mxu0
      %6292 = vdwg.mxu0
      %6293 = vmatprep.subr.bf16.mxu0 %v6241
      %6294 = vmatpush1.bf16.msra.mxu0 %v6238
      %6295 = vmatprep.subr.bf16.mxu0 0
      %6296 = vmatpush1.bf16.msra.mxu0 0
      %6297 = vmatprep.subr.bf16.mxu0 0
      %6298 = vmatpush1.bf16.msra.mxu0 0
      %6299 = vmatprep.subr.bf16.mxu0 0
      %6300 = vmatpush1.bf16.msra.mxu0 0
      %6301 = vmatprep.subr.bf16.mxu0 0
      %6302 = vmatpush1.bf16.msra.mxu0 0
      %6303 = vmatprep.subr.bf16.mxu0 0
      %6304 = vmatpush1.bf16.msra.mxu0 0
      %6305 = vmatprep.subr.bf16.mxu0 0
      %6306 = vmatpush1.bf16.msra.mxu0 0
      %6307 = vmatprep.subr.bf16.mxu0 0
      %6308 = vmatpush1.bf16.msra.mxu0 0
      %6309 = vmatprep.subr.bf16.mxu0 0
      %6310 = vmatpush1.bf16.msra.mxu0 0
      %6311 = vmatprep.subr.bf16.mxu0 0
      %6312 = vmatpush1.bf16.msra.mxu0 0
      %6313 = vmatprep.subr.bf16.mxu0 0
      %6314 = vmatpush1.bf16.msra.mxu0 0
      %6315 = vmatprep.subr.bf16.mxu0 0
      %6316 = vmatpush1.bf16.msra.mxu0 0
      %6317 = vmatprep.subr.bf16.mxu0 0
      %6318 = vmatpush1.bf16.msra.mxu0 0
      %6319 = vmatprep.subr.bf16.mxu0 0
      %6320 = vmatpush1.bf16.msra.mxu0 0
      %6321 = vmatprep.subr.bf16.mxu0 0
      %6322 = vmatpush1.bf16.msra.mxu0 0
      %6323 = vmatprep.subr.bf16.mxu0 0
      %6324 = vmatpush1.bf16.msra.mxu0 0
      %6325 = vmatprep.mubr.bf16.mxu0 0
      %6326 = vmatmul.mubr.bf16.gmra.mrb[0].mxu0 %v6229
      %v6327 = vpop.f32.mrb[0].mxu0
      %v6328 = vadd.f32 0.0, %v6327
      %v6329 = vpop.f32.mrb[0].mxu0
      %v6330 = vadd.f32 0.0, %v6329
      %v6331 = vpop.f32.mrb[0].mxu0
      %v6332 = vpop.f32.mrb[0].mxu0
      %6333 = vdwg.mxu0
      %6334 = vmatprep.subr.bf16.mxu0 %v6247
      %6335 = vmatpush1.bf16.msra.mxu0 %v6244
      %6336 = vmatprep.subr.bf16.mxu0 0
      %6337 = vmatpush1.bf16.msra.mxu0 0
      %6338 = vmatprep.subr.bf16.mxu0 0
      %6339 = vmatpush1.bf16.msra.mxu0 0
      %6340 = vmatprep.subr.bf16.mxu0 0
      %6341 = vmatpush1.bf16.msra.mxu0 0
      %6342 = vmatprep.subr.bf16.mxu0 0
      %6343 = vmatpush1.bf16.msra.mxu0 0
      %6344 = vmatprep.subr.bf16.mxu0 0
      %6345 = vmatpush1.bf16.msra.mxu0 0
      %6346 = vmatprep.subr.bf16.mxu0 0
      %6347 = vmatpush1.bf16.msra.mxu0 0
      %6348 = vmatprep.subr.bf16.mxu0 0
      %6349 = vmatpush1.bf16.msra.mxu0 0
      %6350 = vmatprep.subr.bf16.mxu0 0
      %6351 = vmatpush1.bf16.msra.mxu0 0
      %6352 = vmatprep.subr.bf16.mxu0 0
      %6353 = vmatpush1.bf16.msra.mxu0 0
      %6354 = vmatprep.subr.bf16.mxu0 0
      %6355 = vmatpush1.bf16.msra.mxu0 0
      %6356 = vmatprep.subr.bf16.mxu0 0
      %6357 = vmatpush1.bf16.msra.mxu0 0
      %6358 = vmatprep.subr.bf16.mxu0 0
      %6359 = vmatpush1.bf16.msra.mxu0 0
      %6360 = vmatprep.subr.bf16.mxu0 0
      %6361 = vmatpush1.bf16.msra.mxu0 0
      %6362 = vmatprep.subr.bf16.mxu0 0
      %6363 = vmatpush1.bf16.msra.mxu0 0
      %6364 = vmatprep.subr.bf16.mxu0 0
      %6365 = vmatpush1.bf16.msra.mxu0 0
      %6366 = vmatprep.mubr.bf16.mxu0 0
      %6367 = vmatmul.mubr.bf16.gmra.mrb[0].mxu0 %v6229
      %v6368 = vpop.f32.mrb[0].mxu0
      %v6369 = vadd.f32 0.0, %v6368
      %v6370 = vpop.f32.mrb[0].mxu0
      %v6371 = vadd.f32 0.0, %v6370
      %v6372 = vpop.f32.mrb[0].mxu0
      %v6373 = vpop.f32.mrb[0].mxu0
      %6374 = vdwg.mxu0
      %6375 = vmatprep.subr.bf16.mxu0 0
      %6376 = vmatpush1.bf16.msra.mxu0 %v6250
      %6377 = vmatprep.subr.bf16.mxu0 0
      %6378 = vmatpush1.bf16.msra.mxu0 0
      %6379 = vmatprep.subr.bf16.mxu0 0
      %6380 = vmatpush1.bf16.msra.mxu0 0
      %6381 = vmatprep.subr.bf16.mxu0 0
      %6382 = vmatpush1.bf16.msra.mxu0 0
      %6383 = vmatprep.subr.bf16.mxu0 0
      %6384 = vmatpush1.bf16.msra.mxu0 0
      %6385 = vmatprep.subr.bf16.mxu0 0
      %6386 = vmatpush1.bf16.msra.mxu0 0
      %6387 = vmatprep.subr.bf16.mxu0 0
      %6388 = vmatpush1.bf16.msra.mxu0 0
      %6389 = vmatprep.subr.bf16.mxu0 0
      %6390 = vmatpush1.bf16.msra.mxu0 0
      %6391 = vmatprep.subr.bf16.mxu0 0
      %6392 = vmatpush1.bf16.msra.mxu0 0
      %6393 = vmatprep.subr.bf16.mxu0 0
      %6394 = vmatpush1.bf16.msra.mxu0 0
      %6395 = vmatprep.subr.bf16.mxu0 0
      %6396 = vmatpush1.bf16.msra.mxu0 0
      %6397 = vmatprep.subr.bf16.mxu0 0
      %6398 = vmatpush1.bf16.msra.mxu0 0
      %6399 = vmatprep.subr.bf16.mxu0 0
      %6400 = vmatpush1.bf16.msra.mxu0 0
      %6401 = vmatprep.subr.bf16.mxu0 0
      %6402 = vmatpush1.bf16.msra.mxu0 0
      %6403 = vmatprep.subr.bf16.mxu0 0
      %6404 = vmatpush1.bf16.msra.mxu0 0
      %6405 = vmatprep.subr.bf16.mxu0 0
      %6406 = vmatpush1.bf16.msra.mxu0 0
      %6407 = vmatprep.mubr.bf16.mxu0 0
      %6408 = vmatmul.mubr.bf16.gmra.mrb[0].mxu0 %v6229
      %v6409 = vpop.f32.mrb[0].mxu0
      %v6410 = vadd.f32 0.0, %v6409
      %v6411 = vpop.f32.mrb[0].mxu0
      %v6412 = vpop.f32.mrb[0].mxu0
      %v6413 = vpop.f32.mrb[0].mxu0
      %6414 = vdwg.mxu0
      %v6415 = vadd.f32 %v6199, %v6287
      %v6416 = vadd.f32 %v6200, %v6289
      %v6417 = vadd.f32 %v6201, %v6328
      %v6418 = vadd.f32 %v6202, %v6330
      %v6419 = vadd.f32 %v6203, %v6369
      %v6420 = vadd.f32 %v6204, %v6371
      %v6421 = vadd.f32 %v6205, %v6410
      %v6422 = vsel %vm4350, %v5333, 0
      %v6423 = vsel %vm4351, %v5321, 0
      %v6424 = vsel %vm4352, %v5322, 0
      %v6425 = vsel %vm4353, %v5323, 0
      %v6426 = vsel %vm4354, %v5324, 0
      %v6427 = vsel %vm4355, %v5325, 0
      %v6428 = vsel %vm4356, %v5336, 0
      %s6429 = scalar_lea.vmem %s9, 5
      %v6430 = vld [vmem:[%s6429] sm:$0x1]
      %6438 = vrot.lane.b32.xlu0 %v6422, 98
      %v6439 = vpop.permute.xlu0 %6438
      %6440 = vrot.lane.b32.xlu0 %v6423, 98
      %v6441 = vpop.permute.xlu0 %6440
      %6442 = vrot.lane.b32.xlu0 %v6424, 98
      %v6443 = vpop.permute.xlu0 %6442
      %6444 = vrot.lane.b32.xlu0 %v6425, 98
      %v6445 = vpop.permute.xlu0 %6444
      %6446 = vrot.lane.b32.xlu0 %v6426, 98
      %v6447 = vpop.permute.xlu0 %6446
      %6448 = vrot.lane.b32.xlu0 %v6427, 98
      %v6449 = vpop.permute.xlu0 %6448
      %6450 = vrot.lane.b32.xlu0 %v6428, 98
      %v6451 = vpop.permute.xlu0 %6450
      %v6452 = vsel %vm2230, %v6439, %v6441
      %v6453 = vsel %vm2230, %v6441, %v6443
      %v6454 = vsel %vm2230, %v6443, %v6445
      %v6455 = vsel %vm2230, %v6445, %v6447
      %v6456 = vsel %vm2230, %v6447, %v6449
      %v6457 = vsel %vm2230, %v6449, %v6451
      %v6459 = vsel %vm5370, %v6430, 0
      %v6462 = vsel %vm5374, %v6452, 0
      %v6465 = vsel %vm5374, %v6453, 0
      %v6468 = vsel %vm5374, %v6454, 0
      %v6471 = vsel %vm5374, %v6455, 0
      %v6474 = vsel %vm5374, %v6456, 0
      %v6477 = vsel %vm5374, %v6457, 0
      %v6480 = vsel %vm5374, %v6451, 0
      %6482 = vmatprep.subr.bf16.mxu0 %v6465
      %6483 = vmatpush1.bf16.msra.mxu0 %v6462
      %6484 = vmatprep.subr.bf16.mxu0 0
      %6485 = vmatpush1.bf16.msra.mxu0 0
      %6486 = vmatprep.subr.bf16.mxu0 0
      %6487 = vmatpush1.bf16.msra.mxu0 0
      %6488 = vmatprep.subr.bf16.mxu0 0
      %6489 = vmatpush1.bf16.msra.mxu0 0
      %6490 = vmatprep.subr.bf16.mxu0 0
      %6491 = vmatpush1.bf16.msra.mxu0 0
      %6492 = vmatprep.subr.bf16.mxu0 0
      %6493 = vmatpush1.bf16.msra.mxu0 0
      %6494 = vmatprep.subr.bf16.mxu0 0
      %6495 = vmatpush1.bf16.msra.mxu0 0
      %6496 = vmatprep.subr.bf16.mxu0 0
      %6497 = vmatpush1.bf16.msra.mxu0 0
      %6498 = vmatprep.subr.bf16.mxu0 0
      %6499 = vmatpush1.bf16.msra.mxu0 0
      %6500 = vmatprep.subr.bf16.mxu0 0
      %6501 = vmatpush1.bf16.msra.mxu0 0
      %6502 = vmatprep.subr.bf16.mxu0 0
      %6503 = vmatpush1.bf16.msra.mxu0 0
      %6504 = vmatprep.subr.bf16.mxu0 0
      %6505 = vmatpush1.bf16.msra.mxu0 0
      %6506 = vmatprep.subr.bf16.mxu0 0
      %6507 = vmatpush1.bf16.msra.mxu0 0
      %6508 = vmatprep.subr.bf16.mxu0 0
      %6509 = vmatpush1.bf16.msra.mxu0 0
      %6510 = vmatprep.subr.bf16.mxu0 0
      %6511 = vmatpush1.bf16.msra.mxu0 0
      %6512 = vmatprep.subr.bf16.mxu0 0
      %6513 = vmatpush1.bf16.msra.mxu0 0
      %6514 = vmatprep.mubr.bf16.mxu0 0
      %6515 = vmatmul.mubr.bf16.gmra.mrb[0].mxu0 %v6459
      %v6516 = vpop.f32.mrb[0].mxu0
      %v6517 = vadd.f32 0.0, %v6516
      %v6518 = vpop.f32.mrb[0].mxu0
      %v6519 = vadd.f32 0.0, %v6518
      %v6520 = vpop.f32.mrb[0].mxu0
      %v6521 = vpop.f32.mrb[0].mxu0
      %6522 = vdwg.mxu0
      %6523 = vmatprep.subr.bf16.mxu0 %v6471
      %6524 = vmatpush1.bf16.msra.mxu0 %v6468
      %6525 = vmatprep.subr.bf16.mxu0 0
      %6526 = vmatpush1.bf16.msra.mxu0 0
      %6527 = vmatprep.subr.bf16.mxu0 0
      %6528 = vmatpush1.bf16.msra.mxu0 0
      %6529 = vmatprep.subr.bf16.mxu0 0
      %6530 = vmatpush1.bf16.msra.mxu0 0
      %6531 = vmatprep.subr.bf16.mxu0 0
      %6532 = vmatpush1.bf16.msra.mxu0 0
      %6533 = vmatprep.subr.bf16.mxu0 0
      %6534 = vmatpush1.bf16.msra.mxu0 0
      %6535 = vmatprep.subr.bf16.mxu0 0
      %6536 = vmatpush1.bf16.msra.mxu0 0
      %6537 = vmatprep.subr.bf16.mxu0 0
      %6538 = vmatpush1.bf16.msra.mxu0 0
      %6539 = vmatprep.subr.bf16.mxu0 0
      %6540 = vmatpush1.bf16.msra.mxu0 0
      %6541 = vmatprep.subr.bf16.mxu0 0
      %6542 = vmatpush1.bf16.msra.mxu0 0
      %6543 = vmatprep.subr.bf16.mxu0 0
      %6544 = vmatpush1.bf16.msra.mxu0 0
      %6545 = vmatprep.subr.bf16.mxu0 0
      %6546 = vmatpush1.bf16.msra.mxu0 0
      %6547 = vmatprep.subr.bf16.mxu0 0
      %6548 = vmatpush1.bf16.msra.mxu0 0
      %6549 = vmatprep.subr.bf16.mxu0 0
      %6550 = vmatpush1.bf16.msra.mxu0 0
      %6551 = vmatprep.subr.bf16.mxu0 0
      %6552 = vmatpush1.bf16.msra.mxu0 0
      %6553 = vmatprep.subr.bf16.mxu0 0
      %6554 = vmatpush1.bf16.msra.mxu0 0
      %6555 = vmatprep.mubr.bf16.mxu0 0
      %6556 = vmatmul.mubr.bf16.gmra.mrb[0].mxu0 %v6459
      %v6557 = vpop.f32.mrb[0].mxu0
      %v6558 = vadd.f32 0.0, %v6557
      %v6559 = vpop.f32.mrb[0].mxu0
      %v6560 = vadd.f32 0.0, %v6559
      %v6561 = vpop.f32.mrb[0].mxu0
      %v6562 = vpop.f32.mrb[0].mxu0
      %6563 = vdwg.mxu0
      %6564 = vmatprep.subr.bf16.mxu0 %v6477
      %6565 = vmatpush1.bf16.msra.mxu0 %v6474
      %6566 = vmatprep.subr.bf16.mxu0 0
      %6567 = vmatpush1.bf16.msra.mxu0 0
      %6568 = vmatprep.subr.bf16.mxu0 0
      %6569 = vmatpush1.bf16.msra.mxu0 0
      %6570 = vmatprep.subr.bf16.mxu0 0
      %6571 = vmatpush1.bf16.msra.mxu0 0
      %6572 = vmatprep.subr.bf16.mxu0 0
      %6573 = vmatpush1.bf16.msra.mxu0 0
      %6574 = vmatprep.subr.bf16.mxu0 0
      %6575 = vmatpush1.bf16.msra.mxu0 0
      %6576 = vmatprep.subr.bf16.mxu0 0
      %6577 = vmatpush1.bf16.msra.mxu0 0
      %6578 = vmatprep.subr.bf16.mxu0 0
      %6579 = vmatpush1.bf16.msra.mxu0 0
      %6580 = vmatprep.subr.bf16.mxu0 0
      %6581 = vmatpush1.bf16.msra.mxu0 0
      %6582 = vmatprep.subr.bf16.mxu0 0
      %6583 = vmatpush1.bf16.msra.mxu0 0
      %6584 = vmatprep.subr.bf16.mxu0 0
      %6585 = vmatpush1.bf16.msra.mxu0 0
      %6586 = vmatprep.subr.bf16.mxu0 0
      %6587 = vmatpush1.bf16.msra.mxu0 0
      %6588 = vmatprep.subr.bf16.mxu0 0
      %6589 = vmatpush1.bf16.msra.mxu0 0
      %6590 = vmatprep.subr.bf16.mxu0 0
      %6591 = vmatpush1.bf16.msra.mxu0 0
      %6592 = vmatprep.subr.bf16.mxu0 0
      %6593 = vmatpush1.bf16.msra.mxu0 0
      %6594 = vmatprep.subr.bf16.mxu0 0
      %6595 = vmatpush1.bf16.msra.mxu0 0
      %6596 = vmatprep.mubr.bf16.mxu0 0
      %6597 = vmatmul.mubr.bf16.gmra.mrb[0].mxu0 %v6459
      %v6598 = vpop.f32.mrb[0].mxu0
      %v6599 = vadd.f32 0.0, %v6598
      %v6600 = vpop.f32.mrb[0].mxu0
      %v6601 = vadd.f32 0.0, %v6600
      %v6602 = vpop.f32.mrb[0].mxu0
      %v6603 = vpop.f32.mrb[0].mxu0
      %6604 = vdwg.mxu0
      %6605 = vmatprep.subr.bf16.mxu0 0
      %6606 = vmatpush1.bf16.msra.mxu0 %v6480
      %6607 = vmatprep.subr.bf16.mxu0 0
      %6608 = vmatpush1.bf16.msra.mxu0 0
      %6609 = vmatprep.subr.bf16.mxu0 0
      %6610 = vmatpush1.bf16.msra.mxu0 0
      %6611 = vmatprep.subr.bf16.mxu0 0
      %6612 = vmatpush1.bf16.msra.mxu0 0
      %6613 = vmatprep.subr.bf16.mxu0 0
      %6614 = vmatpush1.bf16.msra.mxu0 0
      %6615 = vmatprep.subr.bf16.mxu0 0
      %6616 = vmatpush1.bf16.msra.mxu0 0
      %6617 = vmatprep.subr.bf16.mxu0 0
      %6618 = vmatpush1.bf16.msra.mxu0 0
      %6619 = vmatprep.subr.bf16.mxu0 0
      %6620 = vmatpush1.bf16.msra.mxu0 0
      %6621 = vmatprep.subr.bf16.mxu0 0
      %6622 = vmatpush1.bf16.msra.mxu0 0
      %6623 = vmatprep.subr.bf16.mxu0 0
      %6624 = vmatpush1.bf16.msra.mxu0 0
      %6625 = vmatprep.subr.bf16.mxu0 0
      %6626 = vmatpush1.bf16.msra.mxu0 0
      %6627 = vmatprep.subr.bf16.mxu0 0
      %6628 = vmatpush1.bf16.msra.mxu0 0
      %6629 = vmatprep.subr.bf16.mxu0 0
      %6630 = vmatpush1.bf16.msra.mxu0 0
      %6631 = vmatprep.subr.bf16.mxu0 0
      %6632 = vmatpush1.bf16.msra.mxu0 0
      %6633 = vmatprep.subr.bf16.mxu0 0
      %6634 = vmatpush1.bf16.msra.mxu0 0
      %6635 = vmatprep.subr.bf16.mxu0 0
      %6636 = vmatpush1.bf16.msra.mxu0 0
      %6637 = vmatprep.mubr.bf16.mxu0 0
      %6638 = vmatmul.mubr.bf16.gmra.mrb[0].mxu0 %v6459
      %v6639 = vpop.f32.mrb[0].mxu0
      %v6640 = vadd.f32 0.0, %v6639
      %v6641 = vpop.f32.mrb[0].mxu0
      %v6642 = vpop.f32.mrb[0].mxu0
      %v6643 = vpop.f32.mrb[0].mxu0
      %6644 = vdwg.mxu0
      %v6645 = vadd.f32 %v6415, %v6517
      %v6646 = vadd.f32 %v6416, %v6519
      %v6647 = vadd.f32 %v6417, %v6558
      %v6648 = vadd.f32 %v6418, %v6560
      %v6649 = vadd.f32 %v6419, %v6599
      %v6650 = vadd.f32 %v6420, %v6601
      %v6651 = vadd.f32 %v6421, %v6640
      %v6652 = vsel %vm4594, %v5333, 0
      %v6653 = vsel %vm4595, %v5321, 0
      %v6654 = vsel %vm4596, %v5322, 0
      %v6655 = vsel %vm4597, %v5323, 0
      %v6656 = vsel %vm4598, %v5324, 0
      %v6657 = vsel %vm4599, %v5325, 0
      %v6658 = vsel %vm4600, %v5336, 0
      %s6659 = scalar_lea.vmem %s9, 6
      %v6660 = vld [vmem:[%s6659] sm:$0x1]
      %6668 = vrot.lane.b32.xlu0 %v6652, 72
      %v6669 = vpop.permute.xlu0 %6668
      %6670 = vrot.lane.b32.xlu0 %v6653, 72
      %v6671 = vpop.permute.xlu0 %6670
      %6672 = vrot.lane.b32.xlu0 %v6654, 72
      %v6673 = vpop.permute.xlu0 %6672
      %6674 = vrot.lane.b32.xlu0 %v6655, 72
      %v6675 = vpop.permute.xlu0 %6674
      %6676 = vrot.lane.b32.xlu0 %v6656, 72
      %v6677 = vpop.permute.xlu0 %6676
      %6678 = vrot.lane.b32.xlu0 %v6657, 72
      %v6679 = vpop.permute.xlu0 %6678
      %6680 = vrot.lane.b32.xlu0 %v6658, 72
      %v6681 = vpop.permute.xlu0 %6680
      %v6682 = vsel %vm4631, %v6669, %v6671
      %v6683 = vsel %vm4631, %v6671, %v6673
      %v6684 = vsel %vm4631, %v6673, %v6675
      %v6685 = vsel %vm4631, %v6675, %v6677
      %v6686 = vsel %vm4631, %v6677, %v6679
      %v6687 = vsel %vm4631, %v6679, %v6681
      %v6689 = vsel %vm5370, %v6660, 0
      %v6692 = vsel %vm5374, %v6682, 0
      %v6695 = vsel %vm5374, %v6683, 0
      %v6698 = vsel %vm5374, %v6684, 0
      %v6701 = vsel %vm5374, %v6685, 0
      %v6704 = vsel %vm5374, %v6686, 0
      %v6707 = vsel %vm5374, %v6687, 0
      %v6710 = vsel %vm5374, %v6681, 0
      %6712 = vmatprep.subr.bf16.mxu0 %v6695
      %6713 = vmatpush1.bf16.msra.mxu0 %v6692
      %6714 = vmatprep.subr.bf16.mxu0 0
      %6715 = vmatpush1.bf16.msra.mxu0 0
      %6716 = vmatprep.subr.bf16.mxu0 0
      %6717 = vmatpush1.bf16.msra.mxu0 0
      %6718 = vmatprep.subr.bf16.mxu0 0
      %6719 = vmatpush1.bf16.msra.mxu0 0
      %6720 = vmatprep.subr.bf16.mxu0 0
      %6721 = vmatpush1.bf16.msra.mxu0 0
      %6722 = vmatprep.subr.bf16.mxu0 0
      %6723 = vmatpush1.bf16.msra.mxu0 0
      %6724 = vmatprep.subr.bf16.mxu0 0
      %6725 = vmatpush1.bf16.msra.mxu0 0
      %6726 = vmatprep.subr.bf16.mxu0 0
      %6727 = vmatpush1.bf16.msra.mxu0 0
      %6728 = vmatprep.subr.bf16.mxu0 0
      %6729 = vmatpush1.bf16.msra.mxu0 0
      %6730 = vmatprep.subr.bf16.mxu0 0
      %6731 = vmatpush1.bf16.msra.mxu0 0
      %6732 = vmatprep.subr.bf16.mxu0 0
      %6733 = vmatpush1.bf16.msra.mxu0 0
      %6734 = vmatprep.subr.bf16.mxu0 0
      %6735 = vmatpush1.bf16.msra.mxu0 0
      %6736 = vmatprep.subr.bf16.mxu0 0
      %6737 = vmatpush1.bf16.msra.mxu0 0
      %6738 = vmatprep.subr.bf16.mxu0 0
      %6739 = vmatpush1.bf16.msra.mxu0 0
      %6740 = vmatprep.subr.bf16.mxu0 0
      %6741 = vmatpush1.bf16.msra.mxu0 0
      %6742 = vmatprep.subr.bf16.mxu0 0
      %6743 = vmatpush1.bf16.msra.mxu0 0
      %6744 = vmatprep.mubr.bf16.mxu0 0
      %6745 = vmatmul.mubr.bf16.gmra.mrb[0].mxu0 %v6689
      %v6746 = vpop.f32.mrb[0].mxu0
      %v6747 = vadd.f32 0.0, %v6746
      %v6748 = vpop.f32.mrb[0].mxu0
      %v6749 = vadd.f32 0.0, %v6748
      %v6750 = vpop.f32.mrb[0].mxu0
      %v6751 = vpop.f32.mrb[0].mxu0
      %6752 = vdwg.mxu0
      %6753 = vmatprep.subr.bf16.mxu0 %v6701
      %6754 = vmatpush1.bf16.msra.mxu0 %v6698
      %6755 = vmatprep.subr.bf16.mxu0 0
      %6756 = vmatpush1.bf16.msra.mxu0 0
      %6757 = vmatprep.subr.bf16.mxu0 0
      %6758 = vmatpush1.bf16.msra.mxu0 0
      %6759 = vmatprep.subr.bf16.mxu0 0
      %6760 = vmatpush1.bf16.msra.mxu0 0
      %6761 = vmatprep.subr.bf16.mxu0 0
      %6762 = vmatpush1.bf16.msra.mxu0 0
      %6763 = vmatprep.subr.bf16.mxu0 0
      %6764 = vmatpush1.bf16.msra.mxu0 0
      %6765 = vmatprep.subr.bf16.mxu0 0
      %6766 = vmatpush1.bf16.msra.mxu0 0
      %6767 = vmatprep.subr.bf16.mxu0 0
      %6768 = vmatpush1.bf16.msra.mxu0 0
      %6769 = vmatprep.subr.bf16.mxu0 0
      %6770 = vmatpush1.bf16.msra.mxu0 0
      %6771 = vmatprep.subr.bf16.mxu0 0
      %6772 = vmatpush1.bf16.msra.mxu0 0
      %6773 = vmatprep.subr.bf16.mxu0 0
      %6774 = vmatpush1.bf16.msra.mxu0 0
      %6775 = vmatprep.subr.bf16.mxu0 0
      %6776 = vmatpush1.bf16.msra.mxu0 0
      %6777 = vmatprep.subr.bf16.mxu0 0
      %6778 = vmatpush1.bf16.msra.mxu0 0
      %6779 = vmatprep.subr.bf16.mxu0 0
      %6780 = vmatpush1.bf16.msra.mxu0 0
      %6781 = vmatprep.subr.bf16.mxu0 0
      %6782 = vmatpush1.bf16.msra.mxu0 0
      %6783 = vmatprep.subr.bf16.mxu0 0
      %6784 = vmatpush1.bf16.msra.mxu0 0
      %6785 = vmatprep.mubr.bf16.mxu0 0
      %6786 = vmatmul.mubr.bf16.gmra.mrb[0].mxu0 %v6689
      %v6787 = vpop.f32.mrb[0].mxu0
      %v6788 = vadd.f32 0.0, %v6787
      %v6789 = vpop.f32.mrb[0].mxu0
      %v6790 = vadd.f32 0.0, %v6789
      %v6791 = vpop.f32.mrb[0].mxu0
      %v6792 = vpop.f32.mrb[0].mxu0
      %6793 = vdwg.mxu0
      %6794 = vmatprep.subr.bf16.mxu0 %v6707
      %6795 = vmatpush1.bf16.msra.mxu0 %v6704
      %6796 = vmatprep.subr.bf16.mxu0 0
      %6797 = vmatpush1.bf16.msra.mxu0 0
      %6798 = vmatprep.subr.bf16.mxu0 0
      %6799 = vmatpush1.bf16.msra.mxu0 0
      %6800 = vmatprep.subr.bf16.mxu0 0
      %6801 = vmatpush1.bf16.msra.mxu0 0
      %6802 = vmatprep.subr.bf16.mxu0 0
      %6803 = vmatpush1.bf16.msra.mxu0 0
      %6804 = vmatprep.subr.bf16.mxu0 0
      %6805 = vmatpush1.bf16.msra.mxu0 0
      %6806 = vmatprep.subr.bf16.mxu0 0
      %6807 = vmatpush1.bf16.msra.mxu0 0
      %6808 = vmatprep.subr.bf16.mxu0 0
      %6809 = vmatpush1.bf16.msra.mxu0 0
      %6810 = vmatprep.subr.bf16.mxu0 0
      %6811 = vmatpush1.bf16.msra.mxu0 0
      %6812 = vmatprep.subr.bf16.mxu0 0
      %6813 = vmatpush1.bf16.msra.mxu0 0
      %6814 = vmatprep.subr.bf16.mxu0 0
      %6815 = vmatpush1.bf16.msra.mxu0 0
      %6816 = vmatprep.subr.bf16.mxu0 0
      %6817 = vmatpush1.bf16.msra.mxu0 0
      %6818 = vmatprep.subr.bf16.mxu0 0
      %6819 = vmatpush1.bf16.msra.mxu0 0
      %6820 = vmatprep.subr.bf16.mxu0 0
      %6821 = vmatpush1.bf16.msra.mxu0 0
      %6822 = vmatprep.subr.bf16.mxu0 0
      %6823 = vmatpush1.bf16.msra.mxu0 0
      %6824 = vmatprep.subr.bf16.mxu0 0
      %6825 = vmatpush1.bf16.msra.mxu0 0
      %6826 = vmatprep.mubr.bf16.mxu0 0
      %6827 = vmatmul.mubr.bf16.gmra.mrb[0].mxu0 %v6689
      %v6828 = vpop.f32.mrb[0].mxu0
      %v6829 = vadd.f32 0.0, %v6828
      %v6830 = vpop.f32.mrb[0].mxu0
      %v6831 = vadd.f32 0.0, %v6830
      %v6832 = vpop.f32.mrb[0].mxu0
      %v6833 = vpop.f32.mrb[0].mxu0
      %6834 = vdwg.mxu0
      %6835 = vmatprep.subr.bf16.mxu0 0
      %6836 = vmatpush1.bf16.msra.mxu0 %v6710
      %6837 = vmatprep.subr.bf16.mxu0 0
      %6838 = vmatpush1.bf16.msra.mxu0 0
      %6839 = vmatprep.subr.bf16.mxu0 0
      %6840 = vmatpush1.bf16.msra.mxu0 0
      %6841 = vmatprep.subr.bf16.mxu0 0
      %6842 = vmatpush1.bf16.msra.mxu0 0
      %6843 = vmatprep.subr.bf16.mxu0 0
      %6844 = vmatpush1.bf16.msra.mxu0 0
      %6845 = vmatprep.subr.bf16.mxu0 0
      %6846 = vmatpush1.bf16.msra.mxu0 0
      %6847 = vmatprep.subr.bf16.mxu0 0
      %6848 = vmatpush1.bf16.msra.mxu0 0
      %6849 = vmatprep.subr.bf16.mxu0 0
      %6850 = vmatpush1.bf16.msra.mxu0 0
      %6851 = vmatprep.subr.bf16.mxu0 0
      %6852 = vmatpush1.bf16.msra.mxu0 0
      %6853 = vmatprep.subr.bf16.mxu0 0
      %6854 = vmatpush1.bf16.msra.mxu0 0
      %6855 = vmatprep.subr.bf16.mxu0 0
      %6856 = vmatpush1.bf16.msra.mxu0 0
      %6857 = vmatprep.subr.bf16.mxu0 0
      %6858 = vmatpush1.bf16.msra.mxu0 0
      %6859 = vmatprep.subr.bf16.mxu0 0
      %6860 = vmatpush1.bf16.msra.mxu0 0
      %6861 = vmatprep.subr.bf16.mxu0 0
      %6862 = vmatpush1.bf16.msra.mxu0 0
      %6863 = vmatprep.subr.bf16.mxu0 0
      %6864 = vmatpush1.bf16.msra.mxu0 0
      %6865 = vmatprep.subr.bf16.mxu0 0
      %6866 = vmatpush1.bf16.msra.mxu0 0
      %6867 = vmatprep.mubr.bf16.mxu0 0
      %6868 = vmatmul.mubr.bf16.gmra.mrb[0].mxu0 %v6689
      %v6869 = vpop.f32.mrb[0].mxu0
      %v6870 = vadd.f32 0.0, %v6869
      %v6871 = vpop.f32.mrb[0].mxu0
      %v6872 = vpop.f32.mrb[0].mxu0
      %v6873 = vpop.f32.mrb[0].mxu0
      %6874 = vdwg.mxu0
      %v6875 = vadd.f32 %v6645, %v6747
      %v6876 = vadd.f32 %v6646, %v6749
      %v6877 = vadd.f32 %v6647, %v6788
      %v6878 = vadd.f32 %v6648, %v6790
      %v6879 = vadd.f32 %v6649, %v6829
      %v6880 = vadd.f32 %v6650, %v6831
      %v6881 = vadd.f32 %v6651, %v6870
      %s6882 = scalar_lea.vmem %s9, 7
      %v6883 = vld [vmem:[%s6882] sm:$0x1]
      %6884 = vrot.lane.b32.xlu0 %v5333, 71
      %v6885 = vpop.permute.xlu0 %6884
      %6886 = vrot.lane.b32.xlu0 %v5321, 71
      %v6887 = vpop.permute.xlu0 %6886
      %6888 = vrot.lane.b32.xlu0 %v5322, 71
      %v6889 = vpop.permute.xlu0 %6888
      %6890 = vrot.lane.b32.xlu0 %v5323, 71
      %v6891 = vpop.permute.xlu0 %6890
      %6892 = vrot.lane.b32.xlu0 %v5324, 71
      %v6893 = vpop.permute.xlu0 %6892
      %6894 = vrot.lane.b32.xlu0 %v5325, 71
      %v6895 = vpop.permute.xlu0 %6894
      %6896 = vrot.lane.b32.xlu0 %v5336, 71
      %v6897 = vpop.permute.xlu0 %6896
      %v6898 = vsel %vm4834, %v6885, %v6887
      %v6899 = vsel %vm4834, %v6887, %v6889
      %v6900 = vsel %vm4834, %v6889, %v6891
      %v6901 = vsel %vm4834, %v6891, %v6893
      %v6902 = vsel %vm4834, %v6893, %v6895
      %v6903 = vsel %vm4834, %v6895, %v6897
      %v6905 = vsel %vm5370, %v6883, 0
      %v6908 = vsel %vm5374, %v6898, 0
      %v6911 = vsel %vm5374, %v6899, 0
      %v6914 = vsel %vm5374, %v6900, 0
      %v6917 = vsel %vm5374, %v6901, 0
      %v6920 = vsel %vm5374, %v6902, 0
      %v6923 = vsel %vm5374, %v6903, 0
      %v6926 = vsel %vm5374, %v6897, 0
      %6928 = vmatprep.subr.bf16.mxu0 %v6911
      %6929 = vmatpush1.bf16.msra.mxu0 %v6908
      %6930 = vmatprep.subr.bf16.mxu0 0
      %6931 = vmatpush1.bf16.msra.mxu0 0
      %6932 = vmatprep.subr.bf16.mxu0 0
      %6933 = vmatpush1.bf16.msra.mxu0 0
      %6934 = vmatprep.subr.bf16.mxu0 0
      %6935 = vmatpush1.bf16.msra.mxu0 0
      %6936 = vmatprep.subr.bf16.mxu0 0
      %6937 = vmatpush1.bf16.msra.mxu0 0
      %6938 = vmatprep.subr.bf16.mxu0 0
      %6939 = vmatpush1.bf16.msra.mxu0 0
      %6940 = vmatprep.subr.bf16.mxu0 0
      %6941 = vmatpush1.bf16.msra.mxu0 0
      %6942 = vmatprep.subr.bf16.mxu0 0
      %6943 = vmatpush1.bf16.msra.mxu0 0
      %6944 = vmatprep.subr.bf16.mxu0 0
      %6945 = vmatpush1.bf16.msra.mxu0 0
      %6946 = vmatprep.subr.bf16.mxu0 0
      %6947 = vmatpush1.bf16.msra.mxu0 0
      %6948 = vmatprep.subr.bf16.mxu0 0
      %6949 = vmatpush1.bf16.msra.mxu0 0
      %6950 = vmatprep.subr.bf16.mxu0 0
      %6951 = vmatpush1.bf16.msra.mxu0 0
      %6952 = vmatprep.subr.bf16.mxu0 0
      %6953 = vmatpush1.bf16.msra.mxu0 0
      %6954 = vmatprep.subr.bf16.mxu0 0
      %6955 = vmatpush1.bf16.msra.mxu0 0
      %6956 = vmatprep.subr.bf16.mxu0 0
      %6957 = vmatpush1.bf16.msra.mxu0 0
      %6958 = vmatprep.subr.bf16.mxu0 0
      %6959 = vmatpush1.bf16.msra.mxu0 0
      %6960 = vmatprep.mubr.bf16.mxu0 0
      %6961 = vmatmul.mubr.bf16.gmra.mrb[0].mxu0 %v6905
      %v6962 = vpop.f32.mrb[0].mxu0
      %v6963 = vadd.f32 0.0, %v6962
      %v6964 = vpop.f32.mrb[0].mxu0
      %v6965 = vadd.f32 0.0, %v6964
      %v6966 = vpop.f32.mrb[0].mxu0
      %v6967 = vpop.f32.mrb[0].mxu0
      %6968 = vdwg.mxu0
      %6969 = vmatprep.subr.bf16.mxu0 %v6917
      %6970 = vmatpush1.bf16.msra.mxu0 %v6914
      %6971 = vmatprep.subr.bf16.mxu0 0
      %6972 = vmatpush1.bf16.msra.mxu0 0
      %6973 = vmatprep.subr.bf16.mxu0 0
      %6974 = vmatpush1.bf16.msra.mxu0 0
      %6975 = vmatprep.subr.bf16.mxu0 0
      %6976 = vmatpush1.bf16.msra.mxu0 0
      %6977 = vmatprep.subr.bf16.mxu0 0
      %6978 = vmatpush1.bf16.msra.mxu0 0
      %6979 = vmatprep.subr.bf16.mxu0 0
      %6980 = vmatpush1.bf16.msra.mxu0 0
      %6981 = vmatprep.subr.bf16.mxu0 0
      %6982 = vmatpush1.bf16.msra.mxu0 0
      %6983 = vmatprep.subr.bf16.mxu0 0
      %6984 = vmatpush1.bf16.msra.mxu0 0
      %6985 = vmatprep.subr.bf16.mxu0 0
      %6986 = vmatpush1.bf16.msra.mxu0 0
      %6987 = vmatprep.subr.bf16.mxu0 0
      %6988 = vmatpush1.bf16.msra.mxu0 0
      %6989 = vmatprep.subr.bf16.mxu0 0
      %6990 = vmatpush1.bf16.msra.mxu0 0
      %6991 = vmatprep.subr.bf16.mxu0 0
      %6992 = vmatpush1.bf16.msra.mxu0 0
      %6993 = vmatprep.subr.bf16.mxu0 0
      %6994 = vmatpush1.bf16.msra.mxu0 0
      %6995 = vmatprep.subr.bf16.mxu0 0
      %6996 = vmatpush1.bf16.msra.mxu0 0
      %6997 = vmatprep.subr.bf16.mxu0 0
      %6998 = vmatpush1.bf16.msra.mxu0 0
      %6999 = vmatprep.subr.bf16.mxu0 0
      %7000 = vmatpush1.bf16.msra.mxu0 0
      %7001 = vmatprep.mubr.bf16.mxu0 0
      %7002 = vmatmul.mubr.bf16.gmra.mrb[0].mxu0 %v6905
      %v7003 = vpop.f32.mrb[0].mxu0
      %v7004 = vadd.f32 0.0, %v7003
      %v7005 = vpop.f32.mrb[0].mxu0
      %v7006 = vadd.f32 0.0, %v7005
      %v7007 = vpop.f32.mrb[0].mxu0
      %v7008 = vpop.f32.mrb[0].mxu0
      %7009 = vdwg.mxu0
      %7010 = vmatprep.subr.bf16.mxu0 %v6923
      %7011 = vmatpush1.bf16.msra.mxu0 %v6920
      %7012 = vmatprep.subr.bf16.mxu0 0
      %7013 = vmatpush1.bf16.msra.mxu0 0
      %7014 = vmatprep.subr.bf16.mxu0 0
      %7015 = vmatpush1.bf16.msra.mxu0 0
      %7016 = vmatprep.subr.bf16.mxu0 0
      %7017 = vmatpush1.bf16.msra.mxu0 0
      %7018 = vmatprep.subr.bf16.mxu0 0
      %7019 = vmatpush1.bf16.msra.mxu0 0
      %7020 = vmatprep.subr.bf16.mxu0 0
      %7021 = vmatpush1.bf16.msra.mxu0 0
      %7022 = vmatprep.subr.bf16.mxu0 0
      %7023 = vmatpush1.bf16.msra.mxu0 0
      %7024 = vmatprep.subr.bf16.mxu0 0
      %7025 = vmatpush1.bf16.msra.mxu0 0
      %7026 = vmatprep.subr.bf16.mxu0 0
      %7027 = vmatpush1.bf16.msra.mxu0 0
      %7028 = vmatprep.subr.bf16.mxu0 0
      %7029 = vmatpush1.bf16.msra.mxu0 0
      %7030 = vmatprep.subr.bf16.mxu0 0
      %7031 = vmatpush1.bf16.msra.mxu0 0
      %7032 = vmatprep.subr.bf16.mxu0 0
      %7033 = vmatpush1.bf16.msra.mxu0 0
      %7034 = vmatprep.subr.bf16.mxu0 0
      %7035 = vmatpush1.bf16.msra.mxu0 0
      %7036 = vmatprep.subr.bf16.mxu0 0
      %7037 = vmatpush1.bf16.msra.mxu0 0
      %7038 = vmatprep.subr.bf16.mxu0 0
      %7039 = vmatpush1.bf16.msra.mxu0 0
      %7040 = vmatprep.subr.bf16.mxu0 0
      %7041 = vmatpush1.bf16.msra.mxu0 0
      %7042 = vmatprep.mubr.bf16.mxu0 0
      %7043 = vmatmul.mubr.bf16.gmra.mrb[0].mxu0 %v6905
      %v7044 = vpop.f32.mrb[0].mxu0
      %v7045 = vadd.f32 0.0, %v7044
      %v7046 = vpop.f32.mrb[0].mxu0
      %v7047 = vadd.f32 0.0, %v7046
      %v7048 = vpop.f32.mrb[0].mxu0
      %v7049 = vpop.f32.mrb[0].mxu0
      %7050 = vdwg.mxu0
      %7051 = vmatprep.subr.bf16.mxu0 0
      %7052 = vmatpush1.bf16.msra.mxu0 %v6926
      %7053 = vmatprep.subr.bf16.mxu0 0
      %7054 = vmatpush1.bf16.msra.mxu0 0
      %7055 = vmatprep.subr.bf16.mxu0 0
      %7056 = vmatpush1.bf16.msra.mxu0 0
      %7057 = vmatprep.subr.bf16.mxu0 0
      %7058 = vmatpush1.bf16.msra.mxu0 0
      %7059 = vmatprep.subr.bf16.mxu0 0
      %7060 = vmatpush1.bf16.msra.mxu0 0
      %7061 = vmatprep.subr.bf16.mxu0 0
      %7062 = vmatpush1.bf16.msra.mxu0 0
      %7063 = vmatprep.subr.bf16.mxu0 0
      %7064 = vmatpush1.bf16.msra.mxu0 0
      %7065 = vmatprep.subr.bf16.mxu0 0
      %7066 = vmatpush1.bf16.msra.mxu0 0
      %7067 = vmatprep.subr.bf16.mxu0 0
      %7068 = vmatpush1.bf16.msra.mxu0 0
      %7069 = vmatprep.subr.bf16.mxu0 0
      %7070 = vmatpush1.bf16.msra.mxu0 0
      %7071 = vmatprep.subr.bf16.mxu0 0
      %7072 = vmatpush1.bf16.msra.mxu0 0
      %7073 = vmatprep.subr.bf16.mxu0 0
      %7074 = vmatpush1.bf16.msra.mxu0 0
      %7075 = vmatprep.subr.bf16.mxu0 0
      %7076 = vmatpush1.bf16.msra.mxu0 0
      %7077 = vmatprep.subr.bf16.mxu0 0
      %7078 = vmatpush1.bf16.msra.mxu0 0
      %7079 = vmatprep.subr.bf16.mxu0 0
      %7080 = vmatpush1.bf16.msra.mxu0 0
      %7081 = vmatprep.subr.bf16.mxu0 0
      %7082 = vmatpush1.bf16.msra.mxu0 0
      %7083 = vmatprep.mubr.bf16.mxu0 0
      %7084 = vmatmul.mubr.bf16.gmra.mrb[0].mxu0 %v6905
      %v7085 = vpop.f32.mrb[0].mxu0
      %v7086 = vadd.f32 0.0, %v7085
      %v7087 = vpop.f32.mrb[0].mxu0
      %v7088 = vpop.f32.mrb[0].mxu0
      %v7089 = vpop.f32.mrb[0].mxu0
      %7090 = vdwg.mxu0
      %v7091 = vadd.f32 %v6875, %v6963
      %v7092 = vadd.f32 %v6876, %v6965
      %v7093 = vadd.f32 %v6877, %v7004
      %v7094 = vadd.f32 %v6878, %v7006
      %v7095 = vadd.f32 %v6879, %v7045
      %v7096 = vadd.f32 %v6880, %v7047
      %v7097 = vadd.f32 %v6881, %v7086
      %v7098 = vsel %vm5042, %v5333, 0
      %v7099 = vsel %vm5043, %v5321, 0
      %v7100 = vsel %vm5044, %v5322, 0
      %v7101 = vsel %vm5045, %v5323, 0
      %v7102 = vsel %vm5046, %v5324, 0
      %v7103 = vsel %vm5047, %v5325, 0
      %v7104 = vsel %vm5048, %v5336, 0
      %s7105 = scalar_lea.vmem %s9, 8
      %v7106 = vld [vmem:[%s7105] sm:$0x1]
      %7114 = vrot.lane.b32.xlu0 %v7098, 70
      %v7115 = vpop.permute.xlu0 %7114
      %7116 = vrot.lane.b32.xlu0 %v7099, 70
      %v7117 = vpop.permute.xlu0 %7116
      %7118 = vrot.lane.b32.xlu0 %v7100, 70
      %v7119 = vpop.permute.xlu0 %7118
      %7120 = vrot.lane.b32.xlu0 %v7101, 70
      %v7121 = vpop.permute.xlu0 %7120
      %7122 = vrot.lane.b32.xlu0 %v7102, 70
      %v7123 = vpop.permute.xlu0 %7122
      %7124 = vrot.lane.b32.xlu0 %v7103, 70
      %v7125 = vpop.permute.xlu0 %7124
      %7126 = vrot.lane.b32.xlu0 %v7104, 70
      %v7127 = vpop.permute.xlu0 %7126
      %v7128 = vsel %vm5079, %v7115, %v7117
      %v7129 = vsel %vm5079, %v7117, %v7119
      %v7130 = vsel %vm5079, %v7119, %v7121
      %v7131 = vsel %vm5079, %v7121, %v7123
      %v7132 = vsel %vm5079, %v7123, %v7125
      %v7133 = vsel %vm5079, %v7125, %v7127
      %v7135 = vsel %vm5370, %v7106, 0
      %v7138 = vsel %vm5374, %v7128, 0
      %v7141 = vsel %vm5374, %v7129, 0
      %v7144 = vsel %vm5374, %v7130, 0
      %v7147 = vsel %vm5374, %v7131, 0
      %v7150 = vsel %vm5374, %v7132, 0
      %v7153 = vsel %vm5374, %v7133, 0
      %v7156 = vsel %vm5374, %v7127, 0
      %7158 = vmatprep.subr.bf16.mxu0 %v7141
      %7159 = vmatpush1.bf16.msra.mxu0 %v7138
      %7160 = vmatprep.subr.bf16.mxu0 0
      %7161 = vmatpush1.bf16.msra.mxu0 0
      %7162 = vmatprep.subr.bf16.mxu0 0
      %7163 = vmatpush1.bf16.msra.mxu0 0
      %7164 = vmatprep.subr.bf16.mxu0 0
      %7165 = vmatpush1.bf16.msra.mxu0 0
      %7166 = vmatprep.subr.bf16.mxu0 0
      %7167 = vmatpush1.bf16.msra.mxu0 0
      %7168 = vmatprep.subr.bf16.mxu0 0
      %7169 = vmatpush1.bf16.msra.mxu0 0
      %7170 = vmatprep.subr.bf16.mxu0 0
      %7171 = vmatpush1.bf16.msra.mxu0 0
      %7172 = vmatprep.subr.bf16.mxu0 0
      %7173 = vmatpush1.bf16.msra.mxu0 0
      %7174 = vmatprep.subr.bf16.mxu0 0
      %7175 = vmatpush1.bf16.msra.mxu0 0
      %7176 = vmatprep.subr.bf16.mxu0 0
      %7177 = vmatpush1.bf16.msra.mxu0 0
      %7178 = vmatprep.subr.bf16.mxu0 0
      %7179 = vmatpush1.bf16.msra.mxu0 0
      %7180 = vmatprep.subr.bf16.mxu0 0
      %7181 = vmatpush1.bf16.msra.mxu0 0
      %7182 = vmatprep.subr.bf16.mxu0 0
      %7183 = vmatpush1.bf16.msra.mxu0 0
      %7184 = vmatprep.subr.bf16.mxu0 0
      %7185 = vmatpush1.bf16.msra.mxu0 0
      %7186 = vmatprep.subr.bf16.mxu0 0
      %7187 = vmatpush1.bf16.msra.mxu0 0
      %7188 = vmatprep.subr.bf16.mxu0 0
      %7189 = vmatpush1.bf16.msra.mxu0 0
      %7190 = vmatprep.mubr.bf16.mxu0 0
      %7191 = vmatmul.mubr.bf16.gmra.mrb[0].mxu0 %v7135
      %v7192 = vpop.f32.mrb[0].mxu0
      %v7193 = vadd.f32 0.0, %v7192
      %v7194 = vpop.f32.mrb[0].mxu0
      %v7195 = vadd.f32 0.0, %v7194
      %v7196 = vpop.f32.mrb[0].mxu0
      %v7197 = vpop.f32.mrb[0].mxu0
      %7198 = vdwg.mxu0
      %7199 = vmatprep.subr.bf16.mxu0 %v7147
      %7200 = vmatpush1.bf16.msra.mxu0 %v7144
      %7201 = vmatprep.subr.bf16.mxu0 0
      %7202 = vmatpush1.bf16.msra.mxu0 0
      %7203 = vmatprep.subr.bf16.mxu0 0
      %7204 = vmatpush1.bf16.msra.mxu0 0
      %7205 = vmatprep.subr.bf16.mxu0 0
      %7206 = vmatpush1.bf16.msra.mxu0 0
      %7207 = vmatprep.subr.bf16.mxu0 0
      %7208 = vmatpush1.bf16.msra.mxu0 0
      %7209 = vmatprep.subr.bf16.mxu0 0
      %7210 = vmatpush1.bf16.msra.mxu0 0
      %7211 = vmatprep.subr.bf16.mxu0 0
      %7212 = vmatpush1.bf16.msra.mxu0 0
      %7213 = vmatprep.subr.bf16.mxu0 0
      %7214 = vmatpush1.bf16.msra.mxu0 0
      %7215 = vmatprep.subr.bf16.mxu0 0
      %7216 = vmatpush1.bf16.msra.mxu0 0
      %7217 = vmatprep.subr.bf16.mxu0 0
      %7218 = vmatpush1.bf16.msra.mxu0 0
      %7219 = vmatprep.subr.bf16.mxu0 0
      %7220 = vmatpush1.bf16.msra.mxu0 0
      %7221 = vmatprep.subr.bf16.mxu0 0
      %7222 = vmatpush1.bf16.msra.mxu0 0
      %7223 = vmatprep.subr.bf16.mxu0 0
      %7224 = vmatpush1.bf16.msra.mxu0 0
      %7225 = vmatprep.subr.bf16.mxu0 0
      %7226 = vmatpush1.bf16.msra.mxu0 0
      %7227 = vmatprep.subr.bf16.mxu0 0
      %7228 = vmatpush1.bf16.msra.mxu0 0
      %7229 = vmatprep.subr.bf16.mxu0 0
      %7230 = vmatpush1.bf16.msra.mxu0 0
      %7231 = vmatprep.mubr.bf16.mxu0 0
      %7232 = vmatmul.mubr.bf16.gmra.mrb[0].mxu0 %v7135
      %v7233 = vpop.f32.mrb[0].mxu0
      %v7234 = vadd.f32 0.0, %v7233
      %v7235 = vpop.f32.mrb[0].mxu0
      %v7236 = vadd.f32 0.0, %v7235
      %v7237 = vpop.f32.mrb[0].mxu0
      %v7238 = vpop.f32.mrb[0].mxu0
      %7239 = vdwg.mxu0
      %7240 = vmatprep.subr.bf16.mxu0 %v7153
      %7241 = vmatpush1.bf16.msra.mxu0 %v7150
      %7242 = vmatprep.subr.bf16.mxu0 0
      %7243 = vmatpush1.bf16.msra.mxu0 0
      %7244 = vmatprep.subr.bf16.mxu0 0
      %7245 = vmatpush1.bf16.msra.mxu0 0
      %7246 = vmatprep.subr.bf16.mxu0 0
      %7247 = vmatpush1.bf16.msra.mxu0 0
      %7248 = vmatprep.subr.bf16.mxu0 0
      %7249 = vmatpush1.bf16.msra.mxu0 0
      %7250 = vmatprep.subr.bf16.mxu0 0
      %7251 = vmatpush1.bf16.msra.mxu0 0
      %7252 = vmatprep.subr.bf16.mxu0 0
      %7253 = vmatpush1.bf16.msra.mxu0 0
      %7254 = vmatprep.subr.bf16.mxu0 0
      %7255 = vmatpush1.bf16.msra.mxu0 0
      %7256 = vmatprep.subr.bf16.mxu0 0
      %7257 = vmatpush1.bf16.msra.mxu0 0
      %7258 = vmatprep.subr.bf16.mxu0 0
      %7259 = vmatpush1.bf16.msra.mxu0 0
      %7260 = vmatprep.subr.bf16.mxu0 0
      %7261 = vmatpush1.bf16.msra.mxu0 0
      %7262 = vmatprep.subr.bf16.mxu0 0
      %7263 = vmatpush1.bf16.msra.mxu0 0
      %7264 = vmatprep.subr.bf16.mxu0 0
      %7265 = vmatpush1.bf16.msra.mxu0 0
      %7266 = vmatprep.subr.bf16.mxu0 0
      %7267 = vmatpush1.bf16.msra.mxu0 0
      %7268 = vmatprep.subr.bf16.mxu0 0
      %7269 = vmatpush1.bf16.msra.mxu0 0
      %7270 = vmatprep.subr.bf16.mxu0 0
      %7271 = vmatpush1.bf16.msra.mxu0 0
      %7272 = vmatprep.mubr.bf16.mxu0 0
      %7273 = vmatmul.mubr.bf16.gmra.mrb[0].mxu0 %v7135
      %v7274 = vpop.f32.mrb[0].mxu0
      %v7275 = vadd.f32 0.0, %v7274
      %v7276 = vpop.f32.mrb[0].mxu0
      %v7277 = vadd.f32 0.0, %v7276
      %v7278 = vpop.f32.mrb[0].mxu0
      %v7279 = vpop.f32.mrb[0].mxu0
      %7280 = vdwg.mxu0
      %7281 = vmatprep.subr.bf16.mxu0 0
      %7282 = vmatpush1.bf16.msra.mxu0 %v7156
      %7283 = vmatprep.subr.bf16.mxu0 0
      %7284 = vmatpush1.bf16.msra.mxu0 0
      %7285 = vmatprep.subr.bf16.mxu0 0
      %7286 = vmatpush1.bf16.msra.mxu0 0
      %7287 = vmatprep.subr.bf16.mxu0 0
      %7288 = vmatpush1.bf16.msra.mxu0 0
      %7289 = vmatprep.subr.bf16.mxu0 0
      %7290 = vmatpush1.bf16.msra.mxu0 0
      %7291 = vmatprep.subr.bf16.mxu0 0
      %7292 = vmatpush1.bf16.msra.mxu0 0
      %7293 = vmatprep.subr.bf16.mxu0 0
      %7294 = vmatpush1.bf16.msra.mxu0 0
      %7295 = vmatprep.subr.bf16.mxu0 0
      %7296 = vmatpush1.bf16.msra.mxu0 0
      %7297 = vmatprep.subr.bf16.mxu0 0
      %7298 = vmatpush1.bf16.msra.mxu0 0
      %7299 = vmatprep.subr.bf16.mxu0 0
      %7300 = vmatpush1.bf16.msra.mxu0 0
      %7301 = vmatprep.subr.bf16.mxu0 0
      %7302 = vmatpush1.bf16.msra.mxu0 0
      %7303 = vmatprep.subr.bf16.mxu0 0
      %7304 = vmatpush1.bf16.msra.mxu0 0
      %7305 = vmatprep.subr.bf16.mxu0 0
      %7306 = vmatpush1.bf16.msra.mxu0 0
      %7307 = vmatprep.subr.bf16.mxu0 0
      %7308 = vmatpush1.bf16.msra.mxu0 0
      %7309 = vmatprep.subr.bf16.mxu0 0
      %7310 = vmatpush1.bf16.msra.mxu0 0
      %7311 = vmatprep.subr.bf16.mxu0 0
      %7312 = vmatpush1.bf16.msra.mxu0 0
      %7313 = vmatprep.mubr.bf16.mxu0 0
      %7314 = vmatmul.mubr.bf16.gmra.mrb[0].mxu0 %v7135
      %v7315 = vpop.f32.mrb[0].mxu0
      %v7316 = vadd.f32 0.0, %v7315
      %v7317 = vpop.f32.mrb[0].mxu0
      %v7318 = vpop.f32.mrb[0].mxu0
      %v7319 = vpop.f32.mrb[0].mxu0
      %7320 = vdwg.mxu0
      %v7321 = vadd.f32 %v7091, %v7193
      %v7322 = vadd.f32 %v7092, %v7195
      %v7323 = vadd.f32 %v7093, %v7234
      %v7324 = vadd.f32 %v7094, %v7236
      %v7325 = vadd.f32 %v7095, %v7275
      %v7326 = vadd.f32 %v7096, %v7277
      %v7327 = vadd.f32 %v7097, %v7316
      %7329 = vset.pattern.permute.xlu0 0
      %7330 = vperm.xlu0 %7329, %v5292
      %v7331 = vpop.permute.xlu0 %7330
      %v7333 = vlaneseq
      %v7334 = vshrl.u32 %v7333, 7
      %v7335 = vsub.s32 0, %v7334
      %v7336 = vrot.slane %v7331, %v7335
      %v7337 = vadd.f32 %v7321, %v7336
      %v7338 = vadd.f32 %v7322, %v7336
      %v7339 = vadd.f32 %v7323, %v7336
      %v7340 = vadd.f32 %v7324, %v7336
      %v7341 = vadd.f32 %v7325, %v7336
      %v7342 = vadd.f32 %v7326, %v7336
      %v7343 = vadd.f32 %v7327, %v7336
      %v7344 = vsub.f32 0.0, %v7337
      %v7345 = vsub.f32 0.0, %v7338
      %v7346 = vsub.f32 0.0, %v7339
      %v7347 = vsub.f32 0.0, %v7340
      %v7348 = vsub.f32 0.0, %v7341
      %v7349 = vsub.f32 0.0, %v7342
      %v7350 = vsub.f32 0.0, %v7343
      %v7351 = vmul.f32 %v7344, 1.442695
      %v7352 = vpow.pop %v7351
      %v7353 = vmul.f32 %v7345, 1.442695
      %v7354 = vpow.pop %v7353
      %v7355 = vmul.f32 %v7346, 1.442695
      %v7356 = vpow.pop %v7355
      %v7357 = vmul.f32 %v7347, 1.442695
      %v7358 = vpow.pop %v7357
      %v7359 = vmul.f32 %v7348, 1.442695
      %v7360 = vpow.pop %v7359
      %v7361 = vmul.f32 %v7349, 1.442695
      %v7362 = vpow.pop %v7361
      %v7363 = vmul.f32 %v7350, 1.442695
      %v7364 = vpow.pop %v7363
      %v7365 = vadd.f32 %v7352, 1.0
      %v7366 = vadd.f32 %v7354, 1.0
      %v7367 = vadd.f32 %v7356, 1.0
      %v7368 = vadd.f32 %v7358, 1.0
      %v7369 = vadd.f32 %v7360, 1.0
      %v7370 = vadd.f32 %v7362, 1.0
      %v7371 = vadd.f32 %v7364, 1.0
      %v7372 = vrcp.pop %v7365
      %v7373 = vmul.f32 1.0, %v7372
      %v7374 = vrcp.pop %v7366
      %v7375 = vmul.f32 1.0, %v7374
      %v7376 = vrcp.pop %v7367
      %v7377 = vmul.f32 1.0, %v7376
      %v7378 = vrcp.pop %v7368
      %v7379 = vmul.f32 1.0, %v7378
      %v7380 = vrcp.pop %v7369
      %v7381 = vmul.f32 1.0, %v7380
      %v7382 = vrcp.pop %v7370
      %v7383 = vmul.f32 1.0, %v7382
      %v7384 = vrcp.pop %v7371
      %v7385 = vmul.f32 1.0, %v7384
      %v7393 = vcombine.low %v7373, %v7375
      %v7394 = vcombine.low %v7377, %v7379
      %v7395 = vcombine.low %v7381, %v7383
      %v7397 = vunpack.c.l.s4 1966171168
      %v7398 = vunpack.c.0.s8 %v7397
      %v7399 = vlaneseq
      %v7400 = vshrl.u32 %v7399, 7
      %v7401 = vsub.s32 %v7398, %v7400
      %v7402 = vrot.slane %v7393, %v7401
      %v7404 = vunpack.c.l.s4 1966171168
      %v7405 = vunpack.c.0.s8 %v7404
      %v7406 = vlaneseq
      %v7407 = vshrl.u32 %v7406, 7
      %v7408 = vsub.s32 %v7405, %v7407
      %v7409 = vrot.slane %v7394, %v7408
      %v7411 = vunpack.c.l.s4 1966171168
      %v7412 = vunpack.c.0.s8 %v7411
      %v7413 = vlaneseq
      %v7414 = vshrl.u32 %v7413, 7
      %v7415 = vsub.s32 %v7412, %v7414
      %v7416 = vrot.slane %v7395, %v7415
      %v7418 = vunpack.c.l.s4 1966171168
      %v7419 = vunpack.c.0.s8 %v7418
      %v7420 = vlaneseq
      %v7421 = vshrl.u32 %v7420, 7
      %v7422 = vsub.s32 %v7419, %v7421
      %v7423 = vrot.slane %v7385, %v7422
      %v7424 = vcombine.low %v7402, %v7409
      %v7425 = vcombine.low %v7416, %v7423
      %v7427 = vunpack.c.l.s4 1966171168
      %v7428 = vunpack.c.0.s8 %v7427
      %v7429 = vlaneseq
      %v7430 = vshrl.u32 %v7429, 7
      %v7431 = vsub.s32 %v7428, %v7430
      %v7432 = vrot.slane %v7424, %v7431
      %v7434 = vunpack.c.l.s4 1966171168
      %v7435 = vunpack.c.0.s8 %v7434
      %v7436 = vlaneseq
      %v7437 = vshrl.u32 %v7436, 7
      %v7438 = vsub.s32 %v7435, %v7437
      %v7439 = vrot.slane %v7425, %v7438
      %v7440 = vcombine.low %v7432, %v7439
      %v7442 = vlaneseq
      %vm7443 = vcmp.ge.s32.totalorder %v7442, 0
      %vm7444 = vcmp.lt.s32.totalorder %v7442, 784
      %vm7445 = vmand %vm7443, %vm7444
      %7446 = vst.msk [vmem:[%s437] sm:$0x7f] %vm7445, %v7440
      %p7447 = scmp.lt.s32.totalorder %s26, 1
      %s7448 = scalar_select %p7447, %s26, 1
      %s7449 = smul.addr %s7448, 7
      %s7450 = scalar_lea.vmem %s13, %s7449
      // Predicated region
      $region73: #{gnet_forward.1} parent=71 // pred_check
        %p7451 = pneg %p322
      $region74: #{gnet_forward.1} parent=71 // pred_check_branch
        %7453 = sbr.rel (%p7451) target = $region76
      $region75: #{gnet_forward.1} parent=71 // pred_region
        _
      $region76: #{gnet_forward.1} parent=71 // pred_fallthru
        _
    $region72: #{gnet_forward.1} parent=5 // pred_fallthru
      _
    %p7454 = scmp.le.s32.totalorder 2, %s21
    // Predicated region
    $region77: #{gnet_forward.1} parent=5 // pred_check
      %p7455 = pneg %p7454
    $region78: #{gnet_forward.1} parent=5 // pred_check_branch
      %7457 = sbr.rel (%p7455) target = $region80
    $region79: #{gnet_forward.1} parent=5 // pred_region
      %s7458 = ssub.s32 %s21, 2
      // Predicated region
      $region81: #{gnet_forward.1} parent=79 // pred_check
        %p7459 = pneg %p328
      $region82: #{gnet_forward.1} parent=79 // pred_check_branch
        %7461 = sbr.rel (%p7459) target = $region84
      $region83: #{gnet_forward.1} parent=79 // pred_region
        %p7462 = scmp.lt.s32.totalorder %s27, 1
        %s7463 = scalar_select %p7462, %s27, 1
        %s7464 = smul.addr %s7463, 7
        %s7465 = scalar_lea.vmem %s13, %s7464
      $region84: #{gnet_forward.1} parent=79 // pred_fallthru
        _
    $region80: #{gnet_forward.1} parent=5 // pred_fallthru
      _
  $region6: #{gnet_forward.1} parent=0 // loop_footer
    %s25 = sadd.s32 1, %s21
  $region7: #{gnet_forward.1} parent=0 // loop_footer_branch
    %20 = sbr.rel target = $region3
  $region8: #{gnet_forward.1} parent=0 // loop_exit
    _

</llo_original>
